<compile_context>
chip_gen: v6e
topology: v6e:2x2x1
jax: 0.10.0
libtpu: 0.0.40
codegen_flags: <defaults>
</compile_context>

<pallas_src>
import math

import jax
import jax.numpy as jnp
from jax.experimental import pallas as pl
from jax.experimental.pallas import tpu as pltpu


# (kernel_size, in_channels, out_channels) for the 11 conv layers.
CONV_DEFS = [
    (7, 14, 32),     # Conv1d(14, 32, 7)
    (5, 32, 64),     # Conv1d(32, 64, 5)
    (5, 64, 128),    # Conv1d(64, 128, 5)
    (10, 128, 128),  # Conv1d(128, 128, 10)
    # inception block — written as nn.Sequential with non-chaining channels.
    # TODO(synk): in_channels of taps 2/3 fixed (128->85, 128->85) so the chain runs.
    (1, 128, 85),
    (3, 85, 85),
    (5, 85, 86),
    # TODO(synk): in_channels fixed 128 -> 86 to follow the inception output.
    (3, 86, 256),
    (3, 256, 128),
    (3, 128, 64),
    (3, 64, 32),
]

SEQ_LEN = 250      # the module's view() hard-codes 250 samples
IN_CH = 13         # 13 sensor channels (+1 coeff-of-variation channel)
POOL_OUT_L = 45    # length after the conv stack + final MaxPool1d(2)
POOL_OUT_C = 32
FLAT = POOL_OUT_L * POOL_OUT_C   # 1440
# TODO(synk): nn.Linear(298*32, 200) in_features does not match the conv output
# for a 250-sample input; adjusted to the actual flatten size 45*32 = 1440.
FC_DEFS = [(FLAT, 200), (200, 200), (200, 400)]   # + (400, num_subjects)


# ---------------------------------------------------------------------------
# fused conv-stack kernel (CV + concat + 11 convs + 2 maxpools)
# ---------------------------------------------------------------------------
def _conv_relu(h, w_ref, b_ref, K):
    """Valid Conv1d (stride 1) + bias + ReLU as a single im2col MXU matmul."""
    Lout = h.shape[0] - K + 1
    if K == 1:
        cols = h
    else:
        # im2col: (Lout, K*Cin) — K shifted views concatenated along lanes,
        # raising the MXU contraction dim from Cin to K*Cin (one big matmul
        # per layer instead of K small ones).
        cols = jnp.concatenate([h[k:k + Lout, :] for k in range(K)], axis=-1)
    acc = jnp.dot(cols, w_ref[...], preferred_element_type=jnp.float32)
    acc = acc + b_ref[...]                       # (1, Cout) f32 broadcast
    return jnp.maximum(acc, 0.0)                 # f32


def _maxpool2(h):
    """MaxPool1d(kernel=2, stride=2) via even/odd 0/1 selection matmuls.

    pooled[i] = max(h[2i], h[2i+1]); the selection matrices are exact 0/1 so
    the MXU result equals the picked rows. This avoids sublane-strided slices
    and sublane->lane reshapes inside the kernel.
    """
    L = h.shape[0]
    L2 = L // 2                                  # floor, matching nn.MaxPool1d(2)
    row = jax.lax.broadcasted_iota(jnp.int32, (L2, L), 0)
    col = jax.lax.broadcasted_iota(jnp.int32, (L2, L), 1)
    s_even = (col == 2 * row).astype(jnp.float32).astype(h.dtype)
    s_odd = (col == 2 * row + 1).astype(jnp.float32).astype(h.dtype)
    ev = jnp.dot(s_even, h, preferred_element_type=jnp.float32)
    od = jnp.dot(s_odd, h, preferred_element_type=jnp.float32)
    return jnp.maximum(ev, od)                   # f32


def _fused_conv_stack_kernel(*refs):
    # refs = (x_ref, w0, b0, w1, b1, ..., w10, b10, o_ref)
    x_ref, o_ref = refs[0], refs[-1]
    wb = refs[1:-1]

    # ---- coefficient of variation over the 13 channels (torch.std: unbiased) ----
    x = x_ref[0].astype(jnp.float32)                            # (250, 13)
    c = x.shape[-1]
    mean = jnp.sum(x, axis=-1, keepdims=True) * (1.0 / c)
    diff = x - mean
    var = jnp.sum(diff * diff, axis=-1, keepdims=True) * (1.0 / (c - 1))
    # std / mean; approx EUP reciprocal — error well below bf16 resolution of
    # the activations that follow.
    cv = jnp.sqrt(var) * pl.reciprocal(mean, approx=True)
    # TODO(synk): torch uses torch.cat(dim=1) (shape-invalid) + a 4D view fed to
    # Conv1d; interpreted as appending CV as a 14th channel of a length-250 signal.
    h = jnp.concatenate([x, cv], axis=-1).astype(jnp.bfloat16)  # (250, 14)

    # conv0 + ReLU + MaxPool1d(2)
    h = _conv_relu(h, wb[0], wb[1], CONV_DEFS[0][0]).astype(jnp.bfloat16)  # (244, 32)
    h = _maxpool2(h).astype(jnp.bfloat16)                                  # (122, 32)
    # convs 1..10 (+ ReLU each): lengths 118, 114, 105, 105, 103, 99, 97, 95, 93, 91
    for li in range(1, len(CONV_DEFS)):
        h = _conv_relu(h, wb[2 * li], wb[2 * li + 1],
                       CONV_DEFS[li][0]).astype(jnp.bfloat16)
    # final MaxPool1d(2): (91, 32) -> (45, 32)
    h = _maxpool2(h)
    o_ref[0] = h.astype(o_ref.dtype)


def conv_stack(params, x):
    B = x.shape[0]
    flat = []
    for (w, b) in params["convs"]:
        flat.extend((w, b))
    in_specs = [pl.BlockSpec((1, SEQ_LEN, IN_CH), lambda b: (b, 0, 0))]
    # weights/biases are 2-D and fully VMEM-resident; the constant block index
    # means Pallas only DMAs them once across the whole grid.
    in_specs += [pl.BlockSpec(a.shape, lambda b: (0, 0)) for a in flat]
    return pl.pallas_call(
        _fused_conv_stack_kernel,
        out_shape=jax.ShapeDtypeStruct((B, POOL_OUT_L, POOL_OUT_C), jnp.bfloat16),
        grid=(B,),
        in_specs=in_specs,
        out_specs=pl.BlockSpec((1, POOL_OUT_L, POOL_OUT_C), lambda b: (b, 0, 0)),
        compiler_params=pltpu.CompilerParams(
            dimension_semantics=("parallel",)),   # shards batch across 2 TCs on v7x
    )(x, *flat)


# ---------------------------------------------------------------------------
# fused FC-stack kernel (4 Linear layers, ReLU between)
# ---------------------------------------------------------------------------
def _fused_fc_kernel(x_ref, w0, b0, w1, b1, w2, b2, w3, b3, o_ref):
    def lin(h, w_ref, b_ref, relu):
        y = jnp.dot(h, w_ref[...], preferred_element_type=jnp.float32) + b_ref[...]
        return jnp.maximum(y, 0.0) if relu else y

    h = x_ref[...]                                   # (B, 1440) bf16
    h = lin(h, w0, b0, True).astype(jnp.bfloat16)
    h = lin(h, w1, b1, True).astype(jnp.bfloat16)
    h = lin(h, w2, b2, True).astype(jnp.bfloat16)
    o_ref[...] = lin(h, w3, b3, False).astype(o_ref.dtype)   # logits, f32


def fc_stack(params, h):
    B = h.shape[0]
    flat = []
    for (w, b) in params["fcs"]:
        flat.extend((w, b))
    num_out = params["fcs"][-1][0].shape[1]
    return pl.pallas_call(
        _fused_fc_kernel,
        out_shape=jax.ShapeDtypeStruct((B, num_out), jnp.float32),
    )(h, *flat)


# ---------------------------------------------------------------------------
# params + forward
# ---------------------------------------------------------------------------
def _uniform(key, shape, bound):
    return jax.random.uniform(key, shape, jnp.float32, -bound, bound)


def init_params(key, num_subjects):
    convs = []
    for (k, cin, cout) in CONV_DEFS:
        key, kw, kb = jax.random.split(key, 3)
        bound = 1.0 / math.sqrt(cin * k)
        w = _uniform(kw, (k, cin, cout), bound)
        b = _uniform(kb, (1, cout), bound)
        # pre-reshape for im2col (tap-major, then channel) and cast to bf16
        convs.append((w.reshape(k * cin, cout).astype(jnp.bfloat16), b))

    fcs = []
    for (fin, fout) in FC_DEFS + [(400, num_subjects)]:
        key, kw, kb = jax.random.split(key, 3)
        bound = 1.0 / math.sqrt(fin)
        fcs.append((_uniform(kw, (fin, fout), bound).astype(jnp.bfloat16),
                    _uniform(kb, (1, fout), bound)))
    return {"convs": convs, "fcs": fcs}


def forward(params, x):
    # x: (B, 250, 13) — 250 time samples, 13 sensor channels (NLC).
    B = x.shape[0]
    h = conv_stack(params, x)            # (B, 45, 32) — single fused kernel
    # TODO(synk): flatten in NLC order (PyTorch flattens NCL); valid only
    # because the FC weights are synthetic. The reshape is a contiguous
    # bitcast in XLA (free) — no extra HBM traffic between the two kernels.
    h = h.reshape(B, FLAT)               # (B, 1440)
    return fc_stack(params, h)           # (B, num_subjects) f32 logits


if __name__ == "__main__":
    key = jax.random.PRNGKey(0)
    kparam, kx = jax.random.split(key)
    num_subjects = 10
    params = init_params(kparam, num_subjects)
    # Small batch; the module's view() hard-codes 250 samples x (13+1) channels.
    x = jax.random.uniform(kx, (2, SEQ_LEN, IN_CH), jnp.float32,
                           minval=0.5, maxval=1.5)
    out = jax.block_until_ready(jax.jit(forward)(params, x))
    assert out.shape == (2, num_subjects) and out.dtype == jnp.float32
    print("KERNEL_OK")
</pallas_src>

<mosaic_0001>
module attributes {stable_mosaic.version = 11 : i64} {
  func.func @_fused_conv_stack_kernel(%arg0: i32, %arg1: memref<1x250x13xf32, #tpu.memory_space<vmem>>, %arg2: memref<98x32xbf16, #tpu.memory_space<vmem>>, %arg3: memref<1x32xf32, #tpu.memory_space<vmem>>, %arg4: memref<160x64xbf16, #tpu.memory_space<vmem>>, %arg5: memref<1x64xf32, #tpu.memory_space<vmem>>, %arg6: memref<320x128xbf16, #tpu.memory_space<vmem>>, %arg7: memref<1x128xf32, #tpu.memory_space<vmem>>, %arg8: memref<1280x128xbf16, #tpu.memory_space<vmem>>, %arg9: memref<1x128xf32, #tpu.memory_space<vmem>>, %arg10: memref<128x85xbf16, #tpu.memory_space<vmem>>, %arg11: memref<1x85xf32, #tpu.memory_space<vmem>>, %arg12: memref<255x85xbf16, #tpu.memory_space<vmem>>, %arg13: memref<1x85xf32, #tpu.memory_space<vmem>>, %arg14: memref<425x86xbf16, #tpu.memory_space<vmem>>, %arg15: memref<1x86xf32, #tpu.memory_space<vmem>>, %arg16: memref<258x256xbf16, #tpu.memory_space<vmem>>, %arg17: memref<1x256xf32, #tpu.memory_space<vmem>>, %arg18: memref<768x128xbf16, #tpu.memory_space<vmem>>, %arg19: memref<1x128xf32, #tpu.memory_space<vmem>>, %arg20: memref<384x64xbf16, #tpu.memory_space<vmem>>, %arg21: memref<1x64xf32, #tpu.memory_space<vmem>>, %arg22: memref<192x32xbf16, #tpu.memory_space<vmem>>, %arg23: memref<1x32xf32, #tpu.memory_space<vmem>>, %arg24: memref<1x45x32xbf16, #tpu.memory_space<vmem>>) attributes {dimension_semantics = [#tpu.dimension_semantics<parallel>], iteration_bounds = array<i64: 2>, scalar_prefetch = 0 : i64, scratch_operands = 0 : i64, tpu.core_type = #tpu.core_type<tc>, window_params = [{transform_indices = @transform_0, window_bounds = array<i64: 1, 250, 13>}, {pipeline_mode = #tpu.pipeline_mode<synchronous>, transform_indices = @transform_1, window_bounds = array<i64: 98, 32>}, {pipeline_mode = #tpu.pipeline_mode<synchronous>, transform_indices = @transform_2, window_bounds = array<i64: 1, 32>}, {pipeline_mode = #tpu.pipeline_mode<synchronous>, transform_indices = @transform_3, window_bounds = array<i64: 160, 64>}, {pipeline_mode = #tpu.pipeline_mode<synchronous>, transform_indices = @transform_4, window_bounds = array<i64: 1, 64>}, {pipeline_mode = #tpu.pipeline_mode<synchronous>, transform_indices = @transform_5, window_bounds = array<i64: 320, 128>}, {pipeline_mode = #tpu.pipeline_mode<synchronous>, transform_indices = @transform_6, window_bounds = array<i64: 1, 128>}, {pipeline_mode = #tpu.pipeline_mode<synchronous>, transform_indices = @transform_7, window_bounds = array<i64: 1280, 128>}, {pipeline_mode = #tpu.pipeline_mode<synchronous>, transform_indices = @transform_8, window_bounds = array<i64: 1, 128>}, {pipeline_mode = #tpu.pipeline_mode<synchronous>, transform_indices = @transform_9, window_bounds = array<i64: 128, 85>}, {pipeline_mode = #tpu.pipeline_mode<synchronous>, transform_indices = @transform_10, window_bounds = array<i64: 1, 85>}, {pipeline_mode = #tpu.pipeline_mode<synchronous>, transform_indices = @transform_11, window_bounds = array<i64: 255, 85>}, {pipeline_mode = #tpu.pipeline_mode<synchronous>, transform_indices = @transform_12, window_bounds = array<i64: 1, 85>}, {pipeline_mode = #tpu.pipeline_mode<synchronous>, transform_indices = @transform_13, window_bounds = array<i64: 425, 86>}, {pipeline_mode = #tpu.pipeline_mode<synchronous>, transform_indices = @transform_14, window_bounds = array<i64: 1, 86>}, {pipeline_mode = #tpu.pipeline_mode<synchronous>, transform_indices = @transform_15, window_bounds = array<i64: 258, 256>}, {pipeline_mode = #tpu.pipeline_mode<synchronous>, transform_indices = @transform_16, window_bounds = array<i64: 1, 256>}, {pipeline_mode = #tpu.pipeline_mode<synchronous>, transform_indices = @transform_17, window_bounds = array<i64: 768, 128>}, {pipeline_mode = #tpu.pipeline_mode<synchronous>, transform_indices = @transform_18, window_bounds = array<i64: 1, 128>}, {pipeline_mode = #tpu.pipeline_mode<synchronous>, transform_indices = @transform_19, window_bounds = array<i64: 384, 64>}, {pipeline_mode = #tpu.pipeline_mode<synchronous>, transform_indices = @transform_20, window_bounds = array<i64: 1, 64>}, {pipeline_mode = #tpu.pipeline_mode<synchronous>, transform_indices = @transform_21, window_bounds = array<i64: 192, 32>}, {pipeline_mode = #tpu.pipeline_mode<synchronous>, transform_indices = @transform_22, window_bounds = array<i64: 1, 32>}, {transform_indices = @transform_23, window_bounds = array<i64: 1, 45, 32>}]} {
    %c0 = arith.constant 0 : index
    %c0_0 = arith.constant 0 : index
    %c0_1 = arith.constant 0 : index
    %0 = vector.load %arg1[%c0, %c0_0, %c0_1] : memref<1x250x13xf32, #tpu.memory_space<vmem>>, vector<1x250x13xf32>
    %1 = vector.shape_cast %0 : vector<1x250x13xf32> to vector<250x13xf32>
    %cst = arith.constant dense<0.000000e+00> : vector<250xf32>
    %2 = vector.multi_reduction <add>, %1, %cst [1] : vector<250x13xf32> to vector<250xf32>
    %3 = vector.shape_cast %2 : vector<250xf32> to vector<250x1xf32>
    %cst_2 = arith.constant 0.0769230798 : f32
    %4 = vector.broadcast %cst_2 : f32 to vector<250x1xf32>
    %5 = arith.mulf %3, %4 : vector<250x1xf32>
    %6 = vector.broadcast %5 : vector<250x1xf32> to vector<250x13xf32>
    %7 = arith.subf %1, %6 : vector<250x13xf32>
    %8 = arith.mulf %7, %7 : vector<250x13xf32>
    %cst_3 = arith.constant dense<0.000000e+00> : vector<250xf32>
    %9 = vector.multi_reduction <add>, %8, %cst_3 [1] : vector<250x13xf32> to vector<250xf32>
    %10 = vector.shape_cast %9 : vector<250xf32> to vector<250x1xf32>
    %cst_4 = arith.constant 0.0833333358 : f32
    %11 = vector.broadcast %cst_4 : f32 to vector<250x1xf32>
    %12 = arith.mulf %10, %11 : vector<250x1xf32>
    %13 = math.sqrt %12 : vector<250x1xf32>
    %14 = tpu.reciprocal %5 {approx = true} : vector<250x1xf32> -> vector<250x1xf32>
    %15 = arith.mulf %13, %14 : vector<250x1xf32>
    %16 = tpu.concatenate %1, %15 in 1 : vector<250x13xf32>, vector<250x1xf32> -> vector<250x14xf32>
    %17 = arith.truncf %16 : vector<250x14xf32> to vector<250x14xbf16>
    %18 = vector.extract_strided_slice %17 {offsets = [0, 0], sizes = [244, 14], strides = [1, 1]} : vector<250x14xbf16> to vector<244x14xbf16>
    %19 = vector.extract_strided_slice %17 {offsets = [1, 0], sizes = [244, 14], strides = [1, 1]} : vector<250x14xbf16> to vector<244x14xbf16>
    %20 = vector.extract_strided_slice %17 {offsets = [2, 0], sizes = [244, 14], strides = [1, 1]} : vector<250x14xbf16> to vector<244x14xbf16>
    %21 = vector.extract_strided_slice %17 {offsets = [3, 0], sizes = [244, 14], strides = [1, 1]} : vector<250x14xbf16> to vector<244x14xbf16>
    %22 = vector.extract_strided_slice %17 {offsets = [4, 0], sizes = [244, 14], strides = [1, 1]} : vector<250x14xbf16> to vector<244x14xbf16>
    %23 = vector.extract_strided_slice %17 {offsets = [5, 0], sizes = [244, 14], strides = [1, 1]} : vector<250x14xbf16> to vector<244x14xbf16>
    %24 = vector.extract_strided_slice %17 {offsets = [6, 0], sizes = [244, 14], strides = [1, 1]} : vector<250x14xbf16> to vector<244x14xbf16>
    %25 = tpu.concatenate %18, %19, %20, %21, %22, %23, %24 in 1 : vector<244x14xbf16>, vector<244x14xbf16>, vector<244x14xbf16>, vector<244x14xbf16>, vector<244x14xbf16>, vector<244x14xbf16>, vector<244x14xbf16> -> vector<244x98xbf16>
    %c0_5 = arith.constant 0 : index
    %c0_6 = arith.constant 0 : index
    %26 = vector.load %arg2[%c0_5, %c0_6] : memref<98x32xbf16, #tpu.memory_space<vmem>>, vector<98x32xbf16>
    %cst_7 = arith.constant dense<0.000000e+00> : vector<244x32xf32>
    %27 = tpu.matmul %25, %26, %cst_7 {dimension_numbers = #tpu.dot_dimension_numbers<[1], [0], [0], [1], [0, 0, 1, 1], [], []>} : vector<244x98xbf16>, vector<98x32xbf16>, vector<244x32xf32> -> vector<244x32xf32>
    %c0_8 = arith.constant 0 : index
    %c0_9 = arith.constant 0 : index
    %28 = vector.load %arg3[%c0_8, %c0_9] : memref<1x32xf32, #tpu.memory_space<vmem>>, vector<1x32xf32>
    %29 = vector.broadcast %28 : vector<1x32xf32> to vector<244x32xf32>
    %30 = arith.addf %27, %29 : vector<244x32xf32>
    %cst_10 = arith.constant 0.000000e+00 : f32
    %31 = vector.broadcast %cst_10 : f32 to vector<244x32xf32>
    %32 = arith.maximumf %30, %31 : vector<244x32xf32>
    %33 = arith.truncf %32 : vector<244x32xf32> to vector<244x32xbf16>
    %34 = tpu.iota {dimensions = array<i32: 0>} : vector<122x244xi32>
    %35 = tpu.iota {dimensions = array<i32: 1>} : vector<122x244xi32>
    %c2_i32 = arith.constant 2 : i32
    %36 = vector.broadcast %c2_i32 : i32 to vector<122x244xi32>
    %37 = arith.muli %36, %34 : vector<122x244xi32>
    %38 = arith.cmpi eq, %35, %37 : vector<122x244xi32>
    %39 = arith.extui %38 : vector<122x244xi1> to vector<122x244xi32>
    %40 = arith.sitofp %39 : vector<122x244xi32> to vector<122x244xf32>
    %41 = arith.truncf %40 : vector<122x244xf32> to vector<122x244xbf16>
    %c2_i32_11 = arith.constant 2 : i32
    %42 = vector.broadcast %c2_i32_11 : i32 to vector<122x244xi32>
    %43 = arith.muli %42, %34 : vector<122x244xi32>
    %c1_i32 = arith.constant 1 : i32
    %44 = vector.broadcast %c1_i32 : i32 to vector<122x244xi32>
    %45 = arith.addi %43, %44 : vector<122x244xi32>
    %46 = arith.cmpi eq, %35, %45 : vector<122x244xi32>
    %47 = arith.extui %46 : vector<122x244xi1> to vector<122x244xi32>
    %48 = arith.sitofp %47 : vector<122x244xi32> to vector<122x244xf32>
    %49 = arith.truncf %48 : vector<122x244xf32> to vector<122x244xbf16>
    %cst_12 = arith.constant dense<0.000000e+00> : vector<122x32xf32>
    %50 = tpu.matmul %41, %33, %cst_12 {dimension_numbers = #tpu.dot_dimension_numbers<[1], [0], [0], [1], [0, 0, 1, 1], [], []>} : vector<122x244xbf16>, vector<244x32xbf16>, vector<122x32xf32> -> vector<122x32xf32>
    %cst_13 = arith.constant dense<0.000000e+00> : vector<122x32xf32>
    %51 = tpu.matmul %49, %33, %cst_13 {dimension_numbers = #tpu.dot_dimension_numbers<[1], [0], [0], [1], [0, 0, 1, 1], [], []>} : vector<122x244xbf16>, vector<244x32xbf16>, vector<122x32xf32> -> vector<122x32xf32>
    %52 = arith.maximumf %50, %51 : vector<122x32xf32>
    %53 = arith.truncf %52 : vector<122x32xf32> to vector<122x32xbf16>
    %54 = vector.extract_strided_slice %53 {offsets = [0, 0], sizes = [118, 32], strides = [1, 1]} : vector<122x32xbf16> to vector<118x32xbf16>
    %55 = vector.extract_strided_slice %53 {offsets = [1, 0], sizes = [118, 32], strides = [1, 1]} : vector<122x32xbf16> to vector<118x32xbf16>
    %56 = vector.extract_strided_slice %53 {offsets = [2, 0], sizes = [118, 32], strides = [1, 1]} : vector<122x32xbf16> to vector<118x32xbf16>
    %57 = vector.extract_strided_slice %53 {offsets = [3, 0], sizes = [118, 32], strides = [1, 1]} : vector<122x32xbf16> to vector<118x32xbf16>
    %58 = vector.extract_strided_slice %53 {offsets = [4, 0], sizes = [118, 32], strides = [1, 1]} : vector<122x32xbf16> to vector<118x32xbf16>
    %59 = tpu.concatenate %54, %55, %56, %57, %58 in 1 : vector<118x32xbf16>, vector<118x32xbf16>, vector<118x32xbf16>, vector<118x32xbf16>, vector<118x32xbf16> -> vector<118x160xbf16>
    %c0_14 = arith.constant 0 : index
    %c0_15 = arith.constant 0 : index
    %60 = vector.load %arg4[%c0_14, %c0_15] : memref<160x64xbf16, #tpu.memory_space<vmem>>, vector<160x64xbf16>
    %cst_16 = arith.constant dense<0.000000e+00> : vector<118x64xf32>
    %61 = tpu.matmul %59, %60, %cst_16 {dimension_numbers = #tpu.dot_dimension_numbers<[1], [0], [0], [1], [0, 0, 1, 1], [], []>} : vector<118x160xbf16>, vector<160x64xbf16>, vector<118x64xf32> -> vector<118x64xf32>
    %c0_17 = arith.constant 0 : index
    %c0_18 = arith.constant 0 : index
    %62 = vector.load %arg5[%c0_17, %c0_18] : memref<1x64xf32, #tpu.memory_space<vmem>>, vector<1x64xf32>
    %63 = vector.broadcast %62 : vector<1x64xf32> to vector<118x64xf32>
    %64 = arith.addf %61, %63 : vector<118x64xf32>
    %cst_19 = arith.constant 0.000000e+00 : f32
    %65 = vector.broadcast %cst_19 : f32 to vector<118x64xf32>
    %66 = arith.maximumf %64, %65 : vector<118x64xf32>
    %67 = arith.truncf %66 : vector<118x64xf32> to vector<118x64xbf16>
    %68 = vector.extract_strided_slice %67 {offsets = [0, 0], sizes = [114, 64], strides = [1, 1]} : vector<118x64xbf16> to vector<114x64xbf16>
    %69 = vector.extract_strided_slice %67 {offsets = [1, 0], sizes = [114, 64], strides = [1, 1]} : vector<118x64xbf16> to vector<114x64xbf16>
    %70 = vector.extract_strided_slice %67 {offsets = [2, 0], sizes = [114, 64], strides = [1, 1]} : vector<118x64xbf16> to vector<114x64xbf16>
    %71 = vector.extract_strided_slice %67 {offsets = [3, 0], sizes = [114, 64], strides = [1, 1]} : vector<118x64xbf16> to vector<114x64xbf16>
    %72 = vector.extract_strided_slice %67 {offsets = [4, 0], sizes = [114, 64], strides = [1, 1]} : vector<118x64xbf16> to vector<114x64xbf16>
    %73 = tpu.concatenate %68, %69, %70, %71, %72 in 1 : vector<114x64xbf16>, vector<114x64xbf16>, vector<114x64xbf16>, vector<114x64xbf16>, vector<114x64xbf16> -> vector<114x320xbf16>
    %c0_20 = arith.constant 0 : index
    %c0_21 = arith.constant 0 : index
    %74 = vector.load %arg6[%c0_20, %c0_21] : memref<320x128xbf16, #tpu.memory_space<vmem>>, vector<320x128xbf16>
    %cst_22 = arith.constant dense<0.000000e+00> : vector<114x128xf32>
    %75 = tpu.matmul %73, %74, %cst_22 {dimension_numbers = #tpu.dot_dimension_numbers<[1], [0], [0], [1], [0, 0, 1, 1], [], []>} : vector<114x320xbf16>, vector<320x128xbf16>, vector<114x128xf32> -> vector<114x128xf32>
    %c0_23 = arith.constant 0 : index
    %c0_24 = arith.constant 0 : index
    %76 = vector.load %arg7[%c0_23, %c0_24] : memref<1x128xf32, #tpu.memory_space<vmem>>, vector<1x128xf32>
    %77 = vector.broadcast %76 : vector<1x128xf32> to vector<114x128xf32>
    %78 = arith.addf %75, %77 : vector<114x128xf32>
    %cst_25 = arith.constant 0.000000e+00 : f32
    %79 = vector.broadcast %cst_25 : f32 to vector<114x128xf32>
    %80 = arith.maximumf %78, %79 : vector<114x128xf32>
    %81 = arith.truncf %80 : vector<114x128xf32> to vector<114x128xbf16>
    %82 = vector.extract_strided_slice %81 {offsets = [0, 0], sizes = [105, 128], strides = [1, 1]} : vector<114x128xbf16> to vector<105x128xbf16>
    %83 = vector.extract_strided_slice %81 {offsets = [1, 0], sizes = [105, 128], strides = [1, 1]} : vector<114x128xbf16> to vector<105x128xbf16>
    %84 = vector.extract_strided_slice %81 {offsets = [2, 0], sizes = [105, 128], strides = [1, 1]} : vector<114x128xbf16> to vector<105x128xbf16>
    %85 = vector.extract_strided_slice %81 {offsets = [3, 0], sizes = [105, 128], strides = [1, 1]} : vector<114x128xbf16> to vector<105x128xbf16>
    %86 = vector.extract_strided_slice %81 {offsets = [4, 0], sizes = [105, 128], strides = [1, 1]} : vector<114x128xbf16> to vector<105x128xbf16>
    %87 = vector.extract_strided_slice %81 {offsets = [5, 0], sizes = [105, 128], strides = [1, 1]} : vector<114x128xbf16> to vector<105x128xbf16>
    %88 = vector.extract_strided_slice %81 {offsets = [6, 0], sizes = [105, 128], strides = [1, 1]} : vector<114x128xbf16> to vector<105x128xbf16>
    %89 = vector.extract_strided_slice %81 {offsets = [7, 0], sizes = [105, 128], strides = [1, 1]} : vector<114x128xbf16> to vector<105x128xbf16>
    %90 = vector.extract_strided_slice %81 {offsets = [8, 0], sizes = [105, 128], strides = [1, 1]} : vector<114x128xbf16> to vector<105x128xbf16>
    %91 = vector.extract_strided_slice %81 {offsets = [9, 0], sizes = [105, 128], strides = [1, 1]} : vector<114x128xbf16> to vector<105x128xbf16>
    %92 = tpu.concatenate %82, %83, %84, %85, %86, %87, %88, %89, %90, %91 in 1 : vector<105x128xbf16>, vector<105x128xbf16>, vector<105x128xbf16>, vector<105x128xbf16>, vector<105x128xbf16>, vector<105x128xbf16>, vector<105x128xbf16>, vector<105x128xbf16>, vector<105x128xbf16>, vector<105x128xbf16> -> vector<105x1280xbf16>
    %c0_26 = arith.constant 0 : index
    %c0_27 = arith.constant 0 : index
    %93 = vector.load %arg8[%c0_26, %c0_27] : memref<1280x128xbf16, #tpu.memory_space<vmem>>, vector<1280x128xbf16>
    %cst_28 = arith.constant dense<0.000000e+00> : vector<105x128xf32>
    %94 = tpu.matmul %92, %93, %cst_28 {dimension_numbers = #tpu.dot_dimension_numbers<[1], [0], [0], [1], [0, 0, 1, 1], [], []>} : vector<105x1280xbf16>, vector<1280x128xbf16>, vector<105x128xf32> -> vector<105x128xf32>
    %c0_29 = arith.constant 0 : index
    %c0_30 = arith.constant 0 : index
    %95 = vector.load %arg9[%c0_29, %c0_30] : memref<1x128xf32, #tpu.memory_space<vmem>>, vector<1x128xf32>
    %96 = vector.broadcast %95 : vector<1x128xf32> to vector<105x128xf32>
    %97 = arith.addf %94, %96 : vector<105x128xf32>
    %cst_31 = arith.constant 0.000000e+00 : f32
    %98 = vector.broadcast %cst_31 : f32 to vector<105x128xf32>
    %99 = arith.maximumf %97, %98 : vector<105x128xf32>
    %100 = arith.truncf %99 : vector<105x128xf32> to vector<105x128xbf16>
    %c0_32 = arith.constant 0 : index
    %c0_33 = arith.constant 0 : index
    %101 = vector.load %arg10[%c0_32, %c0_33] : memref<128x85xbf16, #tpu.memory_space<vmem>>, vector<128x85xbf16>
    %cst_34 = arith.constant dense<0.000000e+00> : vector<105x85xf32>
    %102 = tpu.matmul %100, %101, %cst_34 {dimension_numbers = #tpu.dot_dimension_numbers<[1], [0], [0], [1], [0, 0, 1, 1], [], []>} : vector<105x128xbf16>, vector<128x85xbf16>, vector<105x85xf32> -> vector<105x85xf32>
    %c0_35 = arith.constant 0 : index
    %c0_36 = arith.constant 0 : index
    %103 = vector.load %arg11[%c0_35, %c0_36] : memref<1x85xf32, #tpu.memory_space<vmem>>, vector<1x85xf32>
    %104 = vector.broadcast %103 : vector<1x85xf32> to vector<105x85xf32>
    %105 = arith.addf %102, %104 : vector<105x85xf32>
    %cst_37 = arith.constant 0.000000e+00 : f32
    %106 = vector.broadcast %cst_37 : f32 to vector<105x85xf32>
    %107 = arith.maximumf %105, %106 : vector<105x85xf32>
    %108 = arith.truncf %107 : vector<105x85xf32> to vector<105x85xbf16>
    %109 = vector.extract_strided_slice %108 {offsets = [0, 0], sizes = [103, 85], strides = [1, 1]} : vector<105x85xbf16> to vector<103x85xbf16>
    %110 = vector.extract_strided_slice %108 {offsets = [1, 0], sizes = [103, 85], strides = [1, 1]} : vector<105x85xbf16> to vector<103x85xbf16>
    %111 = vector.extract_strided_slice %108 {offsets = [2, 0], sizes = [103, 85], strides = [1, 1]} : vector<105x85xbf16> to vector<103x85xbf16>
    %112 = tpu.concatenate %109, %110, %111 in 1 : vector<103x85xbf16>, vector<103x85xbf16>, vector<103x85xbf16> -> vector<103x255xbf16>
    %c0_38 = arith.constant 0 : index
    %c0_39 = arith.constant 0 : index
    %113 = vector.load %arg12[%c0_38, %c0_39] : memref<255x85xbf16, #tpu.memory_space<vmem>>, vector<255x85xbf16>
    %cst_40 = arith.constant dense<0.000000e+00> : vector<103x85xf32>
    %114 = tpu.matmul %112, %113, %cst_40 {dimension_numbers = #tpu.dot_dimension_numbers<[1], [0], [0], [1], [0, 0, 1, 1], [], []>} : vector<103x255xbf16>, vector<255x85xbf16>, vector<103x85xf32> -> vector<103x85xf32>
    %c0_41 = arith.constant 0 : index
    %c0_42 = arith.constant 0 : index
    %115 = vector.load %arg13[%c0_41, %c0_42] : memref<1x85xf32, #tpu.memory_space<vmem>>, vector<1x85xf32>
    %116 = vector.broadcast %115 : vector<1x85xf32> to vector<103x85xf32>
    %117 = arith.addf %114, %116 : vector<103x85xf32>
    %cst_43 = arith.constant 0.000000e+00 : f32
    %118 = vector.broadcast %cst_43 : f32 to vector<103x85xf32>
    %119 = arith.maximumf %117, %118 : vector<103x85xf32>
    %120 = arith.truncf %119 : vector<103x85xf32> to vector<103x85xbf16>
    %121 = vector.extract_strided_slice %120 {offsets = [0, 0], sizes = [99, 85], strides = [1, 1]} : vector<103x85xbf16> to vector<99x85xbf16>
    %122 = vector.extract_strided_slice %120 {offsets = [1, 0], sizes = [99, 85], strides = [1, 1]} : vector<103x85xbf16> to vector<99x85xbf16>
    %123 = vector.extract_strided_slice %120 {offsets = [2, 0], sizes = [99, 85], strides = [1, 1]} : vector<103x85xbf16> to vector<99x85xbf16>
    %124 = vector.extract_strided_slice %120 {offsets = [3, 0], sizes = [99, 85], strides = [1, 1]} : vector<103x85xbf16> to vector<99x85xbf16>
    %125 = vector.extract_strided_slice %120 {offsets = [4, 0], sizes = [99, 85], strides = [1, 1]} : vector<103x85xbf16> to vector<99x85xbf16>
    %126 = tpu.concatenate %121, %122, %123, %124, %125 in 1 : vector<99x85xbf16>, vector<99x85xbf16>, vector<99x85xbf16>, vector<99x85xbf16>, vector<99x85xbf16> -> vector<99x425xbf16>
    %c0_44 = arith.constant 0 : index
    %c0_45 = arith.constant 0 : index
    %127 = vector.load %arg14[%c0_44, %c0_45] : memref<425x86xbf16, #tpu.memory_space<vmem>>, vector<425x86xbf16>
    %cst_46 = arith.constant dense<0.000000e+00> : vector<99x86xf32>
    %128 = tpu.matmul %126, %127, %cst_46 {dimension_numbers = #tpu.dot_dimension_numbers<[1], [0], [0], [1], [0, 0, 1, 1], [], []>} : vector<99x425xbf16>, vector<425x86xbf16>, vector<99x86xf32> -> vector<99x86xf32>
    %c0_47 = arith.constant 0 : index
    %c0_48 = arith.constant 0 : index
    %129 = vector.load %arg15[%c0_47, %c0_48] : memref<1x86xf32, #tpu.memory_space<vmem>>, vector<1x86xf32>
    %130 = vector.broadcast %129 : vector<1x86xf32> to vector<99x86xf32>
    %131 = arith.addf %128, %130 : vector<99x86xf32>
    %cst_49 = arith.constant 0.000000e+00 : f32
    %132 = vector.broadcast %cst_49 : f32 to vector<99x86xf32>
    %133 = arith.maximumf %131, %132 : vector<99x86xf32>
    %134 = arith.truncf %133 : vector<99x86xf32> to vector<99x86xbf16>
    %135 = vector.extract_strided_slice %134 {offsets = [0, 0], sizes = [97, 86], strides = [1, 1]} : vector<99x86xbf16> to vector<97x86xbf16>
    %136 = vector.extract_strided_slice %134 {offsets = [1, 0], sizes = [97, 86], strides = [1, 1]} : vector<99x86xbf16> to vector<97x86xbf16>
    %137 = vector.extract_strided_slice %134 {offsets = [2, 0], sizes = [97, 86], strides = [1, 1]} : vector<99x86xbf16> to vector<97x86xbf16>
    %138 = tpu.concatenate %135, %136, %137 in 1 : vector<97x86xbf16>, vector<97x86xbf16>, vector<97x86xbf16> -> vector<97x258xbf16>
    %c0_50 = arith.constant 0 : index
    %c0_51 = arith.constant 0 : index
    %139 = vector.load %arg16[%c0_50, %c0_51] : memref<258x256xbf16, #tpu.memory_space<vmem>>, vector<258x256xbf16>
    %cst_52 = arith.constant dense<0.000000e+00> : vector<97x256xf32>
    %140 = tpu.matmul %138, %139, %cst_52 {dimension_numbers = #tpu.dot_dimension_numbers<[1], [0], [0], [1], [0, 0, 1, 1], [], []>} : vector<97x258xbf16>, vector<258x256xbf16>, vector<97x256xf32> -> vector<97x256xf32>
    %c0_53 = arith.constant 0 : index
    %c0_54 = arith.constant 0 : index
    %141 = vector.load %arg17[%c0_53, %c0_54] : memref<1x256xf32, #tpu.memory_space<vmem>>, vector<1x256xf32>
    %142 = vector.broadcast %141 : vector<1x256xf32> to vector<97x256xf32>
    %143 = arith.addf %140, %142 : vector<97x256xf32>
    %cst_55 = arith.constant 0.000000e+00 : f32
    %144 = vector.broadcast %cst_55 : f32 to vector<97x256xf32>
    %145 = arith.maximumf %143, %144 : vector<97x256xf32>
    %146 = arith.truncf %145 : vector<97x256xf32> to vector<97x256xbf16>
    %147 = vector.extract_strided_slice %146 {offsets = [0, 0], sizes = [95, 256], strides = [1, 1]} : vector<97x256xbf16> to vector<95x256xbf16>
    %148 = vector.extract_strided_slice %146 {offsets = [1, 0], sizes = [95, 256], strides = [1, 1]} : vector<97x256xbf16> to vector<95x256xbf16>
    %149 = vector.extract_strided_slice %146 {offsets = [2, 0], sizes = [95, 256], strides = [1, 1]} : vector<97x256xbf16> to vector<95x256xbf16>
    %150 = tpu.concatenate %147, %148, %149 in 1 : vector<95x256xbf16>, vector<95x256xbf16>, vector<95x256xbf16> -> vector<95x768xbf16>
    %c0_56 = arith.constant 0 : index
    %c0_57 = arith.constant 0 : index
    %151 = vector.load %arg18[%c0_56, %c0_57] : memref<768x128xbf16, #tpu.memory_space<vmem>>, vector<768x128xbf16>
    %cst_58 = arith.constant dense<0.000000e+00> : vector<95x128xf32>
    %152 = tpu.matmul %150, %151, %cst_58 {dimension_numbers = #tpu.dot_dimension_numbers<[1], [0], [0], [1], [0, 0, 1, 1], [], []>} : vector<95x768xbf16>, vector<768x128xbf16>, vector<95x128xf32> -> vector<95x128xf32>
    %c0_59 = arith.constant 0 : index
    %c0_60 = arith.constant 0 : index
    %153 = vector.load %arg19[%c0_59, %c0_60] : memref<1x128xf32, #tpu.memory_space<vmem>>, vector<1x128xf32>
    %154 = vector.broadcast %153 : vector<1x128xf32> to vector<95x128xf32>
    %155 = arith.addf %152, %154 : vector<95x128xf32>
    %cst_61 = arith.constant 0.000000e+00 : f32
    %156 = vector.broadcast %cst_61 : f32 to vector<95x128xf32>
    %157 = arith.maximumf %155, %156 : vector<95x128xf32>
    %158 = arith.truncf %157 : vector<95x128xf32> to vector<95x128xbf16>
    %159 = vector.extract_strided_slice %158 {offsets = [0, 0], sizes = [93, 128], strides = [1, 1]} : vector<95x128xbf16> to vector<93x128xbf16>
    %160 = vector.extract_strided_slice %158 {offsets = [1, 0], sizes = [93, 128], strides = [1, 1]} : vector<95x128xbf16> to vector<93x128xbf16>
    %161 = vector.extract_strided_slice %158 {offsets = [2, 0], sizes = [93, 128], strides = [1, 1]} : vector<95x128xbf16> to vector<93x128xbf16>
    %162 = tpu.concatenate %159, %160, %161 in 1 : vector<93x128xbf16>, vector<93x128xbf16>, vector<93x128xbf16> -> vector<93x384xbf16>
    %c0_62 = arith.constant 0 : index
    %c0_63 = arith.constant 0 : index
    %163 = vector.load %arg20[%c0_62, %c0_63] : memref<384x64xbf16, #tpu.memory_space<vmem>>, vector<384x64xbf16>
    %cst_64 = arith.constant dense<0.000000e+00> : vector<93x64xf32>
    %164 = tpu.matmul %162, %163, %cst_64 {dimension_numbers = #tpu.dot_dimension_numbers<[1], [0], [0], [1], [0, 0, 1, 1], [], []>} : vector<93x384xbf16>, vector<384x64xbf16>, vector<93x64xf32> -> vector<93x64xf32>
    %c0_65 = arith.constant 0 : index
    %c0_66 = arith.constant 0 : index
    %165 = vector.load %arg21[%c0_65, %c0_66] : memref<1x64xf32, #tpu.memory_space<vmem>>, vector<1x64xf32>
    %166 = vector.broadcast %165 : vector<1x64xf32> to vector<93x64xf32>
    %167 = arith.addf %164, %166 : vector<93x64xf32>
    %cst_67 = arith.constant 0.000000e+00 : f32
    %168 = vector.broadcast %cst_67 : f32 to vector<93x64xf32>
    %169 = arith.maximumf %167, %168 : vector<93x64xf32>
    %170 = arith.truncf %169 : vector<93x64xf32> to vector<93x64xbf16>
    %171 = vector.extract_strided_slice %170 {offsets = [0, 0], sizes = [91, 64], strides = [1, 1]} : vector<93x64xbf16> to vector<91x64xbf16>
    %172 = vector.extract_strided_slice %170 {offsets = [1, 0], sizes = [91, 64], strides = [1, 1]} : vector<93x64xbf16> to vector<91x64xbf16>
    %173 = vector.extract_strided_slice %170 {offsets = [2, 0], sizes = [91, 64], strides = [1, 1]} : vector<93x64xbf16> to vector<91x64xbf16>
    %174 = tpu.concatenate %171, %172, %173 in 1 : vector<91x64xbf16>, vector<91x64xbf16>, vector<91x64xbf16> -> vector<91x192xbf16>
    %c0_68 = arith.constant 0 : index
    %c0_69 = arith.constant 0 : index
    %175 = vector.load %arg22[%c0_68, %c0_69] : memref<192x32xbf16, #tpu.memory_space<vmem>>, vector<192x32xbf16>
    %cst_70 = arith.constant dense<0.000000e+00> : vector<91x32xf32>
    %176 = tpu.matmul %174, %175, %cst_70 {dimension_numbers = #tpu.dot_dimension_numbers<[1], [0], [0], [1], [0, 0, 1, 1], [], []>} : vector<91x192xbf16>, vector<192x32xbf16>, vector<91x32xf32> -> vector<91x32xf32>
    %c0_71 = arith.constant 0 : index
    %c0_72 = arith.constant 0 : index
    %177 = vector.load %arg23[%c0_71, %c0_72] : memref<1x32xf32, #tpu.memory_space<vmem>>, vector<1x32xf32>
    %178 = vector.broadcast %177 : vector<1x32xf32> to vector<91x32xf32>
    %179 = arith.addf %176, %178 : vector<91x32xf32>
    %cst_73 = arith.constant 0.000000e+00 : f32
    %180 = vector.broadcast %cst_73 : f32 to vector<91x32xf32>
    %181 = arith.maximumf %179, %180 : vector<91x32xf32>
    %182 = arith.truncf %181 : vector<91x32xf32> to vector<91x32xbf16>
    %183 = tpu.iota {dimensions = array<i32: 0>} : vector<45x91xi32>
    %184 = tpu.iota {dimensions = array<i32: 1>} : vector<45x91xi32>
    %c2_i32_74 = arith.constant 2 : i32
    %185 = vector.broadcast %c2_i32_74 : i32 to vector<45x91xi32>
    %186 = arith.muli %185, %183 : vector<45x91xi32>
    %187 = arith.cmpi eq, %184, %186 : vector<45x91xi32>
    %188 = arith.extui %187 : vector<45x91xi1> to vector<45x91xi32>
    %189 = arith.sitofp %188 : vector<45x91xi32> to vector<45x91xf32>
    %190 = arith.truncf %189 : vector<45x91xf32> to vector<45x91xbf16>
    %c2_i32_75 = arith.constant 2 : i32
    %191 = vector.broadcast %c2_i32_75 : i32 to vector<45x91xi32>
    %192 = arith.muli %191, %183 : vector<45x91xi32>
    %c1_i32_76 = arith.constant 1 : i32
    %193 = vector.broadcast %c1_i32_76 : i32 to vector<45x91xi32>
    %194 = arith.addi %192, %193 : vector<45x91xi32>
    %195 = arith.cmpi eq, %184, %194 : vector<45x91xi32>
    %196 = arith.extui %195 : vector<45x91xi1> to vector<45x91xi32>
    %197 = arith.sitofp %196 : vector<45x91xi32> to vector<45x91xf32>
    %198 = arith.truncf %197 : vector<45x91xf32> to vector<45x91xbf16>
    %cst_77 = arith.constant dense<0.000000e+00> : vector<45x32xf32>
    %199 = tpu.matmul %190, %182, %cst_77 {dimension_numbers = #tpu.dot_dimension_numbers<[1], [0], [0], [1], [0, 0, 1, 1], [], []>} : vector<45x91xbf16>, vector<91x32xbf16>, vector<45x32xf32> -> vector<45x32xf32>
    %cst_78 = arith.constant dense<0.000000e+00> : vector<45x32xf32>
    %200 = tpu.matmul %198, %182, %cst_78 {dimension_numbers = #tpu.dot_dimension_numbers<[1], [0], [0], [1], [0, 0, 1, 1], [], []>} : vector<45x91xbf16>, vector<91x32xbf16>, vector<45x32xf32> -> vector<45x32xf32>
    %201 = arith.maximumf %199, %200 : vector<45x32xf32>
    %202 = arith.truncf %201 : vector<45x32xf32> to vector<45x32xbf16>
    %c0_79 = arith.constant 0 : index
    %c0_80 = arith.constant 0 : index
    %c0_81 = arith.constant 0 : index
    %203 = vector.load %arg24[%c0_79, %c0_80, %c0_81] : memref<1x45x32xbf16, #tpu.memory_space<vmem>>, vector<1x45x32xbf16>
    %204 = vector.shape_cast %203 : vector<1x45x32xbf16> to vector<45x32xbf16>
    %205 = vector.shape_cast %202 : vector<45x32xbf16> to vector<1x45x32xbf16>
    tpu.vector_store %arg24[%c0_79, %c0_80, %c0_81], %205 {strides = array<i32>} : memref<1x45x32xbf16, #tpu.memory_space<vmem>>, vector<1x45x32xbf16>,
    return
  }
  func.func @transform_0(%arg0: i32) -> (i32, i32, i32) {
    %c0_i32 = arith.constant 0 : i32
    %c0_i32_0 = arith.constant 0 : i32
    %c0_i32_1 = arith.constant 0 : i32
    return %arg0, %c0_i32, %c0_i32_0 : i32, i32, i32
  }
  func.func @transform_1(%arg0: i32) -> (i32, i32) {
    %c0_i32 = arith.constant 0 : i32
    %c0_i32_0 = arith.constant 0 : i32
    %c0_i32_1 = arith.constant 0 : i32
    return %c0_i32, %c0_i32_0 : i32, i32
  }
  func.func @transform_2(%arg0: i32) -> (i32, i32) {
    %c0_i32 = arith.constant 0 : i32
    %c0_i32_0 = arith.constant 0 : i32
    %c0_i32_1 = arith.constant 0 : i32
    return %c0_i32, %c0_i32_0 : i32, i32
  }
  func.func @transform_3(%arg0: i32) -> (i32, i32) {
    %c0_i32 = arith.constant 0 : i32
    %c0_i32_0 = arith.constant 0 : i32
    %c0_i32_1 = arith.constant 0 : i32
    return %c0_i32, %c0_i32_0 : i32, i32
  }
  func.func @transform_4(%arg0: i32) -> (i32, i32) {
    %c0_i32 = arith.constant 0 : i32
    %c0_i32_0 = arith.constant 0 : i32
    %c0_i32_1 = arith.constant 0 : i32
    return %c0_i32, %c0_i32_0 : i32, i32
  }
  func.func @transform_5(%arg0: i32) -> (i32, i32) {
    %c0_i32 = arith.constant 0 : i32
    %c0_i32_0 = arith.constant 0 : i32
    %c0_i32_1 = arith.constant 0 : i32
    return %c0_i32, %c0_i32_0 : i32, i32
  }
  func.func @transform_6(%arg0: i32) -> (i32, i32) {
    %c0_i32 = arith.constant 0 : i32
    %c0_i32_0 = arith.constant 0 : i32
    %c0_i32_1 = arith.constant 0 : i32
    return %c0_i32, %c0_i32_0 : i32, i32
  }
  func.func @transform_7(%arg0: i32) -> (i32, i32) {
    %c0_i32 = arith.constant 0 : i32
    %c0_i32_0 = arith.constant 0 : i32
    %c0_i32_1 = arith.constant 0 : i32
    return %c0_i32, %c0_i32_0 : i32, i32
  }
  func.func @transform_8(%arg0: i32) -> (i32, i32) {
    %c0_i32 = arith.constant 0 : i32
    %c0_i32_0 = arith.constant 0 : i32
    %c0_i32_1 = arith.constant 0 : i32
    return %c0_i32, %c0_i32_0 : i32, i32
  }
  func.func @transform_9(%arg0: i32) -> (i32, i32) {
    %c0_i32 = arith.constant 0 : i32
    %c0_i32_0 = arith.constant 0 : i32
    %c0_i32_1 = arith.constant 0 : i32
    return %c0_i32, %c0_i32_0 : i32, i32
  }
  func.func @transform_10(%arg0: i32) -> (i32, i32) {
    %c0_i32 = arith.constant 0 : i32
    %c0_i32_0 = arith.constant 0 : i32
    %c0_i32_1 = arith.constant 0 : i32
    return %c0_i32, %c0_i32_0 : i32, i32
  }
  func.func @transform_11(%arg0: i32) -> (i32, i32) {
    %c0_i32 = arith.constant 0 : i32
    %c0_i32_0 = arith.constant 0 : i32
    %c0_i32_1 = arith.constant 0 : i32
    return %c0_i32, %c0_i32_0 : i32, i32
  }
  func.func @transform_12(%arg0: i32) -> (i32, i32) {
    %c0_i32 = arith.constant 0 : i32
    %c0_i32_0 = arith.constant 0 : i32
    %c0_i32_1 = arith.constant 0 : i32
    return %c0_i32, %c0_i32_0 : i32, i32
  }
  func.func @transform_13(%arg0: i32) -> (i32, i32) {
    %c0_i32 = arith.constant 0 : i32
    %c0_i32_0 = arith.constant 0 : i32
    %c0_i32_1 = arith.constant 0 : i32
    return %c0_i32, %c0_i32_0 : i32, i32
  }
  func.func @transform_14(%arg0: i32) -> (i32, i32) {
    %c0_i32 = arith.constant 0 : i32
    %c0_i32_0 = arith.constant 0 : i32
    %c0_i32_1 = arith.constant 0 : i32
    return %c0_i32, %c0_i32_0 : i32, i32
  }
  func.func @transform_15(%arg0: i32) -> (i32, i32) {
    %c0_i32 = arith.constant 0 : i32
    %c0_i32_0 = arith.constant 0 : i32
    %c0_i32_1 = arith.constant 0 : i32
    return %c0_i32, %c0_i32_0 : i32, i32
  }
  func.func @transform_16(%arg0: i32) -> (i32, i32) {
    %c0_i32 = arith.constant 0 : i32
    %c0_i32_0 = arith.constant 0 : i32
    %c0_i32_1 = arith.constant 0 : i32
    return %c0_i32, %c0_i32_0 : i32, i32
  }
  func.func @transform_17(%arg0: i32) -> (i32, i32) {
    %c0_i32 = arith.constant 0 : i32
    %c0_i32_0 = arith.constant 0 : i32
    %c0_i32_1 = arith.constant 0 : i32
    return %c0_i32, %c0_i32_0 : i32, i32
  }
  func.func @transform_18(%arg0: i32) -> (i32, i32) {
    %c0_i32 = arith.constant 0 : i32
    %c0_i32_0 = arith.constant 0 : i32
    %c0_i32_1 = arith.constant 0 : i32
    return %c0_i32, %c0_i32_0 : i32, i32
  }
  func.func @transform_19(%arg0: i32) -> (i32, i32) {
    %c0_i32 = arith.constant 0 : i32
    %c0_i32_0 = arith.constant 0 : i32
    %c0_i32_1 = arith.constant 0 : i32
    return %c0_i32, %c0_i32_0 : i32, i32
  }
  func.func @transform_20(%arg0: i32) -> (i32, i32) {
    %c0_i32 = arith.constant 0 : i32
    %c0_i32_0 = arith.constant 0 : i32
    %c0_i32_1 = arith.constant 0 : i32
    return %c0_i32, %c0_i32_0 : i32, i32
  }
  func.func @transform_21(%arg0: i32) -> (i32, i32) {
    %c0_i32 = arith.constant 0 : i32
    %c0_i32_0 = arith.constant 0 : i32
    %c0_i32_1 = arith.constant 0 : i32
    return %c0_i32, %c0_i32_0 : i32, i32
  }
  func.func @transform_22(%arg0: i32) -> (i32, i32) {
    %c0_i32 = arith.constant 0 : i32
    %c0_i32_0 = arith.constant 0 : i32
    %c0_i32_1 = arith.constant 0 : i32
    return %c0_i32, %c0_i32_0 : i32, i32
  }
  func.func @transform_23(%arg0: i32) -> (i32, i32, i32) {
    %c0_i32 = arith.constant 0 : i32
    %c0_i32_0 = arith.constant 0 : i32
    %c0_i32_1 = arith.constant 0 : i32
    return %arg0, %c0_i32, %c0_i32_0 : i32, i32, i32
  }
}

module attributes {stable_mosaic.version = 11 : i64} {
  func.func @_fused_fc_kernel(%arg0: memref<2x1440xbf16, #tpu.memory_space<vmem>>, %arg1: memref<1440x200xbf16, #tpu.memory_space<vmem>>, %arg2: memref<1x200xf32, #tpu.memory_space<vmem>>, %arg3: memref<200x200xbf16, #tpu.memory_space<vmem>>, %arg4: memref<1x200xf32, #tpu.memory_space<vmem>>, %arg5: memref<200x400xbf16, #tpu.memory_space<vmem>>, %arg6: memref<1x400xf32, #tpu.memory_space<vmem>>, %arg7: memref<400x10xbf16, #tpu.memory_space<vmem>>, %arg8: memref<1x10xf32, #tpu.memory_space<vmem>>, %arg9: memref<2x10xf32, #tpu.memory_space<vmem>>) attributes {dimension_semantics = [], scalar_prefetch = 0 : i64, scratch_operands = 0 : i64, tpu.core_type = #tpu.core_type<tc>} {
    %c0 = arith.constant 0 : index
    %c0_0 = arith.constant 0 : index
    %0 = vector.load %arg0[%c0, %c0_0] : memref<2x1440xbf16, #tpu.memory_space<vmem>>, vector<2x1440xbf16>
    %c0_1 = arith.constant 0 : index
    %c0_2 = arith.constant 0 : index
    %1 = vector.load %arg1[%c0_1, %c0_2] : memref<1440x200xbf16, #tpu.memory_space<vmem>>, vector<1440x200xbf16>
    %cst = arith.constant dense<0.000000e+00> : vector<2x200xf32>
    %2 = tpu.matmul %0, %1, %cst {dimension_numbers = #tpu.dot_dimension_numbers<[1], [0], [0], [1], [0, 0, 1, 1], [], []>} : vector<2x1440xbf16>, vector<1440x200xbf16>, vector<2x200xf32> -> vector<2x200xf32>
    %c0_3 = arith.constant 0 : index
    %c0_4 = arith.constant 0 : index
    %3 = vector.load %arg2[%c0_3, %c0_4] : memref<1x200xf32, #tpu.memory_space<vmem>>, vector<1x200xf32>
    %4 = vector.broadcast %3 : vector<1x200xf32> to vector<2x200xf32>
    %5 = arith.addf %2, %4 : vector<2x200xf32>
    %cst_5 = arith.constant 0.000000e+00 : f32
    %6 = vector.broadcast %cst_5 : f32 to vector<2x200xf32>
    %7 = arith.maximumf %5, %6 : vector<2x200xf32>
    %8 = arith.truncf %7 : vector<2x200xf32> to vector<2x200xbf16>
    %c0_6 = arith.constant 0 : index
    %c0_7 = arith.constant 0 : index
    %9 = vector.load %arg3[%c0_6, %c0_7] : memref<200x200xbf16, #tpu.memory_space<vmem>>, vector<200x200xbf16>
    %cst_8 = arith.constant dense<0.000000e+00> : vector<2x200xf32>
    %10 = tpu.matmul %8, %9, %cst_8 {dimension_numbers = #tpu.dot_dimension_numbers<[1], [0], [0], [1], [0, 0, 1, 1], [], []>} : vector<2x200xbf16>, vector<200x200xbf16>, vector<2x200xf32> -> vector<2x200xf32>
    %c0_9 = arith.constant 0 : index
    %c0_10 = arith.constant 0 : index
    %11 = vector.load %arg4[%c0_9, %c0_10] : memref<1x200xf32, #tpu.memory_space<vmem>>, vector<1x200xf32>
    %12 = vector.broadcast %11 : vector<1x200xf32> to vector<2x200xf32>
    %13 = arith.addf %10, %12 : vector<2x200xf32>
    %cst_11 = arith.constant 0.000000e+00 : f32
    %14 = vector.broadcast %cst_11 : f32 to vector<2x200xf32>
    %15 = arith.maximumf %13, %14 : vector<2x200xf32>
    %16 = arith.truncf %15 : vector<2x200xf32> to vector<2x200xbf16>
    %c0_12 = arith.constant 0 : index
    %c0_13 = arith.constant 0 : index
    %17 = vector.load %arg5[%c0_12, %c0_13] : memref<200x400xbf16, #tpu.memory_space<vmem>>, vector<200x400xbf16>
    %cst_14 = arith.constant dense<0.000000e+00> : vector<2x400xf32>
    %18 = tpu.matmul %16, %17, %cst_14 {dimension_numbers = #tpu.dot_dimension_numbers<[1], [0], [0], [1], [0, 0, 1, 1], [], []>} : vector<2x200xbf16>, vector<200x400xbf16>, vector<2x400xf32> -> vector<2x400xf32>
    %c0_15 = arith.constant 0 : index
    %c0_16 = arith.constant 0 : index
    %19 = vector.load %arg6[%c0_15, %c0_16] : memref<1x400xf32, #tpu.memory_space<vmem>>, vector<1x400xf32>
    %20 = vector.broadcast %19 : vector<1x400xf32> to vector<2x400xf32>
    %21 = arith.addf %18, %20 : vector<2x400xf32>
    %cst_17 = arith.constant 0.000000e+00 : f32
    %22 = vector.broadcast %cst_17 : f32 to vector<2x400xf32>
    %23 = arith.maximumf %21, %22 : vector<2x400xf32>
    %24 = arith.truncf %23 : vector<2x400xf32> to vector<2x400xbf16>
    %c0_18 = arith.constant 0 : index
    %c0_19 = arith.constant 0 : index
    %25 = vector.load %arg7[%c0_18, %c0_19] : memref<400x10xbf16, #tpu.memory_space<vmem>>, vector<400x10xbf16>
    %cst_20 = arith.constant dense<0.000000e+00> : vector<2x10xf32>
    %26 = tpu.matmul %24, %25, %cst_20 {dimension_numbers = #tpu.dot_dimension_numbers<[1], [0], [0], [1], [0, 0, 1, 1], [], []>} : vector<2x400xbf16>, vector<400x10xbf16>, vector<2x10xf32> -> vector<2x10xf32>
    %c0_21 = arith.constant 0 : index
    %c0_22 = arith.constant 0 : index
    %27 = vector.load %arg8[%c0_21, %c0_22] : memref<1x10xf32, #tpu.memory_space<vmem>>, vector<1x10xf32>
    %28 = vector.broadcast %27 : vector<1x10xf32> to vector<2x10xf32>
    %29 = arith.addf %26, %28 : vector<2x10xf32>
    %c0_23 = arith.constant 0 : index
    %c0_24 = arith.constant 0 : index
    %30 = vector.load %arg9[%c0_23, %c0_24] : memref<2x10xf32, #tpu.memory_space<vmem>>, vector<2x10xf32>
    tpu.vector_store %arg9[%c0_23, %c0_24], %29 {strides = array<i32>} : memref<2x10xf32, #tpu.memory_space<vmem>>, vector<2x10xf32>,
    return
  }
}

</mosaic_0001>

<llo_original>
// kernel: forward.3
$region0: #{forward.3}
  #allocation0 [shape = 'u32[]', space=smem, size = 0x4, offset = 0x4, fixed_abs, tag = 'smem constant byte address 0x4 - core index']
  #allocation1 [shape = 'u32[144,128]{1,0:T(1,128)}', space=vmem, size = 0x12000, scoped, tag = 'internal scratch']
  %s0 = inlined_call_operand.vmem [shape: bf16[2,1440], index: 0, kind: input, shape index: {}]
  %s1 = inlined_call_operand.vmem [shape: bf16[1440,200], index: 1, kind: input, shape index: {}]
  %s2 = inlined_call_operand.vmem [shape: f32[1,200], index: 2, kind: input, shape index: {}]
  %s3 = inlined_call_operand.vmem [shape: bf16[200,200], index: 3, kind: input, shape index: {}]
  %s4 = inlined_call_operand.vmem [shape: f32[1,200], index: 4, kind: input, shape index: {}]
  %s5 = inlined_call_operand.vmem [shape: bf16[200,400], index: 5, kind: input, shape index: {}]
  %s6 = inlined_call_operand.vmem [shape: f32[1,400], index: 6, kind: input, shape index: {}]
  %s7 = inlined_call_operand.vmem [shape: bf16[400,10], index: 7, kind: input, shape index: {}]
  %s8 = inlined_call_operand.vmem [shape: f32[1,10], index: 8, kind: input, shape index: {}]
  %s9 = inlined_call_operand.hbm [shape: f32[2,10], index: 9, kind: output, shape index: {}]
  %s10 = sld [smem:[#allocation0]]
  $region46: #{forward.3} parent=0
    _
  %s12 = ssub.s32 1, %s10
  %s13 = scalar_select 0, %s12, %s10
  $region1: #{forward.3} parent=0
    #allocation2 [shape = 'u8[1024]{0}', space=vmem, size = 0x400, scoped, tag = 'output window, operand 0, single buffered']
    #allocation3 [shape = 's32[1]{0}', space=sflag, size = 0x4, scoped, tag = 'scoped memory for forward.3']
    %14 = vsyncpa [#allocation3], 0
    // Predicated region
    $region2: #{forward.3} parent=1 // pred_check
      _
    $region3: #{forward.3} parent=1 // pred_check_branch
      %16 = sbr.rel (0) target = $region5
    $region4: #{forward.3} parent=1 // pred_region
      _
    $region5: #{forward.3} parent=1 // pred_fallthru
      _
    // Predicated region
    $region6: #{forward.3} parent=1 // pred_check
      _
    $region7: #{forward.3} parent=1 // pred_check_branch
      %18 = sbr.rel (0) target = $region9
    $region8: #{forward.3} parent=1 // pred_region
      _
    $region9: #{forward.3} parent=1 // pred_fallthru
      _
    // Predicated region
    $region10: #{forward.3} parent=1 // pred_check
      _
    $region11: #{forward.3} parent=1 // pred_check_branch
      %20 = sbr.rel (0) target = $region13
    $region12: #{forward.3} parent=1 // pred_region
      _
    $region13: #{forward.3} parent=1 // pred_fallthru
      _
    // Predicated region
    $region14: #{forward.3} parent=1 // pred_check
      _
    $region15: #{forward.3} parent=1 // pred_check_branch
      %22 = sbr.rel (0) target = $region17
    $region16: #{forward.3} parent=1 // pred_region
      _
    $region17: #{forward.3} parent=1 // pred_fallthru
      _
    // Predicated region
    $region18: #{forward.3} parent=1 // pred_check
      _
    $region19: #{forward.3} parent=1 // pred_check_branch
      %24 = sbr.rel (0) target = $region21
    $region20: #{forward.3} parent=1 // pred_region
      _
    $region21: #{forward.3} parent=1 // pred_fallthru
      _
    // Predicated region
    $region22: #{forward.3} parent=1 // pred_check
      _
    $region23: #{forward.3} parent=1 // pred_check_branch
      %26 = sbr.rel (0) target = $region25
    $region24: #{forward.3} parent=1 // pred_region
      _
    $region25: #{forward.3} parent=1 // pred_fallthru
      _
    // Predicated region
    $region26: #{forward.3} parent=1 // pred_check
      _
    $region27: #{forward.3} parent=1 // pred_check_branch
      %28 = sbr.rel (0) target = $region29
    $region28: #{forward.3} parent=1 // pred_region
      _
    $region29: #{forward.3} parent=1 // pred_fallthru
      _
    // Predicated region
    $region30: #{forward.3} parent=1 // pred_check
      _
    $region31: #{forward.3} parent=1 // pred_check_branch
      %30 = sbr.rel (0) target = $region33
    $region32: #{forward.3} parent=1 // pred_region
      _
    $region33: #{forward.3} parent=1 // pred_fallthru
      _
    // Predicated region
    $region34: #{forward.3} parent=1 // pred_check
      _
    $region35: #{forward.3} parent=1 // pred_check_branch
      %32 = sbr.rel (0) target = $region37
    $region36: #{forward.3} parent=1 // pred_region
      _
    $region37: #{forward.3} parent=1 // pred_fallthru
      _
    %v34 = vld [vmem:[%s0] sm:$0xff]
    %v35 = vld [vmem:[%s0 + $0x8] sm:$0xf]
    %v36 = vld [vmem:[%s1] sm:$0xff]
    %v37 = vld [vmem:[%s1 + $0x8] sm:$0xff]
    %v38 = vld [vmem:[%s1 + $0x10] sm:$0xff]
    %v39 = vld [vmem:[%s1 + $0x18] sm:$0xff]
    %v40 = vld [vmem:[%s1 + $0x20] sm:$0xff]
    %v41 = vld [vmem:[%s1 + $0x28] sm:$0xff]
    %v42 = vld [vmem:[%s1 + $0x30] sm:$0xff]
    %v43 = vld [vmem:[%s1 + $0x38] sm:$0xff]
    %v44 = vld [vmem:[%s1 + $0x40] sm:$0xff]
    %v45 = vld [vmem:[%s1 + $0x48] sm:$0xff]
    %v46 = vld [vmem:[%s1 + $0x50] sm:$0xff]
    %v47 = vld [vmem:[%s1 + $0x58] sm:$0xff]
    %v48 = vld [vmem:[%s1 + $0x60] sm:$0xff]
    %v49 = vld [vmem:[%s1 + $0x68] sm:$0xff]
    %v50 = vld [vmem:[%s1 + $0x70] sm:$0xff]
    %v51 = vld [vmem:[%s1 + $0x78] sm:$0xff]
    %v52 = vld [vmem:[%s1 + $0x80] sm:$0xff]
    %v53 = vld [vmem:[%s1 + $0x88] sm:$0xff]
    %v54 = vld [vmem:[%s1 + $0x90] sm:$0xff]
    %v55 = vld [vmem:[%s1 + $0x98] sm:$0xff]
    %v56 = vld [vmem:[%s1 + $0xa0] sm:$0xff]
    %v57 = vld [vmem:[%s1 + $0xa8] sm:$0xff]
    %v58 = vld [vmem:[%s1 + $0xb0] sm:$0xff]
    %v59 = vld [vmem:[%s1 + $0xb8] sm:$0xff]
    %v60 = vld [vmem:[%s1 + $0xc0] sm:$0xff]
    %v61 = vld [vmem:[%s1 + $0xc8] sm:$0xff]
    %v62 = vld [vmem:[%s1 + $0xd0] sm:$0xff]
    %v63 = vld [vmem:[%s1 + $0xd8] sm:$0xff]
    %v64 = vld [vmem:[%s1 + $0xe0] sm:$0xff]
    %v65 = vld [vmem:[%s1 + $0xe8] sm:$0xff]
    %v66 = vld [vmem:[%s1 + $0xf0] sm:$0xff]
    %v67 = vld [vmem:[%s1 + $0xf8] sm:$0xff]
    %v68 = vld [vmem:[%s1 + $0x100] sm:$0xff]
    %v69 = vld [vmem:[%s1 + $0x108] sm:$0xff]
    %v70 = vld [vmem:[%s1 + $0x110] sm:$0xff]
    %v71 = vld [vmem:[%s1 + $0x118] sm:$0xff]
    %v72 = vld [vmem:[%s1 + $0x120] sm:$0xff]
    %v73 = vld [vmem:[%s1 + $0x128] sm:$0xff]
    %v74 = vld [vmem:[%s1 + $0x130] sm:$0xff]
    %v75 = vld [vmem:[%s1 + $0x138] sm:$0xff]
    %v76 = vld [vmem:[%s1 + $0x140] sm:$0xff]
    %v77 = vld [vmem:[%s1 + $0x148] sm:$0xff]
    %v78 = vld [vmem:[%s1 + $0x150] sm:$0xff]
    %v79 = vld [vmem:[%s1 + $0x158] sm:$0xff]
    %v80 = vld [vmem:[%s1 + $0x160] sm:$0xff]
    %v81 = vld [vmem:[%s1 + $0x168] sm:$0xff]
    %v82 = vld [vmem:[%s1 + $0x170] sm:$0xff]
    %v83 = vld [vmem:[%s1 + $0x178] sm:$0xff]
    %v84 = vld [vmem:[%s1 + $0x180] sm:$0xff]
    %v85 = vld [vmem:[%s1 + $0x188] sm:$0xff]
    %v86 = vld [vmem:[%s1 + $0x190] sm:$0xff]
    %v87 = vld [vmem:[%s1 + $0x198] sm:$0xff]
    %v88 = vld [vmem:[%s1 + $0x1a0] sm:$0xff]
    %v89 = vld [vmem:[%s1 + $0x1a8] sm:$0xff]
    %v90 = vld [vmem:[%s1 + $0x1b0] sm:$0xff]
    %v91 = vld [vmem:[%s1 + $0x1b8] sm:$0xff]
    %v92 = vld [vmem:[%s1 + $0x1c0] sm:$0xff]
    %v93 = vld [vmem:[%s1 + $0x1c8] sm:$0xff]
    %v94 = vld [vmem:[%s1 + $0x1d0] sm:$0xff]
    %v95 = vld [vmem:[%s1 + $0x1d8] sm:$0xff]
    %v96 = vld [vmem:[%s1 + $0x1e0] sm:$0xff]
    %v97 = vld [vmem:[%s1 + $0x1e8] sm:$0xff]
    %v98 = vld [vmem:[%s1 + $0x1f0] sm:$0xff]
    %v99 = vld [vmem:[%s1 + $0x1f8] sm:$0xff]
    %v100 = vld [vmem:[%s1 + $0x200] sm:$0xff]
    %v101 = vld [vmem:[%s1 + $0x208] sm:$0xff]
    %v102 = vld [vmem:[%s1 + $0x210] sm:$0xff]
    %v103 = vld [vmem:[%s1 + $0x218] sm:$0xff]
    %v104 = vld [vmem:[%s1 + $0x220] sm:$0xff]
    %v105 = vld [vmem:[%s1 + $0x228] sm:$0xff]
    %v106 = vld [vmem:[%s1 + $0x230] sm:$0xff]
    %v107 = vld [vmem:[%s1 + $0x238] sm:$0xff]
    %v108 = vld [vmem:[%s1 + $0x240] sm:$0xff]
    %v109 = vld [vmem:[%s1 + $0x248] sm:$0xff]
    %v110 = vld [vmem:[%s1 + $0x250] sm:$0xff]
    %v111 = vld [vmem:[%s1 + $0x258] sm:$0xff]
    %v112 = vld [vmem:[%s1 + $0x260] sm:$0xff]
    %v113 = vld [vmem:[%s1 + $0x268] sm:$0xff]
    %v114 = vld [vmem:[%s1 + $0x270] sm:$0xff]
    %v115 = vld [vmem:[%s1 + $0x278] sm:$0xff]
    %v116 = vld [vmem:[%s1 + $0x280] sm:$0xff]
    %v117 = vld [vmem:[%s1 + $0x288] sm:$0xff]
    %v118 = vld [vmem:[%s1 + $0x290] sm:$0xff]
    %v119 = vld [vmem:[%s1 + $0x298] sm:$0xff]
    %v120 = vld [vmem:[%s1 + $0x2a0] sm:$0xff]
    %v121 = vld [vmem:[%s1 + $0x2a8] sm:$0xff]
    %v122 = vld [vmem:[%s1 + $0x2b0] sm:$0xff]
    %v123 = vld [vmem:[%s1 + $0x2b8] sm:$0xff]
    %v124 = vld [vmem:[%s1 + $0x2c0] sm:$0xff]
    %v125 = vld [vmem:[%s1 + $0x2c8] sm:$0xff]
    %v126 = vld [vmem:[%s1 + $0x2d0] sm:$0xff]
    %v127 = vld [vmem:[%s1 + $0x2d8] sm:$0xff]
    %v128 = vld [vmem:[%s1 + $0x2e0] sm:$0xff]
    %v129 = vld [vmem:[%s1 + $0x2e8] sm:$0xff]
    %v130 = vld [vmem:[%s1 + $0x2f0] sm:$0xff]
    %v131 = vld [vmem:[%s1 + $0x2f8] sm:$0xff]
    %v132 = vld [vmem:[%s1 + $0x300] sm:$0xff]
    %v133 = vld [vmem:[%s1 + $0x308] sm:$0xff]
    %v134 = vld [vmem:[%s1 + $0x310] sm:$0xff]
    %v135 = vld [vmem:[%s1 + $0x318] sm:$0xff]
    %v136 = vld [vmem:[%s1 + $0x320] sm:$0xff]
    %v137 = vld [vmem:[%s1 + $0x328] sm:$0xff]
    %v138 = vld [vmem:[%s1 + $0x330] sm:$0xff]
    %v139 = vld [vmem:[%s1 + $0x338] sm:$0xff]
    %v140 = vld [vmem:[%s1 + $0x340] sm:$0xff]
    %v141 = vld [vmem:[%s1 + $0x348] sm:$0xff]
    %v142 = vld [vmem:[%s1 + $0x350] sm:$0xff]
    %v143 = vld [vmem:[%s1 + $0x358] sm:$0xff]
    %v144 = vld [vmem:[%s1 + $0x360] sm:$0xff]
    %v145 = vld [vmem:[%s1 + $0x368] sm:$0xff]
    %v146 = vld [vmem:[%s1 + $0x370] sm:$0xff]
    %v147 = vld [vmem:[%s1 + $0x378] sm:$0xff]
    %v148 = vld [vmem:[%s1 + $0x380] sm:$0xff]
    %v149 = vld [vmem:[%s1 + $0x388] sm:$0xff]
    %v150 = vld [vmem:[%s1 + $0x390] sm:$0xff]
    %v151 = vld [vmem:[%s1 + $0x398] sm:$0xff]
    %v152 = vld [vmem:[%s1 + $0x3a0] sm:$0xff]
    %v153 = vld [vmem:[%s1 + $0x3a8] sm:$0xff]
    %v154 = vld [vmem:[%s1 + $0x3b0] sm:$0xff]
    %v155 = vld [vmem:[%s1 + $0x3b8] sm:$0xff]
    %v156 = vld [vmem:[%s1 + $0x3c0] sm:$0xff]
    %v157 = vld [vmem:[%s1 + $0x3c8] sm:$0xff]
    %v158 = vld [vmem:[%s1 + $0x3d0] sm:$0xff]
    %v159 = vld [vmem:[%s1 + $0x3d8] sm:$0xff]
    %v160 = vld [vmem:[%s1 + $0x3e0] sm:$0xff]
    %v161 = vld [vmem:[%s1 + $0x3e8] sm:$0xff]
    %v162 = vld [vmem:[%s1 + $0x3f0] sm:$0xff]
    %v163 = vld [vmem:[%s1 + $0x3f8] sm:$0xff]
    %v164 = vld [vmem:[%s1 + $0x400] sm:$0xff]
    %v165 = vld [vmem:[%s1 + $0x408] sm:$0xff]
    %v166 = vld [vmem:[%s1 + $0x410] sm:$0xff]
    %v167 = vld [vmem:[%s1 + $0x418] sm:$0xff]
    %v168 = vld [vmem:[%s1 + $0x420] sm:$0xff]
    %v169 = vld [vmem:[%s1 + $0x428] sm:$0xff]
    %v170 = vld [vmem:[%s1 + $0x430] sm:$0xff]
    %v171 = vld [vmem:[%s1 + $0x438] sm:$0xff]
    %v172 = vld [vmem:[%s1 + $0x440] sm:$0xff]
    %v173 = vld [vmem:[%s1 + $0x448] sm:$0xff]
    %v174 = vld [vmem:[%s1 + $0x450] sm:$0xff]
    %v175 = vld [vmem:[%s1 + $0x458] sm:$0xff]
    %v176 = vld [vmem:[%s1 + $0x460] sm:$0xff]
    %v177 = vld [vmem:[%s1 + $0x468] sm:$0xff]
    %v178 = vld [vmem:[%s1 + $0x470] sm:$0xff]
    %v179 = vld [vmem:[%s1 + $0x478] sm:$0xff]
    %v180 = vld [vmem:[%s1 + $0x480] sm:$0xff]
    %v181 = vld [vmem:[%s1 + $0x488] sm:$0xff]
    %v182 = vld [vmem:[%s1 + $0x490] sm:$0xff]
    %v183 = vld [vmem:[%s1 + $0x498] sm:$0xff]
    %v184 = vld [vmem:[%s1 + $0x4a0] sm:$0xff]
    %v185 = vld [vmem:[%s1 + $0x4a8] sm:$0xff]
    %v186 = vld [vmem:[%s1 + $0x4b0] sm:$0xff]
    %v187 = vld [vmem:[%s1 + $0x4b8] sm:$0xff]
    %v188 = vld [vmem:[%s1 + $0x4c0] sm:$0xff]
    %v189 = vld [vmem:[%s1 + $0x4c8] sm:$0xff]
    %v190 = vld [vmem:[%s1 + $0x4d0] sm:$0xff]
    %v191 = vld [vmem:[%s1 + $0x4d8] sm:$0xff]
    %v192 = vld [vmem:[%s1 + $0x4e0] sm:$0xff]
    %v193 = vld [vmem:[%s1 + $0x4e8] sm:$0xff]
    %v194 = vld [vmem:[%s1 + $0x4f0] sm:$0xff]
    %v195 = vld [vmem:[%s1 + $0x4f8] sm:$0xff]
    %v196 = vld [vmem:[%s1 + $0x500] sm:$0xff]
    %v197 = vld [vmem:[%s1 + $0x508] sm:$0xff]
    %v198 = vld [vmem:[%s1 + $0x510] sm:$0xff]
    %v199 = vld [vmem:[%s1 + $0x518] sm:$0xff]
    %v200 = vld [vmem:[%s1 + $0x520] sm:$0xff]
    %v201 = vld [vmem:[%s1 + $0x528] sm:$0xff]
    %v202 = vld [vmem:[%s1 + $0x530] sm:$0xff]
    %v203 = vld [vmem:[%s1 + $0x538] sm:$0xff]
    %v204 = vld [vmem:[%s1 + $0x540] sm:$0xff]
    %v205 = vld [vmem:[%s1 + $0x548] sm:$0xff]
    %v206 = vld [vmem:[%s1 + $0x550] sm:$0xff]
    %v207 = vld [vmem:[%s1 + $0x558] sm:$0xff]
    %v208 = vld [vmem:[%s1 + $0x560] sm:$0xff]
    %v209 = vld [vmem:[%s1 + $0x568] sm:$0xff]
    %v210 = vld [vmem:[%s1 + $0x570] sm:$0xff]
    %v211 = vld [vmem:[%s1 + $0x578] sm:$0xff]
    %v212 = vld [vmem:[%s1 + $0x580] sm:$0xff]
    %v213 = vld [vmem:[%s1 + $0x588] sm:$0xff]
    %v214 = vld [vmem:[%s1 + $0x590] sm:$0xff]
    %v215 = vld [vmem:[%s1 + $0x598] sm:$0xff]
    %v216 = vld [vmem:[%s2] sm:$0x3]
    %v218 = vlaneseq
    %v219 = vshrl.u32 %v218, 7
    %v220 = vsub.s32 0, %v219
    %v221 = vrot.slane %v216, %v220
    %v222 = vlaneseq
    %v223 = vshrl.u32 %v222, 7
    %v224 = vsub.s32 1, %v223
    %v225 = vrot.slane %v216, %v224
    %v230 = vcombine.high %v34, %v34
    %v232 = vunpack.c.l.s4 1966171168
    %v233 = vunpack.c.0.s8 %v232
    %v234 = vlaneseq
    %v235 = vshrl.u32 %v234, 7
    %v236 = vsub.s32 %v233, %v235
    %v237 = vrot.slane %v34, %v236
    %v239 = vunpack.c.l.s4 1966171168
    %v240 = vunpack.c.0.s8 %v239
    %v241 = vlaneseq
    %v242 = vshrl.u32 %v241, 7
    %v243 = vsub.s32 %v240, %v242
    %v244 = vrot.slane %v230, %v243
    %v245 = vcombine.high %v237, %v237
    %v246 = vcombine.high %v244, %v244
    %v248 = vunpack.c.l.s4 1966171168
    %v249 = vunpack.c.0.s8 %v248
    %v250 = vlaneseq
    %v251 = vshrl.u32 %v250, 7
    %v252 = vsub.s32 %v249, %v251
    %v253 = vrot.slane %v237, %v252
    %v255 = vunpack.c.l.s4 1966171168
    %v256 = vunpack.c.0.s8 %v255
    %v257 = vlaneseq
    %v258 = vshrl.u32 %v257, 7
    %v259 = vsub.s32 %v256, %v258
    %v260 = vrot.slane %v244, %v259
    %v262 = vunpack.c.l.s4 1966171168
    %v263 = vunpack.c.0.s8 %v262
    %v264 = vlaneseq
    %v265 = vshrl.u32 %v264, 7
    %v266 = vsub.s32 %v263, %v265
    %v267 = vrot.slane %v245, %v266
    %v269 = vunpack.c.l.s4 1966171168
    %v270 = vunpack.c.0.s8 %v269
    %v271 = vlaneseq
    %v272 = vshrl.u32 %v271, 7
    %v273 = vsub.s32 %v270, %v272
    %v274 = vrot.slane %v246, %v273
    %v275 = vcombine.high %v253, %v253
    %v276 = vcombine.high %v260, %v260
    %v277 = vcombine.high %v267, %v267
    %v278 = vcombine.high %v274, %v274
    %v280 = vunpack.c.l.s4 1966171168
    %v281 = vunpack.c.0.s8 %v280
    %v282 = vlaneseq
    %v283 = vshrl.u32 %v282, 7
    %v284 = vsub.s32 %v281, %v283
    %v285 = vrot.slane %v35, %v284
    %v286 = vcombine.high %v285, %v285
    %v288 = vunpack.c.l.s4 1966171168
    %v289 = vunpack.c.0.s8 %v288
    %v290 = vlaneseq
    %v291 = vshrl.u32 %v290, 7
    %v292 = vsub.s32 %v289, %v291
    %v293 = vrot.slane %v285, %v292
    %v295 = vunpack.c.l.s4 1966171168
    %v296 = vunpack.c.0.s8 %v295
    %v297 = vlaneseq
    %v298 = vshrl.u32 %v297, 7
    %v299 = vsub.s32 %v296, %v298
    %v300 = vrot.slane %v286, %v299
    %v301 = vcombine.high %v293, %v293
    %v302 = vcombine.high %v300, %v300
    %v494 = vunpack.c.l.b16 %v36
    %v495 = vunpack.c.h.b16 %v36
    %v496 = vunpack.c.l.b16 %v37
    %v497 = vunpack.c.h.b16 %v37
    %v498 = vunpack.c.l.b16 %v38
    %v499 = vunpack.c.h.b16 %v38
    %v500 = vunpack.c.l.b16 %v39
    %v501 = vunpack.c.h.b16 %v39
    %v502 = vunpack.c.l.b16 %v40
    %v503 = vunpack.c.h.b16 %v40
    %v504 = vunpack.c.l.b16 %v41
    %v505 = vunpack.c.h.b16 %v41
    %v506 = vunpack.c.l.b16 %v42
    %v507 = vunpack.c.h.b16 %v42
    %v508 = vunpack.c.l.b16 %v43
    %v509 = vunpack.c.h.b16 %v43
    %v510 = vunpack.c.l.b16 %v44
    %v511 = vunpack.c.h.b16 %v44
    %v512 = vunpack.c.l.b16 %v45
    %v513 = vunpack.c.h.b16 %v45
    %v514 = vunpack.c.l.b16 %v46
    %v515 = vunpack.c.h.b16 %v46
    %v516 = vunpack.c.l.b16 %v47
    %v517 = vunpack.c.h.b16 %v47
    %v518 = vunpack.c.l.b16 %v48
    %v519 = vunpack.c.h.b16 %v48
    %v520 = vunpack.c.l.b16 %v49
    %v521 = vunpack.c.h.b16 %v49
    %v522 = vunpack.c.l.b16 %v50
    %v523 = vunpack.c.h.b16 %v50
    %v524 = vunpack.c.l.b16 %v51
    %v525 = vunpack.c.h.b16 %v51
    %v526 = vunpack.c.l.b16 %v52
    %v527 = vunpack.c.h.b16 %v52
    %v528 = vunpack.c.l.b16 %v53
    %v529 = vunpack.c.h.b16 %v53
    %v530 = vunpack.c.l.b16 %v54
    %v531 = vunpack.c.h.b16 %v54
    %v532 = vunpack.c.l.b16 %v55
    %v533 = vunpack.c.h.b16 %v55
    %v534 = vunpack.c.l.b16 %v56
    %v535 = vunpack.c.h.b16 %v56
    %v536 = vunpack.c.l.b16 %v57
    %v537 = vunpack.c.h.b16 %v57
    %v538 = vunpack.c.l.b16 %v58
    %v539 = vunpack.c.h.b16 %v58
    %v540 = vunpack.c.l.b16 %v59
    %v541 = vunpack.c.h.b16 %v59
    %v542 = vunpack.c.l.b16 %v60
    %v543 = vunpack.c.h.b16 %v60
    %v544 = vunpack.c.l.b16 %v61
    %v545 = vunpack.c.h.b16 %v61
    %v546 = vunpack.c.l.b16 %v62
    %v547 = vunpack.c.h.b16 %v62
    %v548 = vunpack.c.l.b16 %v63
    %v549 = vunpack.c.h.b16 %v63
    %v550 = vunpack.c.l.b16 %v64
    %v551 = vunpack.c.h.b16 %v64
    %v552 = vunpack.c.l.b16 %v65
    %v553 = vunpack.c.h.b16 %v65
    %v554 = vunpack.c.l.b16 %v66
    %v555 = vunpack.c.h.b16 %v66
    %v556 = vunpack.c.l.b16 %v67
    %v557 = vunpack.c.h.b16 %v67
    %v558 = vunpack.c.l.b16 %v68
    %v559 = vunpack.c.h.b16 %v68
    %v560 = vunpack.c.l.b16 %v69
    %v561 = vunpack.c.h.b16 %v69
    %v562 = vunpack.c.l.b16 %v70
    %v563 = vunpack.c.h.b16 %v70
    %v564 = vunpack.c.l.b16 %v71
    %v565 = vunpack.c.h.b16 %v71
    %v566 = vunpack.c.l.b16 %v72
    %v567 = vunpack.c.h.b16 %v72
    %v568 = vunpack.c.l.b16 %v73
    %v569 = vunpack.c.h.b16 %v73
    %v570 = vunpack.c.l.b16 %v74
    %v571 = vunpack.c.h.b16 %v74
    %v572 = vunpack.c.l.b16 %v75
    %v573 = vunpack.c.h.b16 %v75
    %v574 = vunpack.c.l.b16 %v76
    %v575 = vunpack.c.h.b16 %v76
    %v576 = vunpack.c.l.b16 %v77
    %v577 = vunpack.c.h.b16 %v77
    %v578 = vunpack.c.l.b16 %v78
    %v579 = vunpack.c.h.b16 %v78
    %v580 = vunpack.c.l.b16 %v79
    %v581 = vunpack.c.h.b16 %v79
    %v582 = vunpack.c.l.b16 %v80
    %v583 = vunpack.c.h.b16 %v80
    %v584 = vunpack.c.l.b16 %v81
    %v585 = vunpack.c.h.b16 %v81
    %v586 = vunpack.c.l.b16 %v82
    %v587 = vunpack.c.h.b16 %v82
    %v588 = vunpack.c.l.b16 %v83
    %v589 = vunpack.c.h.b16 %v83
    %v590 = vunpack.c.l.b16 %v84
    %v591 = vunpack.c.h.b16 %v84
    %v592 = vunpack.c.l.b16 %v85
    %v593 = vunpack.c.h.b16 %v85
    %v594 = vunpack.c.l.b16 %v86
    %v595 = vunpack.c.h.b16 %v86
    %v596 = vunpack.c.l.b16 %v87
    %v597 = vunpack.c.h.b16 %v87
    %v598 = vunpack.c.l.b16 %v88
    %v599 = vunpack.c.h.b16 %v88
    %v600 = vunpack.c.l.b16 %v89
    %v601 = vunpack.c.h.b16 %v89
    %v602 = vunpack.c.l.b16 %v90
    %v603 = vunpack.c.h.b16 %v90
    %v604 = vunpack.c.l.b16 %v91
    %v605 = vunpack.c.h.b16 %v91
    %v606 = vunpack.c.l.b16 %v92
    %v607 = vunpack.c.h.b16 %v92
    %v608 = vunpack.c.l.b16 %v93
    %v609 = vunpack.c.h.b16 %v93
    %v610 = vunpack.c.l.b16 %v94
    %v611 = vunpack.c.h.b16 %v94
    %v612 = vunpack.c.l.b16 %v95
    %v613 = vunpack.c.h.b16 %v95
    %v614 = vunpack.c.l.b16 %v96
    %v615 = vunpack.c.h.b16 %v96
    %v616 = vunpack.c.l.b16 %v97
    %v617 = vunpack.c.h.b16 %v97
    %v618 = vunpack.c.l.b16 %v98
    %v619 = vunpack.c.h.b16 %v98
    %v620 = vunpack.c.l.b16 %v99
    %v621 = vunpack.c.h.b16 %v99
    %v622 = vunpack.c.l.b16 %v100
    %v623 = vunpack.c.h.b16 %v100
    %v624 = vunpack.c.l.b16 %v101
    %v625 = vunpack.c.h.b16 %v101
    %v626 = vunpack.c.l.b16 %v102
    %v627 = vunpack.c.h.b16 %v102
    %v628 = vunpack.c.l.b16 %v103
    %v629 = vunpack.c.h.b16 %v103
    %v630 = vunpack.c.l.b16 %v104
    %v631 = vunpack.c.h.b16 %v104
    %v632 = vunpack.c.l.b16 %v105
    %v633 = vunpack.c.h.b16 %v105
    %v634 = vunpack.c.l.b16 %v106
    %v635 = vunpack.c.h.b16 %v106
    %v636 = vunpack.c.l.b16 %v107
    %v637 = vunpack.c.h.b16 %v107
    %v638 = vunpack.c.l.b16 %v108
    %v639 = vunpack.c.h.b16 %v108
    %v640 = vunpack.c.l.b16 %v109
    %v641 = vunpack.c.h.b16 %v109
    %v642 = vunpack.c.l.b16 %v110
    %v643 = vunpack.c.h.b16 %v110
    %v644 = vunpack.c.l.b16 %v111
    %v645 = vunpack.c.h.b16 %v111
    %v646 = vunpack.c.l.b16 %v112
    %v647 = vunpack.c.h.b16 %v112
    %v648 = vunpack.c.l.b16 %v113
    %v649 = vunpack.c.h.b16 %v113
    %v650 = vunpack.c.l.b16 %v114
    %v651 = vunpack.c.h.b16 %v114
    %v652 = vunpack.c.l.b16 %v115
    %v653 = vunpack.c.h.b16 %v115
    %v654 = vunpack.c.l.b16 %v116
    %v655 = vunpack.c.h.b16 %v116
    %v656 = vunpack.c.l.b16 %v117
    %v657 = vunpack.c.h.b16 %v117
    %v658 = vunpack.c.l.b16 %v118
    %v659 = vunpack.c.h.b16 %v118
    %v660 = vunpack.c.l.b16 %v119
    %v661 = vunpack.c.h.b16 %v119
    %v662 = vunpack.c.l.b16 %v120
    %v663 = vunpack.c.h.b16 %v120
    %v664 = vunpack.c.l.b16 %v121
    %v665 = vunpack.c.h.b16 %v121
    %v666 = vunpack.c.l.b16 %v122
    %v667 = vunpack.c.h.b16 %v122
    %v668 = vunpack.c.l.b16 %v123
    %v669 = vunpack.c.h.b16 %v123
    %v670 = vunpack.c.l.b16 %v124
    %v671 = vunpack.c.h.b16 %v124
    %v672 = vunpack.c.l.b16 %v125
    %v673 = vunpack.c.h.b16 %v125
    %v674 = vunpack.c.l.b16 %v126
    %v675 = vunpack.c.h.b16 %v126
    %v676 = vunpack.c.l.b16 %v127
    %v677 = vunpack.c.h.b16 %v127
    %v678 = vunpack.c.l.b16 %v128
    %v679 = vunpack.c.h.b16 %v128
    %v680 = vunpack.c.l.b16 %v129
    %v681 = vunpack.c.h.b16 %v129
    %v682 = vunpack.c.l.b16 %v130
    %v683 = vunpack.c.h.b16 %v130
    %v684 = vunpack.c.l.b16 %v131
    %v685 = vunpack.c.h.b16 %v131
    %v686 = vunpack.c.l.b16 %v132
    %v687 = vunpack.c.h.b16 %v132
    %v688 = vunpack.c.l.b16 %v133
    %v689 = vunpack.c.h.b16 %v133
    %v690 = vunpack.c.l.b16 %v134
    %v691 = vunpack.c.h.b16 %v134
    %v692 = vunpack.c.l.b16 %v135
    %v693 = vunpack.c.h.b16 %v135
    %v694 = vunpack.c.l.b16 %v136
    %v695 = vunpack.c.h.b16 %v136
    %v696 = vunpack.c.l.b16 %v137
    %v697 = vunpack.c.h.b16 %v137
    %v698 = vunpack.c.l.b16 %v138
    %v699 = vunpack.c.h.b16 %v138
    %v700 = vunpack.c.l.b16 %v139
    %v701 = vunpack.c.h.b16 %v139
    %v702 = vunpack.c.l.b16 %v140
    %v703 = vunpack.c.h.b16 %v140
    %v704 = vunpack.c.l.b16 %v141
    %v705 = vunpack.c.h.b16 %v141
    %v706 = vunpack.c.l.b16 %v142
    %v707 = vunpack.c.h.b16 %v142
    %v708 = vunpack.c.l.b16 %v143
    %v709 = vunpack.c.h.b16 %v143
    %v710 = vunpack.c.l.b16 %v144
    %v711 = vunpack.c.h.b16 %v144
    %v712 = vunpack.c.l.b16 %v145
    %v713 = vunpack.c.h.b16 %v145
    %v714 = vunpack.c.l.b16 %v146
    %v715 = vunpack.c.h.b16 %v146
    %v716 = vunpack.c.l.b16 %v147
    %v717 = vunpack.c.h.b16 %v147
    %v718 = vunpack.c.l.b16 %v148
    %v719 = vunpack.c.h.b16 %v148
    %v720 = vunpack.c.l.b16 %v149
    %v721 = vunpack.c.h.b16 %v149
    %v722 = vunpack.c.l.b16 %v150
    %v723 = vunpack.c.h.b16 %v150
    %v724 = vunpack.c.l.b16 %v151
    %v725 = vunpack.c.h.b16 %v151
    %v726 = vunpack.c.l.b16 %v152
    %v727 = vunpack.c.h.b16 %v152
    %v728 = vunpack.c.l.b16 %v153
    %v729 = vunpack.c.h.b16 %v153
    %v730 = vunpack.c.l.b16 %v154
    %v731 = vunpack.c.h.b16 %v154
    %v732 = vunpack.c.l.b16 %v155
    %v733 = vunpack.c.h.b16 %v155
    %v734 = vunpack.c.l.b16 %v156
    %v735 = vunpack.c.h.b16 %v156
    %v736 = vunpack.c.l.b16 %v157
    %v737 = vunpack.c.h.b16 %v157
    %v738 = vunpack.c.l.b16 %v158
    %v739 = vunpack.c.h.b16 %v158
    %v740 = vunpack.c.l.b16 %v159
    %v741 = vunpack.c.h.b16 %v159
    %v742 = vunpack.c.l.b16 %v160
    %v743 = vunpack.c.h.b16 %v160
    %v744 = vunpack.c.l.b16 %v161
    %v745 = vunpack.c.h.b16 %v161
    %v746 = vunpack.c.l.b16 %v162
    %v747 = vunpack.c.h.b16 %v162
    %v748 = vunpack.c.l.b16 %v163
    %v749 = vunpack.c.h.b16 %v163
    %v750 = vunpack.c.l.b16 %v164
    %v751 = vunpack.c.h.b16 %v164
    %v752 = vunpack.c.l.b16 %v165
    %v753 = vunpack.c.h.b16 %v165
    %v754 = vunpack.c.l.b16 %v166
    %v755 = vunpack.c.h.b16 %v166
    %v756 = vunpack.c.l.b16 %v167
    %v757 = vunpack.c.h.b16 %v167
    %v758 = vunpack.c.l.b16 %v168
    %v759 = vunpack.c.h.b16 %v168
    %v760 = vunpack.c.l.b16 %v169
    %v761 = vunpack.c.h.b16 %v169
    %v762 = vunpack.c.l.b16 %v170
    %v763 = vunpack.c.h.b16 %v170
    %v764 = vunpack.c.l.b16 %v171
    %v765 = vunpack.c.h.b16 %v171
    %v766 = vunpack.c.l.b16 %v172
    %v767 = vunpack.c.h.b16 %v172
    %v768 = vunpack.c.l.b16 %v173
    %v769 = vunpack.c.h.b16 %v173
    %v770 = vunpack.c.l.b16 %v174
    %v771 = vunpack.c.h.b16 %v174
    %v772 = vunpack.c.l.b16 %v175
    %v773 = vunpack.c.h.b16 %v175
    %v774 = vunpack.c.l.b16 %v176
    %v775 = vunpack.c.h.b16 %v176
    %v776 = vunpack.c.l.b16 %v177
    %v777 = vunpack.c.h.b16 %v177
    %v778 = vunpack.c.l.b16 %v178
    %v779 = vunpack.c.h.b16 %v178
    %v780 = vunpack.c.l.b16 %v179
    %v781 = vunpack.c.h.b16 %v179
    %v782 = vunpack.c.l.b16 %v180
    %v783 = vunpack.c.h.b16 %v180
    %v784 = vunpack.c.l.b16 %v181
    %v785 = vunpack.c.h.b16 %v181
    %v786 = vunpack.c.l.b16 %v182
    %v787 = vunpack.c.h.b16 %v182
    %v788 = vunpack.c.l.b16 %v183
    %v789 = vunpack.c.h.b16 %v183
    %v790 = vunpack.c.l.b16 %v184
    %v791 = vunpack.c.h.b16 %v184
    %v792 = vunpack.c.l.b16 %v185
    %v793 = vunpack.c.h.b16 %v185
    %v794 = vunpack.c.l.b16 %v186
    %v795 = vunpack.c.h.b16 %v186
    %v796 = vunpack.c.l.b16 %v187
    %v797 = vunpack.c.h.b16 %v187
    %v798 = vunpack.c.l.b16 %v188
    %v799 = vunpack.c.h.b16 %v188
    %v800 = vunpack.c.l.b16 %v189
    %v801 = vunpack.c.h.b16 %v189
    %v802 = vunpack.c.l.b16 %v190
    %v803 = vunpack.c.h.b16 %v190
    %v804 = vunpack.c.l.b16 %v191
    %v805 = vunpack.c.h.b16 %v191
    %v806 = vunpack.c.l.b16 %v192
    %v807 = vunpack.c.h.b16 %v192
    %v808 = vunpack.c.l.b16 %v193
    %v809 = vunpack.c.h.b16 %v193
    %v810 = vunpack.c.l.b16 %v194
    %v811 = vunpack.c.h.b16 %v194
    %v812 = vunpack.c.l.b16 %v195
    %v813 = vunpack.c.h.b16 %v195
    %v814 = vunpack.c.l.b16 %v196
    %v815 = vunpack.c.h.b16 %v196
    %v816 = vunpack.c.l.b16 %v197
    %v817 = vunpack.c.h.b16 %v197
    %v818 = vunpack.c.l.b16 %v198
    %v819 = vunpack.c.h.b16 %v198
    %v820 = vunpack.c.l.b16 %v199
    %v821 = vunpack.c.h.b16 %v199
    %v822 = vunpack.c.l.b16 %v200
    %v823 = vunpack.c.h.b16 %v200
    %v824 = vunpack.c.l.b16 %v201
    %v825 = vunpack.c.h.b16 %v201
    %v826 = vunpack.c.l.b16 %v202
    %v827 = vunpack.c.h.b16 %v202
    %v828 = vunpack.c.l.b16 %v203
    %v829 = vunpack.c.h.b16 %v203
    %v830 = vunpack.c.l.b16 %v204
    %v831 = vunpack.c.h.b16 %v204
    %v832 = vunpack.c.l.b16 %v205
    %v833 = vunpack.c.h.b16 %v205
    %v834 = vunpack.c.l.b16 %v206
    %v835 = vunpack.c.h.b16 %v206
    %v836 = vunpack.c.l.b16 %v207
    %v837 = vunpack.c.h.b16 %v207
    %v838 = vunpack.c.l.b16 %v208
    %v839 = vunpack.c.h.b16 %v208
    %v840 = vunpack.c.l.b16 %v209
    %v841 = vunpack.c.h.b16 %v209
    %v842 = vunpack.c.l.b16 %v210
    %v843 = vunpack.c.h.b16 %v210
    %v844 = vunpack.c.l.b16 %v211
    %v845 = vunpack.c.h.b16 %v211
    %v846 = vunpack.c.l.b16 %v212
    %v847 = vunpack.c.h.b16 %v212
    %v848 = vunpack.c.l.b16 %v213
    %v849 = vunpack.c.h.b16 %v213
    %v850 = vunpack.c.l.b16 %v214
    %v851 = vunpack.c.h.b16 %v214
    %v852 = vunpack.c.l.b16 %v215
    %v853 = vunpack.c.h.b16 %v215
    %v854 = vpack.c.b16 %v496, %v494
    %v855 = vpack.c.b16 %v497, %v495
    %v856 = vpack.c.b16 %v500, %v498
    %v857 = vpack.c.b16 %v501, %v499
    %v858 = vpack.c.b16 %v504, %v502
    %v859 = vpack.c.b16 %v505, %v503
    %v860 = vpack.c.b16 %v508, %v506
    %v861 = vpack.c.b16 %v509, %v507
    %v862 = vpack.c.b16 %v512, %v510
    %v863 = vpack.c.b16 %v513, %v511
    %v864 = vpack.c.b16 %v516, %v514
    %v865 = vpack.c.b16 %v517, %v515
    %v866 = vpack.c.b16 %v520, %v518
    %v867 = vpack.c.b16 %v521, %v519
    %v868 = vpack.c.b16 %v524, %v522
    %v869 = vpack.c.b16 %v525, %v523
    %v870 = vpack.c.b16 %v528, %v526
    %v871 = vpack.c.b16 %v529, %v527
    %v872 = vpack.c.b16 %v532, %v530
    %v873 = vpack.c.b16 %v533, %v531
    %v874 = vpack.c.b16 %v536, %v534
    %v875 = vpack.c.b16 %v537, %v535
    %v876 = vpack.c.b16 %v540, %v538
    %v877 = vpack.c.b16 %v541, %v539
    %v878 = vpack.c.b16 %v544, %v542
    %v879 = vpack.c.b16 %v545, %v543
    %v880 = vpack.c.b16 %v548, %v546
    %v881 = vpack.c.b16 %v549, %v547
    %v882 = vpack.c.b16 %v552, %v550
    %v883 = vpack.c.b16 %v553, %v551
    %v884 = vpack.c.b16 %v556, %v554
    %v885 = vpack.c.b16 %v557, %v555
    %v886 = vpack.c.b16 %v560, %v558
    %v887 = vpack.c.b16 %v561, %v559
    %v888 = vpack.c.b16 %v564, %v562
    %v889 = vpack.c.b16 %v565, %v563
    %v890 = vpack.c.b16 %v568, %v566
    %v891 = vpack.c.b16 %v569, %v567
    %v892 = vpack.c.b16 %v572, %v570
    %v893 = vpack.c.b16 %v573, %v571
    %v894 = vpack.c.b16 %v576, %v574
    %v895 = vpack.c.b16 %v577, %v575
    %v896 = vpack.c.b16 %v580, %v578
    %v897 = vpack.c.b16 %v581, %v579
    %v898 = vpack.c.b16 %v584, %v582
    %v899 = vpack.c.b16 %v585, %v583
    %v900 = vpack.c.b16 %v588, %v586
    %v901 = vpack.c.b16 %v589, %v587
    %v902 = vpack.c.b16 %v592, %v590
    %v903 = vpack.c.b16 %v593, %v591
    %v904 = vpack.c.b16 %v596, %v594
    %v905 = vpack.c.b16 %v597, %v595
    %v906 = vpack.c.b16 %v600, %v598
    %v907 = vpack.c.b16 %v601, %v599
    %v908 = vpack.c.b16 %v604, %v602
    %v909 = vpack.c.b16 %v605, %v603
    %v910 = vpack.c.b16 %v608, %v606
    %v911 = vpack.c.b16 %v609, %v607
    %v912 = vpack.c.b16 %v612, %v610
    %v913 = vpack.c.b16 %v613, %v611
    %v914 = vpack.c.b16 %v616, %v614
    %v915 = vpack.c.b16 %v617, %v615
    %v916 = vpack.c.b16 %v620, %v618
    %v917 = vpack.c.b16 %v621, %v619
    %v918 = vpack.c.b16 %v624, %v622
    %v919 = vpack.c.b16 %v625, %v623
    %v920 = vpack.c.b16 %v628, %v626
    %v921 = vpack.c.b16 %v629, %v627
    %v922 = vpack.c.b16 %v632, %v630
    %v923 = vpack.c.b16 %v633, %v631
    %v924 = vpack.c.b16 %v636, %v634
    %v925 = vpack.c.b16 %v637, %v635
    %v926 = vpack.c.b16 %v640, %v638
    %v927 = vpack.c.b16 %v641, %v639
    %v928 = vpack.c.b16 %v644, %v642
    %v929 = vpack.c.b16 %v645, %v643
    %v930 = vpack.c.b16 %v648, %v646
    %v931 = vpack.c.b16 %v649, %v647
    %v932 = vpack.c.b16 %v652, %v650
    %v933 = vpack.c.b16 %v653, %v651
    %v934 = vpack.c.b16 %v656, %v654
    %v935 = vpack.c.b16 %v657, %v655
    %v936 = vpack.c.b16 %v660, %v658
    %v937 = vpack.c.b16 %v661, %v659
    %v938 = vpack.c.b16 %v664, %v662
    %v939 = vpack.c.b16 %v665, %v663
    %v940 = vpack.c.b16 %v668, %v666
    %v941 = vpack.c.b16 %v669, %v667
    %v942 = vpack.c.b16 %v672, %v670
    %v943 = vpack.c.b16 %v673, %v671
    %v944 = vpack.c.b16 %v676, %v674
    %v945 = vpack.c.b16 %v677, %v675
    %v946 = vpack.c.b16 %v680, %v678
    %v947 = vpack.c.b16 %v681, %v679
    %v948 = vpack.c.b16 %v684, %v682
    %v949 = vpack.c.b16 %v685, %v683
    %v950 = vpack.c.b16 %v688, %v686
    %v951 = vpack.c.b16 %v689, %v687
    %v952 = vpack.c.b16 %v692, %v690
    %v953 = vpack.c.b16 %v693, %v691
    %v954 = vpack.c.b16 %v696, %v694
    %v955 = vpack.c.b16 %v697, %v695
    %v956 = vpack.c.b16 %v700, %v698
    %v957 = vpack.c.b16 %v701, %v699
    %v958 = vpack.c.b16 %v704, %v702
    %v959 = vpack.c.b16 %v705, %v703
    %v960 = vpack.c.b16 %v708, %v706
    %v961 = vpack.c.b16 %v709, %v707
    %v962 = vpack.c.b16 %v712, %v710
    %v963 = vpack.c.b16 %v713, %v711
    %v964 = vpack.c.b16 %v716, %v714
    %v965 = vpack.c.b16 %v717, %v715
    %v966 = vpack.c.b16 %v720, %v718
    %v967 = vpack.c.b16 %v721, %v719
    %v968 = vpack.c.b16 %v724, %v722
    %v969 = vpack.c.b16 %v725, %v723
    %v970 = vpack.c.b16 %v728, %v726
    %v971 = vpack.c.b16 %v729, %v727
    %v972 = vpack.c.b16 %v732, %v730
    %v973 = vpack.c.b16 %v733, %v731
    %v974 = vpack.c.b16 %v736, %v734
    %v975 = vpack.c.b16 %v737, %v735
    %v976 = vpack.c.b16 %v740, %v738
    %v977 = vpack.c.b16 %v741, %v739
    %v978 = vpack.c.b16 %v744, %v742
    %v979 = vpack.c.b16 %v745, %v743
    %v980 = vpack.c.b16 %v748, %v746
    %v981 = vpack.c.b16 %v749, %v747
    %v982 = vpack.c.b16 %v752, %v750
    %v983 = vpack.c.b16 %v753, %v751
    %v984 = vpack.c.b16 %v756, %v754
    %v985 = vpack.c.b16 %v757, %v755
    %v986 = vpack.c.b16 %v760, %v758
    %v987 = vpack.c.b16 %v761, %v759
    %v988 = vpack.c.b16 %v764, %v762
    %v989 = vpack.c.b16 %v765, %v763
    %v990 = vpack.c.b16 %v768, %v766
    %v991 = vpack.c.b16 %v769, %v767
    %v992 = vpack.c.b16 %v772, %v770
    %v993 = vpack.c.b16 %v773, %v771
    %v994 = vpack.c.b16 %v776, %v774
    %v995 = vpack.c.b16 %v777, %v775
    %v996 = vpack.c.b16 %v780, %v778
    %v997 = vpack.c.b16 %v781, %v779
    %v998 = vpack.c.b16 %v784, %v782
    %v999 = vpack.c.b16 %v785, %v783
    %v1000 = vpack.c.b16 %v788, %v786
    %v1001 = vpack.c.b16 %v789, %v787
    %v1002 = vpack.c.b16 %v792, %v790
    %v1003 = vpack.c.b16 %v793, %v791
    %v1004 = vpack.c.b16 %v796, %v794
    %v1005 = vpack.c.b16 %v797, %v795
    %v1006 = vpack.c.b16 %v800, %v798
    %v1007 = vpack.c.b16 %v801, %v799
    %v1008 = vpack.c.b16 %v804, %v802
    %v1009 = vpack.c.b16 %v805, %v803
    %v1010 = vpack.c.b16 %v808, %v806
    %v1011 = vpack.c.b16 %v809, %v807
    %v1012 = vpack.c.b16 %v812, %v810
    %v1013 = vpack.c.b16 %v813, %v811
    %v1014 = vpack.c.b16 %v816, %v814
    %v1015 = vpack.c.b16 %v817, %v815
    %v1016 = vpack.c.b16 %v820, %v818
    %v1017 = vpack.c.b16 %v821, %v819
    %v1018 = vpack.c.b16 %v824, %v822
    %v1019 = vpack.c.b16 %v825, %v823
    %v1020 = vpack.c.b16 %v828, %v826
    %v1021 = vpack.c.b16 %v829, %v827
    %v1022 = vpack.c.b16 %v832, %v830
    %v1023 = vpack.c.b16 %v833, %v831
    %v1024 = vpack.c.b16 %v836, %v834
    %v1025 = vpack.c.b16 %v837, %v835
    %v1026 = vpack.c.b16 %v840, %v838
    %v1027 = vpack.c.b16 %v841, %v839
    %v1028 = vpack.c.b16 %v844, %v842
    %v1029 = vpack.c.b16 %v845, %v843
    %v1030 = vpack.c.b16 %v848, %v846
    %v1031 = vpack.c.b16 %v849, %v847
    %v1032 = vpack.c.b16 %v852, %v850
    %v1033 = vpack.c.b16 %v853, %v851
    %vm1214 = vcmask 261120
    %v1216 = vsel %vm1214, %v302, 0
    %1218 = vmatprep.subr.bf16.mxu0 %v869
    %1219 = vmatpush1.bf16.msra.mxu0 %v868
    %1220 = vmatprep.subr.bf16.mxu0 %v867
    %1221 = vmatpush1.bf16.msra.mxu0 %v866
    %1222 = vmatprep.subr.bf16.mxu0 %v865
    %1223 = vmatpush1.bf16.msra.mxu0 %v864
    %1224 = vmatprep.subr.bf16.mxu0 %v863
    %1225 = vmatpush1.bf16.msra.mxu0 %v862
    %1226 = vmatprep.subr.bf16.mxu0 %v861
    %1227 = vmatpush1.bf16.msra.mxu0 %v860
    %1228 = vmatprep.subr.bf16.mxu0 %v859
    %1229 = vmatpush1.bf16.msra.mxu0 %v858
    %1230 = vmatprep.subr.bf16.mxu0 %v857
    %1231 = vmatpush1.bf16.msra.mxu0 %v856
    %1232 = vmatprep.subr.bf16.mxu0 %v855
    %1233 = vmatpush1.bf16.msra.mxu0 %v854
    %1234 = vmatprep.subr.bf16.mxu0 %v885
    %1235 = vmatpush2.bf16.msra.mxu0 %v884
    %1236 = vmatprep.subr.bf16.mxu0 %v883
    %1237 = vmatpush2.bf16.msra.mxu0 %v882
    %1238 = vmatprep.subr.bf16.mxu0 %v881
    %1239 = vmatpush2.bf16.msra.mxu0 %v880
    %1240 = vmatprep.subr.bf16.mxu0 %v879
    %1241 = vmatpush2.bf16.msra.mxu0 %v878
    %1242 = vmatprep.subr.bf16.mxu0 %v877
    %1243 = vmatpush2.bf16.msra.mxu0 %v876
    %1244 = vmatprep.subr.bf16.mxu0 %v875
    %1245 = vmatpush2.bf16.msra.mxu0 %v874
    %1246 = vmatprep.subr.bf16.mxu0 %v873
    %1247 = vmatpush2.bf16.msra.mxu0 %v872
    %1248 = vmatprep.subr.bf16.mxu0 %v871
    %1249 = vmatpush2.bf16.msra.mxu0 %v870
    %1250 = vmatprep.mubr.bf16.mxu0 %v267
    %1251 = vmatmul.mubr.bf16.gmra.mxu0 %v253
    %v1252 = vpop.f32.mrf.mxu0
    %v1253 = vadd.f32 %v221, %v1252
    %v1254 = vpop.f32.mrf.mxu0
    %v1255 = vadd.f32 %v225, %v1254
    %v1256 = vpop.f32.mrf.mxu0
    %v1257 = vpop.f32.mrf.mxu0
    %1258 = vdwg.mxu0
    %1259 = vmatprep.subr.bf16.mxu0 %v901
    %1260 = vmatpush1.bf16.msra.mxu0 %v900
    %1261 = vmatprep.subr.bf16.mxu0 %v899
    %1262 = vmatpush1.bf16.msra.mxu0 %v898
    %1263 = vmatprep.subr.bf16.mxu0 %v897
    %1264 = vmatpush1.bf16.msra.mxu0 %v896
    %1265 = vmatprep.subr.bf16.mxu0 %v895
    %1266 = vmatpush1.bf16.msra.mxu0 %v894
    %1267 = vmatprep.subr.bf16.mxu0 %v893
    %1268 = vmatpush1.bf16.msra.mxu0 %v892
    %1269 = vmatprep.subr.bf16.mxu0 %v891
    %1270 = vmatpush1.bf16.msra.mxu0 %v890
    %1271 = vmatprep.subr.bf16.mxu0 %v889
    %1272 = vmatpush1.bf16.msra.mxu0 %v888
    %1273 = vmatprep.subr.bf16.mxu0 %v887
    %1274 = vmatpush1.bf16.msra.mxu0 %v886
    %1275 = vmatprep.subr.bf16.mxu0 %v917
    %1276 = vmatpush2.bf16.msra.mxu0 %v916
    %1277 = vmatprep.subr.bf16.mxu0 %v915
    %1278 = vmatpush2.bf16.msra.mxu0 %v914
    %1279 = vmatprep.subr.bf16.mxu0 %v913
    %1280 = vmatpush2.bf16.msra.mxu0 %v912
    %1281 = vmatprep.subr.bf16.mxu0 %v911
    %1282 = vmatpush2.bf16.msra.mxu0 %v910
    %1283 = vmatprep.subr.bf16.mxu0 %v909
    %1284 = vmatpush2.bf16.msra.mxu0 %v908
    %1285 = vmatprep.subr.bf16.mxu0 %v907
    %1286 = vmatpush2.bf16.msra.mxu0 %v906
    %1287 = vmatprep.subr.bf16.mxu0 %v905
    %1288 = vmatpush2.bf16.msra.mxu0 %v904
    %1289 = vmatprep.subr.bf16.mxu0 %v903
    %1290 = vmatpush2.bf16.msra.mxu0 %v902
    %1291 = vmatprep.mubr.bf16.mxu0 %v277
    %1292 = vmatmul.mubr.bf16.gmra.mxu0 %v275
    %v1293 = vpop.f32.mrf.mxu0
    %v1294 = vadd.f32 %v1253, %v1293
    %v1295 = vpop.f32.mrf.mxu0
    %v1296 = vadd.f32 %v1255, %v1295
    %v1297 = vpop.f32.mrf.mxu0
    %v1298 = vpop.f32.mrf.mxu0
    %1299 = vdwg.mxu0
    %1300 = vmatprep.subr.bf16.mxu0 %v933
    %1301 = vmatpush1.bf16.msra.mxu0 %v932
    %1302 = vmatprep.subr.bf16.mxu0 %v931
    %1303 = vmatpush1.bf16.msra.mxu0 %v930
    %1304 = vmatprep.subr.bf16.mxu0 %v929
    %1305 = vmatpush1.bf16.msra.mxu0 %v928
    %1306 = vmatprep.subr.bf16.mxu0 %v927
    %1307 = vmatpush1.bf16.msra.mxu0 %v926
    %1308 = vmatprep.subr.bf16.mxu0 %v925
    %1309 = vmatpush1.bf16.msra.mxu0 %v924
    %1310 = vmatprep.subr.bf16.mxu0 %v923
    %1311 = vmatpush1.bf16.msra.mxu0 %v922
    %1312 = vmatprep.subr.bf16.mxu0 %v921
    %1313 = vmatpush1.bf16.msra.mxu0 %v920
    %1314 = vmatprep.subr.bf16.mxu0 %v919
    %1315 = vmatpush1.bf16.msra.mxu0 %v918
    %1316 = vmatprep.subr.bf16.mxu0 %v949
    %1317 = vmatpush2.bf16.msra.mxu0 %v948
    %1318 = vmatprep.subr.bf16.mxu0 %v947
    %1319 = vmatpush2.bf16.msra.mxu0 %v946
    %1320 = vmatprep.subr.bf16.mxu0 %v945
    %1321 = vmatpush2.bf16.msra.mxu0 %v944
    %1322 = vmatprep.subr.bf16.mxu0 %v943
    %1323 = vmatpush2.bf16.msra.mxu0 %v942
    %1324 = vmatprep.subr.bf16.mxu0 %v941
    %1325 = vmatpush2.bf16.msra.mxu0 %v940
    %1326 = vmatprep.subr.bf16.mxu0 %v939
    %1327 = vmatpush2.bf16.msra.mxu0 %v938
    %1328 = vmatprep.subr.bf16.mxu0 %v937
    %1329 = vmatpush2.bf16.msra.mxu0 %v936
    %1330 = vmatprep.subr.bf16.mxu0 %v935
    %1331 = vmatpush2.bf16.msra.mxu0 %v934
    %1332 = vmatprep.mubr.bf16.mxu0 %v274
    %1333 = vmatmul.mubr.bf16.gmra.mxu0 %v260
    %v1334 = vpop.f32.mrf.mxu0
    %v1335 = vadd.f32 %v1294, %v1334
    %v1336 = vpop.f32.mrf.mxu0
    %v1337 = vadd.f32 %v1296, %v1336
    %v1338 = vpop.f32.mrf.mxu0
    %v1339 = vpop.f32.mrf.mxu0
    %1340 = vdwg.mxu0
    %1341 = vmatprep.subr.bf16.mxu0 %v965
    %1342 = vmatpush1.bf16.msra.mxu0 %v964
    %1343 = vmatprep.subr.bf16.mxu0 %v963
    %1344 = vmatpush1.bf16.msra.mxu0 %v962
    %1345 = vmatprep.subr.bf16.mxu0 %v961
    %1346 = vmatpush1.bf16.msra.mxu0 %v960
    %1347 = vmatprep.subr.bf16.mxu0 %v959
    %1348 = vmatpush1.bf16.msra.mxu0 %v958
    %1349 = vmatprep.subr.bf16.mxu0 %v957
    %1350 = vmatpush1.bf16.msra.mxu0 %v956
    %1351 = vmatprep.subr.bf16.mxu0 %v955
    %1352 = vmatpush1.bf16.msra.mxu0 %v954
    %1353 = vmatprep.subr.bf16.mxu0 %v953
    %1354 = vmatpush1.bf16.msra.mxu0 %v952
    %1355 = vmatprep.subr.bf16.mxu0 %v951
    %1356 = vmatpush1.bf16.msra.mxu0 %v950
    %1357 = vmatprep.subr.bf16.mxu0 %v981
    %1358 = vmatpush2.bf16.msra.mxu0 %v980
    %1359 = vmatprep.subr.bf16.mxu0 %v979
    %1360 = vmatpush2.bf16.msra.mxu0 %v978
    %1361 = vmatprep.subr.bf16.mxu0 %v977
    %1362 = vmatpush2.bf16.msra.mxu0 %v976
    %1363 = vmatprep.subr.bf16.mxu0 %v975
    %1364 = vmatpush2.bf16.msra.mxu0 %v974
    %1365 = vmatprep.subr.bf16.mxu0 %v973
    %1366 = vmatpush2.bf16.msra.mxu0 %v972
    %1367 = vmatprep.subr.bf16.mxu0 %v971
    %1368 = vmatpush2.bf16.msra.mxu0 %v970
    %1369 = vmatprep.subr.bf16.mxu0 %v969
    %1370 = vmatpush2.bf16.msra.mxu0 %v968
    %1371 = vmatprep.subr.bf16.mxu0 %v967
    %1372 = vmatpush2.bf16.msra.mxu0 %v966
    %1373 = vmatprep.mubr.bf16.mxu0 %v278
    %1374 = vmatmul.mubr.bf16.gmra.mxu0 %v276
    %v1375 = vpop.f32.mrf.mxu0
    %v1376 = vadd.f32 %v1335, %v1375
    %v1377 = vpop.f32.mrf.mxu0
    %v1378 = vadd.f32 %v1337, %v1377
    %v1379 = vpop.f32.mrf.mxu0
    %v1380 = vpop.f32.mrf.mxu0
    %1381 = vdwg.mxu0
    %1382 = vmatprep.subr.bf16.mxu0 %v997
    %1383 = vmatpush1.bf16.msra.mxu0 %v996
    %1384 = vmatprep.subr.bf16.mxu0 %v995
    %1385 = vmatpush1.bf16.msra.mxu0 %v994
    %1386 = vmatprep.subr.bf16.mxu0 %v993
    %1387 = vmatpush1.bf16.msra.mxu0 %v992
    %1388 = vmatprep.subr.bf16.mxu0 %v991
    %1389 = vmatpush1.bf16.msra.mxu0 %v990
    %1390 = vmatprep.subr.bf16.mxu0 %v989
    %1391 = vmatpush1.bf16.msra.mxu0 %v988
    %1392 = vmatprep.subr.bf16.mxu0 %v987
    %1393 = vmatpush1.bf16.msra.mxu0 %v986
    %1394 = vmatprep.subr.bf16.mxu0 %v985
    %1395 = vmatpush1.bf16.msra.mxu0 %v984
    %1396 = vmatprep.subr.bf16.mxu0 %v983
    %1397 = vmatpush1.bf16.msra.mxu0 %v982
    %1398 = vmatprep.subr.bf16.mxu0 %v1013
    %1399 = vmatpush2.bf16.msra.mxu0 %v1012
    %1400 = vmatprep.subr.bf16.mxu0 %v1011
    %1401 = vmatpush2.bf16.msra.mxu0 %v1010
    %1402 = vmatprep.subr.bf16.mxu0 %v1009
    %1403 = vmatpush2.bf16.msra.mxu0 %v1008
    %1404 = vmatprep.subr.bf16.mxu0 %v1007
    %1405 = vmatpush2.bf16.msra.mxu0 %v1006
    %1406 = vmatprep.subr.bf16.mxu0 %v1005
    %1407 = vmatpush2.bf16.msra.mxu0 %v1004
    %1408 = vmatprep.subr.bf16.mxu0 %v1003
    %1409 = vmatpush2.bf16.msra.mxu0 %v1002
    %1410 = vmatprep.subr.bf16.mxu0 %v1001
    %1411 = vmatpush2.bf16.msra.mxu0 %v1000
    %1412 = vmatprep.subr.bf16.mxu0 %v999
    %1413 = vmatpush2.bf16.msra.mxu0 %v998
    %1414 = vmatprep.mubr.bf16.mxu0 %v300
    %1415 = vmatmul.mubr.bf16.gmra.mxu0 %v293
    %v1416 = vpop.f32.mrf.mxu0
    %v1417 = vadd.f32 %v1376, %v1416
    %v1418 = vpop.f32.mrf.mxu0
    %v1419 = vadd.f32 %v1378, %v1418
    %v1420 = vpop.f32.mrf.mxu0
    %v1421 = vpop.f32.mrf.mxu0
    %1422 = vdwg.mxu0
    %1423 = vmatprep.subr.bf16.mxu0 %v1029
    %1424 = vmatpush1.bf16.msra.mxu0 %v1028
    %1425 = vmatprep.subr.bf16.mxu0 %v1027
    %1426 = vmatpush1.bf16.msra.mxu0 %v1026
    %1427 = vmatprep.subr.bf16.mxu0 %v1025
    %1428 = vmatpush1.bf16.msra.mxu0 %v1024
    %1429 = vmatprep.subr.bf16.mxu0 %v1023
    %1430 = vmatpush1.bf16.msra.mxu0 %v1022
    %1431 = vmatprep.subr.bf16.mxu0 %v1021
    %1432 = vmatpush1.bf16.msra.mxu0 %v1020
    %1433 = vmatprep.subr.bf16.mxu0 %v1019
    %1434 = vmatpush1.bf16.msra.mxu0 %v1018
    %1435 = vmatprep.subr.bf16.mxu0 %v1017
    %1436 = vmatpush1.bf16.msra.mxu0 %v1016
    %1437 = vmatprep.subr.bf16.mxu0 %v1015
    %1438 = vmatpush1.bf16.msra.mxu0 %v1014
    %1439 = vmatprep.subr.bf16.mxu0 0
    %1440 = vmatpush2.bf16.msra.mxu0 0
    %1441 = vmatprep.subr.bf16.mxu0 0
    %1442 = vmatpush2.bf16.msra.mxu0 0
    %1443 = vmatprep.subr.bf16.mxu0 0
    %1444 = vmatpush2.bf16.msra.mxu0 0
    %1445 = vmatprep.subr.bf16.mxu0 0
    %1446 = vmatpush2.bf16.msra.mxu0 0
    %1447 = vmatprep.subr.bf16.mxu0 0
    %1448 = vmatpush2.bf16.msra.mxu0 0
    %1449 = vmatprep.subr.bf16.mxu0 0
    %1450 = vmatpush2.bf16.msra.mxu0 0
    %1451 = vmatprep.subr.bf16.mxu0 %v1033
    %1452 = vmatpush2.bf16.msra.mxu0 %v1032
    %1453 = vmatprep.subr.bf16.mxu0 %v1031
    %1454 = vmatpush2.bf16.msra.mxu0 %v1030
    %1455 = vmatprep.mubr.bf16.mxu0 %v1216
    %1456 = vmatmul.mubr.bf16.gmra.mxu0 %v301
    %v1457 = vpop.f32.mrf.mxu0
    %v1458 = vadd.f32 %v1417, %v1457
    %v1459 = vpop.f32.mrf.mxu0
    %v1460 = vadd.f32 %v1419, %v1459
    %v1461 = vpop.f32.mrf.mxu0
    %v1462 = vpop.f32.mrf.mxu0
    %1463 = vdwg.mxu0
    %v1464 = vmax.f32 %v1458, 0.0
    %v1465 = vmax.f32 %v1460, 0.0
    %v1466 = vpack.c.bf16 %v1464, %v1464
    %v1467 = vpack.c.bf16 %v1465, %v1465
    %v1468 = vld [vmem:[%s3] sm:$0xff]
    %v1469 = vld [vmem:[%s3 + $0x8] sm:$0xff]
    %v1470 = vld [vmem:[%s3 + $0x10] sm:$0xff]
    %v1471 = vld [vmem:[%s3 + $0x18] sm:$0xff]
    %v1472 = vld [vmem:[%s3 + $0x20] sm:$0xff]
    %v1473 = vld [vmem:[%s3 + $0x28] sm:$0xff]
    %v1474 = vld [vmem:[%s3 + $0x30] sm:$0xff]
    %v1475 = vld [vmem:[%s3 + $0x38] sm:$0xff]
    %v1476 = vld [vmem:[%s3 + $0x40] sm:$0xff]
    %v1477 = vld [vmem:[%s3 + $0x48] sm:$0xff]
    %v1478 = vld [vmem:[%s3 + $0x50] sm:$0xff]
    %v1479 = vld [vmem:[%s3 + $0x58] sm:$0xff]
    %v1480 = vld [vmem:[%s3 + $0x60] sm:$0xff]
    %v1481 = vld [vmem:[%s3 + $0x68] sm:$0xff]
    %v1482 = vld [vmem:[%s3 + $0x70] sm:$0xff]
    %v1483 = vld [vmem:[%s3 + $0x78] sm:$0xff]
    %v1484 = vld [vmem:[%s3 + $0x80] sm:$0xff]
    %v1485 = vld [vmem:[%s3 + $0x88] sm:$0xff]
    %v1486 = vld [vmem:[%s3 + $0x90] sm:$0xff]
    %v1487 = vld [vmem:[%s3 + $0x98] sm:$0xff]
    %v1488 = vld [vmem:[%s3 + $0xa0] sm:$0xff]
    %v1489 = vld [vmem:[%s3 + $0xa8] sm:$0xff]
    %v1490 = vld [vmem:[%s3 + $0xb0] sm:$0xff]
    %v1491 = vld [vmem:[%s3 + $0xb8] sm:$0xff]
    %v1492 = vld [vmem:[%s3 + $0xc0] sm:$0xff]
    %v1493 = vld [vmem:[%s4] sm:$0x3]
    %v1495 = vlaneseq
    %v1496 = vshrl.u32 %v1495, 7
    %v1497 = vsub.s32 0, %v1496
    %v1498 = vrot.slane %v1493, %v1497
    %v1499 = vlaneseq
    %v1500 = vshrl.u32 %v1499, 7
    %v1501 = vsub.s32 1, %v1500
    %v1502 = vrot.slane %v1493, %v1501
    %v1530 = vunpack.c.l.b16 %v1468
    %v1531 = vunpack.c.h.b16 %v1468
    %v1532 = vunpack.c.l.b16 %v1469
    %v1533 = vunpack.c.h.b16 %v1469
    %v1534 = vunpack.c.l.b16 %v1470
    %v1535 = vunpack.c.h.b16 %v1470
    %v1536 = vunpack.c.l.b16 %v1471
    %v1537 = vunpack.c.h.b16 %v1471
    %v1538 = vunpack.c.l.b16 %v1472
    %v1539 = vunpack.c.h.b16 %v1472
    %v1540 = vunpack.c.l.b16 %v1473
    %v1541 = vunpack.c.h.b16 %v1473
    %v1542 = vunpack.c.l.b16 %v1474
    %v1543 = vunpack.c.h.b16 %v1474
    %v1544 = vunpack.c.l.b16 %v1475
    %v1545 = vunpack.c.h.b16 %v1475
    %v1546 = vunpack.c.l.b16 %v1476
    %v1547 = vunpack.c.h.b16 %v1476
    %v1548 = vunpack.c.l.b16 %v1477
    %v1549 = vunpack.c.h.b16 %v1477
    %v1550 = vunpack.c.l.b16 %v1478
    %v1551 = vunpack.c.h.b16 %v1478
    %v1552 = vunpack.c.l.b16 %v1479
    %v1553 = vunpack.c.h.b16 %v1479
    %v1554 = vunpack.c.l.b16 %v1480
    %v1555 = vunpack.c.h.b16 %v1480
    %v1556 = vunpack.c.l.b16 %v1481
    %v1557 = vunpack.c.h.b16 %v1481
    %v1558 = vunpack.c.l.b16 %v1482
    %v1559 = vunpack.c.h.b16 %v1482
    %v1560 = vunpack.c.l.b16 %v1483
    %v1561 = vunpack.c.h.b16 %v1483
    %v1562 = vunpack.c.l.b16 %v1484
    %v1563 = vunpack.c.h.b16 %v1484
    %v1564 = vunpack.c.l.b16 %v1485
    %v1565 = vunpack.c.h.b16 %v1485
    %v1566 = vunpack.c.l.b16 %v1486
    %v1567 = vunpack.c.h.b16 %v1486
    %v1568 = vunpack.c.l.b16 %v1487
    %v1569 = vunpack.c.h.b16 %v1487
    %v1570 = vunpack.c.l.b16 %v1488
    %v1571 = vunpack.c.h.b16 %v1488
    %v1572 = vunpack.c.l.b16 %v1489
    %v1573 = vunpack.c.h.b16 %v1489
    %v1574 = vunpack.c.l.b16 %v1490
    %v1575 = vunpack.c.h.b16 %v1490
    %v1576 = vunpack.c.l.b16 %v1491
    %v1577 = vunpack.c.h.b16 %v1491
    %v1578 = vunpack.c.l.b16 %v1492
    %v1579 = vunpack.c.h.b16 %v1492
    %v1580 = vpack.c.b16 %v1532, %v1530
    %v1581 = vpack.c.b16 %v1533, %v1531
    %v1582 = vpack.c.b16 %v1536, %v1534
    %v1583 = vpack.c.b16 %v1537, %v1535
    %v1584 = vpack.c.b16 %v1540, %v1538
    %v1585 = vpack.c.b16 %v1541, %v1539
    %v1586 = vpack.c.b16 %v1544, %v1542
    %v1587 = vpack.c.b16 %v1545, %v1543
    %v1588 = vpack.c.b16 %v1548, %v1546
    %v1589 = vpack.c.b16 %v1549, %v1547
    %v1590 = vpack.c.b16 %v1552, %v1550
    %v1591 = vpack.c.b16 %v1553, %v1551
    %v1592 = vpack.c.b16 %v1556, %v1554
    %v1593 = vpack.c.b16 %v1557, %v1555
    %v1594 = vpack.c.b16 %v1560, %v1558
    %v1595 = vpack.c.b16 %v1561, %v1559
    %v1596 = vpack.c.b16 %v1564, %v1562
    %v1597 = vpack.c.b16 %v1565, %v1563
    %v1598 = vpack.c.b16 %v1568, %v1566
    %v1599 = vpack.c.b16 %v1569, %v1567
    %v1600 = vpack.c.b16 %v1572, %v1570
    %v1601 = vpack.c.b16 %v1573, %v1571
    %v1602 = vpack.c.b16 %v1576, %v1574
    %v1603 = vpack.c.b16 %v1577, %v1575
    %v1604 = vpack.c.b16 %v1578, %v1578
    %v1605 = vpack.c.b16 %v1579, %v1579
    %vm1630 = vcmask 588800
    %v1632 = vsel %vm1630, %v1467, 0
    %vm1634 = vcmask 1043456
    %v1636 = vsel %vm1634, %v1604, 0
    %v1639 = vsel %vm1634, %v1605, 0
    %1641 = vmatprep.subr.bf16.mxu0 %v1595
    %1642 = vmatpush1.bf16.msra.mxu0 %v1594
    %1643 = vmatprep.subr.bf16.mxu0 %v1593
    %1644 = vmatpush1.bf16.msra.mxu0 %v1592
    %1645 = vmatprep.subr.bf16.mxu0 %v1591
    %1646 = vmatpush1.bf16.msra.mxu0 %v1590
    %1647 = vmatprep.subr.bf16.mxu0 %v1589
    %1648 = vmatpush1.bf16.msra.mxu0 %v1588
    %1649 = vmatprep.subr.bf16.mxu0 %v1587
    %1650 = vmatpush1.bf16.msra.mxu0 %v1586
    %1651 = vmatprep.subr.bf16.mxu0 %v1585
    %1652 = vmatpush1.bf16.msra.mxu0 %v1584
    %1653 = vmatprep.subr.bf16.mxu0 %v1583
    %1654 = vmatpush1.bf16.msra.mxu0 %v1582
    %1655 = vmatprep.subr.bf16.mxu0 %v1581
    %1656 = vmatpush1.bf16.msra.mxu0 %v1580
    %1657 = vmatprep.subr.bf16.mxu0 0
    %1658 = vmatpush2.bf16.msra.mxu0 0
    %1659 = vmatprep.subr.bf16.mxu0 0
    %1660 = vmatpush2.bf16.msra.mxu0 0
    %1661 = vmatprep.subr.bf16.mxu0 0
    %1662 = vmatpush2.bf16.msra.mxu0 0
    %1663 = vmatprep.subr.bf16.mxu0 %v1639
    %1664 = vmatpush2.bf16.msra.mxu0 %v1636
    %1665 = vmatprep.subr.bf16.mxu0 %v1603
    %1666 = vmatpush2.bf16.msra.mxu0 %v1602
    %1667 = vmatprep.subr.bf16.mxu0 %v1601
    %1668 = vmatpush2.bf16.msra.mxu0 %v1600
    %1669 = vmatprep.subr.bf16.mxu0 %v1599
    %1670 = vmatpush2.bf16.msra.mxu0 %v1598
    %1671 = vmatprep.subr.bf16.mxu0 %v1597
    %1672 = vmatpush2.bf16.msra.mxu0 %v1596
    %1673 = vmatprep.mubr.bf16.mxu0 %v1632
    %1674 = vmatmul.mubr.bf16.gmra.mxu0 %v1466
    %v1675 = vpop.f32.mrf.mxu0
    %v1676 = vadd.f32 %v1498, %v1675
    %v1677 = vpop.f32.mrf.mxu0
    %v1678 = vadd.f32 %v1502, %v1677
    %v1679 = vpop.f32.mrf.mxu0
    %v1680 = vpop.f32.mrf.mxu0
    %1681 = vdwg.mxu0
    %v1682 = vmax.f32 %v1676, 0.0
    %v1683 = vmax.f32 %v1678, 0.0
    %v1684 = vpack.c.bf16 %v1682, %v1682
    %v1685 = vpack.c.bf16 %v1683, %v1683
    %v1686 = vld [vmem:[%s5] sm:$0xff]
    %v1687 = vld [vmem:[%s5 + $0x8] sm:$0xff]
    %v1688 = vld [vmem:[%s5 + $0x10] sm:$0xff]
    %v1689 = vld [vmem:[%s5 + $0x18] sm:$0xff]
    %v1690 = vld [vmem:[%s5 + $0x20] sm:$0xff]
    %v1691 = vld [vmem:[%s5 + $0x28] sm:$0xff]
    %v1692 = vld [vmem:[%s5 + $0x30] sm:$0xff]
    %v1693 = vld [vmem:[%s5 + $0x38] sm:$0xff]
    %v1694 = vld [vmem:[%s5 + $0x40] sm:$0xff]
    %v1695 = vld [vmem:[%s5 + $0x48] sm:$0xff]
    %v1696 = vld [vmem:[%s5 + $0x50] sm:$0xff]
    %v1697 = vld [vmem:[%s5 + $0x58] sm:$0xff]
    %v1698 = vld [vmem:[%s5 + $0x60] sm:$0xff]
    %v1699 = vld [vmem:[%s5 + $0x68] sm:$0xff]
    %v1700 = vld [vmem:[%s5 + $0x70] sm:$0xff]
    %v1701 = vld [vmem:[%s5 + $0x78] sm:$0xff]
    %v1702 = vld [vmem:[%s5 + $0x80] sm:$0xff]
    %v1703 = vld [vmem:[%s5 + $0x88] sm:$0xff]
    %v1704 = vld [vmem:[%s5 + $0x90] sm:$0xff]
    %v1705 = vld [vmem:[%s5 + $0x98] sm:$0xff]
    %v1706 = vld [vmem:[%s5 + $0xa0] sm:$0xff]
    %v1707 = vld [vmem:[%s5 + $0xa8] sm:$0xff]
    %v1708 = vld [vmem:[%s5 + $0xb0] sm:$0xff]
    %v1709 = vld [vmem:[%s5 + $0xb8] sm:$0xff]
    %v1710 = vld [vmem:[%s5 + $0xc0] sm:$0xff]
    %v1711 = vld [vmem:[%s5 + $0xc8] sm:$0xff]
    %v1712 = vld [vmem:[%s5 + $0xd0] sm:$0xff]
    %v1713 = vld [vmem:[%s5 + $0xd8] sm:$0xff]
    %v1714 = vld [vmem:[%s5 + $0xe0] sm:$0xff]
    %v1715 = vld [vmem:[%s5 + $0xe8] sm:$0xff]
    %v1716 = vld [vmem:[%s5 + $0xf0] sm:$0xff]
    %v1717 = vld [vmem:[%s5 + $0xf8] sm:$0xff]
    %v1718 = vld [vmem:[%s5 + $0x100] sm:$0xff]
    %v1719 = vld [vmem:[%s5 + $0x108] sm:$0xff]
    %v1720 = vld [vmem:[%s5 + $0x110] sm:$0xff]
    %v1721 = vld [vmem:[%s5 + $0x118] sm:$0xff]
    %v1722 = vld [vmem:[%s5 + $0x120] sm:$0xff]
    %v1723 = vld [vmem:[%s5 + $0x128] sm:$0xff]
    %v1724 = vld [vmem:[%s5 + $0x130] sm:$0xff]
    %v1725 = vld [vmem:[%s5 + $0x138] sm:$0xff]
    %v1726 = vld [vmem:[%s5 + $0x140] sm:$0xff]
    %v1727 = vld [vmem:[%s5 + $0x148] sm:$0xff]
    %v1728 = vld [vmem:[%s5 + $0x150] sm:$0xff]
    %v1729 = vld [vmem:[%s5 + $0x158] sm:$0xff]
    %v1730 = vld [vmem:[%s5 + $0x160] sm:$0xff]
    %v1731 = vld [vmem:[%s5 + $0x168] sm:$0xff]
    %v1732 = vld [vmem:[%s5 + $0x170] sm:$0xff]
    %v1733 = vld [vmem:[%s5 + $0x178] sm:$0xff]
    %v1734 = vld [vmem:[%s5 + $0x180] sm:$0xff]
    %v1735 = vld [vmem:[%s5 + $0x188] sm:$0xff]
    %v1736 = vld [vmem:[%s6] sm:$0xf]
    %v1738 = vlaneseq
    %v1739 = vshrl.u32 %v1738, 7
    %v1740 = vsub.s32 0, %v1739
    %v1741 = vrot.slane %v1736, %v1740
    %v1742 = vlaneseq
    %v1743 = vshrl.u32 %v1742, 7
    %v1744 = vsub.s32 1, %v1743
    %v1745 = vrot.slane %v1736, %v1744
    %v1746 = vlaneseq
    %v1747 = vshrl.u32 %v1746, 7
    %v1748 = vsub.s32 2, %v1747
    %v1749 = vrot.slane %v1736, %v1748
    %v1750 = vlaneseq
    %v1751 = vshrl.u32 %v1750, 7
    %v1752 = vsub.s32 3, %v1751
    %v1753 = vrot.slane %v1736, %v1752
    %v1808 = vunpack.c.l.b16 %v1686
    %v1809 = vunpack.c.h.b16 %v1686
    %v1810 = vunpack.c.l.b16 %v1687
    %v1811 = vunpack.c.h.b16 %v1687
    %v1812 = vunpack.c.l.b16 %v1688
    %v1813 = vunpack.c.h.b16 %v1688
    %v1814 = vunpack.c.l.b16 %v1689
    %v1815 = vunpack.c.h.b16 %v1689
    %v1816 = vunpack.c.l.b16 %v1690
    %v1817 = vunpack.c.h.b16 %v1690
    %v1818 = vunpack.c.l.b16 %v1691
    %v1819 = vunpack.c.h.b16 %v1691
    %v1820 = vunpack.c.l.b16 %v1692
    %v1821 = vunpack.c.h.b16 %v1692
    %v1822 = vunpack.c.l.b16 %v1693
    %v1823 = vunpack.c.h.b16 %v1693
    %v1824 = vunpack.c.l.b16 %v1694
    %v1825 = vunpack.c.h.b16 %v1694
    %v1826 = vunpack.c.l.b16 %v1695
    %v1827 = vunpack.c.h.b16 %v1695
    %v1828 = vunpack.c.l.b16 %v1696
    %v1829 = vunpack.c.h.b16 %v1696
    %v1830 = vunpack.c.l.b16 %v1697
    %v1831 = vunpack.c.h.b16 %v1697
    %v1832 = vunpack.c.l.b16 %v1698
    %v1833 = vunpack.c.h.b16 %v1698
    %v1834 = vunpack.c.l.b16 %v1699
    %v1835 = vunpack.c.h.b16 %v1699
    %v1836 = vunpack.c.l.b16 %v1700
    %v1837 = vunpack.c.h.b16 %v1700
    %v1838 = vunpack.c.l.b16 %v1701
    %v1839 = vunpack.c.h.b16 %v1701
    %v1840 = vunpack.c.l.b16 %v1702
    %v1841 = vunpack.c.h.b16 %v1702
    %v1842 = vunpack.c.l.b16 %v1703
    %v1843 = vunpack.c.h.b16 %v1703
    %v1844 = vunpack.c.l.b16 %v1704
    %v1845 = vunpack.c.h.b16 %v1704
    %v1846 = vunpack.c.l.b16 %v1705
    %v1847 = vunpack.c.h.b16 %v1705
    %v1848 = vunpack.c.l.b16 %v1706
    %v1849 = vunpack.c.h.b16 %v1706
    %v1850 = vunpack.c.l.b16 %v1707
    %v1851 = vunpack.c.h.b16 %v1707
    %v1852 = vunpack.c.l.b16 %v1708
    %v1853 = vunpack.c.h.b16 %v1708
    %v1854 = vunpack.c.l.b16 %v1709
    %v1855 = vunpack.c.h.b16 %v1709
    %v1856 = vunpack.c.l.b16 %v1710
    %v1857 = vunpack.c.h.b16 %v1710
    %v1858 = vunpack.c.l.b16 %v1711
    %v1859 = vunpack.c.h.b16 %v1711
    %v1860 = vunpack.c.l.b16 %v1712
    %v1861 = vunpack.c.h.b16 %v1712
    %v1862 = vunpack.c.l.b16 %v1713
    %v1863 = vunpack.c.h.b16 %v1713
    %v1864 = vunpack.c.l.b16 %v1714
    %v1865 = vunpack.c.h.b16 %v1714
    %v1866 = vunpack.c.l.b16 %v1715
    %v1867 = vunpack.c.h.b16 %v1715
    %v1868 = vunpack.c.l.b16 %v1716
    %v1869 = vunpack.c.h.b16 %v1716
    %v1870 = vunpack.c.l.b16 %v1717
    %v1871 = vunpack.c.h.b16 %v1717
    %v1872 = vunpack.c.l.b16 %v1718
    %v1873 = vunpack.c.h.b16 %v1718
    %v1874 = vunpack.c.l.b16 %v1719
    %v1875 = vunpack.c.h.b16 %v1719
    %v1876 = vunpack.c.l.b16 %v1720
    %v1877 = vunpack.c.h.b16 %v1720
    %v1878 = vunpack.c.l.b16 %v1721
    %v1879 = vunpack.c.h.b16 %v1721
    %v1880 = vunpack.c.l.b16 %v1722
    %v1881 = vunpack.c.h.b16 %v1722
    %v1882 = vunpack.c.l.b16 %v1723
    %v1883 = vunpack.c.h.b16 %v1723
    %v1884 = vunpack.c.l.b16 %v1724
    %v1885 = vunpack.c.h.b16 %v1724
    %v1886 = vunpack.c.l.b16 %v1725
    %v1887 = vunpack.c.h.b16 %v1725
    %v1888 = vunpack.c.l.b16 %v1726
    %v1889 = vunpack.c.h.b16 %v1726
    %v1890 = vunpack.c.l.b16 %v1727
    %v1891 = vunpack.c.h.b16 %v1727
    %v1892 = vunpack.c.l.b16 %v1728
    %v1893 = vunpack.c.h.b16 %v1728
    %v1894 = vunpack.c.l.b16 %v1729
    %v1895 = vunpack.c.h.b16 %v1729
    %v1896 = vunpack.c.l.b16 %v1730
    %v1897 = vunpack.c.h.b16 %v1730
    %v1898 = vunpack.c.l.b16 %v1731
    %v1899 = vunpack.c.h.b16 %v1731
    %v1900 = vunpack.c.l.b16 %v1732
    %v1901 = vunpack.c.h.b16 %v1732
    %v1902 = vunpack.c.l.b16 %v1733
    %v1903 = vunpack.c.h.b16 %v1733
    %v1904 = vunpack.c.l.b16 %v1734
    %v1905 = vunpack.c.h.b16 %v1734
    %v1906 = vunpack.c.l.b16 %v1735
    %v1907 = vunpack.c.h.b16 %v1735
    %v1908 = vpack.c.b16 %v1812, %v1808
    %v1909 = vpack.c.b16 %v1813, %v1809
    %v1910 = vpack.c.b16 %v1814, %v1810
    %v1911 = vpack.c.b16 %v1815, %v1811
    %v1912 = vpack.c.b16 %v1820, %v1816
    %v1913 = vpack.c.b16 %v1821, %v1817
    %v1914 = vpack.c.b16 %v1822, %v1818
    %v1915 = vpack.c.b16 %v1823, %v1819
    %v1916 = vpack.c.b16 %v1828, %v1824
    %v1917 = vpack.c.b16 %v1829, %v1825
    %v1918 = vpack.c.b16 %v1830, %v1826
    %v1919 = vpack.c.b16 %v1831, %v1827
    %v1920 = vpack.c.b16 %v1836, %v1832
    %v1921 = vpack.c.b16 %v1837, %v1833
    %v1922 = vpack.c.b16 %v1838, %v1834
    %v1923 = vpack.c.b16 %v1839, %v1835
    %v1924 = vpack.c.b16 %v1844, %v1840
    %v1925 = vpack.c.b16 %v1845, %v1841
    %v1926 = vpack.c.b16 %v1846, %v1842
    %v1927 = vpack.c.b16 %v1847, %v1843
    %v1928 = vpack.c.b16 %v1852, %v1848
    %v1929 = vpack.c.b16 %v1853, %v1849
    %v1930 = vpack.c.b16 %v1854, %v1850
    %v1931 = vpack.c.b16 %v1855, %v1851
    %v1932 = vpack.c.b16 %v1860, %v1856
    %v1933 = vpack.c.b16 %v1861, %v1857
    %v1934 = vpack.c.b16 %v1862, %v1858
    %v1935 = vpack.c.b16 %v1863, %v1859
    %v1936 = vpack.c.b16 %v1868, %v1864
    %v1937 = vpack.c.b16 %v1869, %v1865
    %v1938 = vpack.c.b16 %v1870, %v1866
    %v1939 = vpack.c.b16 %v1871, %v1867
    %v1940 = vpack.c.b16 %v1876, %v1872
    %v1941 = vpack.c.b16 %v1877, %v1873
    %v1942 = vpack.c.b16 %v1878, %v1874
    %v1943 = vpack.c.b16 %v1879, %v1875
    %v1944 = vpack.c.b16 %v1884, %v1880
    %v1945 = vpack.c.b16 %v1885, %v1881
    %v1946 = vpack.c.b16 %v1886, %v1882
    %v1947 = vpack.c.b16 %v1887, %v1883
    %v1948 = vpack.c.b16 %v1892, %v1888
    %v1949 = vpack.c.b16 %v1893, %v1889
    %v1950 = vpack.c.b16 %v1894, %v1890
    %v1951 = vpack.c.b16 %v1895, %v1891
    %v1952 = vpack.c.b16 %v1900, %v1896
    %v1953 = vpack.c.b16 %v1901, %v1897
    %v1954 = vpack.c.b16 %v1902, %v1898
    %v1955 = vpack.c.b16 %v1903, %v1899
    %v1956 = vpack.c.b16 %v1904, %v1904
    %v1957 = vpack.c.b16 %v1905, %v1905
    %v1958 = vpack.c.b16 %v1906, %v1906
    %v1959 = vpack.c.b16 %v1907, %v1907
    %v2009 = vsel %vm1630, %v1685, 0
    %v2012 = vsel %vm1634, %v1956, 0
    %v2015 = vsel %vm1634, %v1957, 0
    %v2018 = vsel %vm1634, %v1958, 0
    %v2021 = vsel %vm1634, %v1959, 0
    %2023 = vmatprep.subr.bf16.mxu0 %v1937
    %2024 = vmatpush1.bf16.msra.mxu0 %v1936
    %2025 = vmatprep.subr.bf16.mxu0 %v1933
    %2026 = vmatpush1.bf16.msra.mxu0 %v1932
    %2027 = vmatprep.subr.bf16.mxu0 %v1929
    %2028 = vmatpush1.bf16.msra.mxu0 %v1928
    %2029 = vmatprep.subr.bf16.mxu0 %v1925
    %2030 = vmatpush1.bf16.msra.mxu0 %v1924
    %2031 = vmatprep.subr.bf16.mxu0 %v1921
    %2032 = vmatpush1.bf16.msra.mxu0 %v1920
    %2033 = vmatprep.subr.bf16.mxu0 %v1917
    %2034 = vmatpush1.bf16.msra.mxu0 %v1916
    %2035 = vmatprep.subr.bf16.mxu0 %v1913
    %2036 = vmatpush1.bf16.msra.mxu0 %v1912
    %2037 = vmatprep.subr.bf16.mxu0 %v1909
    %2038 = vmatpush1.bf16.msra.mxu0 %v1908
    %2039 = vmatprep.subr.bf16.mxu0 0
    %2040 = vmatpush2.bf16.msra.mxu0 0
    %2041 = vmatprep.subr.bf16.mxu0 0
    %2042 = vmatpush2.bf16.msra.mxu0 0
    %2043 = vmatprep.subr.bf16.mxu0 0
    %2044 = vmatpush2.bf16.msra.mxu0 0
    %2045 = vmatprep.subr.bf16.mxu0 %v2015
    %2046 = vmatpush2.bf16.msra.mxu0 %v2012
    %2047 = vmatprep.subr.bf16.mxu0 %v1953
    %2048 = vmatpush2.bf16.msra.mxu0 %v1952
    %2049 = vmatprep.subr.bf16.mxu0 %v1949
    %2050 = vmatpush2.bf16.msra.mxu0 %v1948
    %2051 = vmatprep.subr.bf16.mxu0 %v1945
    %2052 = vmatpush2.bf16.msra.mxu0 %v1944
    %2053 = vmatprep.subr.bf16.mxu0 %v1941
    %2054 = vmatpush2.bf16.msra.mxu0 %v1940
    %2055 = vmatprep.mubr.bf16.mxu0 %v2009
    %2056 = vmatmul.mubr.bf16.gmra.mxu0 %v1684
    %v2057 = vpop.f32.mrf.mxu0
    %v2058 = vadd.f32 %v1741, %v2057
    %v2059 = vpop.f32.mrf.mxu0
    %v2060 = vadd.f32 %v1745, %v2059
    %v2061 = vpop.f32.mrf.mxu0
    %v2062 = vpop.f32.mrf.mxu0
    %2063 = vdwg.mxu0
    %2064 = vmatprep.subr.bf16.mxu0 %v1939
    %2065 = vmatpush1.bf16.msra.mxu0 %v1938
    %2066 = vmatprep.subr.bf16.mxu0 %v1935
    %2067 = vmatpush1.bf16.msra.mxu0 %v1934
    %2068 = vmatprep.subr.bf16.mxu0 %v1931
    %2069 = vmatpush1.bf16.msra.mxu0 %v1930
    %2070 = vmatprep.subr.bf16.mxu0 %v1927
    %2071 = vmatpush1.bf16.msra.mxu0 %v1926
    %2072 = vmatprep.subr.bf16.mxu0 %v1923
    %2073 = vmatpush1.bf16.msra.mxu0 %v1922
    %2074 = vmatprep.subr.bf16.mxu0 %v1919
    %2075 = vmatpush1.bf16.msra.mxu0 %v1918
    %2076 = vmatprep.subr.bf16.mxu0 %v1915
    %2077 = vmatpush1.bf16.msra.mxu0 %v1914
    %2078 = vmatprep.subr.bf16.mxu0 %v1911
    %2079 = vmatpush1.bf16.msra.mxu0 %v1910
    %2080 = vmatprep.subr.bf16.mxu0 0
    %2081 = vmatpush2.bf16.msra.mxu0 0
    %2082 = vmatprep.subr.bf16.mxu0 0
    %2083 = vmatpush2.bf16.msra.mxu0 0
    %2084 = vmatprep.subr.bf16.mxu0 0
    %2085 = vmatpush2.bf16.msra.mxu0 0
    %2086 = vmatprep.subr.bf16.mxu0 %v2021
    %2087 = vmatpush2.bf16.msra.mxu0 %v2018
    %2088 = vmatprep.subr.bf16.mxu0 %v1955
    %2089 = vmatpush2.bf16.msra.mxu0 %v1954
    %2090 = vmatprep.subr.bf16.mxu0 %v1951
    %2091 = vmatpush2.bf16.msra.mxu0 %v1950
    %2092 = vmatprep.subr.bf16.mxu0 %v1947
    %2093 = vmatpush2.bf16.msra.mxu0 %v1946
    %2094 = vmatprep.subr.bf16.mxu0 %v1943
    %2095 = vmatpush2.bf16.msra.mxu0 %v1942
    %2096 = vmatprep.mubr.bf16.mxu0 %v2009
    %2097 = vmatmul.mubr.bf16.gmra.mxu0 %v1684
    %v2098 = vpop.f32.mrf.mxu0
    %v2099 = vadd.f32 %v1749, %v2098
    %v2100 = vpop.f32.mrf.mxu0
    %v2101 = vadd.f32 %v1753, %v2100
    %v2102 = vpop.f32.mrf.mxu0
    %v2103 = vpop.f32.mrf.mxu0
    %2104 = vdwg.mxu0
    %v2105 = vmax.f32 %v2058, 0.0
    %v2106 = vmax.f32 %v2060, 0.0
    %v2107 = vmax.f32 %v2099, 0.0
    %v2108 = vmax.f32 %v2101, 0.0
    %v2109 = vpack.c.bf16 %v2105, %v2105
    %v2110 = vpack.c.bf16 %v2106, %v2106
    %v2111 = vpack.c.bf16 %v2107, %v2107
    %v2112 = vpack.c.bf16 %v2108, %v2108
    %v2113 = vld [vmem:[%s7] sm:$0xf]
    %v2114 = vld [vmem:[%s7 + $0x4] sm:$0xf]
    %v2115 = vld [vmem:[%s7 + $0x8] sm:$0xf]
    %v2116 = vld [vmem:[%s7 + $0xc] sm:$0xf]
    %v2117 = vld [vmem:[%s7 + $0x10] sm:$0xf]
    %v2118 = vld [vmem:[%s7 + $0x14] sm:$0xf]
    %v2119 = vld [vmem:[%s7 + $0x18] sm:$0xf]
    %v2120 = vld [vmem:[%s7 + $0x1c] sm:$0xf]
    %v2121 = vld [vmem:[%s7 + $0x20] sm:$0xf]
    %v2122 = vld [vmem:[%s7 + $0x24] sm:$0xf]
    %v2123 = vld [vmem:[%s7 + $0x28] sm:$0xf]
    %v2124 = vld [vmem:[%s7 + $0x2c] sm:$0xf]
    %v2125 = vld [vmem:[%s7 + $0x30] sm:$0xf]
    %v2126 = vld [vmem:[%s7 + $0x34] sm:$0xf]
    %v2127 = vld [vmem:[%s7 + $0x38] sm:$0xf]
    %v2128 = vld [vmem:[%s7 + $0x3c] sm:$0xf]
    %v2129 = vld [vmem:[%s7 + $0x40] sm:$0xf]
    %v2130 = vld [vmem:[%s7 + $0x44] sm:$0xf]
    %v2131 = vld [vmem:[%s7 + $0x48] sm:$0xf]
    %v2132 = vld [vmem:[%s7 + $0x4c] sm:$0xf]
    %v2133 = vld [vmem:[%s7 + $0x50] sm:$0xf]
    %v2134 = vld [vmem:[%s7 + $0x54] sm:$0xf]
    %v2135 = vld [vmem:[%s7 + $0x58] sm:$0xf]
    %v2136 = vld [vmem:[%s7 + $0x5c] sm:$0xf]
    %v2137 = vld [vmem:[%s7 + $0x60] sm:$0xf]
    %v2138 = vld [vmem:[%s7 + $0x64] sm:$0xf]
    %v2139 = vld [vmem:[%s7 + $0x68] sm:$0xf]
    %v2140 = vld [vmem:[%s7 + $0x6c] sm:$0xf]
    %v2141 = vld [vmem:[%s7 + $0x70] sm:$0xf]
    %v2142 = vld [vmem:[%s7 + $0x74] sm:$0xf]
    %v2143 = vld [vmem:[%s7 + $0x78] sm:$0xf]
    %v2144 = vld [vmem:[%s7 + $0x7c] sm:$0xf]
    %v2145 = vld [vmem:[%s7 + $0x80] sm:$0xf]
    %v2146 = vld [vmem:[%s7 + $0x84] sm:$0xf]
    %v2147 = vld [vmem:[%s7 + $0x88] sm:$0xf]
    %v2148 = vld [vmem:[%s7 + $0x8c] sm:$0xf]
    %v2149 = vld [vmem:[%s7 + $0x90] sm:$0xf]
    %v2150 = vld [vmem:[%s7 + $0x94] sm:$0xf]
    %v2151 = vld [vmem:[%s7 + $0x98] sm:$0xf]
    %v2152 = vld [vmem:[%s7 + $0x9c] sm:$0xf]
    %v2153 = vld [vmem:[%s7 + $0xa0] sm:$0xf]
    %v2154 = vld [vmem:[%s7 + $0xa4] sm:$0xf]
    %v2155 = vld [vmem:[%s7 + $0xa8] sm:$0xf]
    %v2156 = vld [vmem:[%s7 + $0xac] sm:$0xf]
    %v2157 = vld [vmem:[%s7 + $0xb0] sm:$0xf]
    %v2158 = vld [vmem:[%s7 + $0xb4] sm:$0xf]
    %v2159 = vld [vmem:[%s7 + $0xb8] sm:$0xf]
    %v2160 = vld [vmem:[%s7 + $0xbc] sm:$0xf]
    %v2161 = vld [vmem:[%s7 + $0xc0] sm:$0xf]
    %v2162 = vld [vmem:[%s7 + $0xc4] sm:$0xf]
    %v2163 = vld [vmem:[%s8] sm:$0x1]
    %v2165 = vlaneseq
    %v2166 = vshrl.u32 %v2165, 7
    %v2167 = vsub.s32 0, %v2166
    %v2168 = vrot.slane %v2163, %v2167
    %v2220 = vunpack.c.l.b16 %v2113
    %v2221 = vunpack.c.l.b16 %v2114
    %v2222 = vunpack.c.l.b16 %v2115
    %v2223 = vunpack.c.l.b16 %v2116
    %v2224 = vunpack.c.l.b16 %v2117
    %v2225 = vunpack.c.l.b16 %v2118
    %v2226 = vunpack.c.l.b16 %v2119
    %v2227 = vunpack.c.l.b16 %v2120
    %v2228 = vunpack.c.l.b16 %v2121
    %v2229 = vunpack.c.l.b16 %v2122
    %v2230 = vunpack.c.l.b16 %v2123
    %v2231 = vunpack.c.l.b16 %v2124
    %v2232 = vunpack.c.l.b16 %v2125
    %v2233 = vunpack.c.l.b16 %v2126
    %v2234 = vunpack.c.l.b16 %v2127
    %v2235 = vunpack.c.l.b16 %v2128
    %v2236 = vunpack.c.l.b16 %v2129
    %v2237 = vunpack.c.l.b16 %v2130
    %v2238 = vunpack.c.l.b16 %v2131
    %v2239 = vunpack.c.l.b16 %v2132
    %v2240 = vunpack.c.l.b16 %v2133
    %v2241 = vunpack.c.l.b16 %v2134
    %v2242 = vunpack.c.l.b16 %v2135
    %v2243 = vunpack.c.l.b16 %v2136
    %v2244 = vunpack.c.l.b16 %v2137
    %v2245 = vunpack.c.l.b16 %v2138
    %v2246 = vunpack.c.l.b16 %v2139
    %v2247 = vunpack.c.l.b16 %v2140
    %v2248 = vunpack.c.l.b16 %v2141
    %v2249 = vunpack.c.l.b16 %v2142
    %v2250 = vunpack.c.l.b16 %v2143
    %v2251 = vunpack.c.l.b16 %v2144
    %v2252 = vunpack.c.l.b16 %v2145
    %v2253 = vunpack.c.l.b16 %v2146
    %v2254 = vunpack.c.l.b16 %v2147
    %v2255 = vunpack.c.l.b16 %v2148
    %v2256 = vunpack.c.l.b16 %v2149
    %v2257 = vunpack.c.l.b16 %v2150
    %v2258 = vunpack.c.l.b16 %v2151
    %v2259 = vunpack.c.l.b16 %v2152
    %v2260 = vunpack.c.l.b16 %v2153
    %v2261 = vunpack.c.l.b16 %v2154
    %v2262 = vunpack.c.l.b16 %v2155
    %v2263 = vunpack.c.l.b16 %v2156
    %v2264 = vunpack.c.l.b16 %v2157
    %v2265 = vunpack.c.l.b16 %v2158
    %v2266 = vunpack.c.l.b16 %v2159
    %v2267 = vunpack.c.l.b16 %v2160
    %v2268 = vunpack.c.l.b16 %v2161
    %v2269 = vunpack.c.l.b16 %v2162
    %v2270 = vpack.c.b16 %v2221, %v2220
    %v2271 = vpack.c.b16 %v2223, %v2222
    %v2272 = vpack.c.b16 %v2225, %v2224
    %v2273 = vpack.c.b16 %v2227, %v2226
    %v2274 = vpack.c.b16 %v2229, %v2228
    %v2275 = vpack.c.b16 %v2231, %v2230
    %v2276 = vpack.c.b16 %v2233, %v2232
    %v2277 = vpack.c.b16 %v2235, %v2234
    %v2278 = vpack.c.b16 %v2237, %v2236
    %v2279 = vpack.c.b16 %v2239, %v2238
    %v2280 = vpack.c.b16 %v2241, %v2240
    %v2281 = vpack.c.b16 %v2243, %v2242
    %v2282 = vpack.c.b16 %v2245, %v2244
    %v2283 = vpack.c.b16 %v2247, %v2246
    %v2284 = vpack.c.b16 %v2249, %v2248
    %v2285 = vpack.c.b16 %v2251, %v2250
    %v2286 = vpack.c.b16 %v2253, %v2252
    %v2287 = vpack.c.b16 %v2255, %v2254
    %v2288 = vpack.c.b16 %v2257, %v2256
    %v2289 = vpack.c.b16 %v2259, %v2258
    %v2290 = vpack.c.b16 %v2261, %v2260
    %v2291 = vpack.c.b16 %v2263, %v2262
    %v2292 = vpack.c.b16 %v2265, %v2264
    %v2293 = vpack.c.b16 %v2267, %v2266
    %v2294 = vpack.c.b16 %v2269, %v2268
    %vm2320 = vcmask 130048
    %v2322 = vsel %vm2320, %v2112, 0
    %2324 = vmatprep.subr.bf16.mxu0 0
    %2325 = vmatpush1.bf16.msra.mxu0 %v2277
    %2326 = vmatprep.subr.bf16.mxu0 0
    %2327 = vmatpush1.bf16.msra.mxu0 %v2276
    %2328 = vmatprep.subr.bf16.mxu0 0
    %2329 = vmatpush1.bf16.msra.mxu0 %v2275
    %2330 = vmatprep.subr.bf16.mxu0 0
    %2331 = vmatpush1.bf16.msra.mxu0 %v2274
    %2332 = vmatprep.subr.bf16.mxu0 0
    %2333 = vmatpush1.bf16.msra.mxu0 %v2273
    %2334 = vmatprep.subr.bf16.mxu0 0
    %2335 = vmatpush1.bf16.msra.mxu0 %v2272
    %2336 = vmatprep.subr.bf16.mxu0 0
    %2337 = vmatpush1.bf16.msra.mxu0 %v2271
    %2338 = vmatprep.subr.bf16.mxu0 0
    %2339 = vmatpush1.bf16.msra.mxu0 %v2270
    %2340 = vmatprep.subr.bf16.mxu0 0
    %2341 = vmatpush2.bf16.msra.mxu0 %v2285
    %2342 = vmatprep.subr.bf16.mxu0 0
    %2343 = vmatpush2.bf16.msra.mxu0 %v2284
    %2344 = vmatprep.subr.bf16.mxu0 0
    %2345 = vmatpush2.bf16.msra.mxu0 %v2283
    %2346 = vmatprep.subr.bf16.mxu0 0
    %2347 = vmatpush2.bf16.msra.mxu0 %v2282
    %2348 = vmatprep.subr.bf16.mxu0 0
    %2349 = vmatpush2.bf16.msra.mxu0 %v2281
    %2350 = vmatprep.subr.bf16.mxu0 0
    %2351 = vmatpush2.bf16.msra.mxu0 %v2280
    %2352 = vmatprep.subr.bf16.mxu0 0
    %2353 = vmatpush2.bf16.msra.mxu0 %v2279
    %2354 = vmatprep.subr.bf16.mxu0 0
    %2355 = vmatpush2.bf16.msra.mxu0 %v2278
    %2356 = vmatprep.mubr.bf16.mxu0 %v2110
    %2357 = vmatmul.mubr.bf16.gmra.mxu0 %v2109
    %v2358 = vpop.f32.mrf.mxu0
    %v2359 = vadd.f32 %v2168, %v2358
    %v2360 = vpop.f32.mrf.mxu0
    %v2361 = vpop.f32.mrf.mxu0
    %v2362 = vpop.f32.mrf.mxu0
    %2363 = vdwg.mxu0
    %2364 = vmatprep.subr.bf16.mxu0 0
    %2365 = vmatpush1.bf16.msra.mxu0 %v2293
    %2366 = vmatprep.subr.bf16.mxu0 0
    %2367 = vmatpush1.bf16.msra.mxu0 %v2292
    %2368 = vmatprep.subr.bf16.mxu0 0
    %2369 = vmatpush1.bf16.msra.mxu0 %v2291
    %2370 = vmatprep.subr.bf16.mxu0 0
    %2371 = vmatpush1.bf16.msra.mxu0 %v2290
    %2372 = vmatprep.subr.bf16.mxu0 0
    %2373 = vmatpush1.bf16.msra.mxu0 %v2289
    %2374 = vmatprep.subr.bf16.mxu0 0
    %2375 = vmatpush1.bf16.msra.mxu0 %v2288
    %2376 = vmatprep.subr.bf16.mxu0 0
    %2377 = vmatpush1.bf16.msra.mxu0 %v2287
    %2378 = vmatprep.subr.bf16.mxu0 0
    %2379 = vmatpush1.bf16.msra.mxu0 %v2286
    %2380 = vmatprep.subr.bf16.mxu0 0
    %2381 = vmatpush2.bf16.msra.mxu0 0
    %2382 = vmatprep.subr.bf16.mxu0 0
    %2383 = vmatpush2.bf16.msra.mxu0 0
    %2384 = vmatprep.subr.bf16.mxu0 0
    %2385 = vmatpush2.bf16.msra.mxu0 0
    %2386 = vmatprep.subr.bf16.mxu0 0
    %2387 = vmatpush2.bf16.msra.mxu0 0
    %2388 = vmatprep.subr.bf16.mxu0 0
    %2389 = vmatpush2.bf16.msra.mxu0 0
    %2390 = vmatprep.subr.bf16.mxu0 0
    %2391 = vmatpush2.bf16.msra.mxu0 0
    %2392 = vmatprep.subr.bf16.mxu0 0
    %2393 = vmatpush2.bf16.msra.mxu0 0
    %2394 = vmatprep.subr.bf16.mxu0 0
    %2395 = vmatpush2.bf16.msra.mxu0 %v2294
    %2396 = vmatprep.mubr.bf16.mxu0 %v2322
    %2397 = vmatmul.mubr.bf16.gmra.mxu0 %v2111
    %v2398 = vpop.f32.mrf.mxu0
    %v2399 = vadd.f32 %v2359, %v2398
    %v2400 = vpop.f32.mrf.mxu0
    %v2401 = vpop.f32.mrf.mxu0
    %v2402 = vpop.f32.mrf.mxu0
    %2403 = vdwg.mxu0
    %vm2404 = vcmask 74752
    %2405 = vst.msk [vmem:[#allocation2] sm:$0x3] %vm2404, %v2399
    // Predicated region
    $region38: #{forward.3} parent=1 // pred_check
      _
    $region39: #{forward.3} parent=1 // pred_check_branch
      %2407 = sbr.rel (0) target = $region41
    $region40: #{forward.3} parent=1 // pred_region
      %s2409 = ssub.s32 32, 32
      %2410 = vsyncadd [#allocation3], %s2409
      %s2412 = sshll.u32 [#allocation2], 4
      %s2413 = int_to_ptr.vmem [resolvable:$true] %s2412
      %2415 = dma.vmem_to_hbm [thread:$0]  %s2413, 32, %s9, [#allocation3]
    $region41: #{forward.3} parent=1 // pred_fallthru
      _
    // Predicated region
    $region42: #{forward.3} parent=1 // pred_check
      _
    $region43: #{forward.3} parent=1 // pred_check_branch
      %2417 = sbr.rel (0) target = $region45
    $region44: #{forward.3} parent=1 // pred_region
      %2418 = dma.done [#allocation3], 32
    $region45: #{forward.3} parent=1 // pred_fallthru
      _
    %2419 = vsyncpa [#allocation3], 1

// kernel: forward.2
$region0: #{forward.2}
  #allocation0 [shape = 'u32[]', space=smem, size = 0x4, offset = 0x4, fixed_abs, tag = 'smem constant byte address 0x4 - core index']
  #allocation1 [shape = 'u32[144,128]{1,0:T(1,128)}', space=vmem, size = 0x12000, scoped, tag = 'internal scratch']
  %s0 = inlined_call_operand.vmem [shape: f32[2,250,13], index: 0, kind: input, shape index: {}]
  %s1 = inlined_call_operand.vmem [shape: bf16[98,32], index: 1, kind: input, shape index: {}]
  %s2 = inlined_call_operand.vmem [shape: f32[1,32], index: 2, kind: input, shape index: {}]
  %s3 = inlined_call_operand.vmem [shape: bf16[160,64], index: 3, kind: input, shape index: {}]
  %s4 = inlined_call_operand.vmem [shape: f32[1,64], index: 4, kind: input, shape index: {}]
  %s5 = inlined_call_operand.vmem [shape: bf16[320,128], index: 5, kind: input, shape index: {}]
  %s6 = inlined_call_operand.vmem [shape: f32[1,128], index: 6, kind: input, shape index: {}]
  %s7 = inlined_call_operand.vmem [shape: bf16[1280,128], index: 7, kind: input, shape index: {}]
  %s8 = inlined_call_operand.vmem [shape: f32[1,128], index: 8, kind: input, shape index: {}]
  %s9 = inlined_call_operand.vmem [shape: bf16[128,85], index: 9, kind: input, shape index: {}]
  %s10 = inlined_call_operand.vmem [shape: f32[1,85], index: 10, kind: input, shape index: {}]
  %s11 = inlined_call_operand.vmem [shape: bf16[255,85], index: 11, kind: input, shape index: {}]
  %s12 = inlined_call_operand.vmem [shape: f32[1,85], index: 12, kind: input, shape index: {}]
  %s13 = inlined_call_operand.vmem [shape: bf16[425,86], index: 13, kind: input, shape index: {}]
  %s14 = inlined_call_operand.vmem [shape: f32[1,86], index: 14, kind: input, shape index: {}]
  %s15 = inlined_call_operand.vmem [shape: bf16[258,256], index: 15, kind: input, shape index: {}]
  %s16 = inlined_call_operand.vmem [shape: f32[1,256], index: 16, kind: input, shape index: {}]
  %s17 = inlined_call_operand.vmem [shape: bf16[768,128], index: 17, kind: input, shape index: {}]
  %s18 = inlined_call_operand.vmem [shape: f32[1,128], index: 18, kind: input, shape index: {}]
  %s19 = inlined_call_operand.vmem [shape: bf16[384,64], index: 19, kind: input, shape index: {}]
  %s20 = inlined_call_operand.vmem [shape: f32[1,64], index: 20, kind: input, shape index: {}]
  %s21 = inlined_call_operand.vmem [shape: bf16[192,32], index: 21, kind: input, shape index: {}]
  %s22 = inlined_call_operand.vmem [shape: f32[1,32], index: 22, kind: input, shape index: {}]
  %s23 = inlined_call_operand.vmem [shape: bf16[2,45,32], index: 23, kind: output, shape index: {}]
  %s24 = sld [smem:[#allocation0]]
  $region125: #{forward.2} parent=0
    _
  %s26 = ssub.s32 1, %s24
  %s27 = scalar_select 0, %s26, %s24
  loop: start=0, step=1, limit=4
  $region2: #{forward.2} parent=0 // loop_pre_header
    _
  $region3: #{forward.2} parent=0 // loop_header
    %s29 = sphi 0, %s33
    %p30 = scmp.ge.s32.totalorder %s29, 4
    %s39 = sphi 0, %s41
    %s42 = sphi 0, %s39
    %s43 = sphi 0, %s42
    %s59 = sphi 0, %s43
    %s63 = sphi 0, %s63
    %s65 = sphi 0, %s63
    %s66 = sphi 0, %s65
    %s80 = sphi 0, %s66
    %s84 = sphi 0, %s84
    %s86 = sphi 0, %s84
    %s87 = sphi 0, %s86
    %s101 = sphi 0, %s87
    %s105 = sphi 0, %s105
    %s107 = sphi 0, %s105
    %s108 = sphi 0, %s107
    %s122 = sphi 0, %s108
    %s126 = sphi 0, %s126
    %s128 = sphi 0, %s126
    %s129 = sphi 0, %s128
    %s143 = sphi 0, %s129
    %s147 = sphi 0, %s147
    %s149 = sphi 0, %s147
    %s150 = sphi 0, %s149
    %s164 = sphi 0, %s150
    %s168 = sphi 0, %s168
    %s170 = sphi 0, %s168
    %s171 = sphi 0, %s170
    %s185 = sphi 0, %s171
    %s189 = sphi 0, %s189
    %s191 = sphi 0, %s189
    %s192 = sphi 0, %s191
    %s206 = sphi 0, %s192
    %s210 = sphi 0, %s210
    %s212 = sphi 0, %s210
    %s213 = sphi 0, %s212
    %s227 = sphi 0, %s213
    %s231 = sphi 0, %s231
    %s233 = sphi 0, %s231
    %s234 = sphi 0, %s233
    %s248 = sphi 0, %s234
    %s252 = sphi 0, %s252
    %s254 = sphi 0, %s252
    %s255 = sphi 0, %s254
    %s269 = sphi 0, %s255
    %s273 = sphi 0, %s273
    %s275 = sphi 0, %s273
    %s276 = sphi 0, %s275
    %s290 = sphi 0, %s276
    %s294 = sphi 0, %s294
    %s296 = sphi 0, %s294
    %s297 = sphi 0, %s296
    %s311 = sphi 0, %s297
    %s315 = sphi 0, %s315
    %s317 = sphi 0, %s315
    %s318 = sphi 0, %s317
    %s332 = sphi 0, %s318
    %s336 = sphi 0, %s336
    %s338 = sphi 0, %s336
    %s339 = sphi 0, %s338
    %s353 = sphi 0, %s339
    %s357 = sphi 0, %s357
    %s359 = sphi 0, %s357
    %s360 = sphi 0, %s359
    %s374 = sphi 0, %s360
    %s378 = sphi 0, %s378
    %s380 = sphi 0, %s378
    %s381 = sphi 0, %s380
    %s395 = sphi 0, %s381
    %s399 = sphi 0, %s399
    %s401 = sphi 0, %s399
    %s402 = sphi 0, %s401
    %s416 = sphi 0, %s402
    %s420 = sphi 0, %s420
    %s422 = sphi 0, %s420
    %s423 = sphi 0, %s422
    %s437 = sphi 0, %s423
    %s441 = sphi 0, %s441
    %s443 = sphi 0, %s441
    %s444 = sphi 0, %s443
    %s458 = sphi 0, %s444
    %s462 = sphi 0, %s462
    %s464 = sphi 0, %s462
    %s465 = sphi 0, %s464
    %s479 = sphi 0, %s465
    %s483 = sphi 0, %s483
    %s485 = sphi 0, %s483
    %s486 = sphi 0, %s485
    %s500 = sphi 0, %s486
    %s504 = sphi 0, %s504
    %s506 = sphi 0, %s504
    %s507 = sphi 0, %s506
    %s521 = sphi 0, %s507
    %s527 = sphi 0, %s529
    %s530 = sphi 0, %s527
    %s531 = sphi 0, %s530
    %s547 = sphi 0, %s531
  $region4: #{forward.2} parent=0 // loop_header_branch
    %32 = sbr.rel (%p30) target = $region8
  $region5: #{forward.2} parent=0 // loop_body
    %s34 = ssub.s32 %s29, 1
    %s35 = ssub.s32 %s29, 2
    %s36 = sadd.s32 %s29, 1
    %s37 = ssub.s32 %s29, %s36
    %p38 = scmp.eq.s32.totalorder %s37, 0
    %s40 = sadd.s32 %s39, 1
    %s41 = scalar_select %p38, %s39, %s40
    %p44 = pneg %p38
    %p45 = scmp.eq.s32.totalorder %s29, 1
    %p46 = por %p44, %p45
    %p47 = scmp.ne.s32.totalorder %s39, %s42
    %p48 = scmp.eq.s32.totalorder %s29, 0
    %p49 = por %p47, %p48
    %p50 = scmp.ne.s32.totalorder %s39, %s42
    %p51 = scmp.eq.s32.totalorder %s34, 1
    %p52 = por %p50, %p51
    %p53 = scmp.ne.s32.totalorder %s42, %s43
    %p54 = scmp.eq.s32.totalorder %s34, 0
    %p55 = por %p53, %p54
    %p56 = scmp.ne.s32.totalorder %s42, %s43
    %p57 = scmp.eq.s32.totalorder %s35, 1
    %p58 = por %p56, %p57
    %p60 = scmp.ne.s32.totalorder %s43, %s59
    %p61 = scmp.eq.s32.totalorder %s35, 0
    %p62 = por %p60, %p61
    %s64 = sadd.s32 %s63, 1
    %p67 = scmp.eq.s32.totalorder %s29, 1
    %p68 = scmp.ne.s32.totalorder %s63, %s65
    %p69 = scmp.eq.s32.totalorder %s29, 0
    %p70 = por %p68, %p69
    %p71 = scmp.ne.s32.totalorder %s63, %s65
    %p72 = scmp.eq.s32.totalorder %s34, 1
    %p73 = por %p71, %p72
    %p74 = scmp.ne.s32.totalorder %s65, %s66
    %p75 = scmp.eq.s32.totalorder %s34, 0
    %p76 = por %p74, %p75
    %p77 = scmp.ne.s32.totalorder %s65, %s66
    %p78 = scmp.eq.s32.totalorder %s35, 1
    %p79 = por %p77, %p78
    %p81 = scmp.ne.s32.totalorder %s66, %s80
    %p82 = scmp.eq.s32.totalorder %s35, 0
    %p83 = por %p81, %p82
    %s85 = sadd.s32 %s84, 1
    %p88 = scmp.eq.s32.totalorder %s29, 1
    %p89 = scmp.ne.s32.totalorder %s84, %s86
    %p90 = scmp.eq.s32.totalorder %s29, 0
    %p91 = por %p89, %p90
    %p92 = scmp.ne.s32.totalorder %s84, %s86
    %p93 = scmp.eq.s32.totalorder %s34, 1
    %p94 = por %p92, %p93
    %p95 = scmp.ne.s32.totalorder %s86, %s87
    %p96 = scmp.eq.s32.totalorder %s34, 0
    %p97 = por %p95, %p96
    %p98 = scmp.ne.s32.totalorder %s86, %s87
    %p99 = scmp.eq.s32.totalorder %s35, 1
    %p100 = por %p98, %p99
    %p102 = scmp.ne.s32.totalorder %s87, %s101
    %p103 = scmp.eq.s32.totalorder %s35, 0
    %p104 = por %p102, %p103
    %s106 = sadd.s32 %s105, 1
    %p109 = scmp.eq.s32.totalorder %s29, 1
    %p110 = scmp.ne.s32.totalorder %s105, %s107
    %p111 = scmp.eq.s32.totalorder %s29, 0
    %p112 = por %p110, %p111
    %p113 = scmp.ne.s32.totalorder %s105, %s107
    %p114 = scmp.eq.s32.totalorder %s34, 1
    %p115 = por %p113, %p114
    %p116 = scmp.ne.s32.totalorder %s107, %s108
    %p117 = scmp.eq.s32.totalorder %s34, 0
    %p118 = por %p116, %p117
    %p119 = scmp.ne.s32.totalorder %s107, %s108
    %p120 = scmp.eq.s32.totalorder %s35, 1
    %p121 = por %p119, %p120
    %p123 = scmp.ne.s32.totalorder %s108, %s122
    %p124 = scmp.eq.s32.totalorder %s35, 0
    %p125 = por %p123, %p124
    %s127 = sadd.s32 %s126, 1
    %p130 = scmp.eq.s32.totalorder %s29, 1
    %p131 = scmp.ne.s32.totalorder %s126, %s128
    %p132 = scmp.eq.s32.totalorder %s29, 0
    %p133 = por %p131, %p132
    %p134 = scmp.ne.s32.totalorder %s126, %s128
    %p135 = scmp.eq.s32.totalorder %s34, 1
    %p136 = por %p134, %p135
    %p137 = scmp.ne.s32.totalorder %s128, %s129
    %p138 = scmp.eq.s32.totalorder %s34, 0
    %p139 = por %p137, %p138
    %p140 = scmp.ne.s32.totalorder %s128, %s129
    %p141 = scmp.eq.s32.totalorder %s35, 1
    %p142 = por %p140, %p141
    %p144 = scmp.ne.s32.totalorder %s129, %s143
    %p145 = scmp.eq.s32.totalorder %s35, 0
    %p146 = por %p144, %p145
    %s148 = sadd.s32 %s147, 1
    %p151 = scmp.eq.s32.totalorder %s29, 1
    %p152 = scmp.ne.s32.totalorder %s147, %s149
    %p153 = scmp.eq.s32.totalorder %s29, 0
    %p154 = por %p152, %p153
    %p155 = scmp.ne.s32.totalorder %s147, %s149
    %p156 = scmp.eq.s32.totalorder %s34, 1
    %p157 = por %p155, %p156
    %p158 = scmp.ne.s32.totalorder %s149, %s150
    %p159 = scmp.eq.s32.totalorder %s34, 0
    %p160 = por %p158, %p159
    %p161 = scmp.ne.s32.totalorder %s149, %s150
    %p162 = scmp.eq.s32.totalorder %s35, 1
    %p163 = por %p161, %p162
    %p165 = scmp.ne.s32.totalorder %s150, %s164
    %p166 = scmp.eq.s32.totalorder %s35, 0
    %p167 = por %p165, %p166
    %s169 = sadd.s32 %s168, 1
    %p172 = scmp.eq.s32.totalorder %s29, 1
    %p173 = scmp.ne.s32.totalorder %s168, %s170
    %p174 = scmp.eq.s32.totalorder %s29, 0
    %p175 = por %p173, %p174
    %p176 = scmp.ne.s32.totalorder %s168, %s170
    %p177 = scmp.eq.s32.totalorder %s34, 1
    %p178 = por %p176, %p177
    %p179 = scmp.ne.s32.totalorder %s170, %s171
    %p180 = scmp.eq.s32.totalorder %s34, 0
    %p181 = por %p179, %p180
    %p182 = scmp.ne.s32.totalorder %s170, %s171
    %p183 = scmp.eq.s32.totalorder %s35, 1
    %p184 = por %p182, %p183
    %p186 = scmp.ne.s32.totalorder %s171, %s185
    %p187 = scmp.eq.s32.totalorder %s35, 0
    %p188 = por %p186, %p187
    %s190 = sadd.s32 %s189, 1
    %p193 = scmp.eq.s32.totalorder %s29, 1
    %p194 = scmp.ne.s32.totalorder %s189, %s191
    %p195 = scmp.eq.s32.totalorder %s29, 0
    %p196 = por %p194, %p195
    %p197 = scmp.ne.s32.totalorder %s189, %s191
    %p198 = scmp.eq.s32.totalorder %s34, 1
    %p199 = por %p197, %p198
    %p200 = scmp.ne.s32.totalorder %s191, %s192
    %p201 = scmp.eq.s32.totalorder %s34, 0
    %p202 = por %p200, %p201
    %p203 = scmp.ne.s32.totalorder %s191, %s192
    %p204 = scmp.eq.s32.totalorder %s35, 1
    %p205 = por %p203, %p204
    %p207 = scmp.ne.s32.totalorder %s192, %s206
    %p208 = scmp.eq.s32.totalorder %s35, 0
    %p209 = por %p207, %p208
    %s211 = sadd.s32 %s210, 1
    %p214 = scmp.eq.s32.totalorder %s29, 1
    %p215 = scmp.ne.s32.totalorder %s210, %s212
    %p216 = scmp.eq.s32.totalorder %s29, 0
    %p217 = por %p215, %p216
    %p218 = scmp.ne.s32.totalorder %s210, %s212
    %p219 = scmp.eq.s32.totalorder %s34, 1
    %p220 = por %p218, %p219
    %p221 = scmp.ne.s32.totalorder %s212, %s213
    %p222 = scmp.eq.s32.totalorder %s34, 0
    %p223 = por %p221, %p222
    %p224 = scmp.ne.s32.totalorder %s212, %s213
    %p225 = scmp.eq.s32.totalorder %s35, 1
    %p226 = por %p224, %p225
    %p228 = scmp.ne.s32.totalorder %s213, %s227
    %p229 = scmp.eq.s32.totalorder %s35, 0
    %p230 = por %p228, %p229
    %s232 = sadd.s32 %s231, 1
    %p235 = scmp.eq.s32.totalorder %s29, 1
    %p236 = scmp.ne.s32.totalorder %s231, %s233
    %p237 = scmp.eq.s32.totalorder %s29, 0
    %p238 = por %p236, %p237
    %p239 = scmp.ne.s32.totalorder %s231, %s233
    %p240 = scmp.eq.s32.totalorder %s34, 1
    %p241 = por %p239, %p240
    %p242 = scmp.ne.s32.totalorder %s233, %s234
    %p243 = scmp.eq.s32.totalorder %s34, 0
    %p244 = por %p242, %p243
    %p245 = scmp.ne.s32.totalorder %s233, %s234
    %p246 = scmp.eq.s32.totalorder %s35, 1
    %p247 = por %p245, %p246
    %p249 = scmp.ne.s32.totalorder %s234, %s248
    %p250 = scmp.eq.s32.totalorder %s35, 0
    %p251 = por %p249, %p250
    %s253 = sadd.s32 %s252, 1
    %p256 = scmp.eq.s32.totalorder %s29, 1
    %p257 = scmp.ne.s32.totalorder %s252, %s254
    %p258 = scmp.eq.s32.totalorder %s29, 0
    %p259 = por %p257, %p258
    %p260 = scmp.ne.s32.totalorder %s252, %s254
    %p261 = scmp.eq.s32.totalorder %s34, 1
    %p262 = por %p260, %p261
    %p263 = scmp.ne.s32.totalorder %s254, %s255
    %p264 = scmp.eq.s32.totalorder %s34, 0
    %p265 = por %p263, %p264
    %p266 = scmp.ne.s32.totalorder %s254, %s255
    %p267 = scmp.eq.s32.totalorder %s35, 1
    %p268 = por %p266, %p267
    %p270 = scmp.ne.s32.totalorder %s255, %s269
    %p271 = scmp.eq.s32.totalorder %s35, 0
    %p272 = por %p270, %p271
    %s274 = sadd.s32 %s273, 1
    %p277 = scmp.eq.s32.totalorder %s29, 1
    %p278 = scmp.ne.s32.totalorder %s273, %s275
    %p279 = scmp.eq.s32.totalorder %s29, 0
    %p280 = por %p278, %p279
    %p281 = scmp.ne.s32.totalorder %s273, %s275
    %p282 = scmp.eq.s32.totalorder %s34, 1
    %p283 = por %p281, %p282
    %p284 = scmp.ne.s32.totalorder %s275, %s276
    %p285 = scmp.eq.s32.totalorder %s34, 0
    %p286 = por %p284, %p285
    %p287 = scmp.ne.s32.totalorder %s275, %s276
    %p288 = scmp.eq.s32.totalorder %s35, 1
    %p289 = por %p287, %p288
    %p291 = scmp.ne.s32.totalorder %s276, %s290
    %p292 = scmp.eq.s32.totalorder %s35, 0
    %p293 = por %p291, %p292
    %s295 = sadd.s32 %s294, 1
    %p298 = scmp.eq.s32.totalorder %s29, 1
    %p299 = scmp.ne.s32.totalorder %s294, %s296
    %p300 = scmp.eq.s32.totalorder %s29, 0
    %p301 = por %p299, %p300
    %p302 = scmp.ne.s32.totalorder %s294, %s296
    %p303 = scmp.eq.s32.totalorder %s34, 1
    %p304 = por %p302, %p303
    %p305 = scmp.ne.s32.totalorder %s296, %s297
    %p306 = scmp.eq.s32.totalorder %s34, 0
    %p307 = por %p305, %p306
    %p308 = scmp.ne.s32.totalorder %s296, %s297
    %p309 = scmp.eq.s32.totalorder %s35, 1
    %p310 = por %p308, %p309
    %p312 = scmp.ne.s32.totalorder %s297, %s311
    %p313 = scmp.eq.s32.totalorder %s35, 0
    %p314 = por %p312, %p313
    %s316 = sadd.s32 %s315, 1
    %p319 = scmp.eq.s32.totalorder %s29, 1
    %p320 = scmp.ne.s32.totalorder %s315, %s317
    %p321 = scmp.eq.s32.totalorder %s29, 0
    %p322 = por %p320, %p321
    %p323 = scmp.ne.s32.totalorder %s315, %s317
    %p324 = scmp.eq.s32.totalorder %s34, 1
    %p325 = por %p323, %p324
    %p326 = scmp.ne.s32.totalorder %s317, %s318
    %p327 = scmp.eq.s32.totalorder %s34, 0
    %p328 = por %p326, %p327
    %p329 = scmp.ne.s32.totalorder %s317, %s318
    %p330 = scmp.eq.s32.totalorder %s35, 1
    %p331 = por %p329, %p330
    %p333 = scmp.ne.s32.totalorder %s318, %s332
    %p334 = scmp.eq.s32.totalorder %s35, 0
    %p335 = por %p333, %p334
    %s337 = sadd.s32 %s336, 1
    %p340 = scmp.eq.s32.totalorder %s29, 1
    %p341 = scmp.ne.s32.totalorder %s336, %s338
    %p342 = scmp.eq.s32.totalorder %s29, 0
    %p343 = por %p341, %p342
    %p344 = scmp.ne.s32.totalorder %s336, %s338
    %p345 = scmp.eq.s32.totalorder %s34, 1
    %p346 = por %p344, %p345
    %p347 = scmp.ne.s32.totalorder %s338, %s339
    %p348 = scmp.eq.s32.totalorder %s34, 0
    %p349 = por %p347, %p348
    %p350 = scmp.ne.s32.totalorder %s338, %s339
    %p351 = scmp.eq.s32.totalorder %s35, 1
    %p352 = por %p350, %p351
    %p354 = scmp.ne.s32.totalorder %s339, %s353
    %p355 = scmp.eq.s32.totalorder %s35, 0
    %p356 = por %p354, %p355
    %s358 = sadd.s32 %s357, 1
    %p361 = scmp.eq.s32.totalorder %s29, 1
    %p362 = scmp.ne.s32.totalorder %s357, %s359
    %p363 = scmp.eq.s32.totalorder %s29, 0
    %p364 = por %p362, %p363
    %p365 = scmp.ne.s32.totalorder %s357, %s359
    %p366 = scmp.eq.s32.totalorder %s34, 1
    %p367 = por %p365, %p366
    %p368 = scmp.ne.s32.totalorder %s359, %s360
    %p369 = scmp.eq.s32.totalorder %s34, 0
    %p370 = por %p368, %p369
    %p371 = scmp.ne.s32.totalorder %s359, %s360
    %p372 = scmp.eq.s32.totalorder %s35, 1
    %p373 = por %p371, %p372
    %p375 = scmp.ne.s32.totalorder %s360, %s374
    %p376 = scmp.eq.s32.totalorder %s35, 0
    %p377 = por %p375, %p376
    %s379 = sadd.s32 %s378, 1
    %p382 = scmp.eq.s32.totalorder %s29, 1
    %p383 = scmp.ne.s32.totalorder %s378, %s380
    %p384 = scmp.eq.s32.totalorder %s29, 0
    %p385 = por %p383, %p384
    %p386 = scmp.ne.s32.totalorder %s378, %s380
    %p387 = scmp.eq.s32.totalorder %s34, 1
    %p388 = por %p386, %p387
    %p389 = scmp.ne.s32.totalorder %s380, %s381
    %p390 = scmp.eq.s32.totalorder %s34, 0
    %p391 = por %p389, %p390
    %p392 = scmp.ne.s32.totalorder %s380, %s381
    %p393 = scmp.eq.s32.totalorder %s35, 1
    %p394 = por %p392, %p393
    %p396 = scmp.ne.s32.totalorder %s381, %s395
    %p397 = scmp.eq.s32.totalorder %s35, 0
    %p398 = por %p396, %p397
    %s400 = sadd.s32 %s399, 1
    %p403 = scmp.eq.s32.totalorder %s29, 1
    %p404 = scmp.ne.s32.totalorder %s399, %s401
    %p405 = scmp.eq.s32.totalorder %s29, 0
    %p406 = por %p404, %p405
    %p407 = scmp.ne.s32.totalorder %s399, %s401
    %p408 = scmp.eq.s32.totalorder %s34, 1
    %p409 = por %p407, %p408
    %p410 = scmp.ne.s32.totalorder %s401, %s402
    %p411 = scmp.eq.s32.totalorder %s34, 0
    %p412 = por %p410, %p411
    %p413 = scmp.ne.s32.totalorder %s401, %s402
    %p414 = scmp.eq.s32.totalorder %s35, 1
    %p415 = por %p413, %p414
    %p417 = scmp.ne.s32.totalorder %s402, %s416
    %p418 = scmp.eq.s32.totalorder %s35, 0
    %p419 = por %p417, %p418
    %s421 = sadd.s32 %s420, 1
    %p424 = scmp.eq.s32.totalorder %s29, 1
    %p425 = scmp.ne.s32.totalorder %s420, %s422
    %p426 = scmp.eq.s32.totalorder %s29, 0
    %p427 = por %p425, %p426
    %p428 = scmp.ne.s32.totalorder %s420, %s422
    %p429 = scmp.eq.s32.totalorder %s34, 1
    %p430 = por %p428, %p429
    %p431 = scmp.ne.s32.totalorder %s422, %s423
    %p432 = scmp.eq.s32.totalorder %s34, 0
    %p433 = por %p431, %p432
    %p434 = scmp.ne.s32.totalorder %s422, %s423
    %p435 = scmp.eq.s32.totalorder %s35, 1
    %p436 = por %p434, %p435
    %p438 = scmp.ne.s32.totalorder %s423, %s437
    %p439 = scmp.eq.s32.totalorder %s35, 0
    %p440 = por %p438, %p439
    %s442 = sadd.s32 %s441, 1
    %p445 = scmp.eq.s32.totalorder %s29, 1
    %p446 = scmp.ne.s32.totalorder %s441, %s443
    %p447 = scmp.eq.s32.totalorder %s29, 0
    %p448 = por %p446, %p447
    %p449 = scmp.ne.s32.totalorder %s441, %s443
    %p450 = scmp.eq.s32.totalorder %s34, 1
    %p451 = por %p449, %p450
    %p452 = scmp.ne.s32.totalorder %s443, %s444
    %p453 = scmp.eq.s32.totalorder %s34, 0
    %p454 = por %p452, %p453
    %p455 = scmp.ne.s32.totalorder %s443, %s444
    %p456 = scmp.eq.s32.totalorder %s35, 1
    %p457 = por %p455, %p456
    %p459 = scmp.ne.s32.totalorder %s444, %s458
    %p460 = scmp.eq.s32.totalorder %s35, 0
    %p461 = por %p459, %p460
    %s463 = sadd.s32 %s462, 1
    %p466 = scmp.eq.s32.totalorder %s29, 1
    %p467 = scmp.ne.s32.totalorder %s462, %s464
    %p468 = scmp.eq.s32.totalorder %s29, 0
    %p469 = por %p467, %p468
    %p470 = scmp.ne.s32.totalorder %s462, %s464
    %p471 = scmp.eq.s32.totalorder %s34, 1
    %p472 = por %p470, %p471
    %p473 = scmp.ne.s32.totalorder %s464, %s465
    %p474 = scmp.eq.s32.totalorder %s34, 0
    %p475 = por %p473, %p474
    %p476 = scmp.ne.s32.totalorder %s464, %s465
    %p477 = scmp.eq.s32.totalorder %s35, 1
    %p478 = por %p476, %p477
    %p480 = scmp.ne.s32.totalorder %s465, %s479
    %p481 = scmp.eq.s32.totalorder %s35, 0
    %p482 = por %p480, %p481
    %s484 = sadd.s32 %s483, 1
    %p487 = scmp.eq.s32.totalorder %s29, 1
    %p488 = scmp.ne.s32.totalorder %s483, %s485
    %p489 = scmp.eq.s32.totalorder %s29, 0
    %p490 = por %p488, %p489
    %p491 = scmp.ne.s32.totalorder %s483, %s485
    %p492 = scmp.eq.s32.totalorder %s34, 1
    %p493 = por %p491, %p492
    %p494 = scmp.ne.s32.totalorder %s485, %s486
    %p495 = scmp.eq.s32.totalorder %s34, 0
    %p496 = por %p494, %p495
    %p497 = scmp.ne.s32.totalorder %s485, %s486
    %p498 = scmp.eq.s32.totalorder %s35, 1
    %p499 = por %p497, %p498
    %p501 = scmp.ne.s32.totalorder %s486, %s500
    %p502 = scmp.eq.s32.totalorder %s35, 0
    %p503 = por %p501, %p502
    %s505 = sadd.s32 %s504, 1
    %p508 = scmp.eq.s32.totalorder %s29, 1
    %p509 = scmp.ne.s32.totalorder %s504, %s506
    %p510 = scmp.eq.s32.totalorder %s29, 0
    %p511 = por %p509, %p510
    %p512 = scmp.ne.s32.totalorder %s504, %s506
    %p513 = scmp.eq.s32.totalorder %s34, 1
    %p514 = por %p512, %p513
    %p515 = scmp.ne.s32.totalorder %s506, %s507
    %p516 = scmp.eq.s32.totalorder %s34, 0
    %p517 = por %p515, %p516
    %p518 = scmp.ne.s32.totalorder %s506, %s507
    %p519 = scmp.eq.s32.totalorder %s35, 1
    %p520 = por %p518, %p519
    %p522 = scmp.ne.s32.totalorder %s507, %s521
    %p523 = scmp.eq.s32.totalorder %s35, 0
    %p524 = por %p522, %p523
    %s525 = ssub.s32 %s29, %s36
    %p526 = scmp.eq.s32.totalorder %s525, 0
    %s528 = sadd.s32 %s527, 1
    %s529 = scalar_select %p526, %s527, %s528
    %p532 = pneg %p526
    %p533 = scmp.eq.s32.totalorder %s29, 1
    %p534 = por %p532, %p533
    %p535 = scmp.ne.s32.totalorder %s527, %s530
    %p536 = scmp.eq.s32.totalorder %s29, 0
    %p537 = por %p535, %p536
    %p538 = scmp.ne.s32.totalorder %s527, %s530
    %p539 = scmp.eq.s32.totalorder %s34, 1
    %p540 = por %p538, %p539
    %p541 = scmp.ne.s32.totalorder %s530, %s531
    %p542 = scmp.eq.s32.totalorder %s34, 0
    %p543 = por %p541, %p542
    %p544 = scmp.ne.s32.totalorder %s530, %s531
    %p545 = scmp.eq.s32.totalorder %s35, 1
    %p546 = por %p544, %p545
    %p548 = scmp.ne.s32.totalorder %s531, %s547
    %p549 = scmp.eq.s32.totalorder %s35, 0
    %p550 = por %p548, %p549
    %p551 = scmp.le.s32.totalorder 1, %s29
    %p552 = scmp.lt.s32.totalorder %s29, 3
    %p553 = pnand %p551, %p552
    %p554 = pneg %p553
    // Predicated region
    $region9: #{forward.2} parent=5 // pred_check
      _
    $region10: #{forward.2} parent=5 // pred_check_branch
      %556 = sbr.rel (%p553) target = $region12
    $region11: #{forward.2} parent=5 // pred_region
      %s557 = ssub.s32 %s29, 1
      // Predicated region
      $region13: #{forward.2} parent=11 // pred_check
        %p558 = pneg %p76
      $region14: #{forward.2} parent=11 // pred_check_branch
        %560 = sbr.rel (%p558) target = $region16
      $region15: #{forward.2} parent=11 // pred_region
        _
      $region16: #{forward.2} parent=11 // pred_fallthru
        _
      // Predicated region
      $region17: #{forward.2} parent=11 // pred_check
        %p561 = pneg %p97
      $region18: #{forward.2} parent=11 // pred_check_branch
        %563 = sbr.rel (%p561) target = $region20
      $region19: #{forward.2} parent=11 // pred_region
        _
      $region20: #{forward.2} parent=11 // pred_fallthru
        _
      // Predicated region
      $region21: #{forward.2} parent=11 // pred_check
        %p564 = pneg %p118
      $region22: #{forward.2} parent=11 // pred_check_branch
        %566 = sbr.rel (%p564) target = $region24
      $region23: #{forward.2} parent=11 // pred_region
        _
      $region24: #{forward.2} parent=11 // pred_fallthru
        _
      // Predicated region
      $region25: #{forward.2} parent=11 // pred_check
        %p567 = pneg %p139
      $region26: #{forward.2} parent=11 // pred_check_branch
        %569 = sbr.rel (%p567) target = $region28
      $region27: #{forward.2} parent=11 // pred_region
        _
      $region28: #{forward.2} parent=11 // pred_fallthru
        _
      // Predicated region
      $region29: #{forward.2} parent=11 // pred_check
        %p570 = pneg %p160
      $region30: #{forward.2} parent=11 // pred_check_branch
        %572 = sbr.rel (%p570) target = $region32
      $region31: #{forward.2} parent=11 // pred_region
        _
      $region32: #{forward.2} parent=11 // pred_fallthru
        _
      // Predicated region
      $region33: #{forward.2} parent=11 // pred_check
        %p573 = pneg %p181
      $region34: #{forward.2} parent=11 // pred_check_branch
        %575 = sbr.rel (%p573) target = $region36
      $region35: #{forward.2} parent=11 // pred_region
        _
      $region36: #{forward.2} parent=11 // pred_fallthru
        _
      // Predicated region
      $region37: #{forward.2} parent=11 // pred_check
        %p576 = pneg %p202
      $region38: #{forward.2} parent=11 // pred_check_branch
        %578 = sbr.rel (%p576) target = $region40
      $region39: #{forward.2} parent=11 // pred_region
        _
      $region40: #{forward.2} parent=11 // pred_fallthru
        _
      // Predicated region
      $region41: #{forward.2} parent=11 // pred_check
        %p579 = pneg %p223
      $region42: #{forward.2} parent=11 // pred_check_branch
        %581 = sbr.rel (%p579) target = $region44
      $region43: #{forward.2} parent=11 // pred_region
        _
      $region44: #{forward.2} parent=11 // pred_fallthru
        _
      // Predicated region
      $region45: #{forward.2} parent=11 // pred_check
        %p582 = pneg %p244
      $region46: #{forward.2} parent=11 // pred_check_branch
        %584 = sbr.rel (%p582) target = $region48
      $region47: #{forward.2} parent=11 // pred_region
        _
      $region48: #{forward.2} parent=11 // pred_fallthru
        _
      // Predicated region
      $region49: #{forward.2} parent=11 // pred_check
        %p585 = pneg %p265
      $region50: #{forward.2} parent=11 // pred_check_branch
        %587 = sbr.rel (%p585) target = $region52
      $region51: #{forward.2} parent=11 // pred_region
        _
      $region52: #{forward.2} parent=11 // pred_fallthru
        _
      // Predicated region
      $region53: #{forward.2} parent=11 // pred_check
        %p588 = pneg %p286
      $region54: #{forward.2} parent=11 // pred_check_branch
        %590 = sbr.rel (%p588) target = $region56
      $region55: #{forward.2} parent=11 // pred_region
        _
      $region56: #{forward.2} parent=11 // pred_fallthru
        _
      // Predicated region
      $region57: #{forward.2} parent=11 // pred_check
        %p591 = pneg %p307
      $region58: #{forward.2} parent=11 // pred_check_branch
        %593 = sbr.rel (%p591) target = $region60
      $region59: #{forward.2} parent=11 // pred_region
        _
      $region60: #{forward.2} parent=11 // pred_fallthru
        _
      // Predicated region
      $region61: #{forward.2} parent=11 // pred_check
        %p594 = pneg %p328
      $region62: #{forward.2} parent=11 // pred_check_branch
        %596 = sbr.rel (%p594) target = $region64
      $region63: #{forward.2} parent=11 // pred_region
        _
      $region64: #{forward.2} parent=11 // pred_fallthru
        _
      // Predicated region
      $region65: #{forward.2} parent=11 // pred_check
        %p597 = pneg %p349
      $region66: #{forward.2} parent=11 // pred_check_branch
        %599 = sbr.rel (%p597) target = $region68
      $region67: #{forward.2} parent=11 // pred_region
        _
      $region68: #{forward.2} parent=11 // pred_fallthru
        _
      // Predicated region
      $region69: #{forward.2} parent=11 // pred_check
        %p600 = pneg %p370
      $region70: #{forward.2} parent=11 // pred_check_branch
        %602 = sbr.rel (%p600) target = $region72
      $region71: #{forward.2} parent=11 // pred_region
        _
      $region72: #{forward.2} parent=11 // pred_fallthru
        _
      // Predicated region
      $region73: #{forward.2} parent=11 // pred_check
        %p603 = pneg %p391
      $region74: #{forward.2} parent=11 // pred_check_branch
        %605 = sbr.rel (%p603) target = $region76
      $region75: #{forward.2} parent=11 // pred_region
        _
      $region76: #{forward.2} parent=11 // pred_fallthru
        _
      // Predicated region
      $region77: #{forward.2} parent=11 // pred_check
        %p606 = pneg %p412
      $region78: #{forward.2} parent=11 // pred_check_branch
        %608 = sbr.rel (%p606) target = $region80
      $region79: #{forward.2} parent=11 // pred_region
        _
      $region80: #{forward.2} parent=11 // pred_fallthru
        _
      // Predicated region
      $region81: #{forward.2} parent=11 // pred_check
        %p609 = pneg %p433
      $region82: #{forward.2} parent=11 // pred_check_branch
        %611 = sbr.rel (%p609) target = $region84
      $region83: #{forward.2} parent=11 // pred_region
        _
      $region84: #{forward.2} parent=11 // pred_fallthru
        _
      // Predicated region
      $region85: #{forward.2} parent=11 // pred_check
        %p612 = pneg %p454
      $region86: #{forward.2} parent=11 // pred_check_branch
        %614 = sbr.rel (%p612) target = $region88
      $region87: #{forward.2} parent=11 // pred_region
        _
      $region88: #{forward.2} parent=11 // pred_fallthru
        _
      // Predicated region
      $region89: #{forward.2} parent=11 // pred_check
        %p615 = pneg %p475
      $region90: #{forward.2} parent=11 // pred_check_branch
        %617 = sbr.rel (%p615) target = $region92
      $region91: #{forward.2} parent=11 // pred_region
        _
      $region92: #{forward.2} parent=11 // pred_fallthru
        _
      // Predicated region
      $region93: #{forward.2} parent=11 // pred_check
        %p618 = pneg %p496
      $region94: #{forward.2} parent=11 // pred_check_branch
        %620 = sbr.rel (%p618) target = $region96
      $region95: #{forward.2} parent=11 // pred_region
        _
      $region96: #{forward.2} parent=11 // pred_fallthru
        _
      // Predicated region
      $region97: #{forward.2} parent=11 // pred_check
        %p621 = pneg %p517
      $region98: #{forward.2} parent=11 // pred_check_branch
        %623 = sbr.rel (%p621) target = $region100
      $region99: #{forward.2} parent=11 // pred_region
        _
      $region100: #{forward.2} parent=11 // pred_fallthru
        _
    $region12: #{forward.2} parent=5 // pred_fallthru
      _
    %p624 = scmp.lt.s32.totalorder %s29, 2
    // Predicated region
    $region101: #{forward.2} parent=5 // pred_check
      %p625 = pneg %p624
    $region102: #{forward.2} parent=5 // pred_check_branch
      %627 = sbr.rel (%p625) target = $region104
    $region103: #{forward.2} parent=5 // pred_region
      // Predicated region
      $region105: #{forward.2} parent=103 // pred_check
        %p628 = pneg %p49
      $region106: #{forward.2} parent=103 // pred_check_branch
        %630 = sbr.rel (%p628) target = $region108
      $region107: #{forward.2} parent=103 // pred_region
        %p631 = scmp.lt.s32.totalorder %s29, 1
        %s632 = scalar_select %p631, %s29, 1
        %s633 = smul.addr %s632, 32
        %s634 = smul.addr %s633, 8
        %s635 = scalar_lea.vmem %s0, %s634
      $region108: #{forward.2} parent=103 // pred_fallthru
        _
    $region104: #{forward.2} parent=5 // pred_fallthru
      _
    %p636 = scmp.le.s32.totalorder 1, %s29
    %p637 = scmp.lt.s32.totalorder %s29, 3
    %p638 = pnand %p636, %p637
    %p639 = pneg %p638
    // Predicated region
    $region109: #{forward.2} parent=5 // pred_check
      _
    $region110: #{forward.2} parent=5 // pred_check_branch
      %641 = sbr.rel (%p638) target = $region112
    $region111: #{forward.2} parent=5 // pred_region
      %s642 = ssub.s32 %s29, 1
      %p643 = scmp.lt.s32.totalorder %s34, 1
      %s644 = scalar_select %p643, %s34, 1
      %s645 = smul.addr %s644, 32
      %s646 = smul.addr %s645, 8
      %s647 = scalar_lea.vmem %s0, %s646
      %p648 = pneg %p55
      %p649 = pneg %p52
      %p650 = pneg %p76
      %p651 = pneg %p73
      %p652 = pneg %p97
      %p653 = pneg %p94
      %p654 = pneg %p118
      %p655 = pneg %p115
      %p656 = pneg %p139
      %p657 = pneg %p136
      %p658 = pneg %p160
      %p659 = pneg %p157
      %p660 = pneg %p181
      %p661 = pneg %p178
      %p662 = pneg %p202
      %p663 = pneg %p199
      %p664 = pneg %p223
      %p665 = pneg %p220
      %p666 = pneg %p244
      %p667 = pneg %p241
      %p668 = pneg %p265
      %p669 = pneg %p262
      %p670 = pneg %p286
      %p671 = pneg %p283
      %p672 = pneg %p307
      %p673 = pneg %p304
      %p674 = pneg %p328
      %p675 = pneg %p325
      %p676 = pneg %p349
      %p677 = pneg %p346
      %p678 = pneg %p370
      %p679 = pneg %p367
      %p680 = pneg %p391
      %p681 = pneg %p388
      %p682 = pneg %p412
      %p683 = pneg %p409
      %p684 = pneg %p433
      %p685 = pneg %p430
      %p686 = pneg %p454
      %p687 = pneg %p451
      %p688 = pneg %p475
      %p689 = pneg %p472
      %p690 = pneg %p496
      %p691 = pneg %p493
      %p692 = pneg %p517
      %p693 = pneg %p514
      %p694 = pneg %p543
      %p695 = pneg %p540
      %p696 = scmp.lt.s32.totalorder %s34, 1
      %s697 = scalar_select %p696, %s34, 1
      %s698 = smul.addr %s697, 6
      %s699 = smul.addr %s698, 4
      %s700 = scalar_lea.vmem %s23, %s699
      %p701 = scmp.lt.s32.totalorder %s34, 1
      %s702 = scalar_select %p701, %s34, 1
      %s703 = smul.addr %s702, 32
      %s704 = smul.addr %s703, 8
      %s705 = scalar_lea.vmem %s0, %s704
      %p706 = scmp.lt.s32.totalorder %s34, 1
      %s707 = scalar_select %p706, %s34, 1
      %s708 = smul.addr %s707, 6
      %s709 = smul.addr %s708, 4
      %s710 = scalar_lea.vmem %s23, %s709
      %v712 = vld [vmem:[%s705] sm:$0xff]
      %v713 = vld [vmem:[%s705 + $0x8] sm:$0xff]
      %v714 = vld [vmem:[%s705 + $0x10] sm:$0xff]
      %v715 = vld [vmem:[%s705 + $0x18] sm:$0xff]
      %v716 = vld [vmem:[%s705 + $0x20] sm:$0xff]
      %v717 = vld [vmem:[%s705 + $0x28] sm:$0xff]
      %v718 = vld [vmem:[%s705 + $0x30] sm:$0xff]
      %v719 = vld [vmem:[%s705 + $0x38] sm:$0xff]
      %v720 = vld [vmem:[%s705 + $0x40] sm:$0xff]
      %v721 = vld [vmem:[%s705 + $0x48] sm:$0xff]
      %v722 = vld [vmem:[%s705 + $0x50] sm:$0xff]
      %v723 = vld [vmem:[%s705 + $0x58] sm:$0xff]
      %v724 = vld [vmem:[%s705 + $0x60] sm:$0xff]
      %v725 = vld [vmem:[%s705 + $0x68] sm:$0xff]
      %v726 = vld [vmem:[%s705 + $0x70] sm:$0xff]
      %v727 = vld [vmem:[%s705 + $0x78] sm:$0xff]
      %v728 = vld [vmem:[%s705 + $0x80] sm:$0xff]
      %v729 = vld [vmem:[%s705 + $0x88] sm:$0xff]
      %v730 = vld [vmem:[%s705 + $0x90] sm:$0xff]
      %v731 = vld [vmem:[%s705 + $0x98] sm:$0xff]
      %v732 = vld [vmem:[%s705 + $0xa0] sm:$0xff]
      %v733 = vld [vmem:[%s705 + $0xa8] sm:$0xff]
      %v734 = vld [vmem:[%s705 + $0xb0] sm:$0xff]
      %v735 = vld [vmem:[%s705 + $0xb8] sm:$0xff]
      %v736 = vld [vmem:[%s705 + $0xc0] sm:$0xff]
      %v737 = vld [vmem:[%s705 + $0xc8] sm:$0xff]
      %v738 = vld [vmem:[%s705 + $0xd0] sm:$0xff]
      %v739 = vld [vmem:[%s705 + $0xd8] sm:$0xff]
      %v740 = vld [vmem:[%s705 + $0xe0] sm:$0xff]
      %v741 = vld [vmem:[%s705 + $0xe8] sm:$0xff]
      %v742 = vld [vmem:[%s705 + $0xf0] sm:$0xff]
      %v743 = vld [vmem:[%s705 + $0xf8] sm:$0x3]
      %vm744 = vcmask 105472
      %v745 = vsel %vm744, %v712, 0.0
      %746 = vadd.xlane.f32.xlu0 %v745
      %v747 = vpop.xlane.xlu0 %746
      %v748 = vsel %vm744, %v713, 0.0
      %749 = vadd.xlane.f32.xlu0 %v748
      %v750 = vpop.xlane.xlu0 %749
      %v751 = vsel %vm744, %v714, 0.0
      %752 = vadd.xlane.f32.xlu0 %v751
      %v753 = vpop.xlane.xlu0 %752
      %v754 = vsel %vm744, %v715, 0.0
      %755 = vadd.xlane.f32.xlu0 %v754
      %v756 = vpop.xlane.xlu0 %755
      %v757 = vsel %vm744, %v716, 0.0
      %758 = vadd.xlane.f32.xlu0 %v757
      %v759 = vpop.xlane.xlu0 %758
      %v760 = vsel %vm744, %v717, 0.0
      %761 = vadd.xlane.f32.xlu0 %v760
      %v762 = vpop.xlane.xlu0 %761
      %v763 = vsel %vm744, %v718, 0.0
      %764 = vadd.xlane.f32.xlu0 %v763
      %v765 = vpop.xlane.xlu0 %764
      %v766 = vsel %vm744, %v719, 0.0
      %767 = vadd.xlane.f32.xlu0 %v766
      %v768 = vpop.xlane.xlu0 %767
      %v769 = vsel %vm744, %v720, 0.0
      %770 = vadd.xlane.f32.xlu0 %v769
      %v771 = vpop.xlane.xlu0 %770
      %v772 = vsel %vm744, %v721, 0.0
      %773 = vadd.xlane.f32.xlu0 %v772
      %v774 = vpop.xlane.xlu0 %773
      %v775 = vsel %vm744, %v722, 0.0
      %776 = vadd.xlane.f32.xlu0 %v775
      %v777 = vpop.xlane.xlu0 %776
      %v778 = vsel %vm744, %v723, 0.0
      %779 = vadd.xlane.f32.xlu0 %v778
      %v780 = vpop.xlane.xlu0 %779
      %v781 = vsel %vm744, %v724, 0.0
      %782 = vadd.xlane.f32.xlu0 %v781
      %v783 = vpop.xlane.xlu0 %782
      %v784 = vsel %vm744, %v725, 0.0
      %785 = vadd.xlane.f32.xlu0 %v784
      %v786 = vpop.xlane.xlu0 %785
      %v787 = vsel %vm744, %v726, 0.0
      %788 = vadd.xlane.f32.xlu0 %v787
      %v789 = vpop.xlane.xlu0 %788
      %v790 = vsel %vm744, %v727, 0.0
      %791 = vadd.xlane.f32.xlu0 %v790
      %v792 = vpop.xlane.xlu0 %791
      %v793 = vsel %vm744, %v728, 0.0
      %794 = vadd.xlane.f32.xlu0 %v793
      %v795 = vpop.xlane.xlu0 %794
      %v796 = vsel %vm744, %v729, 0.0
      %797 = vadd.xlane.f32.xlu0 %v796
      %v798 = vpop.xlane.xlu0 %797
      %v799 = vsel %vm744, %v730, 0.0
      %800 = vadd.xlane.f32.xlu0 %v799
      %v801 = vpop.xlane.xlu0 %800
      %v802 = vsel %vm744, %v731, 0.0
      %803 = vadd.xlane.f32.xlu0 %v802
      %v804 = vpop.xlane.xlu0 %803
      %v805 = vsel %vm744, %v732, 0.0
      %806 = vadd.xlane.f32.xlu0 %v805
      %v807 = vpop.xlane.xlu0 %806
      %v808 = vsel %vm744, %v733, 0.0
      %809 = vadd.xlane.f32.xlu0 %v808
      %v810 = vpop.xlane.xlu0 %809
      %v811 = vsel %vm744, %v734, 0.0
      %812 = vadd.xlane.f32.xlu0 %v811
      %v813 = vpop.xlane.xlu0 %812
      %v814 = vsel %vm744, %v735, 0.0
      %815 = vadd.xlane.f32.xlu0 %v814
      %v816 = vpop.xlane.xlu0 %815
      %v817 = vsel %vm744, %v736, 0.0
      %818 = vadd.xlane.f32.xlu0 %v817
      %v819 = vpop.xlane.xlu0 %818
      %v820 = vsel %vm744, %v737, 0.0
      %821 = vadd.xlane.f32.xlu0 %v820
      %v822 = vpop.xlane.xlu0 %821
      %v823 = vsel %vm744, %v738, 0.0
      %824 = vadd.xlane.f32.xlu0 %v823
      %v825 = vpop.xlane.xlu0 %824
      %v826 = vsel %vm744, %v739, 0.0
      %827 = vadd.xlane.f32.xlu0 %v826
      %v828 = vpop.xlane.xlu0 %827
      %v829 = vsel %vm744, %v740, 0.0
      %830 = vadd.xlane.f32.xlu0 %v829
      %v831 = vpop.xlane.xlu0 %830
      %v832 = vsel %vm744, %v741, 0.0
      %833 = vadd.xlane.f32.xlu0 %v832
      %v834 = vpop.xlane.xlu0 %833
      %v835 = vsel %vm744, %v742, 0.0
      %836 = vadd.xlane.f32.xlu0 %v835
      %v837 = vpop.xlane.xlu0 %836
      %vm838 = vcmask 99328
      %v839 = vsel %vm838, %v743, 0.0
      %840 = vadd.xlane.f32.xlu0 %v839
      %v841 = vpop.xlane.xlu0 %840
      %v842 = vmul.f32 %v747, 0.07692308
      %v843 = vmul.f32 %v750, 0.07692308
      %v844 = vmul.f32 %v753, 0.07692308
      %v845 = vmul.f32 %v756, 0.07692308
      %v846 = vmul.f32 %v759, 0.07692308
      %v847 = vmul.f32 %v762, 0.07692308
      %v848 = vmul.f32 %v765, 0.07692308
      %v849 = vmul.f32 %v768, 0.07692308
      %v850 = vmul.f32 %v771, 0.07692308
      %v851 = vmul.f32 %v774, 0.07692308
      %v852 = vmul.f32 %v777, 0.07692308
      %v853 = vmul.f32 %v780, 0.07692308
      %v854 = vmul.f32 %v783, 0.07692308
      %v855 = vmul.f32 %v786, 0.07692308
      %v856 = vmul.f32 %v789, 0.07692308
      %v857 = vmul.f32 %v792, 0.07692308
      %v858 = vmul.f32 %v795, 0.07692308
      %v859 = vmul.f32 %v798, 0.07692308
      %v860 = vmul.f32 %v801, 0.07692308
      %v861 = vmul.f32 %v804, 0.07692308
      %v862 = vmul.f32 %v807, 0.07692308
      %v863 = vmul.f32 %v810, 0.07692308
      %v864 = vmul.f32 %v813, 0.07692308
      %v865 = vmul.f32 %v816, 0.07692308
      %v866 = vmul.f32 %v819, 0.07692308
      %v867 = vmul.f32 %v822, 0.07692308
      %v868 = vmul.f32 %v825, 0.07692308
      %v869 = vmul.f32 %v828, 0.07692308
      %v870 = vmul.f32 %v831, 0.07692308
      %v871 = vmul.f32 %v834, 0.07692308
      %v872 = vmul.f32 %v837, 0.07692308
      %v873 = vmul.f32 %v841, 0.07692308
      %v874 = vsub.f32 %v712, %v842
      %v875 = vsub.f32 %v713, %v843
      %v876 = vsub.f32 %v714, %v844
      %v877 = vsub.f32 %v715, %v845
      %v878 = vsub.f32 %v716, %v846
      %v879 = vsub.f32 %v717, %v847
      %v880 = vsub.f32 %v718, %v848
      %v881 = vsub.f32 %v719, %v849
      %v882 = vsub.f32 %v720, %v850
      %v883 = vsub.f32 %v721, %v851
      %v884 = vsub.f32 %v722, %v852
      %v885 = vsub.f32 %v723, %v853
      %v886 = vsub.f32 %v724, %v854
      %v887 = vsub.f32 %v725, %v855
      %v888 = vsub.f32 %v726, %v856
      %v889 = vsub.f32 %v727, %v857
      %v890 = vsub.f32 %v728, %v858
      %v891 = vsub.f32 %v729, %v859
      %v892 = vsub.f32 %v730, %v860
      %v893 = vsub.f32 %v731, %v861
      %v894 = vsub.f32 %v732, %v862
      %v895 = vsub.f32 %v733, %v863
      %v896 = vsub.f32 %v734, %v864
      %v897 = vsub.f32 %v735, %v865
      %v898 = vsub.f32 %v736, %v866
      %v899 = vsub.f32 %v737, %v867
      %v900 = vsub.f32 %v738, %v868
      %v901 = vsub.f32 %v739, %v869
      %v902 = vsub.f32 %v740, %v870
      %v903 = vsub.f32 %v741, %v871
      %v904 = vsub.f32 %v742, %v872
      %v905 = vsub.f32 %v743, %v873
      %v906 = vmul.f32 %v874, %v874
      %v907 = vmul.f32 %v875, %v875
      %v908 = vmul.f32 %v876, %v876
      %v909 = vmul.f32 %v877, %v877
      %v910 = vmul.f32 %v878, %v878
      %v911 = vmul.f32 %v879, %v879
      %v912 = vmul.f32 %v880, %v880
      %v913 = vmul.f32 %v881, %v881
      %v914 = vmul.f32 %v882, %v882
      %v915 = vmul.f32 %v883, %v883
      %v916 = vmul.f32 %v884, %v884
      %v917 = vmul.f32 %v885, %v885
      %v918 = vmul.f32 %v886, %v886
      %v919 = vmul.f32 %v887, %v887
      %v920 = vmul.f32 %v888, %v888
      %v921 = vmul.f32 %v889, %v889
      %v922 = vmul.f32 %v890, %v890
      %v923 = vmul.f32 %v891, %v891
      %v924 = vmul.f32 %v892, %v892
      %v925 = vmul.f32 %v893, %v893
      %v926 = vmul.f32 %v894, %v894
      %v927 = vmul.f32 %v895, %v895
      %v928 = vmul.f32 %v896, %v896
      %v929 = vmul.f32 %v897, %v897
      %v930 = vmul.f32 %v898, %v898
      %v931 = vmul.f32 %v899, %v899
      %v932 = vmul.f32 %v900, %v900
      %v933 = vmul.f32 %v901, %v901
      %v934 = vmul.f32 %v902, %v902
      %v935 = vmul.f32 %v903, %v903
      %v936 = vmul.f32 %v904, %v904
      %v937 = vmul.f32 %v905, %v905
      %v938 = vsel %vm744, %v906, 0.0
      %939 = vadd.xlane.f32.xlu0 %v938
      %v940 = vpop.xlane.xlu0 %939
      %v941 = vsel %vm744, %v907, 0.0
      %942 = vadd.xlane.f32.xlu0 %v941
      %v943 = vpop.xlane.xlu0 %942
      %v944 = vsel %vm744, %v908, 0.0
      %945 = vadd.xlane.f32.xlu0 %v944
      %v946 = vpop.xlane.xlu0 %945
      %v947 = vsel %vm744, %v909, 0.0
      %948 = vadd.xlane.f32.xlu0 %v947
      %v949 = vpop.xlane.xlu0 %948
      %v950 = vsel %vm744, %v910, 0.0
      %951 = vadd.xlane.f32.xlu0 %v950
      %v952 = vpop.xlane.xlu0 %951
      %v953 = vsel %vm744, %v911, 0.0
      %954 = vadd.xlane.f32.xlu0 %v953
      %v955 = vpop.xlane.xlu0 %954
      %v956 = vsel %vm744, %v912, 0.0
      %957 = vadd.xlane.f32.xlu0 %v956
      %v958 = vpop.xlane.xlu0 %957
      %v959 = vsel %vm744, %v913, 0.0
      %960 = vadd.xlane.f32.xlu0 %v959
      %v961 = vpop.xlane.xlu0 %960
      %v962 = vsel %vm744, %v914, 0.0
      %963 = vadd.xlane.f32.xlu0 %v962
      %v964 = vpop.xlane.xlu0 %963
      %v965 = vsel %vm744, %v915, 0.0
      %966 = vadd.xlane.f32.xlu0 %v965
      %v967 = vpop.xlane.xlu0 %966
      %v968 = vsel %vm744, %v916, 0.0
      %969 = vadd.xlane.f32.xlu0 %v968
      %v970 = vpop.xlane.xlu0 %969
      %v971 = vsel %vm744, %v917, 0.0
      %972 = vadd.xlane.f32.xlu0 %v971
      %v973 = vpop.xlane.xlu0 %972
      %v974 = vsel %vm744, %v918, 0.0
      %975 = vadd.xlane.f32.xlu0 %v974
      %v976 = vpop.xlane.xlu0 %975
      %v977 = vsel %vm744, %v919, 0.0
      %978 = vadd.xlane.f32.xlu0 %v977
      %v979 = vpop.xlane.xlu0 %978
      %v980 = vsel %vm744, %v920, 0.0
      %981 = vadd.xlane.f32.xlu0 %v980
      %v982 = vpop.xlane.xlu0 %981
      %v983 = vsel %vm744, %v921, 0.0
      %984 = vadd.xlane.f32.xlu0 %v983
      %v985 = vpop.xlane.xlu0 %984
      %v986 = vsel %vm744, %v922, 0.0
      %987 = vadd.xlane.f32.xlu0 %v986
      %v988 = vpop.xlane.xlu0 %987
      %v989 = vsel %vm744, %v923, 0.0
      %990 = vadd.xlane.f32.xlu0 %v989
      %v991 = vpop.xlane.xlu0 %990
      %v992 = vsel %vm744, %v924, 0.0
      %993 = vadd.xlane.f32.xlu0 %v992
      %v994 = vpop.xlane.xlu0 %993
      %v995 = vsel %vm744, %v925, 0.0
      %996 = vadd.xlane.f32.xlu0 %v995
      %v997 = vpop.xlane.xlu0 %996
      %v998 = vsel %vm744, %v926, 0.0
      %999 = vadd.xlane.f32.xlu0 %v998
      %v1000 = vpop.xlane.xlu0 %999
      %v1001 = vsel %vm744, %v927, 0.0
      %1002 = vadd.xlane.f32.xlu0 %v1001
      %v1003 = vpop.xlane.xlu0 %1002
      %v1004 = vsel %vm744, %v928, 0.0
      %1005 = vadd.xlane.f32.xlu0 %v1004
      %v1006 = vpop.xlane.xlu0 %1005
      %v1007 = vsel %vm744, %v929, 0.0
      %1008 = vadd.xlane.f32.xlu0 %v1007
      %v1009 = vpop.xlane.xlu0 %1008
      %v1010 = vsel %vm744, %v930, 0.0
      %1011 = vadd.xlane.f32.xlu0 %v1010
      %v1012 = vpop.xlane.xlu0 %1011
      %v1013 = vsel %vm744, %v931, 0.0
      %1014 = vadd.xlane.f32.xlu0 %v1013
      %v1015 = vpop.xlane.xlu0 %1014
      %v1016 = vsel %vm744, %v932, 0.0
      %1017 = vadd.xlane.f32.xlu0 %v1016
      %v1018 = vpop.xlane.xlu0 %1017
      %v1019 = vsel %vm744, %v933, 0.0
      %1020 = vadd.xlane.f32.xlu0 %v1019
      %v1021 = vpop.xlane.xlu0 %1020
      %v1022 = vsel %vm744, %v934, 0.0
      %1023 = vadd.xlane.f32.xlu0 %v1022
      %v1024 = vpop.xlane.xlu0 %1023
      %v1025 = vsel %vm744, %v935, 0.0
      %1026 = vadd.xlane.f32.xlu0 %v1025
      %v1027 = vpop.xlane.xlu0 %1026
      %v1028 = vsel %vm744, %v936, 0.0
      %1029 = vadd.xlane.f32.xlu0 %v1028
      %v1030 = vpop.xlane.xlu0 %1029
      %v1031 = vsel %vm838, %v937, 0.0
      %1032 = vadd.xlane.f32.xlu0 %v1031
      %v1033 = vpop.xlane.xlu0 %1032
      %v1034 = vmul.f32 %v940, 0.083333336
      %v1035 = vmul.f32 %v943, 0.083333336
      %v1036 = vmul.f32 %v946, 0.083333336
      %v1037 = vmul.f32 %v949, 0.083333336
      %v1038 = vmul.f32 %v952, 0.083333336
      %v1039 = vmul.f32 %v955, 0.083333336
      %v1040 = vmul.f32 %v958, 0.083333336
      %v1041 = vmul.f32 %v961, 0.083333336
      %v1042 = vmul.f32 %v964, 0.083333336
      %v1043 = vmul.f32 %v967, 0.083333336
      %v1044 = vmul.f32 %v970, 0.083333336
      %v1045 = vmul.f32 %v973, 0.083333336
      %v1046 = vmul.f32 %v976, 0.083333336
      %v1047 = vmul.f32 %v979, 0.083333336
      %v1048 = vmul.f32 %v982, 0.083333336
      %v1049 = vmul.f32 %v985, 0.083333336
      %v1050 = vmul.f32 %v988, 0.083333336
      %v1051 = vmul.f32 %v991, 0.083333336
      %v1052 = vmul.f32 %v994, 0.083333336
      %v1053 = vmul.f32 %v997, 0.083333336
      %v1054 = vmul.f32 %v1000, 0.083333336
      %v1055 = vmul.f32 %v1003, 0.083333336
      %v1056 = vmul.f32 %v1006, 0.083333336
      %v1057 = vmul.f32 %v1009, 0.083333336
      %v1058 = vmul.f32 %v1012, 0.083333336
      %v1059 = vmul.f32 %v1015, 0.083333336
      %v1060 = vmul.f32 %v1018, 0.083333336
      %v1061 = vmul.f32 %v1021, 0.083333336
      %v1062 = vmul.f32 %v1024, 0.083333336
      %v1063 = vmul.f32 %v1027, 0.083333336
      %v1064 = vmul.f32 %v1030, 0.083333336
      %v1065 = vmul.f32 %v1033, 0.083333336
      %v1066 = vrsqrt.pop %v1034
      %v1067 = vmul.f32 %v1034, %v1066
      %vm1068 = vcmp.eq.f32.partialorder %v1034, inf
      %v1069 = vsel %vm1068, %v1034, %v1067
      %vm1070 = vcmp.eq.f32.partialorder %v1034, 0.0
      %v1071 = vand.u32 %v1034, 2147483648
      %v1072 = vsel %vm1070, %v1071, %v1069
      %v1073 = vrsqrt.pop %v1035
      %v1074 = vmul.f32 %v1035, %v1073
      %vm1075 = vcmp.eq.f32.partialorder %v1035, inf
      %v1076 = vsel %vm1075, %v1035, %v1074
      %vm1077 = vcmp.eq.f32.partialorder %v1035, 0.0
      %v1078 = vand.u32 %v1035, 2147483648
      %v1079 = vsel %vm1077, %v1078, %v1076
      %v1080 = vrsqrt.pop %v1036
      %v1081 = vmul.f32 %v1036, %v1080
      %vm1082 = vcmp.eq.f32.partialorder %v1036, inf
      %v1083 = vsel %vm1082, %v1036, %v1081
      %vm1084 = vcmp.eq.f32.partialorder %v1036, 0.0
      %v1085 = vand.u32 %v1036, 2147483648
      %v1086 = vsel %vm1084, %v1085, %v1083
      %v1087 = vrsqrt.pop %v1037
      %v1088 = vmul.f32 %v1037, %v1087
      %vm1089 = vcmp.eq.f32.partialorder %v1037, inf
      %v1090 = vsel %vm1089, %v1037, %v1088
      %vm1091 = vcmp.eq.f32.partialorder %v1037, 0.0
      %v1092 = vand.u32 %v1037, 2147483648
      %v1093 = vsel %vm1091, %v1092, %v1090
      %v1094 = vrsqrt.pop %v1038
      %v1095 = vmul.f32 %v1038, %v1094
      %vm1096 = vcmp.eq.f32.partialorder %v1038, inf
      %v1097 = vsel %vm1096, %v1038, %v1095
      %vm1098 = vcmp.eq.f32.partialorder %v1038, 0.0
      %v1099 = vand.u32 %v1038, 2147483648
      %v1100 = vsel %vm1098, %v1099, %v1097
      %v1101 = vrsqrt.pop %v1039
      %v1102 = vmul.f32 %v1039, %v1101
      %vm1103 = vcmp.eq.f32.partialorder %v1039, inf
      %v1104 = vsel %vm1103, %v1039, %v1102
      %vm1105 = vcmp.eq.f32.partialorder %v1039, 0.0
      %v1106 = vand.u32 %v1039, 2147483648
      %v1107 = vsel %vm1105, %v1106, %v1104
      %v1108 = vrsqrt.pop %v1040
      %v1109 = vmul.f32 %v1040, %v1108
      %vm1110 = vcmp.eq.f32.partialorder %v1040, inf
      %v1111 = vsel %vm1110, %v1040, %v1109
      %vm1112 = vcmp.eq.f32.partialorder %v1040, 0.0
      %v1113 = vand.u32 %v1040, 2147483648
      %v1114 = vsel %vm1112, %v1113, %v1111
      %v1115 = vrsqrt.pop %v1041
      %v1116 = vmul.f32 %v1041, %v1115
      %vm1117 = vcmp.eq.f32.partialorder %v1041, inf
      %v1118 = vsel %vm1117, %v1041, %v1116
      %vm1119 = vcmp.eq.f32.partialorder %v1041, 0.0
      %v1120 = vand.u32 %v1041, 2147483648
      %v1121 = vsel %vm1119, %v1120, %v1118
      %v1122 = vrsqrt.pop %v1042
      %v1123 = vmul.f32 %v1042, %v1122
      %vm1124 = vcmp.eq.f32.partialorder %v1042, inf
      %v1125 = vsel %vm1124, %v1042, %v1123
      %vm1126 = vcmp.eq.f32.partialorder %v1042, 0.0
      %v1127 = vand.u32 %v1042, 2147483648
      %v1128 = vsel %vm1126, %v1127, %v1125
      %v1129 = vrsqrt.pop %v1043
      %v1130 = vmul.f32 %v1043, %v1129
      %vm1131 = vcmp.eq.f32.partialorder %v1043, inf
      %v1132 = vsel %vm1131, %v1043, %v1130
      %vm1133 = vcmp.eq.f32.partialorder %v1043, 0.0
      %v1134 = vand.u32 %v1043, 2147483648
      %v1135 = vsel %vm1133, %v1134, %v1132
      %v1136 = vrsqrt.pop %v1044
      %v1137 = vmul.f32 %v1044, %v1136
      %vm1138 = vcmp.eq.f32.partialorder %v1044, inf
      %v1139 = vsel %vm1138, %v1044, %v1137
      %vm1140 = vcmp.eq.f32.partialorder %v1044, 0.0
      %v1141 = vand.u32 %v1044, 2147483648
      %v1142 = vsel %vm1140, %v1141, %v1139
      %v1143 = vrsqrt.pop %v1045
      %v1144 = vmul.f32 %v1045, %v1143
      %vm1145 = vcmp.eq.f32.partialorder %v1045, inf
      %v1146 = vsel %vm1145, %v1045, %v1144
      %vm1147 = vcmp.eq.f32.partialorder %v1045, 0.0
      %v1148 = vand.u32 %v1045, 2147483648
      %v1149 = vsel %vm1147, %v1148, %v1146
      %v1150 = vrsqrt.pop %v1046
      %v1151 = vmul.f32 %v1046, %v1150
      %vm1152 = vcmp.eq.f32.partialorder %v1046, inf
      %v1153 = vsel %vm1152, %v1046, %v1151
      %vm1154 = vcmp.eq.f32.partialorder %v1046, 0.0
      %v1155 = vand.u32 %v1046, 2147483648
      %v1156 = vsel %vm1154, %v1155, %v1153
      %v1157 = vrsqrt.pop %v1047
      %v1158 = vmul.f32 %v1047, %v1157
      %vm1159 = vcmp.eq.f32.partialorder %v1047, inf
      %v1160 = vsel %vm1159, %v1047, %v1158
      %vm1161 = vcmp.eq.f32.partialorder %v1047, 0.0
      %v1162 = vand.u32 %v1047, 2147483648
      %v1163 = vsel %vm1161, %v1162, %v1160
      %v1164 = vrsqrt.pop %v1048
      %v1165 = vmul.f32 %v1048, %v1164
      %vm1166 = vcmp.eq.f32.partialorder %v1048, inf
      %v1167 = vsel %vm1166, %v1048, %v1165
      %vm1168 = vcmp.eq.f32.partialorder %v1048, 0.0
      %v1169 = vand.u32 %v1048, 2147483648
      %v1170 = vsel %vm1168, %v1169, %v1167
      %v1171 = vrsqrt.pop %v1049
      %v1172 = vmul.f32 %v1049, %v1171
      %vm1173 = vcmp.eq.f32.partialorder %v1049, inf
      %v1174 = vsel %vm1173, %v1049, %v1172
      %vm1175 = vcmp.eq.f32.partialorder %v1049, 0.0
      %v1176 = vand.u32 %v1049, 2147483648
      %v1177 = vsel %vm1175, %v1176, %v1174
      %v1178 = vrsqrt.pop %v1050
      %v1179 = vmul.f32 %v1050, %v1178
      %vm1180 = vcmp.eq.f32.partialorder %v1050, inf
      %v1181 = vsel %vm1180, %v1050, %v1179
      %vm1182 = vcmp.eq.f32.partialorder %v1050, 0.0
      %v1183 = vand.u32 %v1050, 2147483648
      %v1184 = vsel %vm1182, %v1183, %v1181
      %v1185 = vrsqrt.pop %v1051
      %v1186 = vmul.f32 %v1051, %v1185
      %vm1187 = vcmp.eq.f32.partialorder %v1051, inf
      %v1188 = vsel %vm1187, %v1051, %v1186
      %vm1189 = vcmp.eq.f32.partialorder %v1051, 0.0
      %v1190 = vand.u32 %v1051, 2147483648
      %v1191 = vsel %vm1189, %v1190, %v1188
      %v1192 = vrsqrt.pop %v1052
      %v1193 = vmul.f32 %v1052, %v1192
      %vm1194 = vcmp.eq.f32.partialorder %v1052, inf
      %v1195 = vsel %vm1194, %v1052, %v1193
      %vm1196 = vcmp.eq.f32.partialorder %v1052, 0.0
      %v1197 = vand.u32 %v1052, 2147483648
      %v1198 = vsel %vm1196, %v1197, %v1195
      %v1199 = vrsqrt.pop %v1053
      %v1200 = vmul.f32 %v1053, %v1199
      %vm1201 = vcmp.eq.f32.partialorder %v1053, inf
      %v1202 = vsel %vm1201, %v1053, %v1200
      %vm1203 = vcmp.eq.f32.partialorder %v1053, 0.0
      %v1204 = vand.u32 %v1053, 2147483648
      %v1205 = vsel %vm1203, %v1204, %v1202
      %v1206 = vrsqrt.pop %v1054
      %v1207 = vmul.f32 %v1054, %v1206
      %vm1208 = vcmp.eq.f32.partialorder %v1054, inf
      %v1209 = vsel %vm1208, %v1054, %v1207
      %vm1210 = vcmp.eq.f32.partialorder %v1054, 0.0
      %v1211 = vand.u32 %v1054, 2147483648
      %v1212 = vsel %vm1210, %v1211, %v1209
      %v1213 = vrsqrt.pop %v1055
      %v1214 = vmul.f32 %v1055, %v1213
      %vm1215 = vcmp.eq.f32.partialorder %v1055, inf
      %v1216 = vsel %vm1215, %v1055, %v1214
      %vm1217 = vcmp.eq.f32.partialorder %v1055, 0.0
      %v1218 = vand.u32 %v1055, 2147483648
      %v1219 = vsel %vm1217, %v1218, %v1216
      %v1220 = vrsqrt.pop %v1056
      %v1221 = vmul.f32 %v1056, %v1220
      %vm1222 = vcmp.eq.f32.partialorder %v1056, inf
      %v1223 = vsel %vm1222, %v1056, %v1221
      %vm1224 = vcmp.eq.f32.partialorder %v1056, 0.0
      %v1225 = vand.u32 %v1056, 2147483648
      %v1226 = vsel %vm1224, %v1225, %v1223
      %v1227 = vrsqrt.pop %v1057
      %v1228 = vmul.f32 %v1057, %v1227
      %vm1229 = vcmp.eq.f32.partialorder %v1057, inf
      %v1230 = vsel %vm1229, %v1057, %v1228
      %vm1231 = vcmp.eq.f32.partialorder %v1057, 0.0
      %v1232 = vand.u32 %v1057, 2147483648
      %v1233 = vsel %vm1231, %v1232, %v1230
      %v1234 = vrsqrt.pop %v1058
      %v1235 = vmul.f32 %v1058, %v1234
      %vm1236 = vcmp.eq.f32.partialorder %v1058, inf
      %v1237 = vsel %vm1236, %v1058, %v1235
      %vm1238 = vcmp.eq.f32.partialorder %v1058, 0.0
      %v1239 = vand.u32 %v1058, 2147483648
      %v1240 = vsel %vm1238, %v1239, %v1237
      %v1241 = vrsqrt.pop %v1059
      %v1242 = vmul.f32 %v1059, %v1241
      %vm1243 = vcmp.eq.f32.partialorder %v1059, inf
      %v1244 = vsel %vm1243, %v1059, %v1242
      %vm1245 = vcmp.eq.f32.partialorder %v1059, 0.0
      %v1246 = vand.u32 %v1059, 2147483648
      %v1247 = vsel %vm1245, %v1246, %v1244
      %v1248 = vrsqrt.pop %v1060
      %v1249 = vmul.f32 %v1060, %v1248
      %vm1250 = vcmp.eq.f32.partialorder %v1060, inf
      %v1251 = vsel %vm1250, %v1060, %v1249
      %vm1252 = vcmp.eq.f32.partialorder %v1060, 0.0
      %v1253 = vand.u32 %v1060, 2147483648
      %v1254 = vsel %vm1252, %v1253, %v1251
      %v1255 = vrsqrt.pop %v1061
      %v1256 = vmul.f32 %v1061, %v1255
      %vm1257 = vcmp.eq.f32.partialorder %v1061, inf
      %v1258 = vsel %vm1257, %v1061, %v1256
      %vm1259 = vcmp.eq.f32.partialorder %v1061, 0.0
      %v1260 = vand.u32 %v1061, 2147483648
      %v1261 = vsel %vm1259, %v1260, %v1258
      %v1262 = vrsqrt.pop %v1062
      %v1263 = vmul.f32 %v1062, %v1262
      %vm1264 = vcmp.eq.f32.partialorder %v1062, inf
      %v1265 = vsel %vm1264, %v1062, %v1263
      %vm1266 = vcmp.eq.f32.partialorder %v1062, 0.0
      %v1267 = vand.u32 %v1062, 2147483648
      %v1268 = vsel %vm1266, %v1267, %v1265
      %v1269 = vrsqrt.pop %v1063
      %v1270 = vmul.f32 %v1063, %v1269
      %vm1271 = vcmp.eq.f32.partialorder %v1063, inf
      %v1272 = vsel %vm1271, %v1063, %v1270
      %vm1273 = vcmp.eq.f32.partialorder %v1063, 0.0
      %v1274 = vand.u32 %v1063, 2147483648
      %v1275 = vsel %vm1273, %v1274, %v1272
      %v1276 = vrsqrt.pop %v1064
      %v1277 = vmul.f32 %v1064, %v1276
      %vm1278 = vcmp.eq.f32.partialorder %v1064, inf
      %v1279 = vsel %vm1278, %v1064, %v1277
      %vm1280 = vcmp.eq.f32.partialorder %v1064, 0.0
      %v1281 = vand.u32 %v1064, 2147483648
      %v1282 = vsel %vm1280, %v1281, %v1279
      %v1283 = vrsqrt.pop %v1065
      %v1284 = vmul.f32 %v1065, %v1283
      %vm1285 = vcmp.eq.f32.partialorder %v1065, inf
      %v1286 = vsel %vm1285, %v1065, %v1284
      %vm1287 = vcmp.eq.f32.partialorder %v1065, 0.0
      %v1288 = vand.u32 %v1065, 2147483648
      %v1289 = vsel %vm1287, %v1288, %v1286
      %v1290 = vrcp.pop %v842
      %v1291 = vrcp.pop %v843
      %v1292 = vrcp.pop %v844
      %v1293 = vrcp.pop %v845
      %v1294 = vrcp.pop %v846
      %v1295 = vrcp.pop %v847
      %v1296 = vrcp.pop %v848
      %v1297 = vrcp.pop %v849
      %v1298 = vrcp.pop %v850
      %v1299 = vrcp.pop %v851
      %v1300 = vrcp.pop %v852
      %v1301 = vrcp.pop %v853
      %v1302 = vrcp.pop %v854
      %v1303 = vrcp.pop %v855
      %v1304 = vrcp.pop %v856
      %v1305 = vrcp.pop %v857
      %v1306 = vrcp.pop %v858
      %v1307 = vrcp.pop %v859
      %v1308 = vrcp.pop %v860
      %v1309 = vrcp.pop %v861
      %v1310 = vrcp.pop %v862
      %v1311 = vrcp.pop %v863
      %v1312 = vrcp.pop %v864
      %v1313 = vrcp.pop %v865
      %v1314 = vrcp.pop %v866
      %v1315 = vrcp.pop %v867
      %v1316 = vrcp.pop %v868
      %v1317 = vrcp.pop %v869
      %v1318 = vrcp.pop %v870
      %v1319 = vrcp.pop %v871
      %v1320 = vrcp.pop %v872
      %v1321 = vrcp.pop %v873
      %v1322 = vmul.f32 %v1072, %v1290
      %v1323 = vmul.f32 %v1079, %v1291
      %v1324 = vmul.f32 %v1086, %v1292
      %v1325 = vmul.f32 %v1093, %v1293
      %v1326 = vmul.f32 %v1100, %v1294
      %v1327 = vmul.f32 %v1107, %v1295
      %v1328 = vmul.f32 %v1114, %v1296
      %v1329 = vmul.f32 %v1121, %v1297
      %v1330 = vmul.f32 %v1128, %v1298
      %v1331 = vmul.f32 %v1135, %v1299
      %v1332 = vmul.f32 %v1142, %v1300
      %v1333 = vmul.f32 %v1149, %v1301
      %v1334 = vmul.f32 %v1156, %v1302
      %v1335 = vmul.f32 %v1163, %v1303
      %v1336 = vmul.f32 %v1170, %v1304
      %v1337 = vmul.f32 %v1177, %v1305
      %v1338 = vmul.f32 %v1184, %v1306
      %v1339 = vmul.f32 %v1191, %v1307
      %v1340 = vmul.f32 %v1198, %v1308
      %v1341 = vmul.f32 %v1205, %v1309
      %v1342 = vmul.f32 %v1212, %v1310
      %v1343 = vmul.f32 %v1219, %v1311
      %v1344 = vmul.f32 %v1226, %v1312
      %v1345 = vmul.f32 %v1233, %v1313
      %v1346 = vmul.f32 %v1240, %v1314
      %v1347 = vmul.f32 %v1247, %v1315
      %v1348 = vmul.f32 %v1254, %v1316
      %v1349 = vmul.f32 %v1261, %v1317
      %v1350 = vmul.f32 %v1268, %v1318
      %v1351 = vmul.f32 %v1275, %v1319
      %v1352 = vmul.f32 %v1282, %v1320
      %v1353 = vmul.f32 %v1289, %v1321
      %v1354 = vsel %vm744, %v712, %v1322
      %v1355 = vsel %vm744, %v713, %v1323
      %v1356 = vsel %vm744, %v714, %v1324
      %v1357 = vsel %vm744, %v715, %v1325
      %v1358 = vsel %vm744, %v716, %v1326
      %v1359 = vsel %vm744, %v717, %v1327
      %v1360 = vsel %vm744, %v718, %v1328
      %v1361 = vsel %vm744, %v719, %v1329
      %v1362 = vsel %vm744, %v720, %v1330
      %v1363 = vsel %vm744, %v721, %v1331
      %v1364 = vsel %vm744, %v722, %v1332
      %v1365 = vsel %vm744, %v723, %v1333
      %v1366 = vsel %vm744, %v724, %v1334
      %v1367 = vsel %vm744, %v725, %v1335
      %v1368 = vsel %vm744, %v726, %v1336
      %v1369 = vsel %vm744, %v727, %v1337
      %v1370 = vsel %vm744, %v728, %v1338
      %v1371 = vsel %vm744, %v729, %v1339
      %v1372 = vsel %vm744, %v730, %v1340
      %v1373 = vsel %vm744, %v731, %v1341
      %v1374 = vsel %vm744, %v732, %v1342
      %v1375 = vsel %vm744, %v733, %v1343
      %v1376 = vsel %vm744, %v734, %v1344
      %v1377 = vsel %vm744, %v735, %v1345
      %v1378 = vsel %vm744, %v736, %v1346
      %v1379 = vsel %vm744, %v737, %v1347
      %v1380 = vsel %vm744, %v738, %v1348
      %v1381 = vsel %vm744, %v739, %v1349
      %v1382 = vsel %vm744, %v740, %v1350
      %v1383 = vsel %vm744, %v741, %v1351
      %v1384 = vsel %vm744, %v742, %v1352
      %v1385 = vsel %vm744, %v743, %v1353
      %v1386 = vpack.c.bf16 %v1355, %v1354
      %v1387 = vpack.c.bf16 %v1357, %v1356
      %v1388 = vpack.c.bf16 %v1359, %v1358
      %v1389 = vpack.c.bf16 %v1361, %v1360
      %v1390 = vpack.c.bf16 %v1363, %v1362
      %v1391 = vpack.c.bf16 %v1365, %v1364
      %v1392 = vpack.c.bf16 %v1367, %v1366
      %v1393 = vpack.c.bf16 %v1369, %v1368
      %v1394 = vpack.c.bf16 %v1371, %v1370
      %v1395 = vpack.c.bf16 %v1373, %v1372
      %v1396 = vpack.c.bf16 %v1375, %v1374
      %v1397 = vpack.c.bf16 %v1377, %v1376
      %v1398 = vpack.c.bf16 %v1379, %v1378
      %v1399 = vpack.c.bf16 %v1381, %v1380
      %v1400 = vpack.c.bf16 %v1383, %v1382
      %v1401 = vpack.c.bf16 %v1385, %v1384
      %vm1402 = vsmask.f32 7424
      %v1404 = vshrl.u32 %v1386, 16
      %v1406 = vshll.u32 %v1386, 16
      %v1408 = vrot.slane %v1406, 1
      %v1409 = vor.u32 %v1404, %v1408
      %v1411 = vshll.u32 %v1387, 16
      %v1413 = vrot.slane %v1411, 1
      %v1414 = vsel %vm1402, %v1409, %v1413
      %v1415 = vshrl.u32 %v1387, 16
      %v1417 = vor.u32 %v1415, %v1413
      %v1419 = vshll.u32 %v1388, 16
      %v1421 = vrot.slane %v1419, 1
      %v1422 = vsel %vm1402, %v1417, %v1421
      %v1423 = vshrl.u32 %v1388, 16
      %v1425 = vor.u32 %v1423, %v1421
      %v1427 = vshll.u32 %v1389, 16
      %v1429 = vrot.slane %v1427, 1
      %v1430 = vsel %vm1402, %v1425, %v1429
      %v1431 = vshrl.u32 %v1389, 16
      %v1433 = vor.u32 %v1431, %v1429
      %v1435 = vshll.u32 %v1390, 16
      %v1437 = vrot.slane %v1435, 1
      %v1438 = vsel %vm1402, %v1433, %v1437
      %v1439 = vshrl.u32 %v1390, 16
      %v1441 = vor.u32 %v1439, %v1437
      %v1443 = vshll.u32 %v1391, 16
      %v1445 = vrot.slane %v1443, 1
      %v1446 = vsel %vm1402, %v1441, %v1445
      %v1447 = vshrl.u32 %v1391, 16
      %v1449 = vor.u32 %v1447, %v1445
      %v1451 = vshll.u32 %v1392, 16
      %v1453 = vrot.slane %v1451, 1
      %v1454 = vsel %vm1402, %v1449, %v1453
      %v1455 = vshrl.u32 %v1392, 16
      %v1457 = vor.u32 %v1455, %v1453
      %v1459 = vshll.u32 %v1393, 16
      %v1461 = vrot.slane %v1459, 1
      %v1462 = vsel %vm1402, %v1457, %v1461
      %v1463 = vshrl.u32 %v1393, 16
      %v1465 = vor.u32 %v1463, %v1461
      %v1467 = vshll.u32 %v1394, 16
      %v1469 = vrot.slane %v1467, 1
      %v1470 = vsel %vm1402, %v1465, %v1469
      %v1471 = vshrl.u32 %v1394, 16
      %v1473 = vor.u32 %v1471, %v1469
      %v1475 = vshll.u32 %v1395, 16
      %v1477 = vrot.slane %v1475, 1
      %v1478 = vsel %vm1402, %v1473, %v1477
      %v1479 = vshrl.u32 %v1395, 16
      %v1481 = vor.u32 %v1479, %v1477
      %v1483 = vshll.u32 %v1396, 16
      %v1485 = vrot.slane %v1483, 1
      %v1486 = vsel %vm1402, %v1481, %v1485
      %v1487 = vshrl.u32 %v1396, 16
      %v1489 = vor.u32 %v1487, %v1485
      %v1491 = vshll.u32 %v1397, 16
      %v1493 = vrot.slane %v1491, 1
      %v1494 = vsel %vm1402, %v1489, %v1493
      %v1495 = vshrl.u32 %v1397, 16
      %v1497 = vor.u32 %v1495, %v1493
      %v1499 = vshll.u32 %v1398, 16
      %v1501 = vrot.slane %v1499, 1
      %v1502 = vsel %vm1402, %v1497, %v1501
      %v1503 = vshrl.u32 %v1398, 16
      %v1505 = vor.u32 %v1503, %v1501
      %v1507 = vshll.u32 %v1399, 16
      %v1509 = vrot.slane %v1507, 1
      %v1510 = vsel %vm1402, %v1505, %v1509
      %v1511 = vshrl.u32 %v1399, 16
      %v1513 = vor.u32 %v1511, %v1509
      %v1515 = vshll.u32 %v1400, 16
      %v1517 = vrot.slane %v1515, 1
      %v1518 = vsel %vm1402, %v1513, %v1517
      %v1519 = vshrl.u32 %v1400, 16
      %v1521 = vor.u32 %v1519, %v1517
      %v1523 = vshll.u32 %v1401, 16
      %v1525 = vrot.slane %v1523, 1
      %v1526 = vsel %vm1402, %v1521, %v1525
      %v1527 = vshrl.u32 %v1401, 16
      %v1529 = vor.u32 %v1527, %v1525
      %1530 = vrot.lane.b32.xlu0 %v1414, 14
      %v1531 = vpop.permute.xlu0 %1530
      %1532 = vrot.lane.b32.xlu0 %v1422, 14
      %v1533 = vpop.permute.xlu0 %1532
      %1534 = vrot.lane.b32.xlu0 %v1430, 14
      %v1535 = vpop.permute.xlu0 %1534
      %1536 = vrot.lane.b32.xlu0 %v1438, 14
      %v1537 = vpop.permute.xlu0 %1536
      %1538 = vrot.lane.b32.xlu0 %v1446, 14
      %v1539 = vpop.permute.xlu0 %1538
      %1540 = vrot.lane.b32.xlu0 %v1454, 14
      %v1541 = vpop.permute.xlu0 %1540
      %1542 = vrot.lane.b32.xlu0 %v1462, 14
      %v1543 = vpop.permute.xlu0 %1542
      %1544 = vrot.lane.b32.xlu0 %v1470, 14
      %v1545 = vpop.permute.xlu0 %1544
      %1546 = vrot.lane.b32.xlu0 %v1478, 14
      %v1547 = vpop.permute.xlu0 %1546
      %1548 = vrot.lane.b32.xlu0 %v1486, 14
      %v1549 = vpop.permute.xlu0 %1548
      %1550 = vrot.lane.b32.xlu0 %v1494, 14
      %v1551 = vpop.permute.xlu0 %1550
      %1552 = vrot.lane.b32.xlu0 %v1502, 14
      %v1553 = vpop.permute.xlu0 %1552
      %1554 = vrot.lane.b32.xlu0 %v1510, 14
      %v1555 = vpop.permute.xlu0 %1554
      %1556 = vrot.lane.b32.xlu0 %v1518, 14
      %v1557 = vpop.permute.xlu0 %1556
      %1558 = vrot.lane.b32.xlu0 %v1526, 14
      %v1559 = vpop.permute.xlu0 %1558
      %1560 = vrot.lane.b32.xlu0 %v1529, 14
      %v1561 = vpop.permute.xlu0 %1560
      %vm1578 = vcmask 1046528
      %v1579 = vrot.slane %v1386, 1
      %v1580 = vrot.slane %v1387, 1
      %v1581 = vsel %vm1578, %v1579, %v1580
      %v1582 = vrot.slane %v1388, 1
      %v1583 = vsel %vm1578, %v1580, %v1582
      %v1584 = vrot.slane %v1389, 1
      %v1585 = vsel %vm1578, %v1582, %v1584
      %v1586 = vrot.slane %v1390, 1
      %v1587 = vsel %vm1578, %v1584, %v1586
      %v1588 = vrot.slane %v1391, 1
      %v1589 = vsel %vm1578, %v1586, %v1588
      %v1590 = vrot.slane %v1392, 1
      %v1591 = vsel %vm1578, %v1588, %v1590
      %v1592 = vrot.slane %v1393, 1
      %v1593 = vsel %vm1578, %v1590, %v1592
      %v1594 = vrot.slane %v1394, 1
      %v1595 = vsel %vm1578, %v1592, %v1594
      %v1596 = vrot.slane %v1395, 1
      %v1597 = vsel %vm1578, %v1594, %v1596
      %v1598 = vrot.slane %v1396, 1
      %v1599 = vsel %vm1578, %v1596, %v1598
      %v1600 = vrot.slane %v1397, 1
      %v1601 = vsel %vm1578, %v1598, %v1600
      %v1602 = vrot.slane %v1398, 1
      %v1603 = vsel %vm1578, %v1600, %v1602
      %v1604 = vrot.slane %v1399, 1
      %v1605 = vsel %vm1578, %v1602, %v1604
      %v1606 = vrot.slane %v1400, 1
      %v1607 = vsel %vm1578, %v1604, %v1606
      %v1608 = vrot.slane %v1401, 1
      %v1609 = vsel %vm1578, %v1606, %v1608
      %1610 = vrot.lane.b32.xlu0 %v1581, 28
      %v1611 = vpop.permute.xlu0 %1610
      %1612 = vrot.lane.b32.xlu0 %v1583, 28
      %v1613 = vpop.permute.xlu0 %1612
      %1614 = vrot.lane.b32.xlu0 %v1585, 28
      %v1615 = vpop.permute.xlu0 %1614
      %1616 = vrot.lane.b32.xlu0 %v1587, 28
      %v1617 = vpop.permute.xlu0 %1616
      %1618 = vrot.lane.b32.xlu0 %v1589, 28
      %v1619 = vpop.permute.xlu0 %1618
      %1620 = vrot.lane.b32.xlu0 %v1591, 28
      %v1621 = vpop.permute.xlu0 %1620
      %1622 = vrot.lane.b32.xlu0 %v1593, 28
      %v1623 = vpop.permute.xlu0 %1622
      %1624 = vrot.lane.b32.xlu0 %v1595, 28
      %v1625 = vpop.permute.xlu0 %1624
      %1626 = vrot.lane.b32.xlu0 %v1597, 28
      %v1627 = vpop.permute.xlu0 %1626
      %1628 = vrot.lane.b32.xlu0 %v1599, 28
      %v1629 = vpop.permute.xlu0 %1628
      %1630 = vrot.lane.b32.xlu0 %v1601, 28
      %v1631 = vpop.permute.xlu0 %1630
      %1632 = vrot.lane.b32.xlu0 %v1603, 28
      %v1633 = vpop.permute.xlu0 %1632
      %1634 = vrot.lane.b32.xlu0 %v1605, 28
      %v1635 = vpop.permute.xlu0 %1634
      %1636 = vrot.lane.b32.xlu0 %v1607, 28
      %v1637 = vpop.permute.xlu0 %1636
      %1638 = vrot.lane.b32.xlu0 %v1609, 28
      %v1639 = vpop.permute.xlu0 %1638
      %1640 = vrot.lane.b32.xlu0 %v1608, 28
      %v1641 = vpop.permute.xlu0 %1640
      %vm1642 = vsmask.f32 6400
      %v1643 = vrot.slane %v1404, 1
      %v1644 = vrot.slane %v1406, 2
      %v1645 = vor.u32 %v1643, %v1644
      %v1646 = vrot.slane %v1415, 1
      %v1647 = vrot.slane %v1411, 2
      %v1648 = vor.u32 %v1646, %v1647
      %v1649 = vsel %vm1642, %v1645, %v1648
      %v1650 = vrot.slane %v1423, 1
      %v1651 = vrot.slane %v1419, 2
      %v1652 = vor.u32 %v1650, %v1651
      %v1653 = vsel %vm1642, %v1648, %v1652
      %v1654 = vrot.slane %v1431, 1
      %v1655 = vrot.slane %v1427, 2
      %v1656 = vor.u32 %v1654, %v1655
      %v1657 = vsel %vm1642, %v1652, %v1656
      %v1658 = vrot.slane %v1439, 1
      %v1659 = vrot.slane %v1435, 2
      %v1660 = vor.u32 %v1658, %v1659
      %v1661 = vsel %vm1642, %v1656, %v1660
      %v1662 = vrot.slane %v1447, 1
      %v1663 = vrot.slane %v1443, 2
      %v1664 = vor.u32 %v1662, %v1663
      %v1665 = vsel %vm1642, %v1660, %v1664
      %v1666 = vrot.slane %v1455, 1
      %v1667 = vrot.slane %v1451, 2
      %v1668 = vor.u32 %v1666, %v1667
      %v1669 = vsel %vm1642, %v1664, %v1668
      %v1670 = vrot.slane %v1463, 1
      %v1671 = vrot.slane %v1459, 2
      %v1672 = vor.u32 %v1670, %v1671
      %v1673 = vsel %vm1642, %v1668, %v1672
      %v1674 = vrot.slane %v1471, 1
      %v1675 = vrot.slane %v1467, 2
      %v1676 = vor.u32 %v1674, %v1675
      %v1677 = vsel %vm1642, %v1672, %v1676
      %v1678 = vrot.slane %v1479, 1
      %v1679 = vrot.slane %v1475, 2
      %v1680 = vor.u32 %v1678, %v1679
      %v1681 = vsel %vm1642, %v1676, %v1680
      %v1682 = vrot.slane %v1487, 1
      %v1683 = vrot.slane %v1483, 2
      %v1684 = vor.u32 %v1682, %v1683
      %v1685 = vsel %vm1642, %v1680, %v1684
      %v1686 = vrot.slane %v1495, 1
      %v1687 = vrot.slane %v1491, 2
      %v1688 = vor.u32 %v1686, %v1687
      %v1689 = vsel %vm1642, %v1684, %v1688
      %v1690 = vrot.slane %v1503, 1
      %v1691 = vrot.slane %v1499, 2
      %v1692 = vor.u32 %v1690, %v1691
      %v1693 = vsel %vm1642, %v1688, %v1692
      %v1694 = vrot.slane %v1511, 1
      %v1695 = vrot.slane %v1507, 2
      %v1696 = vor.u32 %v1694, %v1695
      %v1697 = vsel %vm1642, %v1692, %v1696
      %v1698 = vrot.slane %v1519, 1
      %v1699 = vrot.slane %v1515, 2
      %v1700 = vor.u32 %v1698, %v1699
      %v1701 = vsel %vm1642, %v1696, %v1700
      %v1702 = vrot.slane %v1527, 1
      %v1703 = vrot.slane %v1523, 2
      %v1704 = vor.u32 %v1702, %v1703
      %v1705 = vsel %vm1642, %v1700, %v1704
      %1706 = vrot.lane.b32.xlu0 %v1649, 42
      %v1707 = vpop.permute.xlu0 %1706
      %1708 = vrot.lane.b32.xlu0 %v1653, 42
      %v1709 = vpop.permute.xlu0 %1708
      %1710 = vrot.lane.b32.xlu0 %v1657, 42
      %v1711 = vpop.permute.xlu0 %1710
      %1712 = vrot.lane.b32.xlu0 %v1661, 42
      %v1713 = vpop.permute.xlu0 %1712
      %1714 = vrot.lane.b32.xlu0 %v1665, 42
      %v1715 = vpop.permute.xlu0 %1714
      %1716 = vrot.lane.b32.xlu0 %v1669, 42
      %v1717 = vpop.permute.xlu0 %1716
      %1718 = vrot.lane.b32.xlu0 %v1673, 42
      %v1719 = vpop.permute.xlu0 %1718
      %1720 = vrot.lane.b32.xlu0 %v1677, 42
      %v1721 = vpop.permute.xlu0 %1720
      %1722 = vrot.lane.b32.xlu0 %v1681, 42
      %v1723 = vpop.permute.xlu0 %1722
      %1724 = vrot.lane.b32.xlu0 %v1685, 42
      %v1725 = vpop.permute.xlu0 %1724
      %1726 = vrot.lane.b32.xlu0 %v1689, 42
      %v1727 = vpop.permute.xlu0 %1726
      %1728 = vrot.lane.b32.xlu0 %v1693, 42
      %v1729 = vpop.permute.xlu0 %1728
      %1730 = vrot.lane.b32.xlu0 %v1697, 42
      %v1731 = vpop.permute.xlu0 %1730
      %1732 = vrot.lane.b32.xlu0 %v1701, 42
      %v1733 = vpop.permute.xlu0 %1732
      %1734 = vrot.lane.b32.xlu0 %v1705, 42
      %v1735 = vpop.permute.xlu0 %1734
      %1736 = vrot.lane.b32.xlu0 %v1704, 42
      %v1737 = vpop.permute.xlu0 %1736
      %vm1738 = vcmask 1045504
      %v1739 = vrot.slane %v1386, 2
      %v1740 = vrot.slane %v1387, 2
      %v1741 = vsel %vm1738, %v1739, %v1740
      %v1742 = vrot.slane %v1388, 2
      %v1743 = vsel %vm1738, %v1740, %v1742
      %v1744 = vrot.slane %v1389, 2
      %v1745 = vsel %vm1738, %v1742, %v1744
      %v1746 = vrot.slane %v1390, 2
      %v1747 = vsel %vm1738, %v1744, %v1746
      %v1748 = vrot.slane %v1391, 2
      %v1749 = vsel %vm1738, %v1746, %v1748
      %v1750 = vrot.slane %v1392, 2
      %v1751 = vsel %vm1738, %v1748, %v1750
      %v1752 = vrot.slane %v1393, 2
      %v1753 = vsel %vm1738, %v1750, %v1752
      %v1754 = vrot.slane %v1394, 2
      %v1755 = vsel %vm1738, %v1752, %v1754
      %v1756 = vrot.slane %v1395, 2
      %v1757 = vsel %vm1738, %v1754, %v1756
      %v1758 = vrot.slane %v1396, 2
      %v1759 = vsel %vm1738, %v1756, %v1758
      %v1760 = vrot.slane %v1397, 2
      %v1761 = vsel %vm1738, %v1758, %v1760
      %v1762 = vrot.slane %v1398, 2
      %v1763 = vsel %vm1738, %v1760, %v1762
      %v1764 = vrot.slane %v1399, 2
      %v1765 = vsel %vm1738, %v1762, %v1764
      %v1766 = vrot.slane %v1400, 2
      %v1767 = vsel %vm1738, %v1764, %v1766
      %v1768 = vrot.slane %v1401, 2
      %v1769 = vsel %vm1738, %v1766, %v1768
      %1770 = vrot.lane.b32.xlu0 %v1741, 56
      %v1771 = vpop.permute.xlu0 %1770
      %1772 = vrot.lane.b32.xlu0 %v1743, 56
      %v1773 = vpop.permute.xlu0 %1772
      %1774 = vrot.lane.b32.xlu0 %v1745, 56
      %v1775 = vpop.permute.xlu0 %1774
      %1776 = vrot.lane.b32.xlu0 %v1747, 56
      %v1777 = vpop.permute.xlu0 %1776
      %1778 = vrot.lane.b32.xlu0 %v1749, 56
      %v1779 = vpop.permute.xlu0 %1778
      %1780 = vrot.lane.b32.xlu0 %v1751, 56
      %v1781 = vpop.permute.xlu0 %1780
      %1782 = vrot.lane.b32.xlu0 %v1753, 56
      %v1783 = vpop.permute.xlu0 %1782
      %1784 = vrot.lane.b32.xlu0 %v1755, 56
      %v1785 = vpop.permute.xlu0 %1784
      %1786 = vrot.lane.b32.xlu0 %v1757, 56
      %v1787 = vpop.permute.xlu0 %1786
      %1788 = vrot.lane.b32.xlu0 %v1759, 56
      %v1789 = vpop.permute.xlu0 %1788
      %1790 = vrot.lane.b32.xlu0 %v1761, 56
      %v1791 = vpop.permute.xlu0 %1790
      %1792 = vrot.lane.b32.xlu0 %v1763, 56
      %v1793 = vpop.permute.xlu0 %1792
      %1794 = vrot.lane.b32.xlu0 %v1765, 56
      %v1795 = vpop.permute.xlu0 %1794
      %1796 = vrot.lane.b32.xlu0 %v1767, 56
      %v1797 = vpop.permute.xlu0 %1796
      %1798 = vrot.lane.b32.xlu0 %v1769, 56
      %v1799 = vpop.permute.xlu0 %1798
      %1800 = vrot.lane.b32.xlu0 %v1768, 56
      %v1801 = vpop.permute.xlu0 %1800
      %vm1802 = vsmask.f32 5376
      %v1803 = vrot.slane %v1404, 2
      %v1804 = vrot.slane %v1406, 3
      %v1805 = vor.u32 %v1803, %v1804
      %v1806 = vrot.slane %v1415, 2
      %v1807 = vrot.slane %v1411, 3
      %v1808 = vor.u32 %v1806, %v1807
      %v1809 = vsel %vm1802, %v1805, %v1808
      %v1810 = vrot.slane %v1423, 2
      %v1811 = vrot.slane %v1419, 3
      %v1812 = vor.u32 %v1810, %v1811
      %v1813 = vsel %vm1802, %v1808, %v1812
      %v1814 = vrot.slane %v1431, 2
      %v1815 = vrot.slane %v1427, 3
      %v1816 = vor.u32 %v1814, %v1815
      %v1817 = vsel %vm1802, %v1812, %v1816
      %v1818 = vrot.slane %v1439, 2
      %v1819 = vrot.slane %v1435, 3
      %v1820 = vor.u32 %v1818, %v1819
      %v1821 = vsel %vm1802, %v1816, %v1820
      %v1822 = vrot.slane %v1447, 2
      %v1823 = vrot.slane %v1443, 3
      %v1824 = vor.u32 %v1822, %v1823
      %v1825 = vsel %vm1802, %v1820, %v1824
      %v1826 = vrot.slane %v1455, 2
      %v1827 = vrot.slane %v1451, 3
      %v1828 = vor.u32 %v1826, %v1827
      %v1829 = vsel %vm1802, %v1824, %v1828
      %v1830 = vrot.slane %v1463, 2
      %v1831 = vrot.slane %v1459, 3
      %v1832 = vor.u32 %v1830, %v1831
      %v1833 = vsel %vm1802, %v1828, %v1832
      %v1834 = vrot.slane %v1471, 2
      %v1835 = vrot.slane %v1467, 3
      %v1836 = vor.u32 %v1834, %v1835
      %v1837 = vsel %vm1802, %v1832, %v1836
      %v1838 = vrot.slane %v1479, 2
      %v1839 = vrot.slane %v1475, 3
      %v1840 = vor.u32 %v1838, %v1839
      %v1841 = vsel %vm1802, %v1836, %v1840
      %v1842 = vrot.slane %v1487, 2
      %v1843 = vrot.slane %v1483, 3
      %v1844 = vor.u32 %v1842, %v1843
      %v1845 = vsel %vm1802, %v1840, %v1844
      %v1846 = vrot.slane %v1495, 2
      %v1847 = vrot.slane %v1491, 3
      %v1848 = vor.u32 %v1846, %v1847
      %v1849 = vsel %vm1802, %v1844, %v1848
      %v1850 = vrot.slane %v1503, 2
      %v1851 = vrot.slane %v1499, 3
      %v1852 = vor.u32 %v1850, %v1851
      %v1853 = vsel %vm1802, %v1848, %v1852
      %v1854 = vrot.slane %v1511, 2
      %v1855 = vrot.slane %v1507, 3
      %v1856 = vor.u32 %v1854, %v1855
      %v1857 = vsel %vm1802, %v1852, %v1856
      %v1858 = vrot.slane %v1519, 2
      %v1859 = vrot.slane %v1515, 3
      %v1860 = vor.u32 %v1858, %v1859
      %v1861 = vsel %vm1802, %v1856, %v1860
      %v1862 = vrot.slane %v1527, 2
      %v1863 = vrot.slane %v1523, 3
      %v1864 = vor.u32 %v1862, %v1863
      %v1865 = vsel %vm1802, %v1860, %v1864
      %1866 = vrot.lane.b32.xlu0 %v1809, 70
      %v1867 = vpop.permute.xlu0 %1866
      %1868 = vrot.lane.b32.xlu0 %v1813, 70
      %v1869 = vpop.permute.xlu0 %1868
      %1870 = vrot.lane.b32.xlu0 %v1817, 70
      %v1871 = vpop.permute.xlu0 %1870
      %1872 = vrot.lane.b32.xlu0 %v1821, 70
      %v1873 = vpop.permute.xlu0 %1872
      %1874 = vrot.lane.b32.xlu0 %v1825, 70
      %v1875 = vpop.permute.xlu0 %1874
      %1876 = vrot.lane.b32.xlu0 %v1829, 70
      %v1877 = vpop.permute.xlu0 %1876
      %1878 = vrot.lane.b32.xlu0 %v1833, 70
      %v1879 = vpop.permute.xlu0 %1878
      %1880 = vrot.lane.b32.xlu0 %v1837, 70
      %v1881 = vpop.permute.xlu0 %1880
      %1882 = vrot.lane.b32.xlu0 %v1841, 70
      %v1883 = vpop.permute.xlu0 %1882
      %1884 = vrot.lane.b32.xlu0 %v1845, 70
      %v1885 = vpop.permute.xlu0 %1884
      %1886 = vrot.lane.b32.xlu0 %v1849, 70
      %v1887 = vpop.permute.xlu0 %1886
      %1888 = vrot.lane.b32.xlu0 %v1853, 70
      %v1889 = vpop.permute.xlu0 %1888
      %1890 = vrot.lane.b32.xlu0 %v1857, 70
      %v1891 = vpop.permute.xlu0 %1890
      %1892 = vrot.lane.b32.xlu0 %v1861, 70
      %v1893 = vpop.permute.xlu0 %1892
      %1894 = vrot.lane.b32.xlu0 %v1865, 70
      %v1895 = vpop.permute.xlu0 %1894
      %1896 = vrot.lane.b32.xlu0 %v1864, 70
      %v1897 = vpop.permute.xlu0 %1896
      %vm1898 = vcmask 1044480
      %v1899 = vrot.slane %v1386, 3
      %v1900 = vrot.slane %v1387, 3
      %v1901 = vsel %vm1898, %v1899, %v1900
      %v1902 = vrot.slane %v1388, 3
      %v1903 = vsel %vm1898, %v1900, %v1902
      %v1904 = vrot.slane %v1389, 3
      %v1905 = vsel %vm1898, %v1902, %v1904
      %v1906 = vrot.slane %v1390, 3
      %v1907 = vsel %vm1898, %v1904, %v1906
      %v1908 = vrot.slane %v1391, 3
      %v1909 = vsel %vm1898, %v1906, %v1908
      %v1910 = vrot.slane %v1392, 3
      %v1911 = vsel %vm1898, %v1908, %v1910
      %v1912 = vrot.slane %v1393, 3
      %v1913 = vsel %vm1898, %v1910, %v1912
      %v1914 = vrot.slane %v1394, 3
      %v1915 = vsel %vm1898, %v1912, %v1914
      %v1916 = vrot.slane %v1395, 3
      %v1917 = vsel %vm1898, %v1914, %v1916
      %v1918 = vrot.slane %v1396, 3
      %v1919 = vsel %vm1898, %v1916, %v1918
      %v1920 = vrot.slane %v1397, 3
      %v1921 = vsel %vm1898, %v1918, %v1920
      %v1922 = vrot.slane %v1398, 3
      %v1923 = vsel %vm1898, %v1920, %v1922
      %v1924 = vrot.slane %v1399, 3
      %v1925 = vsel %vm1898, %v1922, %v1924
      %v1926 = vrot.slane %v1400, 3
      %v1927 = vsel %vm1898, %v1924, %v1926
      %v1928 = vrot.slane %v1401, 3
      %v1929 = vsel %vm1898, %v1926, %v1928
      %1930 = vrot.lane.b32.xlu0 %v1901, 84
      %v1931 = vpop.permute.xlu0 %1930
      %1932 = vrot.lane.b32.xlu0 %v1903, 84
      %v1933 = vpop.permute.xlu0 %1932
      %1934 = vrot.lane.b32.xlu0 %v1905, 84
      %v1935 = vpop.permute.xlu0 %1934
      %1936 = vrot.lane.b32.xlu0 %v1907, 84
      %v1937 = vpop.permute.xlu0 %1936
      %1938 = vrot.lane.b32.xlu0 %v1909, 84
      %v1939 = vpop.permute.xlu0 %1938
      %1940 = vrot.lane.b32.xlu0 %v1911, 84
      %v1941 = vpop.permute.xlu0 %1940
      %1942 = vrot.lane.b32.xlu0 %v1913, 84
      %v1943 = vpop.permute.xlu0 %1942
      %1944 = vrot.lane.b32.xlu0 %v1915, 84
      %v1945 = vpop.permute.xlu0 %1944
      %1946 = vrot.lane.b32.xlu0 %v1917, 84
      %v1947 = vpop.permute.xlu0 %1946
      %1948 = vrot.lane.b32.xlu0 %v1919, 84
      %v1949 = vpop.permute.xlu0 %1948
      %1950 = vrot.lane.b32.xlu0 %v1921, 84
      %v1951 = vpop.permute.xlu0 %1950
      %1952 = vrot.lane.b32.xlu0 %v1923, 84
      %v1953 = vpop.permute.xlu0 %1952
      %1954 = vrot.lane.b32.xlu0 %v1925, 84
      %v1955 = vpop.permute.xlu0 %1954
      %1956 = vrot.lane.b32.xlu0 %v1927, 84
      %v1957 = vpop.permute.xlu0 %1956
      %1958 = vrot.lane.b32.xlu0 %v1929, 84
      %v1959 = vpop.permute.xlu0 %1958
      %1960 = vrot.lane.b32.xlu0 %v1928, 84
      %v1961 = vpop.permute.xlu0 %1960
      %vm1962 = vcmask 113664
      %v1964 = vsel %vm1962, %v1386, %v1531
      %v1966 = vsel %vm1962, %v1387, %v1533
      %v1968 = vsel %vm1962, %v1388, %v1535
      %v1970 = vsel %vm1962, %v1389, %v1537
      %v1972 = vsel %vm1962, %v1390, %v1539
      %v1974 = vsel %vm1962, %v1391, %v1541
      %v1976 = vsel %vm1962, %v1392, %v1543
      %v1978 = vsel %vm1962, %v1393, %v1545
      %v1980 = vsel %vm1962, %v1394, %v1547
      %v1982 = vsel %vm1962, %v1395, %v1549
      %v1984 = vsel %vm1962, %v1396, %v1551
      %v1986 = vsel %vm1962, %v1397, %v1553
      %v1988 = vsel %vm1962, %v1398, %v1555
      %v1990 = vsel %vm1962, %v1399, %v1557
      %v1992 = vsel %vm1962, %v1400, %v1559
      %v1994 = vsel %vm1962, %v1401, %v1561
      %vm1995 = vcmask 228352
      %v1997 = vsel %vm1995, %v1964, %v1611
      %v1999 = vsel %vm1995, %v1966, %v1613
      %v2001 = vsel %vm1995, %v1968, %v1615
      %v2003 = vsel %vm1995, %v1970, %v1617
      %v2005 = vsel %vm1995, %v1972, %v1619
      %v2007 = vsel %vm1995, %v1974, %v1621
      %v2009 = vsel %vm1995, %v1976, %v1623
      %v2011 = vsel %vm1995, %v1978, %v1625
      %v2013 = vsel %vm1995, %v1980, %v1627
      %v2015 = vsel %vm1995, %v1982, %v1629
      %v2017 = vsel %vm1995, %v1984, %v1631
      %v2019 = vsel %vm1995, %v1986, %v1633
      %v2021 = vsel %vm1995, %v1988, %v1635
      %v2023 = vsel %vm1995, %v1990, %v1637
      %v2025 = vsel %vm1995, %v1992, %v1639
      %v2027 = vsel %vm1995, %v1994, %v1641
      %vm2028 = vcmask 343040
      %v2030 = vsel %vm2028, %v1997, %v1707
      %v2032 = vsel %vm2028, %v1999, %v1709
      %v2034 = vsel %vm2028, %v2001, %v1711
      %v2036 = vsel %vm2028, %v2003, %v1713
      %v2038 = vsel %vm2028, %v2005, %v1715
      %v2040 = vsel %vm2028, %v2007, %v1717
      %v2042 = vsel %vm2028, %v2009, %v1719
      %v2044 = vsel %vm2028, %v2011, %v1721
      %v2046 = vsel %vm2028, %v2013, %v1723
      %v2048 = vsel %vm2028, %v2015, %v1725
      %v2050 = vsel %vm2028, %v2017, %v1727
      %v2052 = vsel %vm2028, %v2019, %v1729
      %v2054 = vsel %vm2028, %v2021, %v1731
      %v2056 = vsel %vm2028, %v2023, %v1733
      %v2058 = vsel %vm2028, %v2025, %v1735
      %v2060 = vsel %vm2028, %v2027, %v1737
      %vm2061 = vcmask 457728
      %v2063 = vsel %vm2061, %v2030, %v1771
      %v2065 = vsel %vm2061, %v2032, %v1773
      %v2067 = vsel %vm2061, %v2034, %v1775
      %v2069 = vsel %vm2061, %v2036, %v1777
      %v2071 = vsel %vm2061, %v2038, %v1779
      %v2073 = vsel %vm2061, %v2040, %v1781
      %v2075 = vsel %vm2061, %v2042, %v1783
      %v2077 = vsel %vm2061, %v2044, %v1785
      %v2079 = vsel %vm2061, %v2046, %v1787
      %v2081 = vsel %vm2061, %v2048, %v1789
      %v2083 = vsel %vm2061, %v2050, %v1791
      %v2085 = vsel %vm2061, %v2052, %v1793
      %v2087 = vsel %vm2061, %v2054, %v1795
      %v2089 = vsel %vm2061, %v2056, %v1797
      %v2091 = vsel %vm2061, %v2058, %v1799
      %v2093 = vsel %vm2061, %v2060, %v1801
      %vm2094 = vcmask 572416
      %v2096 = vsel %vm2094, %v2063, %v1867
      %v2098 = vsel %vm2094, %v2065, %v1869
      %v2100 = vsel %vm2094, %v2067, %v1871
      %v2102 = vsel %vm2094, %v2069, %v1873
      %v2104 = vsel %vm2094, %v2071, %v1875
      %v2106 = vsel %vm2094, %v2073, %v1877
      %v2108 = vsel %vm2094, %v2075, %v1879
      %v2110 = vsel %vm2094, %v2077, %v1881
      %v2112 = vsel %vm2094, %v2079, %v1883
      %v2114 = vsel %vm2094, %v2081, %v1885
      %v2116 = vsel %vm2094, %v2083, %v1887
      %v2118 = vsel %vm2094, %v2085, %v1889
      %v2120 = vsel %vm2094, %v2087, %v1891
      %v2122 = vsel %vm2094, %v2089, %v1893
      %v2124 = vsel %vm2094, %v2091, %v1895
      %v2126 = vsel %vm2094, %v2093, %v1897
      %vm2127 = vcmask 687104
      %v2129 = vsel %vm2127, %v2096, %v1931
      %v2131 = vsel %vm2127, %v2098, %v1933
      %v2133 = vsel %vm2127, %v2100, %v1935
      %v2135 = vsel %vm2127, %v2102, %v1937
      %v2137 = vsel %vm2127, %v2104, %v1939
      %v2139 = vsel %vm2127, %v2106, %v1941
      %v2141 = vsel %vm2127, %v2108, %v1943
      %v2143 = vsel %vm2127, %v2110, %v1945
      %v2145 = vsel %vm2127, %v2112, %v1947
      %v2147 = vsel %vm2127, %v2114, %v1949
      %v2149 = vsel %vm2127, %v2116, %v1951
      %v2151 = vsel %vm2127, %v2118, %v1953
      %v2153 = vsel %vm2127, %v2120, %v1955
      %v2155 = vsel %vm2127, %v2122, %v1957
      %v2157 = vsel %vm2127, %v2124, %v1959
      %v2159 = vsel %vm2127, %v2126, %v1961
      %v2160 = vld [vmem:[%s1] sm:$0xf]
      %v2161 = vld [vmem:[%s1 + $0x4] sm:$0xf]
      %v2162 = vld [vmem:[%s1 + $0x8] sm:$0xf]
      %v2163 = vld [vmem:[%s1 + $0xc] sm:$0xf]
      %v2164 = vld [vmem:[%s1 + $0x10] sm:$0xf]
      %v2165 = vld [vmem:[%s1 + $0x14] sm:$0xf]
      %v2166 = vld [vmem:[%s1 + $0x18] sm:$0xf]
      %v2167 = vld [vmem:[%s1 + $0x1c] sm:$0xf]
      %v2168 = vld [vmem:[%s1 + $0x20] sm:$0xf]
      %v2169 = vld [vmem:[%s1 + $0x24] sm:$0xf]
      %v2170 = vld [vmem:[%s1 + $0x28] sm:$0xf]
      %v2171 = vld [vmem:[%s1 + $0x2c] sm:$0xf]
      %v2172 = vld [vmem:[%s1 + $0x30] sm:$0x1]
      %v2173 = vld [vmem:[%s2] sm:$0x1]
      %v2175 = vlaneseq
      %v2176 = vshrl.u32 %v2175, 7
      %v2177 = vsub.s32 0, %v2176
      %v2178 = vrot.slane %v2173, %v2177
      %v2193 = vunpack.c.l.b16 %v2160
      %v2194 = vunpack.c.l.b16 %v2161
      %v2195 = vunpack.c.l.b16 %v2162
      %v2196 = vunpack.c.l.b16 %v2163
      %v2197 = vunpack.c.l.b16 %v2164
      %v2198 = vunpack.c.l.b16 %v2165
      %v2199 = vunpack.c.l.b16 %v2166
      %v2200 = vunpack.c.l.b16 %v2167
      %v2201 = vunpack.c.l.b16 %v2168
      %v2202 = vunpack.c.l.b16 %v2169
      %v2203 = vunpack.c.l.b16 %v2170
      %v2204 = vunpack.c.l.b16 %v2171
      %v2205 = vunpack.c.l.b16 %v2172
      %v2206 = vpack.c.b16 %v2194, %v2193
      %v2207 = vpack.c.b16 %v2196, %v2195
      %v2208 = vpack.c.b16 %v2198, %v2197
      %v2209 = vpack.c.b16 %v2200, %v2199
      %v2210 = vpack.c.b16 %v2202, %v2201
      %v2211 = vpack.c.b16 %v2204, %v2203
      %v2212 = vpack.c.b16 %v2205, %v2205
      %vm2219 = vcmask 801792
      %v2220 = vsel %vm2219, %v2129, 0
      %v2222 = vsel %vm2219, %v2131, 0
      %v2224 = vsel %vm2219, %v2133, 0
      %v2226 = vsel %vm2219, %v2135, 0
      %v2228 = vsel %vm2219, %v2137, 0
      %v2230 = vsel %vm2219, %v2139, 0
      %v2232 = vsel %vm2219, %v2141, 0
      %v2234 = vsel %vm2219, %v2143, 0
      %v2236 = vsel %vm2219, %v2145, 0
      %v2238 = vsel %vm2219, %v2147, 0
      %v2240 = vsel %vm2219, %v2149, 0
      %v2242 = vsel %vm2219, %v2151, 0
      %v2244 = vsel %vm2219, %v2153, 0
      %v2246 = vsel %vm2219, %v2155, 0
      %v2248 = vsel %vm2219, %v2157, 0
      %v2250 = vsel %vm2219, %v2159, 0
      %vm2252 = vcmask 1040384
      %v2254 = vsel %vm2252, %v2212, 0
      %2256 = vmatprep.subr.bf16.mxu0 0
      %2257 = vmatpush1.bf16.msra.mxu0 0
      %2258 = vmatprep.subr.bf16.mxu0 0
      %2259 = vmatpush1.bf16.msra.mxu0 %v2254
      %2260 = vmatprep.subr.bf16.mxu0 0
      %2261 = vmatpush1.bf16.msra.mxu0 %v2211
      %2262 = vmatprep.subr.bf16.mxu0 0
      %2263 = vmatpush1.bf16.msra.mxu0 %v2210
      %2264 = vmatprep.subr.bf16.mxu0 0
      %2265 = vmatpush1.bf16.msra.mxu0 %v2209
      %2266 = vmatprep.subr.bf16.mxu0 0
      %2267 = vmatpush1.bf16.msra.mxu0 %v2208
      %2268 = vmatprep.subr.bf16.mxu0 0
      %2269 = vmatpush1.bf16.msra.mxu0 %v2207
      %2270 = vmatprep.subr.bf16.mxu0 0
      %2271 = vmatpush1.bf16.msra.mxu0 %v2206
      %2272 = vmatprep.subr.bf16.mxu0 0
      %2273 = vmatpush2.bf16.msra.mxu0 0
      %2274 = vmatprep.subr.bf16.mxu0 0
      %2275 = vmatpush2.bf16.msra.mxu0 0
      %2276 = vmatprep.subr.bf16.mxu0 0
      %2277 = vmatpush2.bf16.msra.mxu0 0
      %2278 = vmatprep.subr.bf16.mxu0 0
      %2279 = vmatpush2.bf16.msra.mxu0 0
      %2280 = vmatprep.subr.bf16.mxu0 0
      %2281 = vmatpush2.bf16.msra.mxu0 0
      %2282 = vmatprep.subr.bf16.mxu0 0
      %2283 = vmatpush2.bf16.msra.mxu0 0
      %2284 = vmatprep.subr.bf16.mxu0 0
      %2285 = vmatpush2.bf16.msra.mxu0 0
      %2286 = vmatprep.subr.bf16.mxu0 0
      %2287 = vmatpush2.bf16.msra.mxu0 0
      %2288 = vmatprep.mubr.bf16.mxu0 0
      %2289 = vmatmul.mubr.bf16.gmra.mxu0 %v2220
      %v2290 = vpop.f32.mrf.mxu0
      %v2291 = vadd.f32 %v2178, %v2290
      %v2292 = vpop.f32.mrf.mxu0
      %v2293 = vpop.f32.mrf.mxu0
      %v2294 = vadd.f32 %v2178, %v2293
      %v2295 = vpop.f32.mrf.mxu0
      %2296 = vmatprep.mubr.bf16.mxu0 0
      %2297 = vmatmul.mubr.bf16.gmra.mxu0 %v2222
      %v2298 = vpop.f32.mrf.mxu0
      %v2299 = vadd.f32 %v2178, %v2298
      %v2300 = vpop.f32.mrf.mxu0
      %v2301 = vpop.f32.mrf.mxu0
      %v2302 = vadd.f32 %v2178, %v2301
      %v2303 = vpop.f32.mrf.mxu0
      %2304 = vmatprep.mubr.bf16.mxu0 0
      %2305 = vmatmul.mubr.bf16.gmra.mxu0 %v2224
      %v2306 = vpop.f32.mrf.mxu0
      %v2307 = vadd.f32 %v2178, %v2306
      %v2308 = vpop.f32.mrf.mxu0
      %v2309 = vpop.f32.mrf.mxu0
      %v2310 = vadd.f32 %v2178, %v2309
      %v2311 = vpop.f32.mrf.mxu0
      %2312 = vmatprep.mubr.bf16.mxu0 0
      %2313 = vmatmul.mubr.bf16.gmra.mxu0 %v2226
      %v2314 = vpop.f32.mrf.mxu0
      %v2315 = vadd.f32 %v2178, %v2314
      %v2316 = vpop.f32.mrf.mxu0
      %v2317 = vpop.f32.mrf.mxu0
      %v2318 = vadd.f32 %v2178, %v2317
      %v2319 = vpop.f32.mrf.mxu0
      %2320 = vmatprep.mubr.bf16.mxu0 0
      %2321 = vmatmul.mubr.bf16.gmra.mxu0 %v2228
      %v2322 = vpop.f32.mrf.mxu0
      %v2323 = vadd.f32 %v2178, %v2322
      %v2324 = vpop.f32.mrf.mxu0
      %v2325 = vpop.f32.mrf.mxu0
      %v2326 = vadd.f32 %v2178, %v2325
      %v2327 = vpop.f32.mrf.mxu0
      %2328 = vmatprep.mubr.bf16.mxu0 0
      %2329 = vmatmul.mubr.bf16.gmra.mxu0 %v2230
      %v2330 = vpop.f32.mrf.mxu0
      %v2331 = vadd.f32 %v2178, %v2330
      %v2332 = vpop.f32.mrf.mxu0
      %v2333 = vpop.f32.mrf.mxu0
      %v2334 = vadd.f32 %v2178, %v2333
      %v2335 = vpop.f32.mrf.mxu0
      %2336 = vmatprep.mubr.bf16.mxu0 0
      %2337 = vmatmul.mubr.bf16.gmra.mxu0 %v2232
      %v2338 = vpop.f32.mrf.mxu0
      %v2339 = vadd.f32 %v2178, %v2338
      %v2340 = vpop.f32.mrf.mxu0
      %v2341 = vpop.f32.mrf.mxu0
      %v2342 = vadd.f32 %v2178, %v2341
      %v2343 = vpop.f32.mrf.mxu0
      %2344 = vmatprep.mubr.bf16.mxu0 0
      %2345 = vmatmul.mubr.bf16.gmra.mxu0 %v2234
      %v2346 = vpop.f32.mrf.mxu0
      %v2347 = vadd.f32 %v2178, %v2346
      %v2348 = vpop.f32.mrf.mxu0
      %v2349 = vpop.f32.mrf.mxu0
      %v2350 = vadd.f32 %v2178, %v2349
      %v2351 = vpop.f32.mrf.mxu0
      %2352 = vmatprep.mubr.bf16.mxu0 0
      %2353 = vmatmul.mubr.bf16.gmra.mxu0 %v2236
      %v2354 = vpop.f32.mrf.mxu0
      %v2355 = vadd.f32 %v2178, %v2354
      %v2356 = vpop.f32.mrf.mxu0
      %v2357 = vpop.f32.mrf.mxu0
      %v2358 = vadd.f32 %v2178, %v2357
      %v2359 = vpop.f32.mrf.mxu0
      %2360 = vmatprep.mubr.bf16.mxu0 0
      %2361 = vmatmul.mubr.bf16.gmra.mxu0 %v2238
      %v2362 = vpop.f32.mrf.mxu0
      %v2363 = vadd.f32 %v2178, %v2362
      %v2364 = vpop.f32.mrf.mxu0
      %v2365 = vpop.f32.mrf.mxu0
      %v2366 = vadd.f32 %v2178, %v2365
      %v2367 = vpop.f32.mrf.mxu0
      %2368 = vmatprep.mubr.bf16.mxu0 0
      %2369 = vmatmul.mubr.bf16.gmra.mxu0 %v2240
      %v2370 = vpop.f32.mrf.mxu0
      %v2371 = vadd.f32 %v2178, %v2370
      %v2372 = vpop.f32.mrf.mxu0
      %v2373 = vpop.f32.mrf.mxu0
      %v2374 = vadd.f32 %v2178, %v2373
      %v2375 = vpop.f32.mrf.mxu0
      %2376 = vmatprep.mubr.bf16.mxu0 0
      %2377 = vmatmul.mubr.bf16.gmra.mxu0 %v2242
      %v2378 = vpop.f32.mrf.mxu0
      %v2379 = vadd.f32 %v2178, %v2378
      %v2380 = vpop.f32.mrf.mxu0
      %v2381 = vpop.f32.mrf.mxu0
      %v2382 = vadd.f32 %v2178, %v2381
      %v2383 = vpop.f32.mrf.mxu0
      %2384 = vmatprep.mubr.bf16.mxu0 0
      %2385 = vmatmul.mubr.bf16.gmra.mxu0 %v2244
      %v2386 = vpop.f32.mrf.mxu0
      %v2387 = vadd.f32 %v2178, %v2386
      %v2388 = vpop.f32.mrf.mxu0
      %v2389 = vpop.f32.mrf.mxu0
      %v2390 = vadd.f32 %v2178, %v2389
      %v2391 = vpop.f32.mrf.mxu0
      %2392 = vmatprep.mubr.bf16.mxu0 0
      %2393 = vmatmul.mubr.bf16.gmra.mxu0 %v2246
      %v2394 = vpop.f32.mrf.mxu0
      %v2395 = vadd.f32 %v2178, %v2394
      %v2396 = vpop.f32.mrf.mxu0
      %v2397 = vpop.f32.mrf.mxu0
      %v2398 = vadd.f32 %v2178, %v2397
      %v2399 = vpop.f32.mrf.mxu0
      %2400 = vmatprep.mubr.bf16.mxu0 0
      %2401 = vmatmul.mubr.bf16.gmra.mxu0 %v2248
      %v2402 = vpop.f32.mrf.mxu0
      %v2403 = vadd.f32 %v2178, %v2402
      %v2404 = vpop.f32.mrf.mxu0
      %v2405 = vpop.f32.mrf.mxu0
      %v2406 = vadd.f32 %v2178, %v2405
      %v2407 = vpop.f32.mrf.mxu0
      %2408 = vmatprep.mubr.bf16.mxu0 0
      %2409 = vmatmul.mubr.bf16.gmra.mxu0 %v2250
      %v2410 = vpop.f32.mrf.mxu0
      %v2411 = vadd.f32 %v2178, %v2410
      %v2412 = vpop.f32.mrf.mxu0
      %v2413 = vpop.f32.mrf.mxu0
      %v2414 = vpop.f32.mrf.mxu0
      %2415 = vdwg.mxu0
      %v2416 = vmax.f32 %v2291, 0.0
      %v2417 = vmax.f32 %v2294, 0.0
      %v2418 = vmax.f32 %v2299, 0.0
      %v2419 = vmax.f32 %v2302, 0.0
      %v2420 = vmax.f32 %v2307, 0.0
      %v2421 = vmax.f32 %v2310, 0.0
      %v2422 = vmax.f32 %v2315, 0.0
      %v2423 = vmax.f32 %v2318, 0.0
      %v2424 = vmax.f32 %v2323, 0.0
      %v2425 = vmax.f32 %v2326, 0.0
      %v2426 = vmax.f32 %v2331, 0.0
      %v2427 = vmax.f32 %v2334, 0.0
      %v2428 = vmax.f32 %v2339, 0.0
      %v2429 = vmax.f32 %v2342, 0.0
      %v2430 = vmax.f32 %v2347, 0.0
      %v2431 = vmax.f32 %v2350, 0.0
      %v2432 = vmax.f32 %v2355, 0.0
      %v2433 = vmax.f32 %v2358, 0.0
      %v2434 = vmax.f32 %v2363, 0.0
      %v2435 = vmax.f32 %v2366, 0.0
      %v2436 = vmax.f32 %v2371, 0.0
      %v2437 = vmax.f32 %v2374, 0.0
      %v2438 = vmax.f32 %v2379, 0.0
      %v2439 = vmax.f32 %v2382, 0.0
      %v2440 = vmax.f32 %v2387, 0.0
      %v2441 = vmax.f32 %v2390, 0.0
      %v2442 = vmax.f32 %v2395, 0.0
      %v2443 = vmax.f32 %v2398, 0.0
      %v2444 = vmax.f32 %v2403, 0.0
      %v2445 = vmax.f32 %v2406, 0.0
      %v2446 = vmax.f32 %v2411, 0.0
      %v2447 = vpack.c.bf16 %v2417, %v2416
      %v2448 = vpack.c.bf16 %v2419, %v2418
      %v2449 = vpack.c.bf16 %v2421, %v2420
      %v2450 = vpack.c.bf16 %v2423, %v2422
      %v2451 = vpack.c.bf16 %v2425, %v2424
      %v2452 = vpack.c.bf16 %v2427, %v2426
      %v2453 = vpack.c.bf16 %v2429, %v2428
      %v2454 = vpack.c.bf16 %v2431, %v2430
      %v2455 = vpack.c.bf16 %v2433, %v2432
      %v2456 = vpack.c.bf16 %v2435, %v2434
      %v2457 = vpack.c.bf16 %v2437, %v2436
      %v2458 = vpack.c.bf16 %v2439, %v2438
      %v2459 = vpack.c.bf16 %v2441, %v2440
      %v2460 = vpack.c.bf16 %v2443, %v2442
      %v2461 = vpack.c.bf16 %v2445, %v2444
      %v2462 = vpack.c.bf16 %v2446, %v2446
      %v2463 = vlaneseq
      %v2464 = vshrl.u32 %v2463, 7
      %v2465 = vadd.s32 %v2464, 8
      %v2466 = vadd.s32 %v2464, 16
      %v2467 = vadd.s32 %v2464, 24
      %v2468 = vadd.s32 %v2464, 32
      %v2469 = vadd.s32 %v2464, 40
      %v2470 = vadd.s32 %v2464, 48
      %v2471 = vadd.s32 %v2464, 56
      %v2472 = vadd.s32 %v2464, 64
      %v2473 = vadd.s32 %v2464, 72
      %v2474 = vadd.s32 %v2464, 80
      %v2475 = vadd.s32 %v2464, 88
      %v2476 = vadd.s32 %v2464, 96
      %v2477 = vadd.s32 %v2464, 104
      %v2478 = vadd.s32 %v2464, 112
      %v2479 = vadd.s32 %v2464, 120
      %v2480 = vlaneseq
      %v2481 = vand.u32 %v2480, 127
      %v2482 = vadd.s32 %v2481, 128
      %v2483 = vmul.u32 %v2464, 2
      %v2484 = vmul.u32 %v2465, 2
      %v2485 = vmul.u32 %v2466, 2
      %v2486 = vmul.u32 %v2467, 2
      %v2487 = vmul.u32 %v2468, 2
      %v2488 = vmul.u32 %v2469, 2
      %v2489 = vmul.u32 %v2470, 2
      %v2490 = vmul.u32 %v2471, 2
      %v2491 = vmul.u32 %v2472, 2
      %v2492 = vmul.u32 %v2473, 2
      %v2493 = vmul.u32 %v2474, 2
      %v2494 = vmul.u32 %v2475, 2
      %v2495 = vmul.u32 %v2476, 2
      %v2496 = vmul.u32 %v2477, 2
      %v2497 = vmul.u32 %v2478, 2
      %v2498 = vmul.u32 %v2479, 2
      %vm2499 = vcmp.eq.s32.totalorder %v2481, %v2483
      %vm2500 = vcmp.eq.s32.totalorder %v2482, %v2483
      %vm2501 = vcmp.eq.s32.totalorder %v2481, %v2484
      %vm2502 = vcmp.eq.s32.totalorder %v2482, %v2484
      %vm2503 = vcmp.eq.s32.totalorder %v2481, %v2485
      %vm2504 = vcmp.eq.s32.totalorder %v2482, %v2485
      %vm2505 = vcmp.eq.s32.totalorder %v2481, %v2486
      %vm2506 = vcmp.eq.s32.totalorder %v2482, %v2486
      %vm2507 = vcmp.eq.s32.totalorder %v2481, %v2487
      %vm2508 = vcmp.eq.s32.totalorder %v2482, %v2487
      %vm2509 = vcmp.eq.s32.totalorder %v2481, %v2488
      %vm2510 = vcmp.eq.s32.totalorder %v2482, %v2488
      %vm2511 = vcmp.eq.s32.totalorder %v2481, %v2489
      %vm2512 = vcmp.eq.s32.totalorder %v2482, %v2489
      %vm2513 = vcmp.eq.s32.totalorder %v2481, %v2490
      %vm2514 = vcmp.eq.s32.totalorder %v2482, %v2490
      %vm2515 = vcmp.eq.s32.totalorder %v2481, %v2491
      %vm2516 = vcmp.eq.s32.totalorder %v2482, %v2491
      %vm2517 = vcmp.eq.s32.totalorder %v2481, %v2492
      %vm2518 = vcmp.eq.s32.totalorder %v2482, %v2492
      %vm2519 = vcmp.eq.s32.totalorder %v2481, %v2493
      %vm2520 = vcmp.eq.s32.totalorder %v2482, %v2493
      %vm2521 = vcmp.eq.s32.totalorder %v2481, %v2494
      %vm2522 = vcmp.eq.s32.totalorder %v2482, %v2494
      %vm2523 = vcmp.eq.s32.totalorder %v2481, %v2495
      %vm2524 = vcmp.eq.s32.totalorder %v2482, %v2495
      %vm2525 = vcmp.eq.s32.totalorder %v2481, %v2496
      %vm2526 = vcmp.eq.s32.totalorder %v2482, %v2496
      %vm2527 = vcmp.eq.s32.totalorder %v2481, %v2497
      %vm2528 = vcmp.eq.s32.totalorder %v2482, %v2497
      %vm2529 = vcmp.eq.s32.totalorder %v2481, %v2498
      %vm2530 = vcmp.eq.s32.totalorder %v2482, %v2498
      %v2531 = vsel %vm2499, 1, 0
      %v2532 = vsel %vm2500, 1, 0
      %v2533 = vsel %vm2501, 1, 0
      %v2534 = vsel %vm2502, 1, 0
      %v2535 = vsel %vm2503, 1, 0
      %v2536 = vsel %vm2504, 1, 0
      %v2537 = vsel %vm2505, 1, 0
      %v2538 = vsel %vm2506, 1, 0
      %v2539 = vsel %vm2507, 1, 0
      %v2540 = vsel %vm2508, 1, 0
      %v2541 = vsel %vm2509, 1, 0
      %v2542 = vsel %vm2510, 1, 0
      %v2543 = vsel %vm2511, 1, 0
      %v2544 = vsel %vm2512, 1, 0
      %v2545 = vsel %vm2513, 1, 0
      %v2546 = vsel %vm2514, 1, 0
      %v2547 = vsel %vm2515, 1, 0
      %v2548 = vsel %vm2516, 1, 0
      %v2549 = vsel %vm2517, 1, 0
      %v2550 = vsel %vm2518, 1, 0
      %v2551 = vsel %vm2519, 1, 0
      %v2552 = vsel %vm2520, 1, 0
      %v2553 = vsel %vm2521, 1, 0
      %v2554 = vsel %vm2522, 1, 0
      %v2555 = vsel %vm2523, 1, 0
      %v2556 = vsel %vm2524, 1, 0
      %v2557 = vsel %vm2525, 1, 0
      %v2558 = vsel %vm2526, 1, 0
      %v2559 = vsel %vm2527, 1, 0
      %v2560 = vsel %vm2528, 1, 0
      %v2561 = vsel %vm2529, 1, 0
      %v2562 = vsel %vm2530, 1, 0
      %v2563 = vcvt.s32.f32 %v2531
      %v2564 = vcvt.s32.f32 %v2532
      %v2565 = vcvt.s32.f32 %v2533
      %v2566 = vcvt.s32.f32 %v2534
      %v2567 = vcvt.s32.f32 %v2535
      %v2568 = vcvt.s32.f32 %v2536
      %v2569 = vcvt.s32.f32 %v2537
      %v2570 = vcvt.s32.f32 %v2538
      %v2571 = vcvt.s32.f32 %v2539
      %v2572 = vcvt.s32.f32 %v2540
      %v2573 = vcvt.s32.f32 %v2541
      %v2574 = vcvt.s32.f32 %v2542
      %v2575 = vcvt.s32.f32 %v2543
      %v2576 = vcvt.s32.f32 %v2544
      %v2577 = vcvt.s32.f32 %v2545
      %v2578 = vcvt.s32.f32 %v2546
      %v2579 = vcvt.s32.f32 %v2547
      %v2580 = vcvt.s32.f32 %v2548
      %v2581 = vcvt.s32.f32 %v2549
      %v2582 = vcvt.s32.f32 %v2550
      %v2583 = vcvt.s32.f32 %v2551
      %v2584 = vcvt.s32.f32 %v2552
      %v2585 = vcvt.s32.f32 %v2553
      %v2586 = vcvt.s32.f32 %v2554
      %v2587 = vcvt.s32.f32 %v2555
      %v2588 = vcvt.s32.f32 %v2556
      %v2589 = vcvt.s32.f32 %v2557
      %v2590 = vcvt.s32.f32 %v2558
      %v2591 = vcvt.s32.f32 %v2559
      %v2592 = vcvt.s32.f32 %v2560
      %v2593 = vcvt.s32.f32 %v2561
      %v2594 = vcvt.s32.f32 %v2562
      %v2595 = vpack.c.bf16 %v2565, %v2563
      %v2596 = vpack.c.bf16 %v2566, %v2564
      %v2597 = vpack.c.bf16 %v2569, %v2567
      %v2598 = vpack.c.bf16 %v2570, %v2568
      %v2599 = vpack.c.bf16 %v2573, %v2571
      %v2600 = vpack.c.bf16 %v2574, %v2572
      %v2601 = vpack.c.bf16 %v2577, %v2575
      %v2602 = vpack.c.bf16 %v2578, %v2576
      %v2603 = vpack.c.bf16 %v2581, %v2579
      %v2604 = vpack.c.bf16 %v2582, %v2580
      %v2605 = vpack.c.bf16 %v2585, %v2583
      %v2606 = vpack.c.bf16 %v2586, %v2584
      %v2607 = vpack.c.bf16 %v2589, %v2587
      %v2608 = vpack.c.bf16 %v2590, %v2588
      %v2609 = vpack.c.bf16 %v2593, %v2591
      %v2610 = vpack.c.bf16 %v2594, %v2592
      %v2611 = vadd.s32 %v2483, 1
      %v2612 = vadd.s32 %v2484, 1
      %v2613 = vadd.s32 %v2485, 1
      %v2614 = vadd.s32 %v2486, 1
      %v2615 = vadd.s32 %v2487, 1
      %v2616 = vadd.s32 %v2488, 1
      %v2617 = vadd.s32 %v2489, 1
      %v2618 = vadd.s32 %v2490, 1
      %v2619 = vadd.s32 %v2491, 1
      %v2620 = vadd.s32 %v2492, 1
      %v2621 = vadd.s32 %v2493, 1
      %v2622 = vadd.s32 %v2494, 1
      %v2623 = vadd.s32 %v2495, 1
      %v2624 = vadd.s32 %v2496, 1
      %v2625 = vadd.s32 %v2497, 1
      %v2626 = vadd.s32 %v2498, 1
      %vm2627 = vcmp.eq.s32.totalorder %v2481, %v2611
      %vm2628 = vcmp.eq.s32.totalorder %v2482, %v2611
      %vm2629 = vcmp.eq.s32.totalorder %v2481, %v2612
      %vm2630 = vcmp.eq.s32.totalorder %v2482, %v2612
      %vm2631 = vcmp.eq.s32.totalorder %v2481, %v2613
      %vm2632 = vcmp.eq.s32.totalorder %v2482, %v2613
      %vm2633 = vcmp.eq.s32.totalorder %v2481, %v2614
      %vm2634 = vcmp.eq.s32.totalorder %v2482, %v2614
      %vm2635 = vcmp.eq.s32.totalorder %v2481, %v2615
      %vm2636 = vcmp.eq.s32.totalorder %v2482, %v2615
      %vm2637 = vcmp.eq.s32.totalorder %v2481, %v2616
      %vm2638 = vcmp.eq.s32.totalorder %v2482, %v2616
      %vm2639 = vcmp.eq.s32.totalorder %v2481, %v2617
      %vm2640 = vcmp.eq.s32.totalorder %v2482, %v2617
      %vm2641 = vcmp.eq.s32.totalorder %v2481, %v2618
      %vm2642 = vcmp.eq.s32.totalorder %v2482, %v2618
      %vm2643 = vcmp.eq.s32.totalorder %v2481, %v2619
      %vm2644 = vcmp.eq.s32.totalorder %v2482, %v2619
      %vm2645 = vcmp.eq.s32.totalorder %v2481, %v2620
      %vm2646 = vcmp.eq.s32.totalorder %v2482, %v2620
      %vm2647 = vcmp.eq.s32.totalorder %v2481, %v2621
      %vm2648 = vcmp.eq.s32.totalorder %v2482, %v2621
      %vm2649 = vcmp.eq.s32.totalorder %v2481, %v2622
      %vm2650 = vcmp.eq.s32.totalorder %v2482, %v2622
      %vm2651 = vcmp.eq.s32.totalorder %v2481, %v2623
      %vm2652 = vcmp.eq.s32.totalorder %v2482, %v2623
      %vm2653 = vcmp.eq.s32.totalorder %v2481, %v2624
      %vm2654 = vcmp.eq.s32.totalorder %v2482, %v2624
      %vm2655 = vcmp.eq.s32.totalorder %v2481, %v2625
      %vm2656 = vcmp.eq.s32.totalorder %v2482, %v2625
      %vm2657 = vcmp.eq.s32.totalorder %v2481, %v2626
      %vm2658 = vcmp.eq.s32.totalorder %v2482, %v2626
      %v2659 = vsel %vm2627, 1, 0
      %v2660 = vsel %vm2628, 1, 0
      %v2661 = vsel %vm2629, 1, 0
      %v2662 = vsel %vm2630, 1, 0
      %v2663 = vsel %vm2631, 1, 0
      %v2664 = vsel %vm2632, 1, 0
      %v2665 = vsel %vm2633, 1, 0
      %v2666 = vsel %vm2634, 1, 0
      %v2667 = vsel %vm2635, 1, 0
      %v2668 = vsel %vm2636, 1, 0
      %v2669 = vsel %vm2637, 1, 0
      %v2670 = vsel %vm2638, 1, 0
      %v2671 = vsel %vm2639, 1, 0
      %v2672 = vsel %vm2640, 1, 0
      %v2673 = vsel %vm2641, 1, 0
      %v2674 = vsel %vm2642, 1, 0
      %v2675 = vsel %vm2643, 1, 0
      %v2676 = vsel %vm2644, 1, 0
      %v2677 = vsel %vm2645, 1, 0
      %v2678 = vsel %vm2646, 1, 0
      %v2679 = vsel %vm2647, 1, 0
      %v2680 = vsel %vm2648, 1, 0
      %v2681 = vsel %vm2649, 1, 0
      %v2682 = vsel %vm2650, 1, 0
      %v2683 = vsel %vm2651, 1, 0
      %v2684 = vsel %vm2652, 1, 0
      %v2685 = vsel %vm2653, 1, 0
      %v2686 = vsel %vm2654, 1, 0
      %v2687 = vsel %vm2655, 1, 0
      %v2688 = vsel %vm2656, 1, 0
      %v2689 = vsel %vm2657, 1, 0
      %v2690 = vsel %vm2658, 1, 0
      %v2691 = vcvt.s32.f32 %v2659
      %v2692 = vcvt.s32.f32 %v2660
      %v2693 = vcvt.s32.f32 %v2661
      %v2694 = vcvt.s32.f32 %v2662
      %v2695 = vcvt.s32.f32 %v2663
      %v2696 = vcvt.s32.f32 %v2664
      %v2697 = vcvt.s32.f32 %v2665
      %v2698 = vcvt.s32.f32 %v2666
      %v2699 = vcvt.s32.f32 %v2667
      %v2700 = vcvt.s32.f32 %v2668
      %v2701 = vcvt.s32.f32 %v2669
      %v2702 = vcvt.s32.f32 %v2670
      %v2703 = vcvt.s32.f32 %v2671
      %v2704 = vcvt.s32.f32 %v2672
      %v2705 = vcvt.s32.f32 %v2673
      %v2706 = vcvt.s32.f32 %v2674
      %v2707 = vcvt.s32.f32 %v2675
      %v2708 = vcvt.s32.f32 %v2676
      %v2709 = vcvt.s32.f32 %v2677
      %v2710 = vcvt.s32.f32 %v2678
      %v2711 = vcvt.s32.f32 %v2679
      %v2712 = vcvt.s32.f32 %v2680
      %v2713 = vcvt.s32.f32 %v2681
      %v2714 = vcvt.s32.f32 %v2682
      %v2715 = vcvt.s32.f32 %v2683
      %v2716 = vcvt.s32.f32 %v2684
      %v2717 = vcvt.s32.f32 %v2685
      %v2718 = vcvt.s32.f32 %v2686
      %v2719 = vcvt.s32.f32 %v2687
      %v2720 = vcvt.s32.f32 %v2688
      %v2721 = vcvt.s32.f32 %v2689
      %v2722 = vcvt.s32.f32 %v2690
      %v2723 = vpack.c.bf16 %v2693, %v2691
      %v2724 = vpack.c.bf16 %v2694, %v2692
      %v2725 = vpack.c.bf16 %v2697, %v2695
      %v2726 = vpack.c.bf16 %v2698, %v2696
      %v2727 = vpack.c.bf16 %v2701, %v2699
      %v2728 = vpack.c.bf16 %v2702, %v2700
      %v2729 = vpack.c.bf16 %v2705, %v2703
      %v2730 = vpack.c.bf16 %v2706, %v2704
      %v2731 = vpack.c.bf16 %v2709, %v2707
      %v2732 = vpack.c.bf16 %v2710, %v2708
      %v2733 = vpack.c.bf16 %v2713, %v2711
      %v2734 = vpack.c.bf16 %v2714, %v2712
      %v2735 = vpack.c.bf16 %v2717, %v2715
      %v2736 = vpack.c.bf16 %v2718, %v2716
      %v2737 = vpack.c.bf16 %v2721, %v2719
      %v2738 = vpack.c.bf16 %v2722, %v2720
      %vm2739 = vcmask 949248
      %v2741 = vsel %vm2739, %v2596, 0
      %v2744 = vsel %vm2739, %v2598, 0
      %v2747 = vsel %vm2739, %v2600, 0
      %v2750 = vsel %vm2739, %v2602, 0
      %v2753 = vsel %vm2739, %v2604, 0
      %v2756 = vsel %vm2739, %v2606, 0
      %v2759 = vsel %vm2739, %v2608, 0
      %v2762 = vsel %vm2739, %v2610, 0
      %vm2764 = vcmask 1041408
      %v2766 = vsel %vm2764, %v2462, 0
      %2768 = vmatprep.subr.bf16.mxu0 0
      %2769 = vmatpush1.bf16.msra.mxu0 %v2454
      %2770 = vmatprep.subr.bf16.mxu0 0
      %2771 = vmatpush1.bf16.msra.mxu0 %v2453
      %2772 = vmatprep.subr.bf16.mxu0 0
      %2773 = vmatpush1.bf16.msra.mxu0 %v2452
      %2774 = vmatprep.subr.bf16.mxu0 0
      %2775 = vmatpush1.bf16.msra.mxu0 %v2451
      %2776 = vmatprep.subr.bf16.mxu0 0
      %2777 = vmatpush1.bf16.msra.mxu0 %v2450
      %2778 = vmatprep.subr.bf16.mxu0 0
      %2779 = vmatpush1.bf16.msra.mxu0 %v2449
      %2780 = vmatprep.subr.bf16.mxu0 0
      %2781 = vmatpush1.bf16.msra.mxu0 %v2448
      %2782 = vmatprep.subr.bf16.mxu0 0
      %2783 = vmatpush1.bf16.msra.mxu0 %v2447
      %2784 = vmatprep.subr.bf16.mxu0 0
      %2785 = vmatpush2.bf16.msra.mxu0 %v2766
      %2786 = vmatprep.subr.bf16.mxu0 0
      %2787 = vmatpush2.bf16.msra.mxu0 %v2461
      %2788 = vmatprep.subr.bf16.mxu0 0
      %2789 = vmatpush2.bf16.msra.mxu0 %v2460
      %2790 = vmatprep.subr.bf16.mxu0 0
      %2791 = vmatpush2.bf16.msra.mxu0 %v2459
      %2792 = vmatprep.subr.bf16.mxu0 0
      %2793 = vmatpush2.bf16.msra.mxu0 %v2458
      %2794 = vmatprep.subr.bf16.mxu0 0
      %2795 = vmatpush2.bf16.msra.mxu0 %v2457
      %2796 = vmatprep.subr.bf16.mxu0 0
      %2797 = vmatpush2.bf16.msra.mxu0 %v2456
      %2798 = vmatprep.subr.bf16.mxu0 0
      %2799 = vmatpush2.bf16.msra.mxu0 %v2455
      %2800 = vmatprep.mubr.bf16.mxu0 %v2741
      %2801 = vmatmul.mubr.bf16.gmra.mxu0 %v2595
      %v2802 = vpop.f32.mrf.mxu0
      %v2803 = vadd.f32 0.0, %v2802
      %v2804 = vpop.f32.mrf.mxu0
      %v2805 = vpop.f32.mrf.mxu0
      %v2806 = vadd.f32 0.0, %v2805
      %v2807 = vpop.f32.mrf.mxu0
      %2808 = vmatprep.mubr.bf16.mxu0 %v2744
      %2809 = vmatmul.mubr.bf16.gmra.mxu0 %v2597
      %v2810 = vpop.f32.mrf.mxu0
      %v2811 = vadd.f32 0.0, %v2810
      %v2812 = vpop.f32.mrf.mxu0
      %v2813 = vpop.f32.mrf.mxu0
      %v2814 = vadd.f32 0.0, %v2813
      %v2815 = vpop.f32.mrf.mxu0
      %2816 = vmatprep.mubr.bf16.mxu0 %v2747
      %2817 = vmatmul.mubr.bf16.gmra.mxu0 %v2599
      %v2818 = vpop.f32.mrf.mxu0
      %v2819 = vadd.f32 0.0, %v2818
      %v2820 = vpop.f32.mrf.mxu0
      %v2821 = vpop.f32.mrf.mxu0
      %v2822 = vadd.f32 0.0, %v2821
      %v2823 = vpop.f32.mrf.mxu0
      %2824 = vmatprep.mubr.bf16.mxu0 %v2750
      %2825 = vmatmul.mubr.bf16.gmra.mxu0 %v2601
      %v2826 = vpop.f32.mrf.mxu0
      %v2827 = vadd.f32 0.0, %v2826
      %v2828 = vpop.f32.mrf.mxu0
      %v2829 = vpop.f32.mrf.mxu0
      %v2830 = vadd.f32 0.0, %v2829
      %v2831 = vpop.f32.mrf.mxu0
      %2832 = vmatprep.mubr.bf16.mxu0 %v2753
      %2833 = vmatmul.mubr.bf16.gmra.mxu0 %v2603
      %v2834 = vpop.f32.mrf.mxu0
      %v2835 = vadd.f32 0.0, %v2834
      %v2836 = vpop.f32.mrf.mxu0
      %v2837 = vpop.f32.mrf.mxu0
      %v2838 = vadd.f32 0.0, %v2837
      %v2839 = vpop.f32.mrf.mxu0
      %2840 = vmatprep.mubr.bf16.mxu0 %v2756
      %2841 = vmatmul.mubr.bf16.gmra.mxu0 %v2605
      %v2842 = vpop.f32.mrf.mxu0
      %v2843 = vadd.f32 0.0, %v2842
      %v2844 = vpop.f32.mrf.mxu0
      %v2845 = vpop.f32.mrf.mxu0
      %v2846 = vadd.f32 0.0, %v2845
      %v2847 = vpop.f32.mrf.mxu0
      %2848 = vmatprep.mubr.bf16.mxu0 %v2759
      %2849 = vmatmul.mubr.bf16.gmra.mxu0 %v2607
      %v2850 = vpop.f32.mrf.mxu0
      %v2851 = vadd.f32 0.0, %v2850
      %v2852 = vpop.f32.mrf.mxu0
      %v2853 = vpop.f32.mrf.mxu0
      %v2854 = vadd.f32 0.0, %v2853
      %v2855 = vpop.f32.mrf.mxu0
      %2856 = vmatprep.mubr.bf16.mxu0 %v2762
      %2857 = vmatmul.mubr.bf16.gmra.mxu0 %v2609
      %v2858 = vpop.f32.mrf.mxu0
      %v2859 = vadd.f32 0.0, %v2858
      %v2860 = vpop.f32.mrf.mxu0
      %v2861 = vpop.f32.mrf.mxu0
      %v2862 = vadd.f32 0.0, %v2861
      %v2863 = vpop.f32.mrf.mxu0
      %2864 = vdwg.mxu0
      %v2866 = vsel %vm2739, %v2724, 0
      %v2869 = vsel %vm2739, %v2726, 0
      %v2872 = vsel %vm2739, %v2728, 0
      %v2875 = vsel %vm2739, %v2730, 0
      %v2878 = vsel %vm2739, %v2732, 0
      %v2881 = vsel %vm2739, %v2734, 0
      %v2884 = vsel %vm2739, %v2736, 0
      %v2887 = vsel %vm2739, %v2738, 0
      %2889 = vmatprep.subr.bf16.mxu0 0
      %2890 = vmatpush1.bf16.msra.mxu0 %v2454
      %2891 = vmatprep.subr.bf16.mxu0 0
      %2892 = vmatpush1.bf16.msra.mxu0 %v2453
      %2893 = vmatprep.subr.bf16.mxu0 0
      %2894 = vmatpush1.bf16.msra.mxu0 %v2452
      %2895 = vmatprep.subr.bf16.mxu0 0
      %2896 = vmatpush1.bf16.msra.mxu0 %v2451
      %2897 = vmatprep.subr.bf16.mxu0 0
      %2898 = vmatpush1.bf16.msra.mxu0 %v2450
      %2899 = vmatprep.subr.bf16.mxu0 0
      %2900 = vmatpush1.bf16.msra.mxu0 %v2449
      %2901 = vmatprep.subr.bf16.mxu0 0
      %2902 = vmatpush1.bf16.msra.mxu0 %v2448
      %2903 = vmatprep.subr.bf16.mxu0 0
      %2904 = vmatpush1.bf16.msra.mxu0 %v2447
      %2905 = vmatprep.subr.bf16.mxu0 0
      %2906 = vmatpush2.bf16.msra.mxu0 %v2766
      %2907 = vmatprep.subr.bf16.mxu0 0
      %2908 = vmatpush2.bf16.msra.mxu0 %v2461
      %2909 = vmatprep.subr.bf16.mxu0 0
      %2910 = vmatpush2.bf16.msra.mxu0 %v2460
      %2911 = vmatprep.subr.bf16.mxu0 0
      %2912 = vmatpush2.bf16.msra.mxu0 %v2459
      %2913 = vmatprep.subr.bf16.mxu0 0
      %2914 = vmatpush2.bf16.msra.mxu0 %v2458
      %2915 = vmatprep.subr.bf16.mxu0 0
      %2916 = vmatpush2.bf16.msra.mxu0 %v2457
      %2917 = vmatprep.subr.bf16.mxu0 0
      %2918 = vmatpush2.bf16.msra.mxu0 %v2456
      %2919 = vmatprep.subr.bf16.mxu0 0
      %2920 = vmatpush2.bf16.msra.mxu0 %v2455
      %2921 = vmatprep.mubr.bf16.mxu0 %v2866
      %2922 = vmatmul.mubr.bf16.gmra.mxu0 %v2723
      %v2923 = vpop.f32.mrf.mxu0
      %v2924 = vadd.f32 0.0, %v2923
      %v2925 = vpop.f32.mrf.mxu0
      %v2926 = vpop.f32.mrf.mxu0
      %v2927 = vadd.f32 0.0, %v2926
      %v2928 = vpop.f32.mrf.mxu0
      %2929 = vmatprep.mubr.bf16.mxu0 %v2869
      %2930 = vmatmul.mubr.bf16.gmra.mxu0 %v2725
      %v2931 = vpop.f32.mrf.mxu0
      %v2932 = vadd.f32 0.0, %v2931
      %v2933 = vpop.f32.mrf.mxu0
      %v2934 = vpop.f32.mrf.mxu0
      %v2935 = vadd.f32 0.0, %v2934
      %v2936 = vpop.f32.mrf.mxu0
      %2937 = vmatprep.mubr.bf16.mxu0 %v2872
      %2938 = vmatmul.mubr.bf16.gmra.mxu0 %v2727
      %v2939 = vpop.f32.mrf.mxu0
      %v2940 = vadd.f32 0.0, %v2939
      %v2941 = vpop.f32.mrf.mxu0
      %v2942 = vpop.f32.mrf.mxu0
      %v2943 = vadd.f32 0.0, %v2942
      %v2944 = vpop.f32.mrf.mxu0
      %2945 = vmatprep.mubr.bf16.mxu0 %v2875
      %2946 = vmatmul.mubr.bf16.gmra.mxu0 %v2729
      %v2947 = vpop.f32.mrf.mxu0
      %v2948 = vadd.f32 0.0, %v2947
      %v2949 = vpop.f32.mrf.mxu0
      %v2950 = vpop.f32.mrf.mxu0
      %v2951 = vadd.f32 0.0, %v2950
      %v2952 = vpop.f32.mrf.mxu0
      %2953 = vmatprep.mubr.bf16.mxu0 %v2878
      %2954 = vmatmul.mubr.bf16.gmra.mxu0 %v2731
      %v2955 = vpop.f32.mrf.mxu0
      %v2956 = vadd.f32 0.0, %v2955
      %v2957 = vpop.f32.mrf.mxu0
      %v2958 = vpop.f32.mrf.mxu0
      %v2959 = vadd.f32 0.0, %v2958
      %v2960 = vpop.f32.mrf.mxu0
      %2961 = vmatprep.mubr.bf16.mxu0 %v2881
      %2962 = vmatmul.mubr.bf16.gmra.mxu0 %v2733
      %v2963 = vpop.f32.mrf.mxu0
      %v2964 = vadd.f32 0.0, %v2963
      %v2965 = vpop.f32.mrf.mxu0
      %v2966 = vpop.f32.mrf.mxu0
      %v2967 = vadd.f32 0.0, %v2966
      %v2968 = vpop.f32.mrf.mxu0
      %2969 = vmatprep.mubr.bf16.mxu0 %v2884
      %2970 = vmatmul.mubr.bf16.gmra.mxu0 %v2735
      %v2971 = vpop.f32.mrf.mxu0
      %v2972 = vadd.f32 0.0, %v2971
      %v2973 = vpop.f32.mrf.mxu0
      %v2974 = vpop.f32.mrf.mxu0
      %v2975 = vadd.f32 0.0, %v2974
      %v2976 = vpop.f32.mrf.mxu0
      %2977 = vmatprep.mubr.bf16.mxu0 %v2887
      %2978 = vmatmul.mubr.bf16.gmra.mxu0 %v2737
      %v2979 = vpop.f32.mrf.mxu0
      %v2980 = vadd.f32 0.0, %v2979
      %v2981 = vpop.f32.mrf.mxu0
      %v2982 = vpop.f32.mrf.mxu0
      %v2983 = vadd.f32 0.0, %v2982
      %v2984 = vpop.f32.mrf.mxu0
      %2985 = vdwg.mxu0
      %v2986 = vmax.f32 %v2803, %v2924
      %v2987 = vmax.f32 %v2806, %v2927
      %v2988 = vmax.f32 %v2811, %v2932
      %v2989 = vmax.f32 %v2814, %v2935
      %v2990 = vmax.f32 %v2819, %v2940
      %v2991 = vmax.f32 %v2822, %v2943
      %v2992 = vmax.f32 %v2827, %v2948
      %v2993 = vmax.f32 %v2830, %v2951
      %v2994 = vmax.f32 %v2835, %v2956
      %v2995 = vmax.f32 %v2838, %v2959
      %v2996 = vmax.f32 %v2843, %v2964
      %v2997 = vmax.f32 %v2846, %v2967
      %v2998 = vmax.f32 %v2851, %v2972
      %v2999 = vmax.f32 %v2854, %v2975
      %v3000 = vmax.f32 %v2859, %v2980
      %v3001 = vmax.f32 %v2862, %v2983
      %v3002 = vpack.c.bf16 %v2987, %v2986
      %v3003 = vpack.c.bf16 %v2989, %v2988
      %v3004 = vpack.c.bf16 %v2991, %v2990
      %v3005 = vpack.c.bf16 %v2993, %v2992
      %v3006 = vpack.c.bf16 %v2995, %v2994
      %v3007 = vpack.c.bf16 %v2997, %v2996
      %v3008 = vpack.c.bf16 %v2999, %v2998
      %v3009 = vpack.c.bf16 %v3001, %v3000
      %v3011 = vshrl.u32 %v3002, 16
      %v3013 = vshll.u32 %v3002, 16
      %v3015 = vrot.slane %v3013, 1
      %v3016 = vor.u32 %v3011, %v3015
      %v3018 = vshll.u32 %v3003, 16
      %v3020 = vrot.slane %v3018, 1
      %v3021 = vsel %vm1402, %v3016, %v3020
      %v3022 = vshrl.u32 %v3003, 16
      %v3024 = vor.u32 %v3022, %v3020
      %v3026 = vshll.u32 %v3004, 16
      %v3028 = vrot.slane %v3026, 1
      %v3029 = vsel %vm1402, %v3024, %v3028
      %v3030 = vshrl.u32 %v3004, 16
      %v3032 = vor.u32 %v3030, %v3028
      %v3034 = vshll.u32 %v3005, 16
      %v3036 = vrot.slane %v3034, 1
      %v3037 = vsel %vm1402, %v3032, %v3036
      %v3038 = vshrl.u32 %v3005, 16
      %v3040 = vor.u32 %v3038, %v3036
      %v3042 = vshll.u32 %v3006, 16
      %v3044 = vrot.slane %v3042, 1
      %v3045 = vsel %vm1402, %v3040, %v3044
      %v3046 = vshrl.u32 %v3006, 16
      %v3048 = vor.u32 %v3046, %v3044
      %v3050 = vshll.u32 %v3007, 16
      %v3052 = vrot.slane %v3050, 1
      %v3053 = vsel %vm1402, %v3048, %v3052
      %v3054 = vshrl.u32 %v3007, 16
      %v3056 = vor.u32 %v3054, %v3052
      %v3058 = vshll.u32 %v3008, 16
      %v3060 = vrot.slane %v3058, 1
      %v3061 = vsel %vm1402, %v3056, %v3060
      %v3062 = vshrl.u32 %v3008, 16
      %v3064 = vor.u32 %v3062, %v3060
      %v3066 = vshll.u32 %v3009, 16
      %v3068 = vrot.slane %v3066, 1
      %v3069 = vsel %vm1402, %v3064, %v3068
      %v3070 = vshrl.u32 %v3009, 16
      %v3072 = vor.u32 %v3070, %v3068
      %3073 = vrot.lane.b32.xlu0 %v3021, 32
      %v3074 = vpop.permute.xlu0 %3073
      %3075 = vrot.lane.b32.xlu0 %v3029, 32
      %v3076 = vpop.permute.xlu0 %3075
      %3077 = vrot.lane.b32.xlu0 %v3037, 32
      %v3078 = vpop.permute.xlu0 %3077
      %3079 = vrot.lane.b32.xlu0 %v3045, 32
      %v3080 = vpop.permute.xlu0 %3079
      %3081 = vrot.lane.b32.xlu0 %v3053, 32
      %v3082 = vpop.permute.xlu0 %3081
      %3083 = vrot.lane.b32.xlu0 %v3061, 32
      %v3084 = vpop.permute.xlu0 %3083
      %3085 = vrot.lane.b32.xlu0 %v3069, 32
      %v3086 = vpop.permute.xlu0 %3085
      %3087 = vrot.lane.b32.xlu0 %v3072, 32
      %v3088 = vpop.permute.xlu0 %3087
      %v3097 = vrot.slane %v3002, 1
      %v3098 = vrot.slane %v3003, 1
      %v3099 = vsel %vm1578, %v3097, %v3098
      %v3100 = vrot.slane %v3004, 1
      %v3101 = vsel %vm1578, %v3098, %v3100
      %v3102 = vrot.slane %v3005, 1
      %v3103 = vsel %vm1578, %v3100, %v3102
      %v3104 = vrot.slane %v3006, 1
      %v3105 = vsel %vm1578, %v3102, %v3104
      %v3106 = vrot.slane %v3007, 1
      %v3107 = vsel %vm1578, %v3104, %v3106
      %v3108 = vrot.slane %v3008, 1
      %v3109 = vsel %vm1578, %v3106, %v3108
      %v3110 = vrot.slane %v3009, 1
      %v3111 = vsel %vm1578, %v3108, %v3110
      %3112 = vrot.lane.b32.xlu0 %v3099, 64
      %v3113 = vpop.permute.xlu0 %3112
      %3114 = vrot.lane.b32.xlu0 %v3101, 64
      %v3115 = vpop.permute.xlu0 %3114
      %3116 = vrot.lane.b32.xlu0 %v3103, 64
      %v3117 = vpop.permute.xlu0 %3116
      %3118 = vrot.lane.b32.xlu0 %v3105, 64
      %v3119 = vpop.permute.xlu0 %3118
      %3120 = vrot.lane.b32.xlu0 %v3107, 64
      %v3121 = vpop.permute.xlu0 %3120
      %3122 = vrot.lane.b32.xlu0 %v3109, 64
      %v3123 = vpop.permute.xlu0 %3122
      %3124 = vrot.lane.b32.xlu0 %v3111, 64
      %v3125 = vpop.permute.xlu0 %3124
      %3126 = vrot.lane.b32.xlu0 %v3110, 64
      %v3127 = vpop.permute.xlu0 %3126
      %v3128 = vrot.slane %v3011, 1
      %v3129 = vrot.slane %v3013, 2
      %v3130 = vor.u32 %v3128, %v3129
      %v3131 = vrot.slane %v3022, 1
      %v3132 = vrot.slane %v3018, 2
      %v3133 = vor.u32 %v3131, %v3132
      %v3134 = vsel %vm1642, %v3130, %v3133
      %v3135 = vrot.slane %v3030, 1
      %v3136 = vrot.slane %v3026, 2
      %v3137 = vor.u32 %v3135, %v3136
      %v3138 = vsel %vm1642, %v3133, %v3137
      %v3139 = vrot.slane %v3038, 1
      %v3140 = vrot.slane %v3034, 2
      %v3141 = vor.u32 %v3139, %v3140
      %v3142 = vsel %vm1642, %v3137, %v3141
      %v3143 = vrot.slane %v3046, 1
      %v3144 = vrot.slane %v3042, 2
      %v3145 = vor.u32 %v3143, %v3144
      %v3146 = vsel %vm1642, %v3141, %v3145
      %v3147 = vrot.slane %v3054, 1
      %v3148 = vrot.slane %v3050, 2
      %v3149 = vor.u32 %v3147, %v3148
      %v3150 = vsel %vm1642, %v3145, %v3149
      %v3151 = vrot.slane %v3062, 1
      %v3152 = vrot.slane %v3058, 2
      %v3153 = vor.u32 %v3151, %v3152
      %v3154 = vsel %vm1642, %v3149, %v3153
      %v3155 = vrot.slane %v3070, 1
      %v3156 = vrot.slane %v3066, 2
      %v3157 = vor.u32 %v3155, %v3156
      %v3158 = vsel %vm1642, %v3153, %v3157
      %3159 = vrot.lane.b32.xlu0 %v3134, 96
      %v3160 = vpop.permute.xlu0 %3159
      %3161 = vrot.lane.b32.xlu0 %v3138, 96
      %v3162 = vpop.permute.xlu0 %3161
      %3163 = vrot.lane.b32.xlu0 %v3142, 96
      %v3164 = vpop.permute.xlu0 %3163
      %3165 = vrot.lane.b32.xlu0 %v3146, 96
      %v3166 = vpop.permute.xlu0 %3165
      %3167 = vrot.lane.b32.xlu0 %v3150, 96
      %v3168 = vpop.permute.xlu0 %3167
      %3169 = vrot.lane.b32.xlu0 %v3154, 96
      %v3170 = vpop.permute.xlu0 %3169
      %3171 = vrot.lane.b32.xlu0 %v3158, 96
      %v3172 = vpop.permute.xlu0 %3171
      %3173 = vrot.lane.b32.xlu0 %v3157, 96
      %v3174 = vpop.permute.xlu0 %3173
      %v3175 = vrot.slane %v3002, 2
      %v3176 = vrot.slane %v3003, 2
      %v3177 = vsel %vm1738, %v3175, %v3176
      %v3178 = vrot.slane %v3004, 2
      %v3179 = vsel %vm1738, %v3176, %v3178
      %v3180 = vrot.slane %v3005, 2
      %v3181 = vsel %vm1738, %v3178, %v3180
      %v3182 = vrot.slane %v3006, 2
      %v3183 = vsel %vm1738, %v3180, %v3182
      %v3184 = vrot.slane %v3007, 2
      %v3185 = vsel %vm1738, %v3182, %v3184
      %v3186 = vrot.slane %v3008, 2
      %v3187 = vsel %vm1738, %v3184, %v3186
      %v3188 = vrot.slane %v3009, 2
      %v3189 = vsel %vm1738, %v3186, %v3188
      %vm3190 = vcmask 261120
      %v3192 = vsel %vm3190, %v3002, %v3074
      %v3194 = vsel %vm3190, %v3003, %v3076
      %v3196 = vsel %vm3190, %v3004, %v3078
      %v3198 = vsel %vm3190, %v3005, %v3080
      %v3200 = vsel %vm3190, %v3006, %v3082
      %v3202 = vsel %vm3190, %v3007, %v3084
      %v3204 = vsel %vm3190, %v3008, %v3086
      %v3206 = vsel %vm3190, %v3009, %v3088
      %vm3207 = vcmask 523264
      %v3209 = vsel %vm3207, %v3192, %v3113
      %v3211 = vsel %vm3207, %v3194, %v3115
      %v3213 = vsel %vm3207, %v3196, %v3117
      %v3215 = vsel %vm3207, %v3198, %v3119
      %v3217 = vsel %vm3207, %v3200, %v3121
      %v3219 = vsel %vm3207, %v3202, %v3123
      %v3221 = vsel %vm3207, %v3204, %v3125
      %v3223 = vsel %vm3207, %v3206, %v3127
      %vm3224 = vcmask 785408
      %v3226 = vsel %vm3224, %v3209, %v3160
      %v3229 = vsel %vm3224, %v3211, %v3162
      %v3232 = vsel %vm3224, %v3213, %v3164
      %v3235 = vsel %vm3224, %v3215, %v3166
      %v3238 = vsel %vm3224, %v3217, %v3168
      %v3241 = vsel %vm3224, %v3219, %v3170
      %v3244 = vsel %vm3224, %v3221, %v3172
      %v3247 = vsel %vm3224, %v3223, %v3174
      %v3249 = vld [vmem:[%s3] sm:$0xf]
      %v3250 = vld [vmem:[%s3 + $0x4] sm:$0xf]
      %v3251 = vld [vmem:[%s3 + $0x8] sm:$0xf]
      %v3252 = vld [vmem:[%s3 + $0xc] sm:$0xf]
      %v3253 = vld [vmem:[%s3 + $0x10] sm:$0xf]
      %v3254 = vld [vmem:[%s3 + $0x14] sm:$0xf]
      %v3255 = vld [vmem:[%s3 + $0x18] sm:$0xf]
      %v3256 = vld [vmem:[%s3 + $0x1c] sm:$0xf]
      %v3257 = vld [vmem:[%s3 + $0x20] sm:$0xf]
      %v3258 = vld [vmem:[%s3 + $0x24] sm:$0xf]
      %v3259 = vld [vmem:[%s3 + $0x28] sm:$0xf]
      %v3260 = vld [vmem:[%s3 + $0x2c] sm:$0xf]
      %v3261 = vld [vmem:[%s3 + $0x30] sm:$0xf]
      %v3262 = vld [vmem:[%s3 + $0x34] sm:$0xf]
      %v3263 = vld [vmem:[%s3 + $0x38] sm:$0xf]
      %v3264 = vld [vmem:[%s3 + $0x3c] sm:$0xf]
      %v3265 = vld [vmem:[%s3 + $0x40] sm:$0xf]
      %v3266 = vld [vmem:[%s3 + $0x44] sm:$0xf]
      %v3267 = vld [vmem:[%s3 + $0x48] sm:$0xf]
      %v3268 = vld [vmem:[%s3 + $0x4c] sm:$0xf]
      %v3269 = vld [vmem:[%s4] sm:$0x1]
      %v3271 = vlaneseq
      %v3272 = vshrl.u32 %v3271, 7
      %v3273 = vsub.s32 0, %v3272
      %v3274 = vrot.slane %v3269, %v3273
      %v3296 = vunpack.c.l.b16 %v3249
      %v3297 = vunpack.c.l.b16 %v3250
      %v3298 = vunpack.c.l.b16 %v3251
      %v3299 = vunpack.c.l.b16 %v3252
      %v3300 = vunpack.c.l.b16 %v3253
      %v3301 = vunpack.c.l.b16 %v3254
      %v3302 = vunpack.c.l.b16 %v3255
      %v3303 = vunpack.c.l.b16 %v3256
      %v3304 = vunpack.c.l.b16 %v3257
      %v3305 = vunpack.c.l.b16 %v3258
      %v3306 = vunpack.c.l.b16 %v3259
      %v3307 = vunpack.c.l.b16 %v3260
      %v3308 = vunpack.c.l.b16 %v3261
      %v3309 = vunpack.c.l.b16 %v3262
      %v3310 = vunpack.c.l.b16 %v3263
      %v3311 = vunpack.c.l.b16 %v3264
      %v3312 = vunpack.c.l.b16 %v3265
      %v3313 = vunpack.c.l.b16 %v3266
      %v3314 = vunpack.c.l.b16 %v3267
      %v3315 = vunpack.c.l.b16 %v3268
      %v3316 = vpack.c.b16 %v3297, %v3296
      %v3317 = vpack.c.b16 %v3299, %v3298
      %v3318 = vpack.c.b16 %v3301, %v3300
      %v3319 = vpack.c.b16 %v3303, %v3302
      %v3320 = vpack.c.b16 %v3305, %v3304
      %v3321 = vpack.c.b16 %v3307, %v3306
      %v3322 = vpack.c.b16 %v3309, %v3308
      %v3323 = vpack.c.b16 %v3311, %v3310
      %v3324 = vpack.c.b16 %v3313, %v3312
      %v3325 = vpack.c.b16 %v3315, %v3314
      %v3337 = vsel %vm3190, %v3177, 0
      %v3340 = vsel %vm3190, %v3179, 0
      %v3343 = vsel %vm3190, %v3181, 0
      %v3346 = vsel %vm3190, %v3183, 0
      %v3349 = vsel %vm3190, %v3185, 0
      %v3352 = vsel %vm3190, %v3187, 0
      %v3355 = vsel %vm3190, %v3189, 0
      %v3358 = vsel %vm3190, %v3188, 0
      %3360 = vmatprep.subr.bf16.mxu0 0
      %3361 = vmatpush1.bf16.msra.mxu0 %v3323
      %3362 = vmatprep.subr.bf16.mxu0 0
      %3363 = vmatpush1.bf16.msra.mxu0 %v3322
      %3364 = vmatprep.subr.bf16.mxu0 0
      %3365 = vmatpush1.bf16.msra.mxu0 %v3321
      %3366 = vmatprep.subr.bf16.mxu0 0
      %3367 = vmatpush1.bf16.msra.mxu0 %v3320
      %3368 = vmatprep.subr.bf16.mxu0 0
      %3369 = vmatpush1.bf16.msra.mxu0 %v3319
      %3370 = vmatprep.subr.bf16.mxu0 0
      %3371 = vmatpush1.bf16.msra.mxu0 %v3318
      %3372 = vmatprep.subr.bf16.mxu0 0
      %3373 = vmatpush1.bf16.msra.mxu0 %v3317
      %3374 = vmatprep.subr.bf16.mxu0 0
      %3375 = vmatpush1.bf16.msra.mxu0 %v3316
      %3376 = vmatprep.subr.bf16.mxu0 0
      %3377 = vmatpush2.bf16.msra.mxu0 0
      %3378 = vmatprep.subr.bf16.mxu0 0
      %3379 = vmatpush2.bf16.msra.mxu0 0
      %3380 = vmatprep.subr.bf16.mxu0 0
      %3381 = vmatpush2.bf16.msra.mxu0 0
      %3382 = vmatprep.subr.bf16.mxu0 0
      %3383 = vmatpush2.bf16.msra.mxu0 0
      %3384 = vmatprep.subr.bf16.mxu0 0
      %3385 = vmatpush2.bf16.msra.mxu0 0
      %3386 = vmatprep.subr.bf16.mxu0 0
      %3387 = vmatpush2.bf16.msra.mxu0 0
      %3388 = vmatprep.subr.bf16.mxu0 0
      %3389 = vmatpush2.bf16.msra.mxu0 %v3325
      %3390 = vmatprep.subr.bf16.mxu0 0
      %3391 = vmatpush2.bf16.msra.mxu0 %v3324
      %3392 = vmatprep.mubr.bf16.mxu0 %v3337
      %3393 = vmatmul.mubr.bf16.gmra.mxu0 %v3226
      %v3394 = vpop.f32.mrf.mxu0
      %v3395 = vadd.f32 %v3274, %v3394
      %v3396 = vpop.f32.mrf.mxu0
      %v3397 = vpop.f32.mrf.mxu0
      %v3398 = vadd.f32 %v3274, %v3397
      %v3399 = vpop.f32.mrf.mxu0
      %3400 = vmatprep.mubr.bf16.mxu0 %v3340
      %3401 = vmatmul.mubr.bf16.gmra.mxu0 %v3229
      %v3402 = vpop.f32.mrf.mxu0
      %v3403 = vadd.f32 %v3274, %v3402
      %v3404 = vpop.f32.mrf.mxu0
      %v3405 = vpop.f32.mrf.mxu0
      %v3406 = vadd.f32 %v3274, %v3405
      %v3407 = vpop.f32.mrf.mxu0
      %3408 = vmatprep.mubr.bf16.mxu0 %v3343
      %3409 = vmatmul.mubr.bf16.gmra.mxu0 %v3232
      %v3410 = vpop.f32.mrf.mxu0
      %v3411 = vadd.f32 %v3274, %v3410
      %v3412 = vpop.f32.mrf.mxu0
      %v3413 = vpop.f32.mrf.mxu0
      %v3414 = vadd.f32 %v3274, %v3413
      %v3415 = vpop.f32.mrf.mxu0
      %3416 = vmatprep.mubr.bf16.mxu0 %v3346
      %3417 = vmatmul.mubr.bf16.gmra.mxu0 %v3235
      %v3418 = vpop.f32.mrf.mxu0
      %v3419 = vadd.f32 %v3274, %v3418
      %v3420 = vpop.f32.mrf.mxu0
      %v3421 = vpop.f32.mrf.mxu0
      %v3422 = vadd.f32 %v3274, %v3421
      %v3423 = vpop.f32.mrf.mxu0
      %3424 = vmatprep.mubr.bf16.mxu0 %v3349
      %3425 = vmatmul.mubr.bf16.gmra.mxu0 %v3238
      %v3426 = vpop.f32.mrf.mxu0
      %v3427 = vadd.f32 %v3274, %v3426
      %v3428 = vpop.f32.mrf.mxu0
      %v3429 = vpop.f32.mrf.mxu0
      %v3430 = vadd.f32 %v3274, %v3429
      %v3431 = vpop.f32.mrf.mxu0
      %3432 = vmatprep.mubr.bf16.mxu0 %v3352
      %3433 = vmatmul.mubr.bf16.gmra.mxu0 %v3241
      %v3434 = vpop.f32.mrf.mxu0
      %v3435 = vadd.f32 %v3274, %v3434
      %v3436 = vpop.f32.mrf.mxu0
      %v3437 = vpop.f32.mrf.mxu0
      %v3438 = vadd.f32 %v3274, %v3437
      %v3439 = vpop.f32.mrf.mxu0
      %3440 = vmatprep.mubr.bf16.mxu0 %v3355
      %3441 = vmatmul.mubr.bf16.gmra.mxu0 %v3244
      %v3442 = vpop.f32.mrf.mxu0
      %v3443 = vadd.f32 %v3274, %v3442
      %v3444 = vpop.f32.mrf.mxu0
      %v3445 = vpop.f32.mrf.mxu0
      %v3446 = vadd.f32 %v3274, %v3445
      %v3447 = vpop.f32.mrf.mxu0
      %3448 = vmatprep.mubr.bf16.mxu0 %v3358
      %3449 = vmatmul.mubr.bf16.gmra.mxu0 %v3247
      %v3450 = vpop.f32.mrf.mxu0
      %v3451 = vadd.f32 %v3274, %v3450
      %v3452 = vpop.f32.mrf.mxu0
      %v3453 = vpop.f32.mrf.mxu0
      %v3454 = vpop.f32.mrf.mxu0
      %3455 = vdwg.mxu0
      %v3456 = vmax.f32 %v3395, 0.0
      %v3457 = vmax.f32 %v3398, 0.0
      %v3458 = vmax.f32 %v3403, 0.0
      %v3459 = vmax.f32 %v3406, 0.0
      %v3460 = vmax.f32 %v3411, 0.0
      %v3461 = vmax.f32 %v3414, 0.0
      %v3462 = vmax.f32 %v3419, 0.0
      %v3463 = vmax.f32 %v3422, 0.0
      %v3464 = vmax.f32 %v3427, 0.0
      %v3465 = vmax.f32 %v3430, 0.0
      %v3466 = vmax.f32 %v3435, 0.0
      %v3467 = vmax.f32 %v3438, 0.0
      %v3468 = vmax.f32 %v3443, 0.0
      %v3469 = vmax.f32 %v3446, 0.0
      %v3470 = vmax.f32 %v3451, 0.0
      %v3471 = vpack.c.bf16 %v3457, %v3456
      %v3472 = vpack.c.bf16 %v3459, %v3458
      %v3473 = vpack.c.bf16 %v3461, %v3460
      %v3474 = vpack.c.bf16 %v3463, %v3462
      %v3475 = vpack.c.bf16 %v3465, %v3464
      %v3476 = vpack.c.bf16 %v3467, %v3466
      %v3477 = vpack.c.bf16 %v3469, %v3468
      %v3478 = vpack.c.bf16 %v3470, %v3470
      %v3480 = vshrl.u32 %v3471, 16
      %v3482 = vshll.u32 %v3471, 16
      %v3484 = vrot.slane %v3482, 1
      %v3485 = vor.u32 %v3480, %v3484
      %v3487 = vshll.u32 %v3472, 16
      %v3489 = vrot.slane %v3487, 1
      %v3490 = vsel %vm1402, %v3485, %v3489
      %v3491 = vshrl.u32 %v3472, 16
      %v3493 = vor.u32 %v3491, %v3489
      %v3495 = vshll.u32 %v3473, 16
      %v3497 = vrot.slane %v3495, 1
      %v3498 = vsel %vm1402, %v3493, %v3497
      %v3499 = vshrl.u32 %v3473, 16
      %v3501 = vor.u32 %v3499, %v3497
      %v3503 = vshll.u32 %v3474, 16
      %v3505 = vrot.slane %v3503, 1
      %v3506 = vsel %vm1402, %v3501, %v3505
      %v3507 = vshrl.u32 %v3474, 16
      %v3509 = vor.u32 %v3507, %v3505
      %v3511 = vshll.u32 %v3475, 16
      %v3513 = vrot.slane %v3511, 1
      %v3514 = vsel %vm1402, %v3509, %v3513
      %v3515 = vshrl.u32 %v3475, 16
      %v3517 = vor.u32 %v3515, %v3513
      %v3519 = vshll.u32 %v3476, 16
      %v3521 = vrot.slane %v3519, 1
      %v3522 = vsel %vm1402, %v3517, %v3521
      %v3523 = vshrl.u32 %v3476, 16
      %v3525 = vor.u32 %v3523, %v3521
      %v3527 = vshll.u32 %v3477, 16
      %v3529 = vrot.slane %v3527, 1
      %v3530 = vsel %vm1402, %v3525, %v3529
      %v3531 = vshrl.u32 %v3477, 16
      %v3533 = vor.u32 %v3531, %v3529
      %v3535 = vshll.u32 %v3478, 16
      %v3537 = vrot.slane %v3535, 1
      %v3538 = vsel %vm1402, %v3533, %v3537
      %v3539 = vshrl.u32 %v3478, 16
      %v3541 = vor.u32 %v3539, %v3537
      %3542 = vrot.lane.b32.xlu0 %v3490, 64
      %v3543 = vpop.permute.xlu0 %3542
      %3544 = vrot.lane.b32.xlu0 %v3498, 64
      %v3545 = vpop.permute.xlu0 %3544
      %3546 = vrot.lane.b32.xlu0 %v3506, 64
      %v3547 = vpop.permute.xlu0 %3546
      %3548 = vrot.lane.b32.xlu0 %v3514, 64
      %v3549 = vpop.permute.xlu0 %3548
      %3550 = vrot.lane.b32.xlu0 %v3522, 64
      %v3551 = vpop.permute.xlu0 %3550
      %3552 = vrot.lane.b32.xlu0 %v3530, 64
      %v3553 = vpop.permute.xlu0 %3552
      %3554 = vrot.lane.b32.xlu0 %v3538, 64
      %v3555 = vpop.permute.xlu0 %3554
      %3556 = vrot.lane.b32.xlu0 %v3541, 64
      %v3557 = vpop.permute.xlu0 %3556
      %v3566 = vrot.slane %v3471, 1
      %v3567 = vrot.slane %v3472, 1
      %v3568 = vsel %vm1578, %v3566, %v3567
      %v3569 = vrot.slane %v3473, 1
      %v3570 = vsel %vm1578, %v3567, %v3569
      %v3571 = vrot.slane %v3474, 1
      %v3572 = vsel %vm1578, %v3569, %v3571
      %v3573 = vrot.slane %v3475, 1
      %v3574 = vsel %vm1578, %v3571, %v3573
      %v3575 = vrot.slane %v3476, 1
      %v3576 = vsel %vm1578, %v3573, %v3575
      %v3577 = vrot.slane %v3477, 1
      %v3578 = vsel %vm1578, %v3575, %v3577
      %v3579 = vrot.slane %v3478, 1
      %v3580 = vsel %vm1578, %v3577, %v3579
      %v3581 = vrot.slane %v3480, 1
      %v3582 = vrot.slane %v3482, 2
      %v3583 = vor.u32 %v3581, %v3582
      %v3584 = vrot.slane %v3491, 1
      %v3585 = vrot.slane %v3487, 2
      %v3586 = vor.u32 %v3584, %v3585
      %v3587 = vsel %vm1642, %v3583, %v3586
      %v3588 = vrot.slane %v3499, 1
      %v3589 = vrot.slane %v3495, 2
      %v3590 = vor.u32 %v3588, %v3589
      %v3591 = vsel %vm1642, %v3586, %v3590
      %v3592 = vrot.slane %v3507, 1
      %v3593 = vrot.slane %v3503, 2
      %v3594 = vor.u32 %v3592, %v3593
      %v3595 = vsel %vm1642, %v3590, %v3594
      %v3596 = vrot.slane %v3515, 1
      %v3597 = vrot.slane %v3511, 2
      %v3598 = vor.u32 %v3596, %v3597
      %v3599 = vsel %vm1642, %v3594, %v3598
      %v3600 = vrot.slane %v3523, 1
      %v3601 = vrot.slane %v3519, 2
      %v3602 = vor.u32 %v3600, %v3601
      %v3603 = vsel %vm1642, %v3598, %v3602
      %v3604 = vrot.slane %v3531, 1
      %v3605 = vrot.slane %v3527, 2
      %v3606 = vor.u32 %v3604, %v3605
      %v3607 = vsel %vm1642, %v3602, %v3606
      %v3608 = vrot.slane %v3539, 1
      %v3609 = vrot.slane %v3535, 2
      %v3610 = vor.u32 %v3608, %v3609
      %v3611 = vsel %vm1642, %v3606, %v3610
      %3612 = vrot.lane.b32.xlu0 %v3587, 64
      %v3613 = vpop.permute.xlu0 %3612
      %3614 = vrot.lane.b32.xlu0 %v3591, 64
      %v3615 = vpop.permute.xlu0 %3614
      %3616 = vrot.lane.b32.xlu0 %v3595, 64
      %v3617 = vpop.permute.xlu0 %3616
      %3618 = vrot.lane.b32.xlu0 %v3599, 64
      %v3619 = vpop.permute.xlu0 %3618
      %3620 = vrot.lane.b32.xlu0 %v3603, 64
      %v3621 = vpop.permute.xlu0 %3620
      %3622 = vrot.lane.b32.xlu0 %v3607, 64
      %v3623 = vpop.permute.xlu0 %3622
      %3624 = vrot.lane.b32.xlu0 %v3611, 64
      %v3625 = vpop.permute.xlu0 %3624
      %3626 = vrot.lane.b32.xlu0 %v3610, 64
      %v3627 = vpop.permute.xlu0 %3626
      %v3628 = vrot.slane %v3471, 2
      %v3629 = vrot.slane %v3472, 2
      %v3630 = vsel %vm1738, %v3628, %v3629
      %v3631 = vrot.slane %v3473, 2
      %v3632 = vsel %vm1738, %v3629, %v3631
      %v3633 = vrot.slane %v3474, 2
      %v3634 = vsel %vm1738, %v3631, %v3633
      %v3635 = vrot.slane %v3475, 2
      %v3636 = vsel %vm1738, %v3633, %v3635
      %v3637 = vrot.slane %v3476, 2
      %v3638 = vsel %vm1738, %v3635, %v3637
      %v3639 = vrot.slane %v3477, 2
      %v3640 = vsel %vm1738, %v3637, %v3639
      %v3641 = vrot.slane %v3478, 2
      %v3642 = vsel %vm1738, %v3639, %v3641
      %v3644 = vsel %vm3207, %v3471, %v3543
      %v3647 = vsel %vm3207, %v3472, %v3545
      %v3650 = vsel %vm3207, %v3473, %v3547
      %v3653 = vsel %vm3207, %v3474, %v3549
      %v3656 = vsel %vm3207, %v3475, %v3551
      %v3659 = vsel %vm3207, %v3476, %v3553
      %v3662 = vsel %vm3207, %v3477, %v3555
      %v3665 = vsel %vm3207, %v3478, %v3557
      %v3669 = vsel %vm3207, %v3568, %v3613
      %v3673 = vsel %vm3207, %v3570, %v3615
      %v3677 = vsel %vm3207, %v3572, %v3617
      %v3681 = vsel %vm3207, %v3574, %v3619
      %v3685 = vsel %vm3207, %v3576, %v3621
      %v3689 = vsel %vm3207, %v3578, %v3623
      %v3693 = vsel %vm3207, %v3580, %v3625
      %v3697 = vsel %vm3207, %v3579, %v3627
      %v3699 = vld [vmem:[%s5] sm:$0xf]
      %v3700 = vld [vmem:[%s5 + $0x4] sm:$0xf]
      %v3701 = vld [vmem:[%s5 + $0x8] sm:$0xf]
      %v3702 = vld [vmem:[%s5 + $0xc] sm:$0xf]
      %v3703 = vld [vmem:[%s5 + $0x10] sm:$0xf]
      %v3704 = vld [vmem:[%s5 + $0x14] sm:$0xf]
      %v3705 = vld [vmem:[%s5 + $0x18] sm:$0xf]
      %v3706 = vld [vmem:[%s5 + $0x1c] sm:$0xf]
      %v3707 = vld [vmem:[%s5 + $0x20] sm:$0xf]
      %v3708 = vld [vmem:[%s5 + $0x24] sm:$0xf]
      %v3709 = vld [vmem:[%s5 + $0x28] sm:$0xf]
      %v3710 = vld [vmem:[%s5 + $0x2c] sm:$0xf]
      %v3711 = vld [vmem:[%s5 + $0x30] sm:$0xf]
      %v3712 = vld [vmem:[%s5 + $0x34] sm:$0xf]
      %v3713 = vld [vmem:[%s5 + $0x38] sm:$0xf]
      %v3714 = vld [vmem:[%s5 + $0x3c] sm:$0xf]
      %v3715 = vld [vmem:[%s5 + $0x40] sm:$0xf]
      %v3716 = vld [vmem:[%s5 + $0x44] sm:$0xf]
      %v3717 = vld [vmem:[%s5 + $0x48] sm:$0xf]
      %v3718 = vld [vmem:[%s5 + $0x4c] sm:$0xf]
      %v3719 = vld [vmem:[%s5 + $0x50] sm:$0xf]
      %v3720 = vld [vmem:[%s5 + $0x54] sm:$0xf]
      %v3721 = vld [vmem:[%s5 + $0x58] sm:$0xf]
      %v3722 = vld [vmem:[%s5 + $0x5c] sm:$0xf]
      %v3723 = vld [vmem:[%s5 + $0x60] sm:$0xf]
      %v3724 = vld [vmem:[%s5 + $0x64] sm:$0xf]
      %v3725 = vld [vmem:[%s5 + $0x68] sm:$0xf]
      %v3726 = vld [vmem:[%s5 + $0x6c] sm:$0xf]
      %v3727 = vld [vmem:[%s5 + $0x70] sm:$0xf]
      %v3728 = vld [vmem:[%s5 + $0x74] sm:$0xf]
      %v3729 = vld [vmem:[%s5 + $0x78] sm:$0xf]
      %v3730 = vld [vmem:[%s5 + $0x7c] sm:$0xf]
      %v3731 = vld [vmem:[%s5 + $0x80] sm:$0xf]
      %v3732 = vld [vmem:[%s5 + $0x84] sm:$0xf]
      %v3733 = vld [vmem:[%s5 + $0x88] sm:$0xf]
      %v3734 = vld [vmem:[%s5 + $0x8c] sm:$0xf]
      %v3735 = vld [vmem:[%s5 + $0x90] sm:$0xf]
      %v3736 = vld [vmem:[%s5 + $0x94] sm:$0xf]
      %v3737 = vld [vmem:[%s5 + $0x98] sm:$0xf]
      %v3738 = vld [vmem:[%s5 + $0x9c] sm:$0xf]
      %v3739 = vld [vmem:[%s6] sm:$0x1]
      %v3741 = vlaneseq
      %v3742 = vshrl.u32 %v3741, 7
      %v3743 = vsub.s32 0, %v3742
      %v3744 = vrot.slane %v3739, %v3743
      %v3786 = vunpack.c.l.b16 %v3699
      %v3787 = vunpack.c.l.b16 %v3700
      %v3788 = vunpack.c.l.b16 %v3701
      %v3789 = vunpack.c.l.b16 %v3702
      %v3790 = vunpack.c.l.b16 %v3703
      %v3791 = vunpack.c.l.b16 %v3704
      %v3792 = vunpack.c.l.b16 %v3705
      %v3793 = vunpack.c.l.b16 %v3706
      %v3794 = vunpack.c.l.b16 %v3707
      %v3795 = vunpack.c.l.b16 %v3708
      %v3796 = vunpack.c.l.b16 %v3709
      %v3797 = vunpack.c.l.b16 %v3710
      %v3798 = vunpack.c.l.b16 %v3711
      %v3799 = vunpack.c.l.b16 %v3712
      %v3800 = vunpack.c.l.b16 %v3713
      %v3801 = vunpack.c.l.b16 %v3714
      %v3802 = vunpack.c.l.b16 %v3715
      %v3803 = vunpack.c.l.b16 %v3716
      %v3804 = vunpack.c.l.b16 %v3717
      %v3805 = vunpack.c.l.b16 %v3718
      %v3806 = vunpack.c.l.b16 %v3719
      %v3807 = vunpack.c.l.b16 %v3720
      %v3808 = vunpack.c.l.b16 %v3721
      %v3809 = vunpack.c.l.b16 %v3722
      %v3810 = vunpack.c.l.b16 %v3723
      %v3811 = vunpack.c.l.b16 %v3724
      %v3812 = vunpack.c.l.b16 %v3725
      %v3813 = vunpack.c.l.b16 %v3726
      %v3814 = vunpack.c.l.b16 %v3727
      %v3815 = vunpack.c.l.b16 %v3728
      %v3816 = vunpack.c.l.b16 %v3729
      %v3817 = vunpack.c.l.b16 %v3730
      %v3818 = vunpack.c.l.b16 %v3731
      %v3819 = vunpack.c.l.b16 %v3732
      %v3820 = vunpack.c.l.b16 %v3733
      %v3821 = vunpack.c.l.b16 %v3734
      %v3822 = vunpack.c.l.b16 %v3735
      %v3823 = vunpack.c.l.b16 %v3736
      %v3824 = vunpack.c.l.b16 %v3737
      %v3825 = vunpack.c.l.b16 %v3738
      %v3826 = vpack.c.b16 %v3787, %v3786
      %v3827 = vpack.c.b16 %v3789, %v3788
      %v3828 = vpack.c.b16 %v3791, %v3790
      %v3829 = vpack.c.b16 %v3793, %v3792
      %v3830 = vpack.c.b16 %v3795, %v3794
      %v3831 = vpack.c.b16 %v3797, %v3796
      %v3832 = vpack.c.b16 %v3799, %v3798
      %v3833 = vpack.c.b16 %v3801, %v3800
      %v3834 = vpack.c.b16 %v3803, %v3802
      %v3835 = vpack.c.b16 %v3805, %v3804
      %v3836 = vpack.c.b16 %v3807, %v3806
      %v3837 = vpack.c.b16 %v3809, %v3808
      %v3838 = vpack.c.b16 %v3811, %v3810
      %v3839 = vpack.c.b16 %v3813, %v3812
      %v3840 = vpack.c.b16 %v3815, %v3814
      %v3841 = vpack.c.b16 %v3817, %v3816
      %v3842 = vpack.c.b16 %v3819, %v3818
      %v3843 = vpack.c.b16 %v3821, %v3820
      %v3844 = vpack.c.b16 %v3823, %v3822
      %v3845 = vpack.c.b16 %v3825, %v3824
      %v3867 = vsel %vm3207, %v3630, 0
      %v3870 = vsel %vm3207, %v3632, 0
      %v3873 = vsel %vm3207, %v3634, 0
      %v3876 = vsel %vm3207, %v3636, 0
      %v3879 = vsel %vm3207, %v3638, 0
      %v3882 = vsel %vm3207, %v3640, 0
      %v3885 = vsel %vm3207, %v3642, 0
      %v3888 = vsel %vm3207, %v3641, 0
      %3890 = vmatprep.subr.bf16.mxu0 0
      %3891 = vmatpush1.bf16.msra.mxu0 %v3833
      %3892 = vmatprep.subr.bf16.mxu0 0
      %3893 = vmatpush1.bf16.msra.mxu0 %v3832
      %3894 = vmatprep.subr.bf16.mxu0 0
      %3895 = vmatpush1.bf16.msra.mxu0 %v3831
      %3896 = vmatprep.subr.bf16.mxu0 0
      %3897 = vmatpush1.bf16.msra.mxu0 %v3830
      %3898 = vmatprep.subr.bf16.mxu0 0
      %3899 = vmatpush1.bf16.msra.mxu0 %v3829
      %3900 = vmatprep.subr.bf16.mxu0 0
      %3901 = vmatpush1.bf16.msra.mxu0 %v3828
      %3902 = vmatprep.subr.bf16.mxu0 0
      %3903 = vmatpush1.bf16.msra.mxu0 %v3827
      %3904 = vmatprep.subr.bf16.mxu0 0
      %3905 = vmatpush1.bf16.msra.mxu0 %v3826
      %3906 = vmatprep.subr.bf16.mxu0 0
      %3907 = vmatpush2.bf16.msra.mxu0 %v3841
      %3908 = vmatprep.subr.bf16.mxu0 0
      %3909 = vmatpush2.bf16.msra.mxu0 %v3840
      %3910 = vmatprep.subr.bf16.mxu0 0
      %3911 = vmatpush2.bf16.msra.mxu0 %v3839
      %3912 = vmatprep.subr.bf16.mxu0 0
      %3913 = vmatpush2.bf16.msra.mxu0 %v3838
      %3914 = vmatprep.subr.bf16.mxu0 0
      %3915 = vmatpush2.bf16.msra.mxu0 %v3837
      %3916 = vmatprep.subr.bf16.mxu0 0
      %3917 = vmatpush2.bf16.msra.mxu0 %v3836
      %3918 = vmatprep.subr.bf16.mxu0 0
      %3919 = vmatpush2.bf16.msra.mxu0 %v3835
      %3920 = vmatprep.subr.bf16.mxu0 0
      %3921 = vmatpush2.bf16.msra.mxu0 %v3834
      %3922 = vmatprep.mubr.bf16.mxu0 %v3669
      %3923 = vmatmul.mubr.bf16.gmra.mxu0 %v3644
      %v3924 = vpop.f32.mrf.mxu0
      %v3925 = vadd.f32 %v3744, %v3924
      %v3926 = vpop.f32.mrf.mxu0
      %v3927 = vpop.f32.mrf.mxu0
      %v3928 = vadd.f32 %v3744, %v3927
      %v3929 = vpop.f32.mrf.mxu0
      %3930 = vmatprep.mubr.bf16.mxu0 %v3673
      %3931 = vmatmul.mubr.bf16.gmra.mxu0 %v3647
      %v3932 = vpop.f32.mrf.mxu0
      %v3933 = vadd.f32 %v3744, %v3932
      %v3934 = vpop.f32.mrf.mxu0
      %v3935 = vpop.f32.mrf.mxu0
      %v3936 = vadd.f32 %v3744, %v3935
      %v3937 = vpop.f32.mrf.mxu0
      %3938 = vmatprep.mubr.bf16.mxu0 %v3677
      %3939 = vmatmul.mubr.bf16.gmra.mxu0 %v3650
      %v3940 = vpop.f32.mrf.mxu0
      %v3941 = vadd.f32 %v3744, %v3940
      %v3942 = vpop.f32.mrf.mxu0
      %v3943 = vpop.f32.mrf.mxu0
      %v3944 = vadd.f32 %v3744, %v3943
      %v3945 = vpop.f32.mrf.mxu0
      %3946 = vmatprep.mubr.bf16.mxu0 %v3681
      %3947 = vmatmul.mubr.bf16.gmra.mxu0 %v3653
      %v3948 = vpop.f32.mrf.mxu0
      %v3949 = vadd.f32 %v3744, %v3948
      %v3950 = vpop.f32.mrf.mxu0
      %v3951 = vpop.f32.mrf.mxu0
      %v3952 = vadd.f32 %v3744, %v3951
      %v3953 = vpop.f32.mrf.mxu0
      %3954 = vmatprep.mubr.bf16.mxu0 %v3685
      %3955 = vmatmul.mubr.bf16.gmra.mxu0 %v3656
      %v3956 = vpop.f32.mrf.mxu0
      %v3957 = vadd.f32 %v3744, %v3956
      %v3958 = vpop.f32.mrf.mxu0
      %v3959 = vpop.f32.mrf.mxu0
      %v3960 = vadd.f32 %v3744, %v3959
      %v3961 = vpop.f32.mrf.mxu0
      %3962 = vmatprep.mubr.bf16.mxu0 %v3689
      %3963 = vmatmul.mubr.bf16.gmra.mxu0 %v3659
      %v3964 = vpop.f32.mrf.mxu0
      %v3965 = vadd.f32 %v3744, %v3964
      %v3966 = vpop.f32.mrf.mxu0
      %v3967 = vpop.f32.mrf.mxu0
      %v3968 = vadd.f32 %v3744, %v3967
      %v3969 = vpop.f32.mrf.mxu0
      %3970 = vmatprep.mubr.bf16.mxu0 %v3693
      %3971 = vmatmul.mubr.bf16.gmra.mxu0 %v3662
      %v3972 = vpop.f32.mrf.mxu0
      %v3973 = vadd.f32 %v3744, %v3972
      %v3974 = vpop.f32.mrf.mxu0
      %v3975 = vpop.f32.mrf.mxu0
      %v3976 = vadd.f32 %v3744, %v3975
      %v3977 = vpop.f32.mrf.mxu0
      %3978 = vmatprep.mubr.bf16.mxu0 %v3697
      %3979 = vmatmul.mubr.bf16.gmra.mxu0 %v3665
      %v3980 = vpop.f32.mrf.mxu0
      %v3981 = vadd.f32 %v3744, %v3980
      %v3982 = vpop.f32.mrf.mxu0
      %v3983 = vpop.f32.mrf.mxu0
      %v3984 = vpop.f32.mrf.mxu0
      %3985 = vdwg.mxu0
      %3986 = vmatprep.subr.bf16.mxu0 0
      %3987 = vmatpush1.bf16.msra.mxu0 0
      %3988 = vmatprep.subr.bf16.mxu0 0
      %3989 = vmatpush1.bf16.msra.mxu0 0
      %3990 = vmatprep.subr.bf16.mxu0 0
      %3991 = vmatpush1.bf16.msra.mxu0 0
      %3992 = vmatprep.subr.bf16.mxu0 0
      %3993 = vmatpush1.bf16.msra.mxu0 0
      %3994 = vmatprep.subr.bf16.mxu0 0
      %3995 = vmatpush1.bf16.msra.mxu0 %v3845
      %3996 = vmatprep.subr.bf16.mxu0 0
      %3997 = vmatpush1.bf16.msra.mxu0 %v3844
      %3998 = vmatprep.subr.bf16.mxu0 0
      %3999 = vmatpush1.bf16.msra.mxu0 %v3843
      %4000 = vmatprep.subr.bf16.mxu0 0
      %4001 = vmatpush1.bf16.msra.mxu0 %v3842
      %4002 = vmatprep.subr.bf16.mxu0 0
      %4003 = vmatpush2.bf16.msra.mxu0 0
      %4004 = vmatprep.subr.bf16.mxu0 0
      %4005 = vmatpush2.bf16.msra.mxu0 0
      %4006 = vmatprep.subr.bf16.mxu0 0
      %4007 = vmatpush2.bf16.msra.mxu0 0
      %4008 = vmatprep.subr.bf16.mxu0 0
      %4009 = vmatpush2.bf16.msra.mxu0 0
      %4010 = vmatprep.subr.bf16.mxu0 0
      %4011 = vmatpush2.bf16.msra.mxu0 0
      %4012 = vmatprep.subr.bf16.mxu0 0
      %4013 = vmatpush2.bf16.msra.mxu0 0
      %4014 = vmatprep.subr.bf16.mxu0 0
      %4015 = vmatpush2.bf16.msra.mxu0 0
      %4016 = vmatprep.subr.bf16.mxu0 0
      %4017 = vmatpush2.bf16.msra.mxu0 0
      %4018 = vmatprep.mubr.bf16.mxu0 0
      %4019 = vmatmul.mubr.bf16.gmra.mxu0 %v3867
      %v4020 = vpop.f32.mrf.mxu0
      %v4021 = vadd.f32 %v3925, %v4020
      %v4022 = vpop.f32.mrf.mxu0
      %v4023 = vpop.f32.mrf.mxu0
      %v4024 = vadd.f32 %v3928, %v4023
      %v4025 = vpop.f32.mrf.mxu0
      %4026 = vmatprep.mubr.bf16.mxu0 0
      %4027 = vmatmul.mubr.bf16.gmra.mxu0 %v3870
      %v4028 = vpop.f32.mrf.mxu0
      %v4029 = vadd.f32 %v3933, %v4028
      %v4030 = vpop.f32.mrf.mxu0
      %v4031 = vpop.f32.mrf.mxu0
      %v4032 = vadd.f32 %v3936, %v4031
      %v4033 = vpop.f32.mrf.mxu0
      %4034 = vmatprep.mubr.bf16.mxu0 0
      %4035 = vmatmul.mubr.bf16.gmra.mxu0 %v3873
      %v4036 = vpop.f32.mrf.mxu0
      %v4037 = vadd.f32 %v3941, %v4036
      %v4038 = vpop.f32.mrf.mxu0
      %v4039 = vpop.f32.mrf.mxu0
      %v4040 = vadd.f32 %v3944, %v4039
      %v4041 = vpop.f32.mrf.mxu0
      %4042 = vmatprep.mubr.bf16.mxu0 0
      %4043 = vmatmul.mubr.bf16.gmra.mxu0 %v3876
      %v4044 = vpop.f32.mrf.mxu0
      %v4045 = vadd.f32 %v3949, %v4044
      %v4046 = vpop.f32.mrf.mxu0
      %v4047 = vpop.f32.mrf.mxu0
      %v4048 = vadd.f32 %v3952, %v4047
      %v4049 = vpop.f32.mrf.mxu0
      %4050 = vmatprep.mubr.bf16.mxu0 0
      %4051 = vmatmul.mubr.bf16.gmra.mxu0 %v3879
      %v4052 = vpop.f32.mrf.mxu0
      %v4053 = vadd.f32 %v3957, %v4052
      %v4054 = vpop.f32.mrf.mxu0
      %v4055 = vpop.f32.mrf.mxu0
      %v4056 = vadd.f32 %v3960, %v4055
      %v4057 = vpop.f32.mrf.mxu0
      %4058 = vmatprep.mubr.bf16.mxu0 0
      %4059 = vmatmul.mubr.bf16.gmra.mxu0 %v3882
      %v4060 = vpop.f32.mrf.mxu0
      %v4061 = vadd.f32 %v3965, %v4060
      %v4062 = vpop.f32.mrf.mxu0
      %v4063 = vpop.f32.mrf.mxu0
      %v4064 = vadd.f32 %v3968, %v4063
      %v4065 = vpop.f32.mrf.mxu0
      %4066 = vmatprep.mubr.bf16.mxu0 0
      %4067 = vmatmul.mubr.bf16.gmra.mxu0 %v3885
      %v4068 = vpop.f32.mrf.mxu0
      %v4069 = vadd.f32 %v3973, %v4068
      %v4070 = vpop.f32.mrf.mxu0
      %v4071 = vpop.f32.mrf.mxu0
      %v4072 = vadd.f32 %v3976, %v4071
      %v4073 = vpop.f32.mrf.mxu0
      %4074 = vmatprep.mubr.bf16.mxu0 0
      %4075 = vmatmul.mubr.bf16.gmra.mxu0 %v3888
      %v4076 = vpop.f32.mrf.mxu0
      %v4077 = vadd.f32 %v3981, %v4076
      %v4078 = vpop.f32.mrf.mxu0
      %v4079 = vpop.f32.mrf.mxu0
      %v4080 = vpop.f32.mrf.mxu0
      %4081 = vdwg.mxu0
      %v4082 = vmax.f32 %v4021, 0.0
      %v4083 = vmax.f32 %v4024, 0.0
      %v4084 = vmax.f32 %v4029, 0.0
      %v4085 = vmax.f32 %v4032, 0.0
      %v4086 = vmax.f32 %v4037, 0.0
      %v4087 = vmax.f32 %v4040, 0.0
      %v4088 = vmax.f32 %v4045, 0.0
      %v4089 = vmax.f32 %v4048, 0.0
      %v4090 = vmax.f32 %v4053, 0.0
      %v4091 = vmax.f32 %v4056, 0.0
      %v4092 = vmax.f32 %v4061, 0.0
      %v4093 = vmax.f32 %v4064, 0.0
      %v4094 = vmax.f32 %v4069, 0.0
      %v4095 = vmax.f32 %v4072, 0.0
      %v4096 = vmax.f32 %v4077, 0.0
      %v4097 = vpack.c.bf16 %v4083, %v4082
      %v4098 = vpack.c.bf16 %v4085, %v4084
      %v4099 = vpack.c.bf16 %v4087, %v4086
      %v4100 = vpack.c.bf16 %v4089, %v4088
      %v4101 = vpack.c.bf16 %v4091, %v4090
      %v4102 = vpack.c.bf16 %v4093, %v4092
      %v4103 = vpack.c.bf16 %v4095, %v4094
      %v4104 = vpack.c.bf16 %v4096, %v4096
      %v4106 = vshrl.u32 %v4097, 16
      %v4108 = vshll.u32 %v4097, 16
      %v4110 = vrot.slane %v4108, 1
      %v4111 = vor.u32 %v4106, %v4110
      %v4113 = vshll.u32 %v4098, 16
      %v4115 = vrot.slane %v4113, 1
      %v4116 = vsel %vm1402, %v4111, %v4115
      %v4117 = vshrl.u32 %v4098, 16
      %v4119 = vor.u32 %v4117, %v4115
      %v4121 = vshll.u32 %v4099, 16
      %v4123 = vrot.slane %v4121, 1
      %v4124 = vsel %vm1402, %v4119, %v4123
      %v4125 = vshrl.u32 %v4099, 16
      %v4127 = vor.u32 %v4125, %v4123
      %v4129 = vshll.u32 %v4100, 16
      %v4131 = vrot.slane %v4129, 1
      %v4132 = vsel %vm1402, %v4127, %v4131
      %v4133 = vshrl.u32 %v4100, 16
      %v4135 = vor.u32 %v4133, %v4131
      %v4137 = vshll.u32 %v4101, 16
      %v4139 = vrot.slane %v4137, 1
      %v4140 = vsel %vm1402, %v4135, %v4139
      %v4141 = vshrl.u32 %v4101, 16
      %v4143 = vor.u32 %v4141, %v4139
      %v4145 = vshll.u32 %v4102, 16
      %v4147 = vrot.slane %v4145, 1
      %v4148 = vsel %vm1402, %v4143, %v4147
      %v4149 = vshrl.u32 %v4102, 16
      %v4151 = vor.u32 %v4149, %v4147
      %v4153 = vshll.u32 %v4103, 16
      %v4155 = vrot.slane %v4153, 1
      %v4156 = vsel %vm1402, %v4151, %v4155
      %v4157 = vshrl.u32 %v4103, 16
      %v4159 = vor.u32 %v4157, %v4155
      %v4174 = vrot.slane %v4097, 1
      %v4175 = vrot.slane %v4098, 1
      %v4176 = vsel %vm1578, %v4174, %v4175
      %v4177 = vrot.slane %v4099, 1
      %v4178 = vsel %vm1578, %v4175, %v4177
      %v4179 = vrot.slane %v4100, 1
      %v4180 = vsel %vm1578, %v4177, %v4179
      %v4181 = vrot.slane %v4101, 1
      %v4182 = vsel %vm1578, %v4179, %v4181
      %v4183 = vrot.slane %v4102, 1
      %v4184 = vsel %vm1578, %v4181, %v4183
      %v4185 = vrot.slane %v4103, 1
      %v4186 = vsel %vm1578, %v4183, %v4185
      %v4194 = vrot.slane %v4106, 1
      %v4195 = vrot.slane %v4108, 2
      %v4196 = vor.u32 %v4194, %v4195
      %v4197 = vrot.slane %v4117, 1
      %v4198 = vrot.slane %v4113, 2
      %v4199 = vor.u32 %v4197, %v4198
      %v4200 = vsel %vm1642, %v4196, %v4199
      %v4201 = vrot.slane %v4125, 1
      %v4202 = vrot.slane %v4121, 2
      %v4203 = vor.u32 %v4201, %v4202
      %v4204 = vsel %vm1642, %v4199, %v4203
      %v4205 = vrot.slane %v4133, 1
      %v4206 = vrot.slane %v4129, 2
      %v4207 = vor.u32 %v4205, %v4206
      %v4208 = vsel %vm1642, %v4203, %v4207
      %v4209 = vrot.slane %v4141, 1
      %v4210 = vrot.slane %v4137, 2
      %v4211 = vor.u32 %v4209, %v4210
      %v4212 = vsel %vm1642, %v4207, %v4211
      %v4213 = vrot.slane %v4149, 1
      %v4214 = vrot.slane %v4145, 2
      %v4215 = vor.u32 %v4213, %v4214
      %v4216 = vsel %vm1642, %v4211, %v4215
      %v4217 = vrot.slane %v4157, 1
      %v4218 = vrot.slane %v4153, 2
      %v4219 = vor.u32 %v4217, %v4218
      %v4220 = vsel %vm1642, %v4215, %v4219
      %v4228 = vrot.slane %v4097, 2
      %v4229 = vrot.slane %v4098, 2
      %v4230 = vsel %vm1738, %v4228, %v4229
      %v4231 = vrot.slane %v4099, 2
      %v4232 = vsel %vm1738, %v4229, %v4231
      %v4233 = vrot.slane %v4100, 2
      %v4234 = vsel %vm1738, %v4231, %v4233
      %v4235 = vrot.slane %v4101, 2
      %v4236 = vsel %vm1738, %v4233, %v4235
      %v4237 = vrot.slane %v4102, 2
      %v4238 = vsel %vm1738, %v4235, %v4237
      %v4239 = vrot.slane %v4103, 2
      %v4240 = vsel %vm1738, %v4237, %v4239
      %v4248 = vrot.slane %v4106, 2
      %v4249 = vrot.slane %v4108, 3
      %v4250 = vor.u32 %v4248, %v4249
      %v4251 = vrot.slane %v4117, 2
      %v4252 = vrot.slane %v4113, 3
      %v4253 = vor.u32 %v4251, %v4252
      %v4254 = vsel %vm1802, %v4250, %v4253
      %v4255 = vrot.slane %v4125, 2
      %v4256 = vrot.slane %v4121, 3
      %v4257 = vor.u32 %v4255, %v4256
      %v4258 = vsel %vm1802, %v4253, %v4257
      %v4259 = vrot.slane %v4133, 2
      %v4260 = vrot.slane %v4129, 3
      %v4261 = vor.u32 %v4259, %v4260
      %v4262 = vsel %vm1802, %v4257, %v4261
      %v4263 = vrot.slane %v4141, 2
      %v4264 = vrot.slane %v4137, 3
      %v4265 = vor.u32 %v4263, %v4264
      %v4266 = vsel %vm1802, %v4261, %v4265
      %v4267 = vrot.slane %v4149, 2
      %v4268 = vrot.slane %v4145, 3
      %v4269 = vor.u32 %v4267, %v4268
      %v4270 = vsel %vm1802, %v4265, %v4269
      %v4271 = vrot.slane %v4157, 2
      %v4272 = vrot.slane %v4153, 3
      %v4273 = vor.u32 %v4271, %v4272
      %v4274 = vsel %vm1802, %v4269, %v4273
      %v4282 = vrot.slane %v4097, 3
      %v4283 = vrot.slane %v4098, 3
      %v4284 = vsel %vm1898, %v4282, %v4283
      %v4285 = vrot.slane %v4099, 3
      %v4286 = vsel %vm1898, %v4283, %v4285
      %v4287 = vrot.slane %v4100, 3
      %v4288 = vsel %vm1898, %v4285, %v4287
      %v4289 = vrot.slane %v4101, 3
      %v4290 = vsel %vm1898, %v4287, %v4289
      %v4291 = vrot.slane %v4102, 3
      %v4292 = vsel %vm1898, %v4289, %v4291
      %v4293 = vrot.slane %v4103, 3
      %v4294 = vsel %vm1898, %v4291, %v4293
      %vm4302 = vsmask.f32 4352
      %v4303 = vrot.slane %v4106, 3
      %v4304 = vrot.slane %v4108, 4
      %v4305 = vor.u32 %v4303, %v4304
      %v4306 = vrot.slane %v4117, 3
      %v4307 = vrot.slane %v4113, 4
      %v4308 = vor.u32 %v4306, %v4307
      %v4309 = vsel %vm4302, %v4305, %v4308
      %v4310 = vrot.slane %v4125, 3
      %v4311 = vrot.slane %v4121, 4
      %v4312 = vor.u32 %v4310, %v4311
      %v4313 = vsel %vm4302, %v4308, %v4312
      %v4314 = vrot.slane %v4133, 3
      %v4315 = vrot.slane %v4129, 4
      %v4316 = vor.u32 %v4314, %v4315
      %v4317 = vsel %vm4302, %v4312, %v4316
      %v4318 = vrot.slane %v4141, 3
      %v4319 = vrot.slane %v4137, 4
      %v4320 = vor.u32 %v4318, %v4319
      %v4321 = vsel %vm4302, %v4316, %v4320
      %v4322 = vrot.slane %v4149, 3
      %v4323 = vrot.slane %v4145, 4
      %v4324 = vor.u32 %v4322, %v4323
      %v4325 = vsel %vm4302, %v4320, %v4324
      %v4326 = vrot.slane %v4157, 3
      %v4327 = vrot.slane %v4153, 4
      %v4328 = vor.u32 %v4326, %v4327
      %v4329 = vsel %vm4302, %v4324, %v4328
      %vm4338 = vcmask 1043456
      %v4339 = vrot.slane %v4097, 4
      %v4340 = vrot.slane %v4098, 4
      %v4341 = vsel %vm4338, %v4339, %v4340
      %v4342 = vrot.slane %v4099, 4
      %v4343 = vsel %vm4338, %v4340, %v4342
      %v4344 = vrot.slane %v4100, 4
      %v4345 = vsel %vm4338, %v4342, %v4344
      %v4346 = vrot.slane %v4101, 4
      %v4347 = vsel %vm4338, %v4344, %v4346
      %v4348 = vrot.slane %v4102, 4
      %v4349 = vsel %vm4338, %v4346, %v4348
      %v4350 = vrot.slane %v4103, 4
      %v4351 = vsel %vm4338, %v4348, %v4350
      %v4352 = vrot.slane %v4104, 4
      %v4353 = vsel %vm4338, %v4350, %v4352
      %vm4361 = vsmask.f32 3328
      %v4362 = vrot.slane %v4106, 4
      %v4363 = vrot.slane %v4108, 5
      %v4364 = vor.u32 %v4362, %v4363
      %v4365 = vrot.slane %v4117, 4
      %v4366 = vrot.slane %v4113, 5
      %v4367 = vor.u32 %v4365, %v4366
      %v4368 = vsel %vm4361, %v4364, %v4367
      %v4369 = vrot.slane %v4125, 4
      %v4370 = vrot.slane %v4121, 5
      %v4371 = vor.u32 %v4369, %v4370
      %v4372 = vsel %vm4361, %v4367, %v4371
      %v4373 = vrot.slane %v4133, 4
      %v4374 = vrot.slane %v4129, 5
      %v4375 = vor.u32 %v4373, %v4374
      %v4376 = vsel %vm4361, %v4371, %v4375
      %v4377 = vrot.slane %v4141, 4
      %v4378 = vrot.slane %v4137, 5
      %v4379 = vor.u32 %v4377, %v4378
      %v4380 = vsel %vm4361, %v4375, %v4379
      %v4381 = vrot.slane %v4149, 4
      %v4382 = vrot.slane %v4145, 5
      %v4383 = vor.u32 %v4381, %v4382
      %v4384 = vsel %vm4361, %v4379, %v4383
      %v4385 = vrot.slane %v4157, 4
      %v4386 = vrot.slane %v4153, 5
      %v4387 = vor.u32 %v4385, %v4386
      %v4388 = vsel %vm4361, %v4383, %v4387
      %v4390 = vshrl.u32 %v4104, 16
      %v4392 = vrot.slane %v4390, 4
      %v4393 = vshll.u32 %v4104, 16
      %v4395 = vrot.slane %v4393, 5
      %v4396 = vor.u32 %v4392, %v4395
      %v4397 = vsel %vm4361, %v4387, %v4396
      %v4405 = vld [vmem:[%s7] sm:$0xf]
      %v4406 = vld [vmem:[%s7 + $0x4] sm:$0xf]
      %v4407 = vld [vmem:[%s7 + $0x8] sm:$0xf]
      %v4408 = vld [vmem:[%s7 + $0xc] sm:$0xf]
      %v4409 = vld [vmem:[%s7 + $0x10] sm:$0xf]
      %v4410 = vld [vmem:[%s7 + $0x14] sm:$0xf]
      %v4411 = vld [vmem:[%s7 + $0x18] sm:$0xf]
      %v4412 = vld [vmem:[%s7 + $0x1c] sm:$0xf]
      %v4413 = vld [vmem:[%s7 + $0x20] sm:$0xf]
      %v4414 = vld [vmem:[%s7 + $0x24] sm:$0xf]
      %v4415 = vld [vmem:[%s7 + $0x28] sm:$0xf]
      %v4416 = vld [vmem:[%s7 + $0x2c] sm:$0xf]
      %v4417 = vld [vmem:[%s7 + $0x30] sm:$0xf]
      %v4418 = vld [vmem:[%s7 + $0x34] sm:$0xf]
      %v4419 = vld [vmem:[%s7 + $0x38] sm:$0xf]
      %v4420 = vld [vmem:[%s7 + $0x3c] sm:$0xf]
      %v4421 = vld [vmem:[%s7 + $0x40] sm:$0xf]
      %v4422 = vld [vmem:[%s7 + $0x44] sm:$0xf]
      %v4423 = vld [vmem:[%s7 + $0x48] sm:$0xf]
      %v4424 = vld [vmem:[%s7 + $0x4c] sm:$0xf]
      %v4425 = vld [vmem:[%s7 + $0x50] sm:$0xf]
      %v4426 = vld [vmem:[%s7 + $0x54] sm:$0xf]
      %v4427 = vld [vmem:[%s7 + $0x58] sm:$0xf]
      %v4428 = vld [vmem:[%s7 + $0x5c] sm:$0xf]
      %v4429 = vld [vmem:[%s7 + $0x60] sm:$0xf]
      %v4430 = vld [vmem:[%s7 + $0x64] sm:$0xf]
      %v4431 = vld [vmem:[%s7 + $0x68] sm:$0xf]
      %v4432 = vld [vmem:[%s7 + $0x6c] sm:$0xf]
      %v4433 = vld [vmem:[%s7 + $0x70] sm:$0xf]
      %v4434 = vld [vmem:[%s7 + $0x74] sm:$0xf]
      %v4435 = vld [vmem:[%s7 + $0x78] sm:$0xf]
      %v4436 = vld [vmem:[%s7 + $0x7c] sm:$0xf]
      %v4437 = vld [vmem:[%s7 + $0x80] sm:$0xf]
      %v4438 = vld [vmem:[%s7 + $0x84] sm:$0xf]
      %v4439 = vld [vmem:[%s7 + $0x88] sm:$0xf]
      %v4440 = vld [vmem:[%s7 + $0x8c] sm:$0xf]
      %v4441 = vld [vmem:[%s7 + $0x90] sm:$0xf]
      %v4442 = vld [vmem:[%s7 + $0x94] sm:$0xf]
      %v4443 = vld [vmem:[%s7 + $0x98] sm:$0xf]
      %v4444 = vld [vmem:[%s7 + $0x9c] sm:$0xf]
      %v4445 = vld [vmem:[%s7 + $0xa0] sm:$0xf]
      %v4446 = vld [vmem:[%s7 + $0xa4] sm:$0xf]
      %v4447 = vld [vmem:[%s7 + $0xa8] sm:$0xf]
      %v4448 = vld [vmem:[%s7 + $0xac] sm:$0xf]
      %v4449 = vld [vmem:[%s7 + $0xb0] sm:$0xf]
      %v4450 = vld [vmem:[%s7 + $0xb4] sm:$0xf]
      %v4451 = vld [vmem:[%s7 + $0xb8] sm:$0xf]
      %v4452 = vld [vmem:[%s7 + $0xbc] sm:$0xf]
      %v4453 = vld [vmem:[%s7 + $0xc0] sm:$0xf]
      %v4454 = vld [vmem:[%s7 + $0xc4] sm:$0xf]
      %v4455 = vld [vmem:[%s7 + $0xc8] sm:$0xf]
      %v4456 = vld [vmem:[%s7 + $0xcc] sm:$0xf]
      %v4457 = vld [vmem:[%s7 + $0xd0] sm:$0xf]
      %v4458 = vld [vmem:[%s7 + $0xd4] sm:$0xf]
      %v4459 = vld [vmem:[%s7 + $0xd8] sm:$0xf]
      %v4460 = vld [vmem:[%s7 + $0xdc] sm:$0xf]
      %v4461 = vld [vmem:[%s7 + $0xe0] sm:$0xf]
      %v4462 = vld [vmem:[%s7 + $0xe4] sm:$0xf]
      %v4463 = vld [vmem:[%s7 + $0xe8] sm:$0xf]
      %v4464 = vld [vmem:[%s7 + $0xec] sm:$0xf]
      %v4465 = vld [vmem:[%s7 + $0xf0] sm:$0xf]
      %v4466 = vld [vmem:[%s7 + $0xf4] sm:$0xf]
      %v4467 = vld [vmem:[%s7 + $0xf8] sm:$0xf]
      %v4468 = vld [vmem:[%s7 + $0xfc] sm:$0xf]
      %v4469 = vld [vmem:[%s7 + $0x100] sm:$0xf]
      %v4470 = vld [vmem:[%s7 + $0x104] sm:$0xf]
      %v4471 = vld [vmem:[%s7 + $0x108] sm:$0xf]
      %v4472 = vld [vmem:[%s7 + $0x10c] sm:$0xf]
      %v4473 = vld [vmem:[%s7 + $0x110] sm:$0xf]
      %v4474 = vld [vmem:[%s7 + $0x114] sm:$0xf]
      %v4475 = vld [vmem:[%s7 + $0x118] sm:$0xf]
      %v4476 = vld [vmem:[%s7 + $0x11c] sm:$0xf]
      %v4477 = vld [vmem:[%s7 + $0x120] sm:$0xf]
      %v4478 = vld [vmem:[%s7 + $0x124] sm:$0xf]
      %v4479 = vld [vmem:[%s7 + $0x128] sm:$0xf]
      %v4480 = vld [vmem:[%s7 + $0x12c] sm:$0xf]
      %v4481 = vld [vmem:[%s7 + $0x130] sm:$0xf]
      %v4482 = vld [vmem:[%s7 + $0x134] sm:$0xf]
      %v4483 = vld [vmem:[%s7 + $0x138] sm:$0xf]
      %v4484 = vld [vmem:[%s7 + $0x13c] sm:$0xf]
      %v4485 = vld [vmem:[%s7 + $0x140] sm:$0xf]
      %v4486 = vld [vmem:[%s7 + $0x144] sm:$0xf]
      %v4487 = vld [vmem:[%s7 + $0x148] sm:$0xf]
      %v4488 = vld [vmem:[%s7 + $0x14c] sm:$0xf]
      %v4489 = vld [vmem:[%s7 + $0x150] sm:$0xf]
      %v4490 = vld [vmem:[%s7 + $0x154] sm:$0xf]
      %v4491 = vld [vmem:[%s7 + $0x158] sm:$0xf]
      %v4492 = vld [vmem:[%s7 + $0x15c] sm:$0xf]
      %v4493 = vld [vmem:[%s7 + $0x160] sm:$0xf]
      %v4494 = vld [vmem:[%s7 + $0x164] sm:$0xf]
      %v4495 = vld [vmem:[%s7 + $0x168] sm:$0xf]
      %v4496 = vld [vmem:[%s7 + $0x16c] sm:$0xf]
      %v4497 = vld [vmem:[%s7 + $0x170] sm:$0xf]
      %v4498 = vld [vmem:[%s7 + $0x174] sm:$0xf]
      %v4499 = vld [vmem:[%s7 + $0x178] sm:$0xf]
      %v4500 = vld [vmem:[%s7 + $0x17c] sm:$0xf]
      %v4501 = vld [vmem:[%s7 + $0x180] sm:$0xf]
      %v4502 = vld [vmem:[%s7 + $0x184] sm:$0xf]
      %v4503 = vld [vmem:[%s7 + $0x188] sm:$0xf]
      %v4504 = vld [vmem:[%s7 + $0x18c] sm:$0xf]
      %v4505 = vld [vmem:[%s7 + $0x190] sm:$0xf]
      %v4506 = vld [vmem:[%s7 + $0x194] sm:$0xf]
      %v4507 = vld [vmem:[%s7 + $0x198] sm:$0xf]
      %v4508 = vld [vmem:[%s7 + $0x19c] sm:$0xf]
      %v4509 = vld [vmem:[%s7 + $0x1a0] sm:$0xf]
      %v4510 = vld [vmem:[%s7 + $0x1a4] sm:$0xf]
      %v4511 = vld [vmem:[%s7 + $0x1a8] sm:$0xf]
      %v4512 = vld [vmem:[%s7 + $0x1ac] sm:$0xf]
      %v4513 = vld [vmem:[%s7 + $0x1b0] sm:$0xf]
      %v4514 = vld [vmem:[%s7 + $0x1b4] sm:$0xf]
      %v4515 = vld [vmem:[%s7 + $0x1b8] sm:$0xf]
      %v4516 = vld [vmem:[%s7 + $0x1bc] sm:$0xf]
      %v4517 = vld [vmem:[%s7 + $0x1c0] sm:$0xf]
      %v4518 = vld [vmem:[%s7 + $0x1c4] sm:$0xf]
      %v4519 = vld [vmem:[%s7 + $0x1c8] sm:$0xf]
      %v4520 = vld [vmem:[%s7 + $0x1cc] sm:$0xf]
      %v4521 = vld [vmem:[%s7 + $0x1d0] sm:$0xf]
      %v4522 = vld [vmem:[%s7 + $0x1d4] sm:$0xf]
      %v4523 = vld [vmem:[%s7 + $0x1d8] sm:$0xf]
      %v4524 = vld [vmem:[%s7 + $0x1dc] sm:$0xf]
      %v4525 = vld [vmem:[%s7 + $0x1e0] sm:$0xf]
      %v4526 = vld [vmem:[%s7 + $0x1e4] sm:$0xf]
      %v4527 = vld [vmem:[%s7 + $0x1e8] sm:$0xf]
      %v4528 = vld [vmem:[%s7 + $0x1ec] sm:$0xf]
      %v4529 = vld [vmem:[%s7 + $0x1f0] sm:$0xf]
      %v4530 = vld [vmem:[%s7 + $0x1f4] sm:$0xf]
      %v4531 = vld [vmem:[%s7 + $0x1f8] sm:$0xf]
      %v4532 = vld [vmem:[%s7 + $0x1fc] sm:$0xf]
      %v4533 = vld [vmem:[%s7 + $0x200] sm:$0xf]
      %v4534 = vld [vmem:[%s7 + $0x204] sm:$0xf]
      %v4535 = vld [vmem:[%s7 + $0x208] sm:$0xf]
      %v4536 = vld [vmem:[%s7 + $0x20c] sm:$0xf]
      %v4537 = vld [vmem:[%s7 + $0x210] sm:$0xf]
      %v4538 = vld [vmem:[%s7 + $0x214] sm:$0xf]
      %v4539 = vld [vmem:[%s7 + $0x218] sm:$0xf]
      %v4540 = vld [vmem:[%s7 + $0x21c] sm:$0xf]
      %v4541 = vld [vmem:[%s7 + $0x220] sm:$0xf]
      %v4542 = vld [vmem:[%s7 + $0x224] sm:$0xf]
      %v4543 = vld [vmem:[%s7 + $0x228] sm:$0xf]
      %v4544 = vld [vmem:[%s7 + $0x22c] sm:$0xf]
      %v4545 = vld [vmem:[%s7 + $0x230] sm:$0xf]
      %v4546 = vld [vmem:[%s7 + $0x234] sm:$0xf]
      %v4547 = vld [vmem:[%s7 + $0x238] sm:$0xf]
      %v4548 = vld [vmem:[%s7 + $0x23c] sm:$0xf]
      %v4549 = vld [vmem:[%s7 + $0x240] sm:$0xf]
      %v4550 = vld [vmem:[%s7 + $0x244] sm:$0xf]
      %v4551 = vld [vmem:[%s7 + $0x248] sm:$0xf]
      %v4552 = vld [vmem:[%s7 + $0x24c] sm:$0xf]
      %v4553 = vld [vmem:[%s7 + $0x250] sm:$0xf]
      %v4554 = vld [vmem:[%s7 + $0x254] sm:$0xf]
      %v4555 = vld [vmem:[%s7 + $0x258] sm:$0xf]
      %v4556 = vld [vmem:[%s7 + $0x25c] sm:$0xf]
      %v4557 = vld [vmem:[%s7 + $0x260] sm:$0xf]
      %v4558 = vld [vmem:[%s7 + $0x264] sm:$0xf]
      %v4559 = vld [vmem:[%s7 + $0x268] sm:$0xf]
      %v4560 = vld [vmem:[%s7 + $0x26c] sm:$0xf]
      %v4561 = vld [vmem:[%s7 + $0x270] sm:$0xf]
      %v4562 = vld [vmem:[%s7 + $0x274] sm:$0xf]
      %v4563 = vld [vmem:[%s7 + $0x278] sm:$0xf]
      %v4564 = vld [vmem:[%s7 + $0x27c] sm:$0xf]
      %v4565 = vld [vmem:[%s8] sm:$0x1]
      %v4567 = vlaneseq
      %v4568 = vshrl.u32 %v4567, 7
      %v4569 = vsub.s32 0, %v4568
      %v4570 = vrot.slane %v4565, %v4569
      %v4732 = vunpack.c.l.b16 %v4405
      %v4733 = vunpack.c.l.b16 %v4406
      %v4734 = vunpack.c.l.b16 %v4407
      %v4735 = vunpack.c.l.b16 %v4408
      %v4736 = vunpack.c.l.b16 %v4409
      %v4737 = vunpack.c.l.b16 %v4410
      %v4738 = vunpack.c.l.b16 %v4411
      %v4739 = vunpack.c.l.b16 %v4412
      %v4740 = vunpack.c.l.b16 %v4413
      %v4741 = vunpack.c.l.b16 %v4414
      %v4742 = vunpack.c.l.b16 %v4415
      %v4743 = vunpack.c.l.b16 %v4416
      %v4744 = vunpack.c.l.b16 %v4417
      %v4745 = vunpack.c.l.b16 %v4418
      %v4746 = vunpack.c.l.b16 %v4419
      %v4747 = vunpack.c.l.b16 %v4420
      %v4748 = vunpack.c.l.b16 %v4421
      %v4749 = vunpack.c.l.b16 %v4422
      %v4750 = vunpack.c.l.b16 %v4423
      %v4751 = vunpack.c.l.b16 %v4424
      %v4752 = vunpack.c.l.b16 %v4425
      %v4753 = vunpack.c.l.b16 %v4426
      %v4754 = vunpack.c.l.b16 %v4427
      %v4755 = vunpack.c.l.b16 %v4428
      %v4756 = vunpack.c.l.b16 %v4429
      %v4757 = vunpack.c.l.b16 %v4430
      %v4758 = vunpack.c.l.b16 %v4431
      %v4759 = vunpack.c.l.b16 %v4432
      %v4760 = vunpack.c.l.b16 %v4433
      %v4761 = vunpack.c.l.b16 %v4434
      %v4762 = vunpack.c.l.b16 %v4435
      %v4763 = vunpack.c.l.b16 %v4436
      %v4764 = vunpack.c.l.b16 %v4437
      %v4765 = vunpack.c.l.b16 %v4438
      %v4766 = vunpack.c.l.b16 %v4439
      %v4767 = vunpack.c.l.b16 %v4440
      %v4768 = vunpack.c.l.b16 %v4441
      %v4769 = vunpack.c.l.b16 %v4442
      %v4770 = vunpack.c.l.b16 %v4443
      %v4771 = vunpack.c.l.b16 %v4444
      %v4772 = vunpack.c.l.b16 %v4445
      %v4773 = vunpack.c.l.b16 %v4446
      %v4774 = vunpack.c.l.b16 %v4447
      %v4775 = vunpack.c.l.b16 %v4448
      %v4776 = vunpack.c.l.b16 %v4449
      %v4777 = vunpack.c.l.b16 %v4450
      %v4778 = vunpack.c.l.b16 %v4451
      %v4779 = vunpack.c.l.b16 %v4452
      %v4780 = vunpack.c.l.b16 %v4453
      %v4781 = vunpack.c.l.b16 %v4454
      %v4782 = vunpack.c.l.b16 %v4455
      %v4783 = vunpack.c.l.b16 %v4456
      %v4784 = vunpack.c.l.b16 %v4457
      %v4785 = vunpack.c.l.b16 %v4458
      %v4786 = vunpack.c.l.b16 %v4459
      %v4787 = vunpack.c.l.b16 %v4460
      %v4788 = vunpack.c.l.b16 %v4461
      %v4789 = vunpack.c.l.b16 %v4462
      %v4790 = vunpack.c.l.b16 %v4463
      %v4791 = vunpack.c.l.b16 %v4464
      %v4792 = vunpack.c.l.b16 %v4465
      %v4793 = vunpack.c.l.b16 %v4466
      %v4794 = vunpack.c.l.b16 %v4467
      %v4795 = vunpack.c.l.b16 %v4468
      %v4796 = vunpack.c.l.b16 %v4469
      %v4797 = vunpack.c.l.b16 %v4470
      %v4798 = vunpack.c.l.b16 %v4471
      %v4799 = vunpack.c.l.b16 %v4472
      %v4800 = vunpack.c.l.b16 %v4473
      %v4801 = vunpack.c.l.b16 %v4474
      %v4802 = vunpack.c.l.b16 %v4475
      %v4803 = vunpack.c.l.b16 %v4476
      %v4804 = vunpack.c.l.b16 %v4477
      %v4805 = vunpack.c.l.b16 %v4478
      %v4806 = vunpack.c.l.b16 %v4479
      %v4807 = vunpack.c.l.b16 %v4480
      %v4808 = vunpack.c.l.b16 %v4481
      %v4809 = vunpack.c.l.b16 %v4482
      %v4810 = vunpack.c.l.b16 %v4483
      %v4811 = vunpack.c.l.b16 %v4484
      %v4812 = vunpack.c.l.b16 %v4485
      %v4813 = vunpack.c.l.b16 %v4486
      %v4814 = vunpack.c.l.b16 %v4487
      %v4815 = vunpack.c.l.b16 %v4488
      %v4816 = vunpack.c.l.b16 %v4489
      %v4817 = vunpack.c.l.b16 %v4490
      %v4818 = vunpack.c.l.b16 %v4491
      %v4819 = vunpack.c.l.b16 %v4492
      %v4820 = vunpack.c.l.b16 %v4493
      %v4821 = vunpack.c.l.b16 %v4494
      %v4822 = vunpack.c.l.b16 %v4495
      %v4823 = vunpack.c.l.b16 %v4496
      %v4824 = vunpack.c.l.b16 %v4497
      %v4825 = vunpack.c.l.b16 %v4498
      %v4826 = vunpack.c.l.b16 %v4499
      %v4827 = vunpack.c.l.b16 %v4500
      %v4828 = vunpack.c.l.b16 %v4501
      %v4829 = vunpack.c.l.b16 %v4502
      %v4830 = vunpack.c.l.b16 %v4503
      %v4831 = vunpack.c.l.b16 %v4504
      %v4832 = vunpack.c.l.b16 %v4505
      %v4833 = vunpack.c.l.b16 %v4506
      %v4834 = vunpack.c.l.b16 %v4507
      %v4835 = vunpack.c.l.b16 %v4508
      %v4836 = vunpack.c.l.b16 %v4509
      %v4837 = vunpack.c.l.b16 %v4510
      %v4838 = vunpack.c.l.b16 %v4511
      %v4839 = vunpack.c.l.b16 %v4512
      %v4840 = vunpack.c.l.b16 %v4513
      %v4841 = vunpack.c.l.b16 %v4514
      %v4842 = vunpack.c.l.b16 %v4515
      %v4843 = vunpack.c.l.b16 %v4516
      %v4844 = vunpack.c.l.b16 %v4517
      %v4845 = vunpack.c.l.b16 %v4518
      %v4846 = vunpack.c.l.b16 %v4519
      %v4847 = vunpack.c.l.b16 %v4520
      %v4848 = vunpack.c.l.b16 %v4521
      %v4849 = vunpack.c.l.b16 %v4522
      %v4850 = vunpack.c.l.b16 %v4523
      %v4851 = vunpack.c.l.b16 %v4524
      %v4852 = vunpack.c.l.b16 %v4525
      %v4853 = vunpack.c.l.b16 %v4526
      %v4854 = vunpack.c.l.b16 %v4527
      %v4855 = vunpack.c.l.b16 %v4528
      %v4856 = vunpack.c.l.b16 %v4529
      %v4857 = vunpack.c.l.b16 %v4530
      %v4858 = vunpack.c.l.b16 %v4531
      %v4859 = vunpack.c.l.b16 %v4532
      %v4860 = vunpack.c.l.b16 %v4533
      %v4861 = vunpack.c.l.b16 %v4534
      %v4862 = vunpack.c.l.b16 %v4535
      %v4863 = vunpack.c.l.b16 %v4536
      %v4864 = vunpack.c.l.b16 %v4537
      %v4865 = vunpack.c.l.b16 %v4538
      %v4866 = vunpack.c.l.b16 %v4539
      %v4867 = vunpack.c.l.b16 %v4540
      %v4868 = vunpack.c.l.b16 %v4541
      %v4869 = vunpack.c.l.b16 %v4542
      %v4870 = vunpack.c.l.b16 %v4543
      %v4871 = vunpack.c.l.b16 %v4544
      %v4872 = vunpack.c.l.b16 %v4545
      %v4873 = vunpack.c.l.b16 %v4546
      %v4874 = vunpack.c.l.b16 %v4547
      %v4875 = vunpack.c.l.b16 %v4548
      %v4876 = vunpack.c.l.b16 %v4549
      %v4877 = vunpack.c.l.b16 %v4550
      %v4878 = vunpack.c.l.b16 %v4551
      %v4879 = vunpack.c.l.b16 %v4552
      %v4880 = vunpack.c.l.b16 %v4553
      %v4881 = vunpack.c.l.b16 %v4554
      %v4882 = vunpack.c.l.b16 %v4555
      %v4883 = vunpack.c.l.b16 %v4556
      %v4884 = vunpack.c.l.b16 %v4557
      %v4885 = vunpack.c.l.b16 %v4558
      %v4886 = vunpack.c.l.b16 %v4559
      %v4887 = vunpack.c.l.b16 %v4560
      %v4888 = vunpack.c.l.b16 %v4561
      %v4889 = vunpack.c.l.b16 %v4562
      %v4890 = vunpack.c.l.b16 %v4563
      %v4891 = vunpack.c.l.b16 %v4564
      %v4892 = vpack.c.b16 %v4733, %v4732
      %v4893 = vpack.c.b16 %v4735, %v4734
      %v4894 = vpack.c.b16 %v4737, %v4736
      %v4895 = vpack.c.b16 %v4739, %v4738
      %v4896 = vpack.c.b16 %v4741, %v4740
      %v4897 = vpack.c.b16 %v4743, %v4742
      %v4898 = vpack.c.b16 %v4745, %v4744
      %v4899 = vpack.c.b16 %v4747, %v4746
      %v4900 = vpack.c.b16 %v4749, %v4748
      %v4901 = vpack.c.b16 %v4751, %v4750
      %v4902 = vpack.c.b16 %v4753, %v4752
      %v4903 = vpack.c.b16 %v4755, %v4754
      %v4904 = vpack.c.b16 %v4757, %v4756
      %v4905 = vpack.c.b16 %v4759, %v4758
      %v4906 = vpack.c.b16 %v4761, %v4760
      %v4907 = vpack.c.b16 %v4763, %v4762
      %v4908 = vpack.c.b16 %v4765, %v4764
      %v4909 = vpack.c.b16 %v4767, %v4766
      %v4910 = vpack.c.b16 %v4769, %v4768
      %v4911 = vpack.c.b16 %v4771, %v4770
      %v4912 = vpack.c.b16 %v4773, %v4772
      %v4913 = vpack.c.b16 %v4775, %v4774
      %v4914 = vpack.c.b16 %v4777, %v4776
      %v4915 = vpack.c.b16 %v4779, %v4778
      %v4916 = vpack.c.b16 %v4781, %v4780
      %v4917 = vpack.c.b16 %v4783, %v4782
      %v4918 = vpack.c.b16 %v4785, %v4784
      %v4919 = vpack.c.b16 %v4787, %v4786
      %v4920 = vpack.c.b16 %v4789, %v4788
      %v4921 = vpack.c.b16 %v4791, %v4790
      %v4922 = vpack.c.b16 %v4793, %v4792
      %v4923 = vpack.c.b16 %v4795, %v4794
      %v4924 = vpack.c.b16 %v4797, %v4796
      %v4925 = vpack.c.b16 %v4799, %v4798
      %v4926 = vpack.c.b16 %v4801, %v4800
      %v4927 = vpack.c.b16 %v4803, %v4802
      %v4928 = vpack.c.b16 %v4805, %v4804
      %v4929 = vpack.c.b16 %v4807, %v4806
      %v4930 = vpack.c.b16 %v4809, %v4808
      %v4931 = vpack.c.b16 %v4811, %v4810
      %v4932 = vpack.c.b16 %v4813, %v4812
      %v4933 = vpack.c.b16 %v4815, %v4814
      %v4934 = vpack.c.b16 %v4817, %v4816
      %v4935 = vpack.c.b16 %v4819, %v4818
      %v4936 = vpack.c.b16 %v4821, %v4820
      %v4937 = vpack.c.b16 %v4823, %v4822
      %v4938 = vpack.c.b16 %v4825, %v4824
      %v4939 = vpack.c.b16 %v4827, %v4826
      %v4940 = vpack.c.b16 %v4829, %v4828
      %v4941 = vpack.c.b16 %v4831, %v4830
      %v4942 = vpack.c.b16 %v4833, %v4832
      %v4943 = vpack.c.b16 %v4835, %v4834
      %v4944 = vpack.c.b16 %v4837, %v4836
      %v4945 = vpack.c.b16 %v4839, %v4838
      %v4946 = vpack.c.b16 %v4841, %v4840
      %v4947 = vpack.c.b16 %v4843, %v4842
      %v4948 = vpack.c.b16 %v4845, %v4844
      %v4949 = vpack.c.b16 %v4847, %v4846
      %v4950 = vpack.c.b16 %v4849, %v4848
      %v4951 = vpack.c.b16 %v4851, %v4850
      %v4952 = vpack.c.b16 %v4853, %v4852
      %v4953 = vpack.c.b16 %v4855, %v4854
      %v4954 = vpack.c.b16 %v4857, %v4856
      %v4955 = vpack.c.b16 %v4859, %v4858
      %v4956 = vpack.c.b16 %v4861, %v4860
      %v4957 = vpack.c.b16 %v4863, %v4862
      %v4958 = vpack.c.b16 %v4865, %v4864
      %v4959 = vpack.c.b16 %v4867, %v4866
      %v4960 = vpack.c.b16 %v4869, %v4868
      %v4961 = vpack.c.b16 %v4871, %v4870
      %v4962 = vpack.c.b16 %v4873, %v4872
      %v4963 = vpack.c.b16 %v4875, %v4874
      %v4964 = vpack.c.b16 %v4877, %v4876
      %v4965 = vpack.c.b16 %v4879, %v4878
      %v4966 = vpack.c.b16 %v4881, %v4880
      %v4967 = vpack.c.b16 %v4883, %v4882
      %v4968 = vpack.c.b16 %v4885, %v4884
      %v4969 = vpack.c.b16 %v4887, %v4886
      %v4970 = vpack.c.b16 %v4889, %v4888
      %v4971 = vpack.c.b16 %v4891, %v4890
      %5052 = vmatprep.subr.bf16.mxu0 0
      %5053 = vmatpush1.bf16.msra.mxu0 %v4899
      %5054 = vmatprep.subr.bf16.mxu0 0
      %5055 = vmatpush1.bf16.msra.mxu0 %v4898
      %5056 = vmatprep.subr.bf16.mxu0 0
      %5057 = vmatpush1.bf16.msra.mxu0 %v4897
      %5058 = vmatprep.subr.bf16.mxu0 0
      %5059 = vmatpush1.bf16.msra.mxu0 %v4896
      %5060 = vmatprep.subr.bf16.mxu0 0
      %5061 = vmatpush1.bf16.msra.mxu0 %v4895
      %5062 = vmatprep.subr.bf16.mxu0 0
      %5063 = vmatpush1.bf16.msra.mxu0 %v4894
      %5064 = vmatprep.subr.bf16.mxu0 0
      %5065 = vmatpush1.bf16.msra.mxu0 %v4893
      %5066 = vmatprep.subr.bf16.mxu0 0
      %5067 = vmatpush1.bf16.msra.mxu0 %v4892
      %5068 = vmatprep.subr.bf16.mxu0 0
      %5069 = vmatpush2.bf16.msra.mxu0 %v4907
      %5070 = vmatprep.subr.bf16.mxu0 0
      %5071 = vmatpush2.bf16.msra.mxu0 %v4906
      %5072 = vmatprep.subr.bf16.mxu0 0
      %5073 = vmatpush2.bf16.msra.mxu0 %v4905
      %5074 = vmatprep.subr.bf16.mxu0 0
      %5075 = vmatpush2.bf16.msra.mxu0 %v4904
      %5076 = vmatprep.subr.bf16.mxu0 0
      %5077 = vmatpush2.bf16.msra.mxu0 %v4903
      %5078 = vmatprep.subr.bf16.mxu0 0
      %5079 = vmatpush2.bf16.msra.mxu0 %v4902
      %5080 = vmatprep.subr.bf16.mxu0 0
      %5081 = vmatpush2.bf16.msra.mxu0 %v4901
      %5082 = vmatprep.subr.bf16.mxu0 0
      %5083 = vmatpush2.bf16.msra.mxu0 %v4900
      %5084 = vmatprep.mubr.bf16.mxu0 %v4116
      %5085 = vmatmul.mubr.bf16.gmra.mxu0 %v4097
      %v5086 = vpop.f32.mrf.mxu0
      %v5087 = vadd.f32 %v4570, %v5086
      %v5088 = vpop.f32.mrf.mxu0
      %v5089 = vpop.f32.mrf.mxu0
      %v5090 = vadd.f32 %v4570, %v5089
      %v5091 = vpop.f32.mrf.mxu0
      %5092 = vmatprep.mubr.bf16.mxu0 %v4124
      %5093 = vmatmul.mubr.bf16.gmra.mxu0 %v4098
      %v5094 = vpop.f32.mrf.mxu0
      %v5095 = vadd.f32 %v4570, %v5094
      %v5096 = vpop.f32.mrf.mxu0
      %v5097 = vpop.f32.mrf.mxu0
      %v5098 = vadd.f32 %v4570, %v5097
      %v5099 = vpop.f32.mrf.mxu0
      %5100 = vmatprep.mubr.bf16.mxu0 %v4132
      %5101 = vmatmul.mubr.bf16.gmra.mxu0 %v4099
      %v5102 = vpop.f32.mrf.mxu0
      %v5103 = vadd.f32 %v4570, %v5102
      %v5104 = vpop.f32.mrf.mxu0
      %v5105 = vpop.f32.mrf.mxu0
      %v5106 = vadd.f32 %v4570, %v5105
      %v5107 = vpop.f32.mrf.mxu0
      %5108 = vmatprep.mubr.bf16.mxu0 %v4140
      %5109 = vmatmul.mubr.bf16.gmra.mxu0 %v4100
      %v5110 = vpop.f32.mrf.mxu0
      %v5111 = vadd.f32 %v4570, %v5110
      %v5112 = vpop.f32.mrf.mxu0
      %v5113 = vpop.f32.mrf.mxu0
      %v5114 = vadd.f32 %v4570, %v5113
      %v5115 = vpop.f32.mrf.mxu0
      %5116 = vmatprep.mubr.bf16.mxu0 %v4148
      %5117 = vmatmul.mubr.bf16.gmra.mxu0 %v4101
      %v5118 = vpop.f32.mrf.mxu0
      %v5119 = vadd.f32 %v4570, %v5118
      %v5120 = vpop.f32.mrf.mxu0
      %v5121 = vpop.f32.mrf.mxu0
      %v5122 = vadd.f32 %v4570, %v5121
      %v5123 = vpop.f32.mrf.mxu0
      %5124 = vmatprep.mubr.bf16.mxu0 %v4156
      %5125 = vmatmul.mubr.bf16.gmra.mxu0 %v4102
      %v5126 = vpop.f32.mrf.mxu0
      %v5127 = vadd.f32 %v4570, %v5126
      %v5128 = vpop.f32.mrf.mxu0
      %v5129 = vpop.f32.mrf.mxu0
      %v5130 = vadd.f32 %v4570, %v5129
      %v5131 = vpop.f32.mrf.mxu0
      %5132 = vmatprep.mubr.bf16.mxu0 %v4159
      %5133 = vmatmul.mubr.bf16.gmra.mxu0 %v4103
      %v5134 = vpop.f32.mrf.mxu0
      %v5135 = vadd.f32 %v4570, %v5134
      %v5136 = vpop.f32.mrf.mxu0
      %v5137 = vpop.f32.mrf.mxu0
      %v5138 = vadd.f32 %v4570, %v5137
      %v5139 = vpop.f32.mrf.mxu0
      %5140 = vdwg.mxu0
      %5141 = vmatprep.subr.bf16.mxu0 0
      %5142 = vmatpush1.bf16.msra.mxu0 %v4915
      %5143 = vmatprep.subr.bf16.mxu0 0
      %5144 = vmatpush1.bf16.msra.mxu0 %v4914
      %5145 = vmatprep.subr.bf16.mxu0 0
      %5146 = vmatpush1.bf16.msra.mxu0 %v4913
      %5147 = vmatprep.subr.bf16.mxu0 0
      %5148 = vmatpush1.bf16.msra.mxu0 %v4912
      %5149 = vmatprep.subr.bf16.mxu0 0
      %5150 = vmatpush1.bf16.msra.mxu0 %v4911
      %5151 = vmatprep.subr.bf16.mxu0 0
      %5152 = vmatpush1.bf16.msra.mxu0 %v4910
      %5153 = vmatprep.subr.bf16.mxu0 0
      %5154 = vmatpush1.bf16.msra.mxu0 %v4909
      %5155 = vmatprep.subr.bf16.mxu0 0
      %5156 = vmatpush1.bf16.msra.mxu0 %v4908
      %5157 = vmatprep.subr.bf16.mxu0 0
      %5158 = vmatpush2.bf16.msra.mxu0 %v4923
      %5159 = vmatprep.subr.bf16.mxu0 0
      %5160 = vmatpush2.bf16.msra.mxu0 %v4922
      %5161 = vmatprep.subr.bf16.mxu0 0
      %5162 = vmatpush2.bf16.msra.mxu0 %v4921
      %5163 = vmatprep.subr.bf16.mxu0 0
      %5164 = vmatpush2.bf16.msra.mxu0 %v4920
      %5165 = vmatprep.subr.bf16.mxu0 0
      %5166 = vmatpush2.bf16.msra.mxu0 %v4919
      %5167 = vmatprep.subr.bf16.mxu0 0
      %5168 = vmatpush2.bf16.msra.mxu0 %v4918
      %5169 = vmatprep.subr.bf16.mxu0 0
      %5170 = vmatpush2.bf16.msra.mxu0 %v4917
      %5171 = vmatprep.subr.bf16.mxu0 0
      %5172 = vmatpush2.bf16.msra.mxu0 %v4916
      %5173 = vmatprep.mubr.bf16.mxu0 %v4200
      %5174 = vmatmul.mubr.bf16.gmra.mxu0 %v4176
      %v5175 = vpop.f32.mrf.mxu0
      %v5176 = vadd.f32 %v5087, %v5175
      %v5177 = vpop.f32.mrf.mxu0
      %v5178 = vpop.f32.mrf.mxu0
      %v5179 = vadd.f32 %v5090, %v5178
      %v5180 = vpop.f32.mrf.mxu0
      %5181 = vmatprep.mubr.bf16.mxu0 %v4204
      %5182 = vmatmul.mubr.bf16.gmra.mxu0 %v4178
      %v5183 = vpop.f32.mrf.mxu0
      %v5184 = vadd.f32 %v5095, %v5183
      %v5185 = vpop.f32.mrf.mxu0
      %v5186 = vpop.f32.mrf.mxu0
      %v5187 = vadd.f32 %v5098, %v5186
      %v5188 = vpop.f32.mrf.mxu0
      %5189 = vmatprep.mubr.bf16.mxu0 %v4208
      %5190 = vmatmul.mubr.bf16.gmra.mxu0 %v4180
      %v5191 = vpop.f32.mrf.mxu0
      %v5192 = vadd.f32 %v5103, %v5191
      %v5193 = vpop.f32.mrf.mxu0
      %v5194 = vpop.f32.mrf.mxu0
      %v5195 = vadd.f32 %v5106, %v5194
      %v5196 = vpop.f32.mrf.mxu0
      %5197 = vmatprep.mubr.bf16.mxu0 %v4212
      %5198 = vmatmul.mubr.bf16.gmra.mxu0 %v4182
      %v5199 = vpop.f32.mrf.mxu0
      %v5200 = vadd.f32 %v5111, %v5199
      %v5201 = vpop.f32.mrf.mxu0
      %v5202 = vpop.f32.mrf.mxu0
      %v5203 = vadd.f32 %v5114, %v5202
      %v5204 = vpop.f32.mrf.mxu0
      %5205 = vmatprep.mubr.bf16.mxu0 %v4216
      %5206 = vmatmul.mubr.bf16.gmra.mxu0 %v4184
      %v5207 = vpop.f32.mrf.mxu0
      %v5208 = vadd.f32 %v5119, %v5207
      %v5209 = vpop.f32.mrf.mxu0
      %v5210 = vpop.f32.mrf.mxu0
      %v5211 = vadd.f32 %v5122, %v5210
      %v5212 = vpop.f32.mrf.mxu0
      %5213 = vmatprep.mubr.bf16.mxu0 %v4220
      %5214 = vmatmul.mubr.bf16.gmra.mxu0 %v4186
      %v5215 = vpop.f32.mrf.mxu0
      %v5216 = vadd.f32 %v5127, %v5215
      %v5217 = vpop.f32.mrf.mxu0
      %v5218 = vpop.f32.mrf.mxu0
      %v5219 = vadd.f32 %v5130, %v5218
      %v5220 = vpop.f32.mrf.mxu0
      %5221 = vmatprep.mubr.bf16.mxu0 %v4219
      %5222 = vmatmul.mubr.bf16.gmra.mxu0 %v4185
      %v5223 = vpop.f32.mrf.mxu0
      %v5224 = vadd.f32 %v5135, %v5223
      %v5225 = vpop.f32.mrf.mxu0
      %v5226 = vpop.f32.mrf.mxu0
      %v5227 = vadd.f32 %v5138, %v5226
      %v5228 = vpop.f32.mrf.mxu0
      %5229 = vdwg.mxu0
      %5230 = vmatprep.subr.bf16.mxu0 0
      %5231 = vmatpush1.bf16.msra.mxu0 %v4931
      %5232 = vmatprep.subr.bf16.mxu0 0
      %5233 = vmatpush1.bf16.msra.mxu0 %v4930
      %5234 = vmatprep.subr.bf16.mxu0 0
      %5235 = vmatpush1.bf16.msra.mxu0 %v4929
      %5236 = vmatprep.subr.bf16.mxu0 0
      %5237 = vmatpush1.bf16.msra.mxu0 %v4928
      %5238 = vmatprep.subr.bf16.mxu0 0
      %5239 = vmatpush1.bf16.msra.mxu0 %v4927
      %5240 = vmatprep.subr.bf16.mxu0 0
      %5241 = vmatpush1.bf16.msra.mxu0 %v4926
      %5242 = vmatprep.subr.bf16.mxu0 0
      %5243 = vmatpush1.bf16.msra.mxu0 %v4925
      %5244 = vmatprep.subr.bf16.mxu0 0
      %5245 = vmatpush1.bf16.msra.mxu0 %v4924
      %5246 = vmatprep.subr.bf16.mxu0 0
      %5247 = vmatpush2.bf16.msra.mxu0 %v4939
      %5248 = vmatprep.subr.bf16.mxu0 0
      %5249 = vmatpush2.bf16.msra.mxu0 %v4938
      %5250 = vmatprep.subr.bf16.mxu0 0
      %5251 = vmatpush2.bf16.msra.mxu0 %v4937
      %5252 = vmatprep.subr.bf16.mxu0 0
      %5253 = vmatpush2.bf16.msra.mxu0 %v4936
      %5254 = vmatprep.subr.bf16.mxu0 0
      %5255 = vmatpush2.bf16.msra.mxu0 %v4935
      %5256 = vmatprep.subr.bf16.mxu0 0
      %5257 = vmatpush2.bf16.msra.mxu0 %v4934
      %5258 = vmatprep.subr.bf16.mxu0 0
      %5259 = vmatpush2.bf16.msra.mxu0 %v4933
      %5260 = vmatprep.subr.bf16.mxu0 0
      %5261 = vmatpush2.bf16.msra.mxu0 %v4932
      %5262 = vmatprep.mubr.bf16.mxu0 %v4254
      %5263 = vmatmul.mubr.bf16.gmra.mxu0 %v4230
      %v5264 = vpop.f32.mrf.mxu0
      %v5265 = vadd.f32 %v5176, %v5264
      %v5266 = vpop.f32.mrf.mxu0
      %v5267 = vpop.f32.mrf.mxu0
      %v5268 = vadd.f32 %v5179, %v5267
      %v5269 = vpop.f32.mrf.mxu0
      %5270 = vmatprep.mubr.bf16.mxu0 %v4258
      %5271 = vmatmul.mubr.bf16.gmra.mxu0 %v4232
      %v5272 = vpop.f32.mrf.mxu0
      %v5273 = vadd.f32 %v5184, %v5272
      %v5274 = vpop.f32.mrf.mxu0
      %v5275 = vpop.f32.mrf.mxu0
      %v5276 = vadd.f32 %v5187, %v5275
      %v5277 = vpop.f32.mrf.mxu0
      %5278 = vmatprep.mubr.bf16.mxu0 %v4262
      %5279 = vmatmul.mubr.bf16.gmra.mxu0 %v4234
      %v5280 = vpop.f32.mrf.mxu0
      %v5281 = vadd.f32 %v5192, %v5280
      %v5282 = vpop.f32.mrf.mxu0
      %v5283 = vpop.f32.mrf.mxu0
      %v5284 = vadd.f32 %v5195, %v5283
      %v5285 = vpop.f32.mrf.mxu0
      %5286 = vmatprep.mubr.bf16.mxu0 %v4266
      %5287 = vmatmul.mubr.bf16.gmra.mxu0 %v4236
      %v5288 = vpop.f32.mrf.mxu0
      %v5289 = vadd.f32 %v5200, %v5288
      %v5290 = vpop.f32.mrf.mxu0
      %v5291 = vpop.f32.mrf.mxu0
      %v5292 = vadd.f32 %v5203, %v5291
      %v5293 = vpop.f32.mrf.mxu0
      %5294 = vmatprep.mubr.bf16.mxu0 %v4270
      %5295 = vmatmul.mubr.bf16.gmra.mxu0 %v4238
      %v5296 = vpop.f32.mrf.mxu0
      %v5297 = vadd.f32 %v5208, %v5296
      %v5298 = vpop.f32.mrf.mxu0
      %v5299 = vpop.f32.mrf.mxu0
      %v5300 = vadd.f32 %v5211, %v5299
      %v5301 = vpop.f32.mrf.mxu0
      %5302 = vmatprep.mubr.bf16.mxu0 %v4274
      %5303 = vmatmul.mubr.bf16.gmra.mxu0 %v4240
      %v5304 = vpop.f32.mrf.mxu0
      %v5305 = vadd.f32 %v5216, %v5304
      %v5306 = vpop.f32.mrf.mxu0
      %v5307 = vpop.f32.mrf.mxu0
      %v5308 = vadd.f32 %v5219, %v5307
      %v5309 = vpop.f32.mrf.mxu0
      %5310 = vmatprep.mubr.bf16.mxu0 %v4273
      %5311 = vmatmul.mubr.bf16.gmra.mxu0 %v4239
      %v5312 = vpop.f32.mrf.mxu0
      %v5313 = vadd.f32 %v5224, %v5312
      %v5314 = vpop.f32.mrf.mxu0
      %v5315 = vpop.f32.mrf.mxu0
      %v5316 = vadd.f32 %v5227, %v5315
      %v5317 = vpop.f32.mrf.mxu0
      %5318 = vdwg.mxu0
      %5319 = vmatprep.subr.bf16.mxu0 0
      %5320 = vmatpush1.bf16.msra.mxu0 %v4947
      %5321 = vmatprep.subr.bf16.mxu0 0
      %5322 = vmatpush1.bf16.msra.mxu0 %v4946
      %5323 = vmatprep.subr.bf16.mxu0 0
      %5324 = vmatpush1.bf16.msra.mxu0 %v4945
      %5325 = vmatprep.subr.bf16.mxu0 0
      %5326 = vmatpush1.bf16.msra.mxu0 %v4944
      %5327 = vmatprep.subr.bf16.mxu0 0
      %5328 = vmatpush1.bf16.msra.mxu0 %v4943
      %5329 = vmatprep.subr.bf16.mxu0 0
      %5330 = vmatpush1.bf16.msra.mxu0 %v4942
      %5331 = vmatprep.subr.bf16.mxu0 0
      %5332 = vmatpush1.bf16.msra.mxu0 %v4941
      %5333 = vmatprep.subr.bf16.mxu0 0
      %5334 = vmatpush1.bf16.msra.mxu0 %v4940
      %5335 = vmatprep.subr.bf16.mxu0 0
      %5336 = vmatpush2.bf16.msra.mxu0 %v4955
      %5337 = vmatprep.subr.bf16.mxu0 0
      %5338 = vmatpush2.bf16.msra.mxu0 %v4954
      %5339 = vmatprep.subr.bf16.mxu0 0
      %5340 = vmatpush2.bf16.msra.mxu0 %v4953
      %5341 = vmatprep.subr.bf16.mxu0 0
      %5342 = vmatpush2.bf16.msra.mxu0 %v4952
      %5343 = vmatprep.subr.bf16.mxu0 0
      %5344 = vmatpush2.bf16.msra.mxu0 %v4951
      %5345 = vmatprep.subr.bf16.mxu0 0
      %5346 = vmatpush2.bf16.msra.mxu0 %v4950
      %5347 = vmatprep.subr.bf16.mxu0 0
      %5348 = vmatpush2.bf16.msra.mxu0 %v4949
      %5349 = vmatprep.subr.bf16.mxu0 0
      %5350 = vmatpush2.bf16.msra.mxu0 %v4948
      %5351 = vmatprep.mubr.bf16.mxu0 %v4309
      %5352 = vmatmul.mubr.bf16.gmra.mxu0 %v4284
      %v5353 = vpop.f32.mrf.mxu0
      %v5354 = vadd.f32 %v5265, %v5353
      %v5355 = vpop.f32.mrf.mxu0
      %v5356 = vpop.f32.mrf.mxu0
      %v5357 = vadd.f32 %v5268, %v5356
      %v5358 = vpop.f32.mrf.mxu0
      %5359 = vmatprep.mubr.bf16.mxu0 %v4313
      %5360 = vmatmul.mubr.bf16.gmra.mxu0 %v4286
      %v5361 = vpop.f32.mrf.mxu0
      %v5362 = vadd.f32 %v5273, %v5361
      %v5363 = vpop.f32.mrf.mxu0
      %v5364 = vpop.f32.mrf.mxu0
      %v5365 = vadd.f32 %v5276, %v5364
      %v5366 = vpop.f32.mrf.mxu0
      %5367 = vmatprep.mubr.bf16.mxu0 %v4317
      %5368 = vmatmul.mubr.bf16.gmra.mxu0 %v4288
      %v5369 = vpop.f32.mrf.mxu0
      %v5370 = vadd.f32 %v5281, %v5369
      %v5371 = vpop.f32.mrf.mxu0
      %v5372 = vpop.f32.mrf.mxu0
      %v5373 = vadd.f32 %v5284, %v5372
      %v5374 = vpop.f32.mrf.mxu0
      %5375 = vmatprep.mubr.bf16.mxu0 %v4321
      %5376 = vmatmul.mubr.bf16.gmra.mxu0 %v4290
      %v5377 = vpop.f32.mrf.mxu0
      %v5378 = vadd.f32 %v5289, %v5377
      %v5379 = vpop.f32.mrf.mxu0
      %v5380 = vpop.f32.mrf.mxu0
      %v5381 = vadd.f32 %v5292, %v5380
      %v5382 = vpop.f32.mrf.mxu0
      %5383 = vmatprep.mubr.bf16.mxu0 %v4325
      %5384 = vmatmul.mubr.bf16.gmra.mxu0 %v4292
      %v5385 = vpop.f32.mrf.mxu0
      %v5386 = vadd.f32 %v5297, %v5385
      %v5387 = vpop.f32.mrf.mxu0
      %v5388 = vpop.f32.mrf.mxu0
      %v5389 = vadd.f32 %v5300, %v5388
      %v5390 = vpop.f32.mrf.mxu0
      %5391 = vmatprep.mubr.bf16.mxu0 %v4329
      %5392 = vmatmul.mubr.bf16.gmra.mxu0 %v4294
      %v5393 = vpop.f32.mrf.mxu0
      %v5394 = vadd.f32 %v5305, %v5393
      %v5395 = vpop.f32.mrf.mxu0
      %v5396 = vpop.f32.mrf.mxu0
      %v5397 = vadd.f32 %v5308, %v5396
      %v5398 = vpop.f32.mrf.mxu0
      %5399 = vmatprep.mubr.bf16.mxu0 %v4328
      %5400 = vmatmul.mubr.bf16.gmra.mxu0 %v4293
      %v5401 = vpop.f32.mrf.mxu0
      %v5402 = vadd.f32 %v5313, %v5401
      %v5403 = vpop.f32.mrf.mxu0
      %v5404 = vpop.f32.mrf.mxu0
      %v5405 = vadd.f32 %v5316, %v5404
      %v5406 = vpop.f32.mrf.mxu0
      %5407 = vdwg.mxu0
      %5408 = vmatprep.subr.bf16.mxu0 0
      %5409 = vmatpush1.bf16.msra.mxu0 %v4963
      %5410 = vmatprep.subr.bf16.mxu0 0
      %5411 = vmatpush1.bf16.msra.mxu0 %v4962
      %5412 = vmatprep.subr.bf16.mxu0 0
      %5413 = vmatpush1.bf16.msra.mxu0 %v4961
      %5414 = vmatprep.subr.bf16.mxu0 0
      %5415 = vmatpush1.bf16.msra.mxu0 %v4960
      %5416 = vmatprep.subr.bf16.mxu0 0
      %5417 = vmatpush1.bf16.msra.mxu0 %v4959
      %5418 = vmatprep.subr.bf16.mxu0 0
      %5419 = vmatpush1.bf16.msra.mxu0 %v4958
      %5420 = vmatprep.subr.bf16.mxu0 0
      %5421 = vmatpush1.bf16.msra.mxu0 %v4957
      %5422 = vmatprep.subr.bf16.mxu0 0
      %5423 = vmatpush1.bf16.msra.mxu0 %v4956
      %5424 = vmatprep.subr.bf16.mxu0 0
      %5425 = vmatpush2.bf16.msra.mxu0 %v4971
      %5426 = vmatprep.subr.bf16.mxu0 0
      %5427 = vmatpush2.bf16.msra.mxu0 %v4970
      %5428 = vmatprep.subr.bf16.mxu0 0
      %5429 = vmatpush2.bf16.msra.mxu0 %v4969
      %5430 = vmatprep.subr.bf16.mxu0 0
      %5431 = vmatpush2.bf16.msra.mxu0 %v4968
      %5432 = vmatprep.subr.bf16.mxu0 0
      %5433 = vmatpush2.bf16.msra.mxu0 %v4967
      %5434 = vmatprep.subr.bf16.mxu0 0
      %5435 = vmatpush2.bf16.msra.mxu0 %v4966
      %5436 = vmatprep.subr.bf16.mxu0 0
      %5437 = vmatpush2.bf16.msra.mxu0 %v4965
      %5438 = vmatprep.subr.bf16.mxu0 0
      %5439 = vmatpush2.bf16.msra.mxu0 %v4964
      %5440 = vmatprep.mubr.bf16.mxu0 %v4368
      %5441 = vmatmul.mubr.bf16.gmra.mxu0 %v4341
      %v5442 = vpop.f32.mrf.mxu0
      %v5443 = vadd.f32 %v5354, %v5442
      %v5444 = vpop.f32.mrf.mxu0
      %v5445 = vpop.f32.mrf.mxu0
      %v5446 = vadd.f32 %v5357, %v5445
      %v5447 = vpop.f32.mrf.mxu0
      %5448 = vmatprep.mubr.bf16.mxu0 %v4372
      %5449 = vmatmul.mubr.bf16.gmra.mxu0 %v4343
      %v5450 = vpop.f32.mrf.mxu0
      %v5451 = vadd.f32 %v5362, %v5450
      %v5452 = vpop.f32.mrf.mxu0
      %v5453 = vpop.f32.mrf.mxu0
      %v5454 = vadd.f32 %v5365, %v5453
      %v5455 = vpop.f32.mrf.mxu0
      %5456 = vmatprep.mubr.bf16.mxu0 %v4376
      %5457 = vmatmul.mubr.bf16.gmra.mxu0 %v4345
      %v5458 = vpop.f32.mrf.mxu0
      %v5459 = vadd.f32 %v5370, %v5458
      %v5460 = vpop.f32.mrf.mxu0
      %v5461 = vpop.f32.mrf.mxu0
      %v5462 = vadd.f32 %v5373, %v5461
      %v5463 = vpop.f32.mrf.mxu0
      %5464 = vmatprep.mubr.bf16.mxu0 %v4380
      %5465 = vmatmul.mubr.bf16.gmra.mxu0 %v4347
      %v5466 = vpop.f32.mrf.mxu0
      %v5467 = vadd.f32 %v5378, %v5466
      %v5468 = vpop.f32.mrf.mxu0
      %v5469 = vpop.f32.mrf.mxu0
      %v5470 = vadd.f32 %v5381, %v5469
      %v5471 = vpop.f32.mrf.mxu0
      %5472 = vmatprep.mubr.bf16.mxu0 %v4384
      %5473 = vmatmul.mubr.bf16.gmra.mxu0 %v4349
      %v5474 = vpop.f32.mrf.mxu0
      %v5475 = vadd.f32 %v5386, %v5474
      %v5476 = vpop.f32.mrf.mxu0
      %v5477 = vpop.f32.mrf.mxu0
      %v5478 = vadd.f32 %v5389, %v5477
      %v5479 = vpop.f32.mrf.mxu0
      %5480 = vmatprep.mubr.bf16.mxu0 %v4388
      %5481 = vmatmul.mubr.bf16.gmra.mxu0 %v4351
      %v5482 = vpop.f32.mrf.mxu0
      %v5483 = vadd.f32 %v5394, %v5482
      %v5484 = vpop.f32.mrf.mxu0
      %v5485 = vpop.f32.mrf.mxu0
      %v5486 = vadd.f32 %v5397, %v5485
      %v5487 = vpop.f32.mrf.mxu0
      %5488 = vmatprep.mubr.bf16.mxu0 %v4397
      %5489 = vmatmul.mubr.bf16.gmra.mxu0 %v4353
      %v5490 = vpop.f32.mrf.mxu0
      %v5491 = vadd.f32 %v5402, %v5490
      %v5492 = vpop.f32.mrf.mxu0
      %v5493 = vpop.f32.mrf.mxu0
      %v5494 = vadd.f32 %v5405, %v5493
      %v5495 = vpop.f32.mrf.mxu0
      %5496 = vdwg.mxu0
      %v5497 = vmax.f32 %v5443, 0.0
      %v5498 = vmax.f32 %v5446, 0.0
      %v5499 = vmax.f32 %v5451, 0.0
      %v5500 = vmax.f32 %v5454, 0.0
      %v5501 = vmax.f32 %v5459, 0.0
      %v5502 = vmax.f32 %v5462, 0.0
      %v5503 = vmax.f32 %v5467, 0.0
      %v5504 = vmax.f32 %v5470, 0.0
      %v5505 = vmax.f32 %v5475, 0.0
      %v5506 = vmax.f32 %v5478, 0.0
      %v5507 = vmax.f32 %v5483, 0.0
      %v5508 = vmax.f32 %v5486, 0.0
      %v5509 = vmax.f32 %v5491, 0.0
      %v5510 = vmax.f32 %v5494, 0.0
      %v5511 = vpack.c.bf16 %v5498, %v5497
      %v5512 = vpack.c.bf16 %v5500, %v5499
      %v5513 = vpack.c.bf16 %v5502, %v5501
      %v5514 = vpack.c.bf16 %v5504, %v5503
      %v5515 = vpack.c.bf16 %v5506, %v5505
      %v5516 = vpack.c.bf16 %v5508, %v5507
      %v5517 = vpack.c.bf16 %v5510, %v5509
      %v5518 = vld [vmem:[%s9] sm:$0xf]
      %v5519 = vld [vmem:[%s9 + $0x4] sm:$0xf]
      %v5520 = vld [vmem:[%s9 + $0x8] sm:$0xf]
      %v5521 = vld [vmem:[%s9 + $0xc] sm:$0xf]
      %v5522 = vld [vmem:[%s9 + $0x10] sm:$0xf]
      %v5523 = vld [vmem:[%s9 + $0x14] sm:$0xf]
      %v5524 = vld [vmem:[%s9 + $0x18] sm:$0xf]
      %v5525 = vld [vmem:[%s9 + $0x1c] sm:$0xf]
      %v5526 = vld [vmem:[%s9 + $0x20] sm:$0xf]
      %v5527 = vld [vmem:[%s9 + $0x24] sm:$0xf]
      %v5528 = vld [vmem:[%s9 + $0x28] sm:$0xf]
      %v5529 = vld [vmem:[%s9 + $0x2c] sm:$0xf]
      %v5530 = vld [vmem:[%s9 + $0x30] sm:$0xf]
      %v5531 = vld [vmem:[%s9 + $0x34] sm:$0xf]
      %v5532 = vld [vmem:[%s9 + $0x38] sm:$0xf]
      %v5533 = vld [vmem:[%s9 + $0x3c] sm:$0xf]
      %v5534 = vld [vmem:[%s10] sm:$0x1]
      %v5536 = vlaneseq
      %v5537 = vshrl.u32 %v5536, 7
      %v5538 = vsub.s32 0, %v5537
      %v5539 = vrot.slane %v5534, %v5538
      %v5557 = vunpack.c.l.b16 %v5518
      %v5558 = vunpack.c.l.b16 %v5519
      %v5559 = vunpack.c.l.b16 %v5520
      %v5560 = vunpack.c.l.b16 %v5521
      %v5561 = vunpack.c.l.b16 %v5522
      %v5562 = vunpack.c.l.b16 %v5523
      %v5563 = vunpack.c.l.b16 %v5524
      %v5564 = vunpack.c.l.b16 %v5525
      %v5565 = vunpack.c.l.b16 %v5526
      %v5566 = vunpack.c.l.b16 %v5527
      %v5567 = vunpack.c.l.b16 %v5528
      %v5568 = vunpack.c.l.b16 %v5529
      %v5569 = vunpack.c.l.b16 %v5530
      %v5570 = vunpack.c.l.b16 %v5531
      %v5571 = vunpack.c.l.b16 %v5532
      %v5572 = vunpack.c.l.b16 %v5533
      %v5573 = vpack.c.b16 %v5558, %v5557
      %v5574 = vpack.c.b16 %v5560, %v5559
      %v5575 = vpack.c.b16 %v5562, %v5561
      %v5576 = vpack.c.b16 %v5564, %v5563
      %v5577 = vpack.c.b16 %v5566, %v5565
      %v5578 = vpack.c.b16 %v5568, %v5567
      %v5579 = vpack.c.b16 %v5570, %v5569
      %v5580 = vpack.c.b16 %v5572, %v5571
      %5589 = vmatprep.subr.bf16.mxu0 0
      %5590 = vmatpush1.bf16.msra.mxu0 %v5580
      %5591 = vmatprep.subr.bf16.mxu0 0
      %5592 = vmatpush1.bf16.msra.mxu0 %v5579
      %5593 = vmatprep.subr.bf16.mxu0 0
      %5594 = vmatpush1.bf16.msra.mxu0 %v5578
      %5595 = vmatprep.subr.bf16.mxu0 0
      %5596 = vmatpush1.bf16.msra.mxu0 %v5577
      %5597 = vmatprep.subr.bf16.mxu0 0
      %5598 = vmatpush1.bf16.msra.mxu0 %v5576
      %5599 = vmatprep.subr.bf16.mxu0 0
      %5600 = vmatpush1.bf16.msra.mxu0 %v5575
      %5601 = vmatprep.subr.bf16.mxu0 0
      %5602 = vmatpush1.bf16.msra.mxu0 %v5574
      %5603 = vmatprep.subr.bf16.mxu0 0
      %5604 = vmatpush1.bf16.msra.mxu0 %v5573
      %5605 = vmatprep.subr.bf16.mxu0 0
      %5606 = vmatpush2.bf16.msra.mxu0 0
      %5607 = vmatprep.subr.bf16.mxu0 0
      %5608 = vmatpush2.bf16.msra.mxu0 0
      %5609 = vmatprep.subr.bf16.mxu0 0
      %5610 = vmatpush2.bf16.msra.mxu0 0
      %5611 = vmatprep.subr.bf16.mxu0 0
      %5612 = vmatpush2.bf16.msra.mxu0 0
      %5613 = vmatprep.subr.bf16.mxu0 0
      %5614 = vmatpush2.bf16.msra.mxu0 0
      %5615 = vmatprep.subr.bf16.mxu0 0
      %5616 = vmatpush2.bf16.msra.mxu0 0
      %5617 = vmatprep.subr.bf16.mxu0 0
      %5618 = vmatpush2.bf16.msra.mxu0 0
      %5619 = vmatprep.subr.bf16.mxu0 0
      %5620 = vmatpush2.bf16.msra.mxu0 0
      %5621 = vmatprep.mubr.bf16.mxu0 0
      %5622 = vmatmul.mubr.bf16.gmra.mxu0 %v5511
      %v5623 = vpop.f32.mrf.mxu0
      %v5624 = vadd.f32 %v5539, %v5623
      %v5625 = vpop.f32.mrf.mxu0
      %v5626 = vpop.f32.mrf.mxu0
      %v5627 = vadd.f32 %v5539, %v5626
      %v5628 = vpop.f32.mrf.mxu0
      %5629 = vmatprep.mubr.bf16.mxu0 0
      %5630 = vmatmul.mubr.bf16.gmra.mxu0 %v5512
      %v5631 = vpop.f32.mrf.mxu0
      %v5632 = vadd.f32 %v5539, %v5631
      %v5633 = vpop.f32.mrf.mxu0
      %v5634 = vpop.f32.mrf.mxu0
      %v5635 = vadd.f32 %v5539, %v5634
      %v5636 = vpop.f32.mrf.mxu0
      %5637 = vmatprep.mubr.bf16.mxu0 0
      %5638 = vmatmul.mubr.bf16.gmra.mxu0 %v5513
      %v5639 = vpop.f32.mrf.mxu0
      %v5640 = vadd.f32 %v5539, %v5639
      %v5641 = vpop.f32.mrf.mxu0
      %v5642 = vpop.f32.mrf.mxu0
      %v5643 = vadd.f32 %v5539, %v5642
      %v5644 = vpop.f32.mrf.mxu0
      %5645 = vmatprep.mubr.bf16.mxu0 0
      %5646 = vmatmul.mubr.bf16.gmra.mxu0 %v5514
      %v5647 = vpop.f32.mrf.mxu0
      %v5648 = vadd.f32 %v5539, %v5647
      %v5649 = vpop.f32.mrf.mxu0
      %v5650 = vpop.f32.mrf.mxu0
      %v5651 = vadd.f32 %v5539, %v5650
      %v5652 = vpop.f32.mrf.mxu0
      %5653 = vmatprep.mubr.bf16.mxu0 0
      %5654 = vmatmul.mubr.bf16.gmra.mxu0 %v5515
      %v5655 = vpop.f32.mrf.mxu0
      %v5656 = vadd.f32 %v5539, %v5655
      %v5657 = vpop.f32.mrf.mxu0
      %v5658 = vpop.f32.mrf.mxu0
      %v5659 = vadd.f32 %v5539, %v5658
      %v5660 = vpop.f32.mrf.mxu0
      %5661 = vmatprep.mubr.bf16.mxu0 0
      %5662 = vmatmul.mubr.bf16.gmra.mxu0 %v5516
      %v5663 = vpop.f32.mrf.mxu0
      %v5664 = vadd.f32 %v5539, %v5663
      %v5665 = vpop.f32.mrf.mxu0
      %v5666 = vpop.f32.mrf.mxu0
      %v5667 = vadd.f32 %v5539, %v5666
      %v5668 = vpop.f32.mrf.mxu0
      %5669 = vmatprep.mubr.bf16.mxu0 0
      %5670 = vmatmul.mubr.bf16.gmra.mxu0 %v5517
      %v5671 = vpop.f32.mrf.mxu0
      %v5672 = vadd.f32 %v5539, %v5671
      %v5673 = vpop.f32.mrf.mxu0
      %v5674 = vpop.f32.mrf.mxu0
      %v5675 = vadd.f32 %v5539, %v5674
      %v5676 = vpop.f32.mrf.mxu0
      %5677 = vdwg.mxu0
      %v5678 = vmax.f32 %v5624, 0.0
      %v5679 = vmax.f32 %v5627, 0.0
      %v5680 = vmax.f32 %v5632, 0.0
      %v5681 = vmax.f32 %v5635, 0.0
      %v5682 = vmax.f32 %v5640, 0.0
      %v5683 = vmax.f32 %v5643, 0.0
      %v5684 = vmax.f32 %v5648, 0.0
      %v5685 = vmax.f32 %v5651, 0.0
      %v5686 = vmax.f32 %v5656, 0.0
      %v5687 = vmax.f32 %v5659, 0.0
      %v5688 = vmax.f32 %v5664, 0.0
      %v5689 = vmax.f32 %v5667, 0.0
      %v5690 = vmax.f32 %v5672, 0.0
      %v5691 = vmax.f32 %v5675, 0.0
      %v5692 = vpack.c.bf16 %v5679, %v5678
      %v5693 = vpack.c.bf16 %v5681, %v5680
      %v5694 = vpack.c.bf16 %v5683, %v5682
      %v5695 = vpack.c.bf16 %v5685, %v5684
      %v5696 = vpack.c.bf16 %v5687, %v5686
      %v5697 = vpack.c.bf16 %v5689, %v5688
      %v5698 = vpack.c.bf16 %v5691, %v5690
      %v5700 = vshrl.u32 %v5692, 16
      %v5702 = vshll.u32 %v5692, 16
      %v5704 = vrot.slane %v5702, 1
      %v5705 = vor.u32 %v5700, %v5704
      %v5707 = vshll.u32 %v5693, 16
      %v5709 = vrot.slane %v5707, 1
      %v5710 = vsel %vm1402, %v5705, %v5709
      %v5711 = vshrl.u32 %v5693, 16
      %v5713 = vor.u32 %v5711, %v5709
      %v5715 = vshll.u32 %v5694, 16
      %v5717 = vrot.slane %v5715, 1
      %v5718 = vsel %vm1402, %v5713, %v5717
      %v5719 = vshrl.u32 %v5694, 16
      %v5721 = vor.u32 %v5719, %v5717
      %v5723 = vshll.u32 %v5695, 16
      %v5725 = vrot.slane %v5723, 1
      %v5726 = vsel %vm1402, %v5721, %v5725
      %v5727 = vshrl.u32 %v5695, 16
      %v5729 = vor.u32 %v5727, %v5725
      %v5731 = vshll.u32 %v5696, 16
      %v5733 = vrot.slane %v5731, 1
      %v5734 = vsel %vm1402, %v5729, %v5733
      %v5735 = vshrl.u32 %v5696, 16
      %v5737 = vor.u32 %v5735, %v5733
      %v5739 = vshll.u32 %v5697, 16
      %v5741 = vrot.slane %v5739, 1
      %v5742 = vsel %vm1402, %v5737, %v5741
      %v5743 = vshrl.u32 %v5697, 16
      %v5745 = vor.u32 %v5743, %v5741
      %v5747 = vshll.u32 %v5698, 16
      %v5749 = vrot.slane %v5747, 1
      %v5750 = vsel %vm1402, %v5745, %v5749
      %v5751 = vshrl.u32 %v5698, 16
      %v5753 = vor.u32 %v5751, %v5749
      %5754 = vrot.lane.b32.xlu0 %v5710, 85
      %v5755 = vpop.permute.xlu0 %5754
      %5756 = vrot.lane.b32.xlu0 %v5718, 85
      %v5757 = vpop.permute.xlu0 %5756
      %5758 = vrot.lane.b32.xlu0 %v5726, 85
      %v5759 = vpop.permute.xlu0 %5758
      %5760 = vrot.lane.b32.xlu0 %v5734, 85
      %v5761 = vpop.permute.xlu0 %5760
      %5762 = vrot.lane.b32.xlu0 %v5742, 85
      %v5763 = vpop.permute.xlu0 %5762
      %5764 = vrot.lane.b32.xlu0 %v5750, 85
      %v5765 = vpop.permute.xlu0 %5764
      %5766 = vrot.lane.b32.xlu0 %v5753, 85
      %v5767 = vpop.permute.xlu0 %5766
      %v5775 = vrot.slane %v5692, 1
      %v5776 = vrot.slane %v5693, 1
      %v5777 = vsel %vm1578, %v5775, %v5776
      %v5778 = vrot.slane %v5694, 1
      %v5779 = vsel %vm1578, %v5776, %v5778
      %v5780 = vrot.slane %v5695, 1
      %v5781 = vsel %vm1578, %v5778, %v5780
      %v5782 = vrot.slane %v5696, 1
      %v5783 = vsel %vm1578, %v5780, %v5782
      %v5784 = vrot.slane %v5697, 1
      %v5785 = vsel %vm1578, %v5782, %v5784
      %v5786 = vrot.slane %v5698, 1
      %v5787 = vsel %vm1578, %v5784, %v5786
      %5788 = vrot.lane.b32.xlu0 %v5777, 42
      %v5789 = vpop.permute.xlu0 %5788
      %5790 = vrot.lane.b32.xlu0 %v5779, 42
      %v5791 = vpop.permute.xlu0 %5790
      %5792 = vrot.lane.b32.xlu0 %v5781, 42
      %v5793 = vpop.permute.xlu0 %5792
      %5794 = vrot.lane.b32.xlu0 %v5783, 42
      %v5795 = vpop.permute.xlu0 %5794
      %5796 = vrot.lane.b32.xlu0 %v5785, 42
      %v5797 = vpop.permute.xlu0 %5796
      %5798 = vrot.lane.b32.xlu0 %v5787, 42
      %v5799 = vpop.permute.xlu0 %5798
      %5800 = vrot.lane.b32.xlu0 %v5786, 42
      %v5801 = vpop.permute.xlu0 %5800
      %vm5802 = vcmask 695296
      %v5804 = vsel %vm5802, %v5692, %v5755
      %v5807 = vsel %vm5802, %v5693, %v5757
      %v5810 = vsel %vm5802, %v5694, %v5759
      %v5813 = vsel %vm5802, %v5695, %v5761
      %v5816 = vsel %vm5802, %v5696, %v5763
      %v5819 = vsel %vm5802, %v5697, %v5765
      %v5822 = vsel %vm5802, %v5698, %v5767
      %v5825 = vsel %vm2028, %v5755, %v5789
      %v5827 = vsel %vm2028, %v5757, %v5791
      %v5829 = vsel %vm2028, %v5759, %v5793
      %v5831 = vsel %vm2028, %v5761, %v5795
      %v5833 = vsel %vm2028, %v5763, %v5797
      %v5835 = vsel %vm2028, %v5765, %v5799
      %v5837 = vsel %vm2028, %v5767, %v5801
      %v5838 = vld [vmem:[%s11] sm:$0xf]
      %v5839 = vld [vmem:[%s11 + $0x4] sm:$0xf]
      %v5840 = vld [vmem:[%s11 + $0x8] sm:$0xf]
      %v5841 = vld [vmem:[%s11 + $0xc] sm:$0xf]
      %v5842 = vld [vmem:[%s11 + $0x10] sm:$0xf]
      %v5843 = vld [vmem:[%s11 + $0x14] sm:$0xf]
      %v5844 = vld [vmem:[%s11 + $0x18] sm:$0xf]
      %v5845 = vld [vmem:[%s11 + $0x1c] sm:$0xf]
      %v5846 = vld [vmem:[%s11 + $0x20] sm:$0xf]
      %v5847 = vld [vmem:[%s11 + $0x24] sm:$0xf]
      %v5848 = vld [vmem:[%s11 + $0x28] sm:$0xf]
      %v5849 = vld [vmem:[%s11 + $0x2c] sm:$0xf]
      %v5850 = vld [vmem:[%s11 + $0x30] sm:$0xf]
      %v5851 = vld [vmem:[%s11 + $0x34] sm:$0xf]
      %v5852 = vld [vmem:[%s11 + $0x38] sm:$0xf]
      %v5853 = vld [vmem:[%s11 + $0x3c] sm:$0xf]
      %v5854 = vld [vmem:[%s11 + $0x40] sm:$0xf]
      %v5855 = vld [vmem:[%s11 + $0x44] sm:$0xf]
      %v5856 = vld [vmem:[%s11 + $0x48] sm:$0xf]
      %v5857 = vld [vmem:[%s11 + $0x4c] sm:$0xf]
      %v5858 = vld [vmem:[%s11 + $0x50] sm:$0xf]
      %v5859 = vld [vmem:[%s11 + $0x54] sm:$0xf]
      %v5860 = vld [vmem:[%s11 + $0x58] sm:$0xf]
      %v5861 = vld [vmem:[%s11 + $0x5c] sm:$0xf]
      %v5862 = vld [vmem:[%s11 + $0x60] sm:$0xf]
      %v5863 = vld [vmem:[%s11 + $0x64] sm:$0xf]
      %v5864 = vld [vmem:[%s11 + $0x68] sm:$0xf]
      %v5865 = vld [vmem:[%s11 + $0x6c] sm:$0xf]
      %v5866 = vld [vmem:[%s11 + $0x70] sm:$0xf]
      %v5867 = vld [vmem:[%s11 + $0x74] sm:$0xf]
      %v5868 = vld [vmem:[%s11 + $0x78] sm:$0xf]
      %v5869 = vld [vmem:[%s11 + $0x7c] sm:$0xf]
      %v5870 = vld [vmem:[%s12] sm:$0x1]
      %v5872 = vlaneseq
      %v5873 = vshrl.u32 %v5872, 7
      %v5874 = vsub.s32 0, %v5873
      %v5875 = vrot.slane %v5870, %v5874
      %v5909 = vunpack.c.l.b16 %v5838
      %v5910 = vunpack.c.l.b16 %v5839
      %v5911 = vunpack.c.l.b16 %v5840
      %v5912 = vunpack.c.l.b16 %v5841
      %v5913 = vunpack.c.l.b16 %v5842
      %v5914 = vunpack.c.l.b16 %v5843
      %v5915 = vunpack.c.l.b16 %v5844
      %v5916 = vunpack.c.l.b16 %v5845
      %v5917 = vunpack.c.l.b16 %v5846
      %v5918 = vunpack.c.l.b16 %v5847
      %v5919 = vunpack.c.l.b16 %v5848
      %v5920 = vunpack.c.l.b16 %v5849
      %v5921 = vunpack.c.l.b16 %v5850
      %v5922 = vunpack.c.l.b16 %v5851
      %v5923 = vunpack.c.l.b16 %v5852
      %v5924 = vunpack.c.l.b16 %v5853
      %v5925 = vunpack.c.l.b16 %v5854
      %v5926 = vunpack.c.l.b16 %v5855
      %v5927 = vunpack.c.l.b16 %v5856
      %v5928 = vunpack.c.l.b16 %v5857
      %v5929 = vunpack.c.l.b16 %v5858
      %v5930 = vunpack.c.l.b16 %v5859
      %v5931 = vunpack.c.l.b16 %v5860
      %v5932 = vunpack.c.l.b16 %v5861
      %v5933 = vunpack.c.l.b16 %v5862
      %v5934 = vunpack.c.l.b16 %v5863
      %v5935 = vunpack.c.l.b16 %v5864
      %v5936 = vunpack.c.l.b16 %v5865
      %v5937 = vunpack.c.l.b16 %v5866
      %v5938 = vunpack.c.l.b16 %v5867
      %v5939 = vunpack.c.l.b16 %v5868
      %v5940 = vunpack.c.l.b16 %v5869
      %v5941 = vpack.c.b16 %v5910, %v5909
      %v5942 = vpack.c.b16 %v5912, %v5911
      %v5943 = vpack.c.b16 %v5914, %v5913
      %v5944 = vpack.c.b16 %v5916, %v5915
      %v5945 = vpack.c.b16 %v5918, %v5917
      %v5946 = vpack.c.b16 %v5920, %v5919
      %v5947 = vpack.c.b16 %v5922, %v5921
      %v5948 = vpack.c.b16 %v5924, %v5923
      %v5949 = vpack.c.b16 %v5926, %v5925
      %v5950 = vpack.c.b16 %v5928, %v5927
      %v5951 = vpack.c.b16 %v5930, %v5929
      %v5952 = vpack.c.b16 %v5932, %v5931
      %v5953 = vpack.c.b16 %v5934, %v5933
      %v5954 = vpack.c.b16 %v5936, %v5935
      %v5955 = vpack.c.b16 %v5938, %v5937
      %v5956 = vpack.c.b16 %v5940, %v5939
      %vm5972 = vcmask 1039360
      %v5973 = vsel %vm5972, %v5825, 0
      %v5975 = vsel %vm5972, %v5827, 0
      %v5977 = vsel %vm5972, %v5829, 0
      %v5979 = vsel %vm5972, %v5831, 0
      %v5981 = vsel %vm5972, %v5833, 0
      %v5983 = vsel %vm5972, %v5835, 0
      %v5985 = vsel %vm5972, %v5837, 0
      %vm5987 = vcmask 1046528
      %vm5988 = vcmask 1047552
      %v5989 = vsel %vm5987, 4294967295, 65535
      %v5990 = vsel %vm5988, %v5989, 0
      %v5992 = vand.u32 %v5956, %v5990
      %5994 = vmatprep.subr.bf16.mxu0 0
      %5995 = vmatpush1.bf16.msra.mxu0 %v5948
      %5996 = vmatprep.subr.bf16.mxu0 0
      %5997 = vmatpush1.bf16.msra.mxu0 %v5947
      %5998 = vmatprep.subr.bf16.mxu0 0
      %5999 = vmatpush1.bf16.msra.mxu0 %v5946
      %6000 = vmatprep.subr.bf16.mxu0 0
      %6001 = vmatpush1.bf16.msra.mxu0 %v5945
      %6002 = vmatprep.subr.bf16.mxu0 0
      %6003 = vmatpush1.bf16.msra.mxu0 %v5944
      %6004 = vmatprep.subr.bf16.mxu0 0
      %6005 = vmatpush1.bf16.msra.mxu0 %v5943
      %6006 = vmatprep.subr.bf16.mxu0 0
      %6007 = vmatpush1.bf16.msra.mxu0 %v5942
      %6008 = vmatprep.subr.bf16.mxu0 0
      %6009 = vmatpush1.bf16.msra.mxu0 %v5941
      %6010 = vmatprep.subr.bf16.mxu0 0
      %6011 = vmatpush2.bf16.msra.mxu0 %v5992
      %6012 = vmatprep.subr.bf16.mxu0 0
      %6013 = vmatpush2.bf16.msra.mxu0 %v5955
      %6014 = vmatprep.subr.bf16.mxu0 0
      %6015 = vmatpush2.bf16.msra.mxu0 %v5954
      %6016 = vmatprep.subr.bf16.mxu0 0
      %6017 = vmatpush2.bf16.msra.mxu0 %v5953
      %6018 = vmatprep.subr.bf16.mxu0 0
      %6019 = vmatpush2.bf16.msra.mxu0 %v5952
      %6020 = vmatprep.subr.bf16.mxu0 0
      %6021 = vmatpush2.bf16.msra.mxu0 %v5951
      %6022 = vmatprep.subr.bf16.mxu0 0
      %6023 = vmatpush2.bf16.msra.mxu0 %v5950
      %6024 = vmatprep.subr.bf16.mxu0 0
      %6025 = vmatpush2.bf16.msra.mxu0 %v5949
      %6026 = vmatprep.mubr.bf16.mxu0 %v5973
      %6027 = vmatmul.mubr.bf16.gmra.mxu0 %v5804
      %v6028 = vpop.f32.mrf.mxu0
      %v6029 = vadd.f32 %v5875, %v6028
      %v6030 = vpop.f32.mrf.mxu0
      %v6031 = vpop.f32.mrf.mxu0
      %v6032 = vadd.f32 %v5875, %v6031
      %v6033 = vpop.f32.mrf.mxu0
      %6034 = vmatprep.mubr.bf16.mxu0 %v5975
      %6035 = vmatmul.mubr.bf16.gmra.mxu0 %v5807
      %v6036 = vpop.f32.mrf.mxu0
      %v6037 = vadd.f32 %v5875, %v6036
      %v6038 = vpop.f32.mrf.mxu0
      %v6039 = vpop.f32.mrf.mxu0
      %v6040 = vadd.f32 %v5875, %v6039
      %v6041 = vpop.f32.mrf.mxu0
      %6042 = vmatprep.mubr.bf16.mxu0 %v5977
      %6043 = vmatmul.mubr.bf16.gmra.mxu0 %v5810
      %v6044 = vpop.f32.mrf.mxu0
      %v6045 = vadd.f32 %v5875, %v6044
      %v6046 = vpop.f32.mrf.mxu0
      %v6047 = vpop.f32.mrf.mxu0
      %v6048 = vadd.f32 %v5875, %v6047
      %v6049 = vpop.f32.mrf.mxu0
      %6050 = vmatprep.mubr.bf16.mxu0 %v5979
      %6051 = vmatmul.mubr.bf16.gmra.mxu0 %v5813
      %v6052 = vpop.f32.mrf.mxu0
      %v6053 = vadd.f32 %v5875, %v6052
      %v6054 = vpop.f32.mrf.mxu0
      %v6055 = vpop.f32.mrf.mxu0
      %v6056 = vadd.f32 %v5875, %v6055
      %v6057 = vpop.f32.mrf.mxu0
      %6058 = vmatprep.mubr.bf16.mxu0 %v5981
      %6059 = vmatmul.mubr.bf16.gmra.mxu0 %v5816
      %v6060 = vpop.f32.mrf.mxu0
      %v6061 = vadd.f32 %v5875, %v6060
      %v6062 = vpop.f32.mrf.mxu0
      %v6063 = vpop.f32.mrf.mxu0
      %v6064 = vadd.f32 %v5875, %v6063
      %v6065 = vpop.f32.mrf.mxu0
      %6066 = vmatprep.mubr.bf16.mxu0 %v5983
      %6067 = vmatmul.mubr.bf16.gmra.mxu0 %v5819
      %v6068 = vpop.f32.mrf.mxu0
      %v6069 = vadd.f32 %v5875, %v6068
      %v6070 = vpop.f32.mrf.mxu0
      %v6071 = vpop.f32.mrf.mxu0
      %v6072 = vadd.f32 %v5875, %v6071
      %v6073 = vpop.f32.mrf.mxu0
      %6074 = vmatprep.mubr.bf16.mxu0 %v5985
      %6075 = vmatmul.mubr.bf16.gmra.mxu0 %v5822
      %v6076 = vpop.f32.mrf.mxu0
      %v6077 = vadd.f32 %v5875, %v6076
      %v6078 = vpop.f32.mrf.mxu0
      %v6079 = vpop.f32.mrf.mxu0
      %v6080 = vpop.f32.mrf.mxu0
      %6081 = vdwg.mxu0
      %v6082 = vmax.f32 %v6029, 0.0
      %v6083 = vmax.f32 %v6032, 0.0
      %v6084 = vmax.f32 %v6037, 0.0
      %v6085 = vmax.f32 %v6040, 0.0
      %v6086 = vmax.f32 %v6045, 0.0
      %v6087 = vmax.f32 %v6048, 0.0
      %v6088 = vmax.f32 %v6053, 0.0
      %v6089 = vmax.f32 %v6056, 0.0
      %v6090 = vmax.f32 %v6061, 0.0
      %v6091 = vmax.f32 %v6064, 0.0
      %v6092 = vmax.f32 %v6069, 0.0
      %v6093 = vmax.f32 %v6072, 0.0
      %v6094 = vmax.f32 %v6077, 0.0
      %v6095 = vpack.c.bf16 %v6083, %v6082
      %v6096 = vpack.c.bf16 %v6085, %v6084
      %v6097 = vpack.c.bf16 %v6087, %v6086
      %v6098 = vpack.c.bf16 %v6089, %v6088
      %v6099 = vpack.c.bf16 %v6091, %v6090
      %v6100 = vpack.c.bf16 %v6093, %v6092
      %v6101 = vpack.c.bf16 %v6094, %v6094
      %v6103 = vshrl.u32 %v6095, 16
      %v6105 = vshll.u32 %v6095, 16
      %v6107 = vrot.slane %v6105, 1
      %v6108 = vor.u32 %v6103, %v6107
      %v6110 = vshll.u32 %v6096, 16
      %v6112 = vrot.slane %v6110, 1
      %v6113 = vsel %vm1402, %v6108, %v6112
      %v6114 = vshrl.u32 %v6096, 16
      %v6116 = vor.u32 %v6114, %v6112
      %v6118 = vshll.u32 %v6097, 16
      %v6120 = vrot.slane %v6118, 1
      %v6121 = vsel %vm1402, %v6116, %v6120
      %v6122 = vshrl.u32 %v6097, 16
      %v6124 = vor.u32 %v6122, %v6120
      %v6126 = vshll.u32 %v6098, 16
      %v6128 = vrot.slane %v6126, 1
      %v6129 = vsel %vm1402, %v6124, %v6128
      %v6130 = vshrl.u32 %v6098, 16
      %v6132 = vor.u32 %v6130, %v6128
      %v6134 = vshll.u32 %v6099, 16
      %v6136 = vrot.slane %v6134, 1
      %v6137 = vsel %vm1402, %v6132, %v6136
      %v6138 = vshrl.u32 %v6099, 16
      %v6140 = vor.u32 %v6138, %v6136
      %v6142 = vshll.u32 %v6100, 16
      %v6144 = vrot.slane %v6142, 1
      %v6145 = vsel %vm1402, %v6140, %v6144
      %v6146 = vshrl.u32 %v6100, 16
      %v6148 = vor.u32 %v6146, %v6144
      %v6150 = vshll.u32 %v6101, 16
      %v6152 = vrot.slane %v6150, 1
      %v6153 = vsel %vm1402, %v6148, %v6152
      %v6154 = vshrl.u32 %v6101, 16
      %v6156 = vor.u32 %v6154, %v6152
      %6157 = vrot.lane.b32.xlu0 %v6113, 85
      %v6158 = vpop.permute.xlu0 %6157
      %6159 = vrot.lane.b32.xlu0 %v6121, 85
      %v6160 = vpop.permute.xlu0 %6159
      %6161 = vrot.lane.b32.xlu0 %v6129, 85
      %v6162 = vpop.permute.xlu0 %6161
      %6163 = vrot.lane.b32.xlu0 %v6137, 85
      %v6164 = vpop.permute.xlu0 %6163
      %6165 = vrot.lane.b32.xlu0 %v6145, 85
      %v6166 = vpop.permute.xlu0 %6165
      %6167 = vrot.lane.b32.xlu0 %v6153, 85
      %v6168 = vpop.permute.xlu0 %6167
      %6169 = vrot.lane.b32.xlu0 %v6156, 85
      %v6170 = vpop.permute.xlu0 %6169
      %v6178 = vrot.slane %v6095, 1
      %v6179 = vrot.slane %v6096, 1
      %v6180 = vsel %vm1578, %v6178, %v6179
      %v6181 = vrot.slane %v6097, 1
      %v6182 = vsel %vm1578, %v6179, %v6181
      %v6183 = vrot.slane %v6098, 1
      %v6184 = vsel %vm1578, %v6181, %v6183
      %v6185 = vrot.slane %v6099, 1
      %v6186 = vsel %vm1578, %v6183, %v6185
      %v6187 = vrot.slane %v6100, 1
      %v6188 = vsel %vm1578, %v6185, %v6187
      %v6189 = vrot.slane %v6101, 1
      %v6190 = vsel %vm1578, %v6187, %v6189
      %6191 = vrot.lane.b32.xlu0 %v6180, 42
      %v6192 = vpop.permute.xlu0 %6191
      %6193 = vrot.lane.b32.xlu0 %v6182, 42
      %v6194 = vpop.permute.xlu0 %6193
      %6195 = vrot.lane.b32.xlu0 %v6184, 42
      %v6196 = vpop.permute.xlu0 %6195
      %6197 = vrot.lane.b32.xlu0 %v6186, 42
      %v6198 = vpop.permute.xlu0 %6197
      %6199 = vrot.lane.b32.xlu0 %v6188, 42
      %v6200 = vpop.permute.xlu0 %6199
      %6201 = vrot.lane.b32.xlu0 %v6190, 42
      %v6202 = vpop.permute.xlu0 %6201
      %6203 = vrot.lane.b32.xlu0 %v6189, 42
      %v6204 = vpop.permute.xlu0 %6203
      %v6205 = vrot.slane %v6103, 1
      %v6206 = vrot.slane %v6105, 2
      %v6207 = vor.u32 %v6205, %v6206
      %v6208 = vrot.slane %v6114, 1
      %v6209 = vrot.slane %v6110, 2
      %v6210 = vor.u32 %v6208, %v6209
      %v6211 = vsel %vm1642, %v6207, %v6210
      %v6212 = vrot.slane %v6122, 1
      %v6213 = vrot.slane %v6118, 2
      %v6214 = vor.u32 %v6212, %v6213
      %v6215 = vsel %vm1642, %v6210, %v6214
      %v6216 = vrot.slane %v6130, 1
      %v6217 = vrot.slane %v6126, 2
      %v6218 = vor.u32 %v6216, %v6217
      %v6219 = vsel %vm1642, %v6214, %v6218
      %v6220 = vrot.slane %v6138, 1
      %v6221 = vrot.slane %v6134, 2
      %v6222 = vor.u32 %v6220, %v6221
      %v6223 = vsel %vm1642, %v6218, %v6222
      %v6224 = vrot.slane %v6146, 1
      %v6225 = vrot.slane %v6142, 2
      %v6226 = vor.u32 %v6224, %v6225
      %v6227 = vsel %vm1642, %v6222, %v6226
      %v6228 = vrot.slane %v6154, 1
      %v6229 = vrot.slane %v6150, 2
      %v6230 = vor.u32 %v6228, %v6229
      %v6231 = vsel %vm1642, %v6226, %v6230
      %6232 = vrot.lane.b32.xlu0 %v6211, 127
      %v6233 = vpop.permute.xlu0 %6232
      %6234 = vrot.lane.b32.xlu0 %v6215, 127
      %v6235 = vpop.permute.xlu0 %6234
      %6236 = vrot.lane.b32.xlu0 %v6219, 127
      %v6237 = vpop.permute.xlu0 %6236
      %6238 = vrot.lane.b32.xlu0 %v6223, 127
      %v6239 = vpop.permute.xlu0 %6238
      %6240 = vrot.lane.b32.xlu0 %v6227, 127
      %v6241 = vpop.permute.xlu0 %6240
      %6242 = vrot.lane.b32.xlu0 %v6231, 127
      %v6243 = vpop.permute.xlu0 %6242
      %6244 = vrot.lane.b32.xlu0 %v6230, 127
      %v6245 = vpop.permute.xlu0 %6244
      %v6246 = vrot.slane %v6095, 2
      %v6247 = vrot.slane %v6096, 2
      %v6248 = vsel %vm1738, %v6246, %v6247
      %v6249 = vrot.slane %v6097, 2
      %v6250 = vsel %vm1738, %v6247, %v6249
      %v6251 = vrot.slane %v6098, 2
      %v6252 = vsel %vm1738, %v6249, %v6251
      %v6253 = vrot.slane %v6099, 2
      %v6254 = vsel %vm1738, %v6251, %v6253
      %v6255 = vrot.slane %v6100, 2
      %v6256 = vsel %vm1738, %v6253, %v6255
      %v6257 = vrot.slane %v6101, 2
      %v6258 = vsel %vm1738, %v6255, %v6257
      %6259 = vrot.lane.b32.xlu0 %v6248, 84
      %v6260 = vpop.permute.xlu0 %6259
      %6261 = vrot.lane.b32.xlu0 %v6250, 84
      %v6262 = vpop.permute.xlu0 %6261
      %6263 = vrot.lane.b32.xlu0 %v6252, 84
      %v6264 = vpop.permute.xlu0 %6263
      %6265 = vrot.lane.b32.xlu0 %v6254, 84
      %v6266 = vpop.permute.xlu0 %6265
      %6267 = vrot.lane.b32.xlu0 %v6256, 84
      %v6268 = vpop.permute.xlu0 %6267
      %6269 = vrot.lane.b32.xlu0 %v6258, 84
      %v6270 = vpop.permute.xlu0 %6269
      %6271 = vrot.lane.b32.xlu0 %v6257, 84
      %v6272 = vpop.permute.xlu0 %6271
      %v6274 = vsel %vm5802, %v6095, %v6158
      %v6277 = vsel %vm5802, %v6096, %v6160
      %v6280 = vsel %vm5802, %v6097, %v6162
      %v6283 = vsel %vm5802, %v6098, %v6164
      %v6286 = vsel %vm5802, %v6099, %v6166
      %v6289 = vsel %vm5802, %v6100, %v6168
      %v6292 = vsel %vm5802, %v6101, %v6170
      %v6295 = vsel %vm2028, %v6158, %v6192
      %v6297 = vsel %vm2028, %v6160, %v6194
      %v6299 = vsel %vm2028, %v6162, %v6196
      %v6301 = vsel %vm2028, %v6164, %v6198
      %v6303 = vsel %vm2028, %v6166, %v6200
      %v6305 = vsel %vm2028, %v6168, %v6202
      %v6307 = vsel %vm2028, %v6170, %v6204
      %v6309 = vsel %vm5972, %v6295, %v6233
      %v6312 = vsel %vm5972, %v6297, %v6235
      %v6315 = vsel %vm5972, %v6299, %v6237
      %v6318 = vsel %vm5972, %v6301, %v6239
      %v6321 = vsel %vm5972, %v6303, %v6241
      %v6324 = vsel %vm5972, %v6305, %v6243
      %v6327 = vsel %vm5972, %v6307, %v6245
      %v6330 = vsel %vm2127, %v6233, %v6260
      %v6333 = vsel %vm2127, %v6235, %v6262
      %v6336 = vsel %vm2127, %v6237, %v6264
      %v6339 = vsel %vm2127, %v6239, %v6266
      %v6342 = vsel %vm2127, %v6241, %v6268
      %v6345 = vsel %vm2127, %v6243, %v6270
      %v6348 = vsel %vm2127, %v6245, %v6272
      %v6350 = vld [vmem:[%s13] sm:$0xf]
      %v6351 = vld [vmem:[%s13 + $0x4] sm:$0xf]
      %v6352 = vld [vmem:[%s13 + $0x8] sm:$0xf]
      %v6353 = vld [vmem:[%s13 + $0xc] sm:$0xf]
      %v6354 = vld [vmem:[%s13 + $0x10] sm:$0xf]
      %v6355 = vld [vmem:[%s13 + $0x14] sm:$0xf]
      %v6356 = vld [vmem:[%s13 + $0x18] sm:$0xf]
      %v6357 = vld [vmem:[%s13 + $0x1c] sm:$0xf]
      %v6358 = vld [vmem:[%s13 + $0x20] sm:$0xf]
      %v6359 = vld [vmem:[%s13 + $0x24] sm:$0xf]
      %v6360 = vld [vmem:[%s13 + $0x28] sm:$0xf]
      %v6361 = vld [vmem:[%s13 + $0x2c] sm:$0xf]
      %v6362 = vld [vmem:[%s13 + $0x30] sm:$0xf]
      %v6363 = vld [vmem:[%s13 + $0x34] sm:$0xf]
      %v6364 = vld [vmem:[%s13 + $0x38] sm:$0xf]
      %v6365 = vld [vmem:[%s13 + $0x3c] sm:$0xf]
      %v6366 = vld [vmem:[%s13 + $0x40] sm:$0xf]
      %v6367 = vld [vmem:[%s13 + $0x44] sm:$0xf]
      %v6368 = vld [vmem:[%s13 + $0x48] sm:$0xf]
      %v6369 = vld [vmem:[%s13 + $0x4c] sm:$0xf]
      %v6370 = vld [vmem:[%s13 + $0x50] sm:$0xf]
      %v6371 = vld [vmem:[%s13 + $0x54] sm:$0xf]
      %v6372 = vld [vmem:[%s13 + $0x58] sm:$0xf]
      %v6373 = vld [vmem:[%s13 + $0x5c] sm:$0xf]
      %v6374 = vld [vmem:[%s13 + $0x60] sm:$0xf]
      %v6375 = vld [vmem:[%s13 + $0x64] sm:$0xf]
      %v6376 = vld [vmem:[%s13 + $0x68] sm:$0xf]
      %v6377 = vld [vmem:[%s13 + $0x6c] sm:$0xf]
      %v6378 = vld [vmem:[%s13 + $0x70] sm:$0xf]
      %v6379 = vld [vmem:[%s13 + $0x74] sm:$0xf]
      %v6380 = vld [vmem:[%s13 + $0x78] sm:$0xf]
      %v6381 = vld [vmem:[%s13 + $0x7c] sm:$0xf]
      %v6382 = vld [vmem:[%s13 + $0x80] sm:$0xf]
      %v6383 = vld [vmem:[%s13 + $0x84] sm:$0xf]
      %v6384 = vld [vmem:[%s13 + $0x88] sm:$0xf]
      %v6385 = vld [vmem:[%s13 + $0x8c] sm:$0xf]
      %v6386 = vld [vmem:[%s13 + $0x90] sm:$0xf]
      %v6387 = vld [vmem:[%s13 + $0x94] sm:$0xf]
      %v6388 = vld [vmem:[%s13 + $0x98] sm:$0xf]
      %v6389 = vld [vmem:[%s13 + $0x9c] sm:$0xf]
      %v6390 = vld [vmem:[%s13 + $0xa0] sm:$0xf]
      %v6391 = vld [vmem:[%s13 + $0xa4] sm:$0xf]
      %v6392 = vld [vmem:[%s13 + $0xa8] sm:$0xf]
      %v6393 = vld [vmem:[%s13 + $0xac] sm:$0xf]
      %v6394 = vld [vmem:[%s13 + $0xb0] sm:$0xf]
      %v6395 = vld [vmem:[%s13 + $0xb4] sm:$0xf]
      %v6396 = vld [vmem:[%s13 + $0xb8] sm:$0xf]
      %v6397 = vld [vmem:[%s13 + $0xbc] sm:$0xf]
      %v6398 = vld [vmem:[%s13 + $0xc0] sm:$0xf]
      %v6399 = vld [vmem:[%s13 + $0xc4] sm:$0xf]
      %v6400 = vld [vmem:[%s13 + $0xc8] sm:$0xf]
      %v6401 = vld [vmem:[%s13 + $0xcc] sm:$0xf]
      %v6402 = vld [vmem:[%s13 + $0xd0] sm:$0xf]
      %v6403 = vld [vmem:[%s13 + $0xd4] sm:$0x1]
      %v6404 = vld [vmem:[%s14] sm:$0x1]
      %v6406 = vlaneseq
      %v6407 = vshrl.u32 %v6406, 7
      %v6408 = vsub.s32 0, %v6407
      %v6409 = vrot.slane %v6404, %v6408
      %v6465 = vunpack.c.l.b16 %v6350
      %v6466 = vunpack.c.l.b16 %v6351
      %v6467 = vunpack.c.l.b16 %v6352
      %v6468 = vunpack.c.l.b16 %v6353
      %v6469 = vunpack.c.l.b16 %v6354
      %v6470 = vunpack.c.l.b16 %v6355
      %v6471 = vunpack.c.l.b16 %v6356
      %v6472 = vunpack.c.l.b16 %v6357
      %v6473 = vunpack.c.l.b16 %v6358
      %v6474 = vunpack.c.l.b16 %v6359
      %v6475 = vunpack.c.l.b16 %v6360
      %v6476 = vunpack.c.l.b16 %v6361
      %v6477 = vunpack.c.l.b16 %v6362
      %v6478 = vunpack.c.l.b16 %v6363
      %v6479 = vunpack.c.l.b16 %v6364
      %v6480 = vunpack.c.l.b16 %v6365
      %v6481 = vunpack.c.l.b16 %v6366
      %v6482 = vunpack.c.l.b16 %v6367
      %v6483 = vunpack.c.l.b16 %v6368
      %v6484 = vunpack.c.l.b16 %v6369
      %v6485 = vunpack.c.l.b16 %v6370
      %v6486 = vunpack.c.l.b16 %v6371
      %v6487 = vunpack.c.l.b16 %v6372
      %v6488 = vunpack.c.l.b16 %v6373
      %v6489 = vunpack.c.l.b16 %v6374
      %v6490 = vunpack.c.l.b16 %v6375
      %v6491 = vunpack.c.l.b16 %v6376
      %v6492 = vunpack.c.l.b16 %v6377
      %v6493 = vunpack.c.l.b16 %v6378
      %v6494 = vunpack.c.l.b16 %v6379
      %v6495 = vunpack.c.l.b16 %v6380
      %v6496 = vunpack.c.l.b16 %v6381
      %v6497 = vunpack.c.l.b16 %v6382
      %v6498 = vunpack.c.l.b16 %v6383
      %v6499 = vunpack.c.l.b16 %v6384
      %v6500 = vunpack.c.l.b16 %v6385
      %v6501 = vunpack.c.l.b16 %v6386
      %v6502 = vunpack.c.l.b16 %v6387
      %v6503 = vunpack.c.l.b16 %v6388
      %v6504 = vunpack.c.l.b16 %v6389
      %v6505 = vunpack.c.l.b16 %v6390
      %v6506 = vunpack.c.l.b16 %v6391
      %v6507 = vunpack.c.l.b16 %v6392
      %v6508 = vunpack.c.l.b16 %v6393
      %v6509 = vunpack.c.l.b16 %v6394
      %v6510 = vunpack.c.l.b16 %v6395
      %v6511 = vunpack.c.l.b16 %v6396
      %v6512 = vunpack.c.l.b16 %v6397
      %v6513 = vunpack.c.l.b16 %v6398
      %v6514 = vunpack.c.l.b16 %v6399
      %v6515 = vunpack.c.l.b16 %v6400
      %v6516 = vunpack.c.l.b16 %v6401
      %v6517 = vunpack.c.l.b16 %v6402
      %v6518 = vunpack.c.l.b16 %v6403
      %v6519 = vpack.c.b16 %v6466, %v6465
      %v6520 = vpack.c.b16 %v6468, %v6467
      %v6521 = vpack.c.b16 %v6470, %v6469
      %v6522 = vpack.c.b16 %v6472, %v6471
      %v6523 = vpack.c.b16 %v6474, %v6473
      %v6524 = vpack.c.b16 %v6476, %v6475
      %v6525 = vpack.c.b16 %v6478, %v6477
      %v6526 = vpack.c.b16 %v6480, %v6479
      %v6527 = vpack.c.b16 %v6482, %v6481
      %v6528 = vpack.c.b16 %v6484, %v6483
      %v6529 = vpack.c.b16 %v6486, %v6485
      %v6530 = vpack.c.b16 %v6488, %v6487
      %v6531 = vpack.c.b16 %v6490, %v6489
      %v6532 = vpack.c.b16 %v6492, %v6491
      %v6533 = vpack.c.b16 %v6494, %v6493
      %v6534 = vpack.c.b16 %v6496, %v6495
      %v6535 = vpack.c.b16 %v6498, %v6497
      %v6536 = vpack.c.b16 %v6500, %v6499
      %v6537 = vpack.c.b16 %v6502, %v6501
      %v6538 = vpack.c.b16 %v6504, %v6503
      %v6539 = vpack.c.b16 %v6506, %v6505
      %v6540 = vpack.c.b16 %v6508, %v6507
      %v6541 = vpack.c.b16 %v6510, %v6509
      %v6542 = vpack.c.b16 %v6512, %v6511
      %v6543 = vpack.c.b16 %v6514, %v6513
      %v6544 = vpack.c.b16 %v6516, %v6515
      %v6545 = vpack.c.b16 %v6518, %v6517
      %vm6572 = vcmask 334848
      %v6573 = vsel %vm6572, %v6260, 0
      %v6575 = vsel %vm6572, %v6262, 0
      %v6577 = vsel %vm6572, %v6264, 0
      %v6579 = vsel %vm6572, %v6266, 0
      %v6581 = vsel %vm6572, %v6268, 0
      %v6583 = vsel %vm6572, %v6270, 0
      %v6585 = vsel %vm6572, %v6272, 0
      %vm6587 = vcmask 1043456
      %vm6588 = vcmask 1044480
      %v6589 = vsel %vm6587, 4294967295, 65535
      %v6590 = vsel %vm6588, %v6589, 0
      %v6592 = vand.u32 %v6545, %v6590
      %6594 = vmatprep.subr.bf16.mxu0 0
      %6595 = vmatpush1.bf16.msra.mxu0 %v6526
      %6596 = vmatprep.subr.bf16.mxu0 0
      %6597 = vmatpush1.bf16.msra.mxu0 %v6525
      %6598 = vmatprep.subr.bf16.mxu0 0
      %6599 = vmatpush1.bf16.msra.mxu0 %v6524
      %6600 = vmatprep.subr.bf16.mxu0 0
      %6601 = vmatpush1.bf16.msra.mxu0 %v6523
      %6602 = vmatprep.subr.bf16.mxu0 0
      %6603 = vmatpush1.bf16.msra.mxu0 %v6522
      %6604 = vmatprep.subr.bf16.mxu0 0
      %6605 = vmatpush1.bf16.msra.mxu0 %v6521
      %6606 = vmatprep.subr.bf16.mxu0 0
      %6607 = vmatpush1.bf16.msra.mxu0 %v6520
      %6608 = vmatprep.subr.bf16.mxu0 0
      %6609 = vmatpush1.bf16.msra.mxu0 %v6519
      %6610 = vmatprep.subr.bf16.mxu0 0
      %6611 = vmatpush2.bf16.msra.mxu0 %v6534
      %6612 = vmatprep.subr.bf16.mxu0 0
      %6613 = vmatpush2.bf16.msra.mxu0 %v6533
      %6614 = vmatprep.subr.bf16.mxu0 0
      %6615 = vmatpush2.bf16.msra.mxu0 %v6532
      %6616 = vmatprep.subr.bf16.mxu0 0
      %6617 = vmatpush2.bf16.msra.mxu0 %v6531
      %6618 = vmatprep.subr.bf16.mxu0 0
      %6619 = vmatpush2.bf16.msra.mxu0 %v6530
      %6620 = vmatprep.subr.bf16.mxu0 0
      %6621 = vmatpush2.bf16.msra.mxu0 %v6529
      %6622 = vmatprep.subr.bf16.mxu0 0
      %6623 = vmatpush2.bf16.msra.mxu0 %v6528
      %6624 = vmatprep.subr.bf16.mxu0 0
      %6625 = vmatpush2.bf16.msra.mxu0 %v6527
      %6626 = vmatprep.mubr.bf16.mxu0 %v6309
      %6627 = vmatmul.mubr.bf16.gmra.mxu0 %v6274
      %v6628 = vpop.f32.mrf.mxu0
      %v6629 = vadd.f32 %v6409, %v6628
      %v6630 = vpop.f32.mrf.mxu0
      %v6631 = vpop.f32.mrf.mxu0
      %v6632 = vadd.f32 %v6409, %v6631
      %v6633 = vpop.f32.mrf.mxu0
      %6634 = vmatprep.mubr.bf16.mxu0 %v6312
      %6635 = vmatmul.mubr.bf16.gmra.mxu0 %v6277
      %v6636 = vpop.f32.mrf.mxu0
      %v6637 = vadd.f32 %v6409, %v6636
      %v6638 = vpop.f32.mrf.mxu0
      %v6639 = vpop.f32.mrf.mxu0
      %v6640 = vadd.f32 %v6409, %v6639
      %v6641 = vpop.f32.mrf.mxu0
      %6642 = vmatprep.mubr.bf16.mxu0 %v6315
      %6643 = vmatmul.mubr.bf16.gmra.mxu0 %v6280
      %v6644 = vpop.f32.mrf.mxu0
      %v6645 = vadd.f32 %v6409, %v6644
      %v6646 = vpop.f32.mrf.mxu0
      %v6647 = vpop.f32.mrf.mxu0
      %v6648 = vadd.f32 %v6409, %v6647
      %v6649 = vpop.f32.mrf.mxu0
      %6650 = vmatprep.mubr.bf16.mxu0 %v6318
      %6651 = vmatmul.mubr.bf16.gmra.mxu0 %v6283
      %v6652 = vpop.f32.mrf.mxu0
      %v6653 = vadd.f32 %v6409, %v6652
      %v6654 = vpop.f32.mrf.mxu0
      %v6655 = vpop.f32.mrf.mxu0
      %v6656 = vadd.f32 %v6409, %v6655
      %v6657 = vpop.f32.mrf.mxu0
      %6658 = vmatprep.mubr.bf16.mxu0 %v6321
      %6659 = vmatmul.mubr.bf16.gmra.mxu0 %v6286
      %v6660 = vpop.f32.mrf.mxu0
      %v6661 = vadd.f32 %v6409, %v6660
      %v6662 = vpop.f32.mrf.mxu0
      %v6663 = vpop.f32.mrf.mxu0
      %v6664 = vadd.f32 %v6409, %v6663
      %v6665 = vpop.f32.mrf.mxu0
      %6666 = vmatprep.mubr.bf16.mxu0 %v6324
      %6667 = vmatmul.mubr.bf16.gmra.mxu0 %v6289
      %v6668 = vpop.f32.mrf.mxu0
      %v6669 = vadd.f32 %v6409, %v6668
      %v6670 = vpop.f32.mrf.mxu0
      %v6671 = vpop.f32.mrf.mxu0
      %v6672 = vadd.f32 %v6409, %v6671
      %v6673 = vpop.f32.mrf.mxu0
      %6674 = vmatprep.mubr.bf16.mxu0 %v6327
      %6675 = vmatmul.mubr.bf16.gmra.mxu0 %v6292
      %v6676 = vpop.f32.mrf.mxu0
      %v6677 = vadd.f32 %v6409, %v6676
      %v6678 = vpop.f32.mrf.mxu0
      %v6679 = vpop.f32.mrf.mxu0
      %v6680 = vpop.f32.mrf.mxu0
      %6681 = vdwg.mxu0
      %6682 = vmatprep.subr.bf16.mxu0 0
      %6683 = vmatpush1.bf16.msra.mxu0 %v6542
      %6684 = vmatprep.subr.bf16.mxu0 0
      %6685 = vmatpush1.bf16.msra.mxu0 %v6541
      %6686 = vmatprep.subr.bf16.mxu0 0
      %6687 = vmatpush1.bf16.msra.mxu0 %v6540
      %6688 = vmatprep.subr.bf16.mxu0 0
      %6689 = vmatpush1.bf16.msra.mxu0 %v6539
      %6690 = vmatprep.subr.bf16.mxu0 0
      %6691 = vmatpush1.bf16.msra.mxu0 %v6538
      %6692 = vmatprep.subr.bf16.mxu0 0
      %6693 = vmatpush1.bf16.msra.mxu0 %v6537
      %6694 = vmatprep.subr.bf16.mxu0 0
      %6695 = vmatpush1.bf16.msra.mxu0 %v6536
      %6696 = vmatprep.subr.bf16.mxu0 0
      %6697 = vmatpush1.bf16.msra.mxu0 %v6535
      %6698 = vmatprep.subr.bf16.mxu0 0
      %6699 = vmatpush2.bf16.msra.mxu0 0
      %6700 = vmatprep.subr.bf16.mxu0 0
      %6701 = vmatpush2.bf16.msra.mxu0 0
      %6702 = vmatprep.subr.bf16.mxu0 0
      %6703 = vmatpush2.bf16.msra.mxu0 0
      %6704 = vmatprep.subr.bf16.mxu0 0
      %6705 = vmatpush2.bf16.msra.mxu0 0
      %6706 = vmatprep.subr.bf16.mxu0 0
      %6707 = vmatpush2.bf16.msra.mxu0 0
      %6708 = vmatprep.subr.bf16.mxu0 0
      %6709 = vmatpush2.bf16.msra.mxu0 %v6592
      %6710 = vmatprep.subr.bf16.mxu0 0
      %6711 = vmatpush2.bf16.msra.mxu0 %v6544
      %6712 = vmatprep.subr.bf16.mxu0 0
      %6713 = vmatpush2.bf16.msra.mxu0 %v6543
      %6714 = vmatprep.mubr.bf16.mxu0 %v6573
      %6715 = vmatmul.mubr.bf16.gmra.mxu0 %v6330
      %v6716 = vpop.f32.mrf.mxu0
      %v6717 = vadd.f32 %v6629, %v6716
      %v6718 = vpop.f32.mrf.mxu0
      %v6719 = vpop.f32.mrf.mxu0
      %v6720 = vadd.f32 %v6632, %v6719
      %v6721 = vpop.f32.mrf.mxu0
      %6722 = vmatprep.mubr.bf16.mxu0 %v6575
      %6723 = vmatmul.mubr.bf16.gmra.mxu0 %v6333
      %v6724 = vpop.f32.mrf.mxu0
      %v6725 = vadd.f32 %v6637, %v6724
      %v6726 = vpop.f32.mrf.mxu0
      %v6727 = vpop.f32.mrf.mxu0
      %v6728 = vadd.f32 %v6640, %v6727
      %v6729 = vpop.f32.mrf.mxu0
      %6730 = vmatprep.mubr.bf16.mxu0 %v6577
      %6731 = vmatmul.mubr.bf16.gmra.mxu0 %v6336
      %v6732 = vpop.f32.mrf.mxu0
      %v6733 = vadd.f32 %v6645, %v6732
      %v6734 = vpop.f32.mrf.mxu0
      %v6735 = vpop.f32.mrf.mxu0
      %v6736 = vadd.f32 %v6648, %v6735
      %v6737 = vpop.f32.mrf.mxu0
      %6738 = vmatprep.mubr.bf16.mxu0 %v6579
      %6739 = vmatmul.mubr.bf16.gmra.mxu0 %v6339
      %v6740 = vpop.f32.mrf.mxu0
      %v6741 = vadd.f32 %v6653, %v6740
      %v6742 = vpop.f32.mrf.mxu0
      %v6743 = vpop.f32.mrf.mxu0
      %v6744 = vadd.f32 %v6656, %v6743
      %v6745 = vpop.f32.mrf.mxu0
      %6746 = vmatprep.mubr.bf16.mxu0 %v6581
      %6747 = vmatmul.mubr.bf16.gmra.mxu0 %v6342
      %v6748 = vpop.f32.mrf.mxu0
      %v6749 = vadd.f32 %v6661, %v6748
      %v6750 = vpop.f32.mrf.mxu0
      %v6751 = vpop.f32.mrf.mxu0
      %v6752 = vadd.f32 %v6664, %v6751
      %v6753 = vpop.f32.mrf.mxu0
      %6754 = vmatprep.mubr.bf16.mxu0 %v6583
      %6755 = vmatmul.mubr.bf16.gmra.mxu0 %v6345
      %v6756 = vpop.f32.mrf.mxu0
      %v6757 = vadd.f32 %v6669, %v6756
      %v6758 = vpop.f32.mrf.mxu0
      %v6759 = vpop.f32.mrf.mxu0
      %v6760 = vadd.f32 %v6672, %v6759
      %v6761 = vpop.f32.mrf.mxu0
      %6762 = vmatprep.mubr.bf16.mxu0 %v6585
      %6763 = vmatmul.mubr.bf16.gmra.mxu0 %v6348
      %v6764 = vpop.f32.mrf.mxu0
      %v6765 = vadd.f32 %v6677, %v6764
      %v6766 = vpop.f32.mrf.mxu0
      %v6767 = vpop.f32.mrf.mxu0
      %v6768 = vpop.f32.mrf.mxu0
      %6769 = vdwg.mxu0
      %v6770 = vmax.f32 %v6717, 0.0
      %v6771 = vmax.f32 %v6720, 0.0
      %v6772 = vmax.f32 %v6725, 0.0
      %v6773 = vmax.f32 %v6728, 0.0
      %v6774 = vmax.f32 %v6733, 0.0
      %v6775 = vmax.f32 %v6736, 0.0
      %v6776 = vmax.f32 %v6741, 0.0
      %v6777 = vmax.f32 %v6744, 0.0
      %v6778 = vmax.f32 %v6749, 0.0
      %v6779 = vmax.f32 %v6752, 0.0
      %v6780 = vmax.f32 %v6757, 0.0
      %v6781 = vmax.f32 %v6760, 0.0
      %v6782 = vmax.f32 %v6765, 0.0
      %v6783 = vpack.c.bf16 %v6771, %v6770
      %v6784 = vpack.c.bf16 %v6773, %v6772
      %v6785 = vpack.c.bf16 %v6775, %v6774
      %v6786 = vpack.c.bf16 %v6777, %v6776
      %v6787 = vpack.c.bf16 %v6779, %v6778
      %v6788 = vpack.c.bf16 %v6781, %v6780
      %v6789 = vpack.c.bf16 %v6782, %v6782
      %v6791 = vshrl.u32 %v6783, 16
      %v6793 = vshll.u32 %v6783, 16
      %v6795 = vrot.slane %v6793, 1
      %v6796 = vor.u32 %v6791, %v6795
      %v6798 = vshll.u32 %v6784, 16
      %v6800 = vrot.slane %v6798, 1
      %v6801 = vsel %vm1402, %v6796, %v6800
      %v6802 = vshrl.u32 %v6784, 16
      %v6804 = vor.u32 %v6802, %v6800
      %v6806 = vshll.u32 %v6785, 16
      %v6808 = vrot.slane %v6806, 1
      %v6809 = vsel %vm1402, %v6804, %v6808
      %v6810 = vshrl.u32 %v6785, 16
      %v6812 = vor.u32 %v6810, %v6808
      %v6814 = vshll.u32 %v6786, 16
      %v6816 = vrot.slane %v6814, 1
      %v6817 = vsel %vm1402, %v6812, %v6816
      %v6818 = vshrl.u32 %v6786, 16
      %v6820 = vor.u32 %v6818, %v6816
      %v6822 = vshll.u32 %v6787, 16
      %v6824 = vrot.slane %v6822, 1
      %v6825 = vsel %vm1402, %v6820, %v6824
      %v6826 = vshrl.u32 %v6787, 16
      %v6828 = vor.u32 %v6826, %v6824
      %v6830 = vshll.u32 %v6788, 16
      %v6832 = vrot.slane %v6830, 1
      %v6833 = vsel %vm1402, %v6828, %v6832
      %v6834 = vshrl.u32 %v6788, 16
      %v6836 = vor.u32 %v6834, %v6832
      %v6838 = vshll.u32 %v6789, 16
      %v6840 = vrot.slane %v6838, 1
      %v6841 = vsel %vm1402, %v6836, %v6840
      %v6842 = vshrl.u32 %v6789, 16
      %6844 = vrot.lane.b32.xlu0 %v6801, 86
      %v6845 = vpop.permute.xlu0 %6844
      %6846 = vrot.lane.b32.xlu0 %v6809, 86
      %v6847 = vpop.permute.xlu0 %6846
      %6848 = vrot.lane.b32.xlu0 %v6817, 86
      %v6849 = vpop.permute.xlu0 %6848
      %6850 = vrot.lane.b32.xlu0 %v6825, 86
      %v6851 = vpop.permute.xlu0 %6850
      %6852 = vrot.lane.b32.xlu0 %v6833, 86
      %v6853 = vpop.permute.xlu0 %6852
      %6854 = vrot.lane.b32.xlu0 %v6841, 86
      %v6855 = vpop.permute.xlu0 %6854
      %6856 = vrot.lane.b32.xlu0 %v6842, 86
      %v6857 = vpop.permute.xlu0 %6856
      %v6865 = vrot.slane %v6783, 1
      %v6866 = vrot.slane %v6784, 1
      %v6867 = vsel %vm1578, %v6865, %v6866
      %v6868 = vrot.slane %v6785, 1
      %v6869 = vsel %vm1578, %v6866, %v6868
      %v6870 = vrot.slane %v6786, 1
      %v6871 = vsel %vm1578, %v6868, %v6870
      %v6872 = vrot.slane %v6787, 1
      %v6873 = vsel %vm1578, %v6870, %v6872
      %v6874 = vrot.slane %v6788, 1
      %v6875 = vsel %vm1578, %v6872, %v6874
      %v6876 = vrot.slane %v6789, 1
      %v6877 = vsel %vm1578, %v6874, %v6876
      %6878 = vrot.lane.b32.xlu0 %v6867, 44
      %v6879 = vpop.permute.xlu0 %6878
      %6880 = vrot.lane.b32.xlu0 %v6869, 44
      %v6881 = vpop.permute.xlu0 %6880
      %6882 = vrot.lane.b32.xlu0 %v6871, 44
      %v6883 = vpop.permute.xlu0 %6882
      %6884 = vrot.lane.b32.xlu0 %v6873, 44
      %v6885 = vpop.permute.xlu0 %6884
      %6886 = vrot.lane.b32.xlu0 %v6875, 44
      %v6887 = vpop.permute.xlu0 %6886
      %6888 = vrot.lane.b32.xlu0 %v6877, 44
      %v6889 = vpop.permute.xlu0 %6888
      %6890 = vrot.lane.b32.xlu0 %v6876, 44
      %v6891 = vpop.permute.xlu0 %6890
      %vm6892 = vcmask 703488
      %v6894 = vsel %vm6892, %v6783, %v6845
      %v6897 = vsel %vm6892, %v6784, %v6847
      %v6900 = vsel %vm6892, %v6785, %v6849
      %v6903 = vsel %vm6892, %v6786, %v6851
      %v6906 = vsel %vm6892, %v6787, %v6853
      %v6909 = vsel %vm6892, %v6788, %v6855
      %v6912 = vsel %vm6892, %v6789, %v6857
      %vm6914 = vcmask 359424
      %v6916 = vsel %vm6914, %v6845, %v6879
      %v6919 = vsel %vm6914, %v6847, %v6881
      %v6922 = vsel %vm6914, %v6849, %v6883
      %v6925 = vsel %vm6914, %v6851, %v6885
      %v6928 = vsel %vm6914, %v6853, %v6887
      %v6931 = vsel %vm6914, %v6855, %v6889
      %v6934 = vsel %vm6914, %v6857, %v6891
      %v6936 = vld [vmem:[%s15] sm:$0xff]
      %v6937 = vld [vmem:[%s15 + $0x8] sm:$0xff]
      %v6938 = vld [vmem:[%s15 + $0x10] sm:$0xff]
      %v6939 = vld [vmem:[%s15 + $0x18] sm:$0xff]
      %v6940 = vld [vmem:[%s15 + $0x20] sm:$0xff]
      %v6941 = vld [vmem:[%s15 + $0x28] sm:$0xff]
      %v6942 = vld [vmem:[%s15 + $0x30] sm:$0xff]
      %v6943 = vld [vmem:[%s15 + $0x38] sm:$0xff]
      %v6944 = vld [vmem:[%s15 + $0x40] sm:$0xff]
      %v6945 = vld [vmem:[%s15 + $0x48] sm:$0xff]
      %v6946 = vld [vmem:[%s15 + $0x50] sm:$0xff]
      %v6947 = vld [vmem:[%s15 + $0x58] sm:$0xff]
      %v6948 = vld [vmem:[%s15 + $0x60] sm:$0xff]
      %v6949 = vld [vmem:[%s15 + $0x68] sm:$0xff]
      %v6950 = vld [vmem:[%s15 + $0x70] sm:$0xff]
      %v6951 = vld [vmem:[%s15 + $0x78] sm:$0xff]
      %v6952 = vld [vmem:[%s15 + $0x80] sm:$0xff]
      %v6953 = vld [vmem:[%s15 + $0x88] sm:$0xff]
      %v6954 = vld [vmem:[%s15 + $0x90] sm:$0xff]
      %v6955 = vld [vmem:[%s15 + $0x98] sm:$0xff]
      %v6956 = vld [vmem:[%s15 + $0xa0] sm:$0xff]
      %v6957 = vld [vmem:[%s15 + $0xa8] sm:$0xff]
      %v6958 = vld [vmem:[%s15 + $0xb0] sm:$0xff]
      %v6959 = vld [vmem:[%s15 + $0xb8] sm:$0xff]
      %v6960 = vld [vmem:[%s15 + $0xc0] sm:$0xff]
      %v6961 = vld [vmem:[%s15 + $0xc8] sm:$0xff]
      %v6962 = vld [vmem:[%s15 + $0xd0] sm:$0xff]
      %v6963 = vld [vmem:[%s15 + $0xd8] sm:$0xff]
      %v6964 = vld [vmem:[%s15 + $0xe0] sm:$0xff]
      %v6965 = vld [vmem:[%s15 + $0xe8] sm:$0xff]
      %v6966 = vld [vmem:[%s15 + $0xf0] sm:$0xff]
      %v6967 = vld [vmem:[%s15 + $0xf8] sm:$0xff]
      %v6968 = vld [vmem:[%s15 + $0x100] sm:$0x11]
      %v6969 = vld [vmem:[%s16] sm:$0x3]
      %v6971 = vlaneseq
      %v6972 = vshrl.u32 %v6971, 7
      %v6973 = vsub.s32 0, %v6972
      %v6974 = vrot.slane %v6969, %v6973
      %v6975 = vlaneseq
      %v6976 = vshrl.u32 %v6975, 7
      %v6977 = vsub.s32 1, %v6976
      %v6978 = vrot.slane %v6969, %v6977
      %v7014 = vunpack.c.l.b16 %v6936
      %v7015 = vunpack.c.h.b16 %v6936
      %v7016 = vunpack.c.l.b16 %v6937
      %v7017 = vunpack.c.h.b16 %v6937
      %v7018 = vunpack.c.l.b16 %v6938
      %v7019 = vunpack.c.h.b16 %v6938
      %v7020 = vunpack.c.l.b16 %v6939
      %v7021 = vunpack.c.h.b16 %v6939
      %v7022 = vunpack.c.l.b16 %v6940
      %v7023 = vunpack.c.h.b16 %v6940
      %v7024 = vunpack.c.l.b16 %v6941
      %v7025 = vunpack.c.h.b16 %v6941
      %v7026 = vunpack.c.l.b16 %v6942
      %v7027 = vunpack.c.h.b16 %v6942
      %v7028 = vunpack.c.l.b16 %v6943
      %v7029 = vunpack.c.h.b16 %v6943
      %v7030 = vunpack.c.l.b16 %v6944
      %v7031 = vunpack.c.h.b16 %v6944
      %v7032 = vunpack.c.l.b16 %v6945
      %v7033 = vunpack.c.h.b16 %v6945
      %v7034 = vunpack.c.l.b16 %v6946
      %v7035 = vunpack.c.h.b16 %v6946
      %v7036 = vunpack.c.l.b16 %v6947
      %v7037 = vunpack.c.h.b16 %v6947
      %v7038 = vunpack.c.l.b16 %v6948
      %v7039 = vunpack.c.h.b16 %v6948
      %v7040 = vunpack.c.l.b16 %v6949
      %v7041 = vunpack.c.h.b16 %v6949
      %v7042 = vunpack.c.l.b16 %v6950
      %v7043 = vunpack.c.h.b16 %v6950
      %v7044 = vunpack.c.l.b16 %v6951
      %v7045 = vunpack.c.h.b16 %v6951
      %v7046 = vunpack.c.l.b16 %v6952
      %v7047 = vunpack.c.h.b16 %v6952
      %v7048 = vunpack.c.l.b16 %v6953
      %v7049 = vunpack.c.h.b16 %v6953
      %v7050 = vunpack.c.l.b16 %v6954
      %v7051 = vunpack.c.h.b16 %v6954
      %v7052 = vunpack.c.l.b16 %v6955
      %v7053 = vunpack.c.h.b16 %v6955
      %v7054 = vunpack.c.l.b16 %v6956
      %v7055 = vunpack.c.h.b16 %v6956
      %v7056 = vunpack.c.l.b16 %v6957
      %v7057 = vunpack.c.h.b16 %v6957
      %v7058 = vunpack.c.l.b16 %v6958
      %v7059 = vunpack.c.h.b16 %v6958
      %v7060 = vunpack.c.l.b16 %v6959
      %v7061 = vunpack.c.h.b16 %v6959
      %v7062 = vunpack.c.l.b16 %v6960
      %v7063 = vunpack.c.h.b16 %v6960
      %v7064 = vunpack.c.l.b16 %v6961
      %v7065 = vunpack.c.h.b16 %v6961
      %v7066 = vunpack.c.l.b16 %v6962
      %v7067 = vunpack.c.h.b16 %v6962
      %v7068 = vunpack.c.l.b16 %v6963
      %v7069 = vunpack.c.h.b16 %v6963
      %v7070 = vunpack.c.l.b16 %v6964
      %v7071 = vunpack.c.h.b16 %v6964
      %v7072 = vunpack.c.l.b16 %v6965
      %v7073 = vunpack.c.h.b16 %v6965
      %v7074 = vunpack.c.l.b16 %v6966
      %v7075 = vunpack.c.h.b16 %v6966
      %v7076 = vunpack.c.l.b16 %v6967
      %v7077 = vunpack.c.h.b16 %v6967
      %v7078 = vunpack.c.l.b16 %v6968
      %v7079 = vunpack.c.h.b16 %v6968
      %v7080 = vpack.c.b16 %v7016, %v7014
      %v7081 = vpack.c.b16 %v7017, %v7015
      %v7082 = vpack.c.b16 %v7020, %v7018
      %v7083 = vpack.c.b16 %v7021, %v7019
      %v7084 = vpack.c.b16 %v7024, %v7022
      %v7085 = vpack.c.b16 %v7025, %v7023
      %v7086 = vpack.c.b16 %v7028, %v7026
      %v7087 = vpack.c.b16 %v7029, %v7027
      %v7088 = vpack.c.b16 %v7032, %v7030
      %v7089 = vpack.c.b16 %v7033, %v7031
      %v7090 = vpack.c.b16 %v7036, %v7034
      %v7091 = vpack.c.b16 %v7037, %v7035
      %v7092 = vpack.c.b16 %v7040, %v7038
      %v7093 = vpack.c.b16 %v7041, %v7039
      %v7094 = vpack.c.b16 %v7044, %v7042
      %v7095 = vpack.c.b16 %v7045, %v7043
      %v7096 = vpack.c.b16 %v7048, %v7046
      %v7097 = vpack.c.b16 %v7049, %v7047
      %v7098 = vpack.c.b16 %v7052, %v7050
      %v7099 = vpack.c.b16 %v7053, %v7051
      %v7100 = vpack.c.b16 %v7056, %v7054
      %v7101 = vpack.c.b16 %v7057, %v7055
      %v7102 = vpack.c.b16 %v7060, %v7058
      %v7103 = vpack.c.b16 %v7061, %v7059
      %v7104 = vpack.c.b16 %v7064, %v7062
      %v7105 = vpack.c.b16 %v7065, %v7063
      %v7106 = vpack.c.b16 %v7068, %v7066
      %v7107 = vpack.c.b16 %v7069, %v7067
      %v7108 = vpack.c.b16 %v7072, %v7070
      %v7109 = vpack.c.b16 %v7073, %v7071
      %v7110 = vpack.c.b16 %v7076, %v7074
      %v7111 = vpack.c.b16 %v7077, %v7075
      %v7112 = vpack.c.b16 %v7078, %v7078
      %v7113 = vpack.c.b16 %v7079, %v7079
      %vm7146 = vcmask 15360
      %v7147 = vsel %vm7146, %v6879, 0
      %v7149 = vsel %vm7146, %v6881, 0
      %v7151 = vsel %vm7146, %v6883, 0
      %v7153 = vsel %vm7146, %v6885, 0
      %v7155 = vsel %vm7146, %v6887, 0
      %v7157 = vsel %vm7146, %v6889, 0
      %v7159 = vsel %vm7146, %v6891, 0
      %v7162 = vsel %vm2252, %v7112, 0
      %v7165 = vsel %vm2252, %v7113, 0
      %7167 = vmatprep.subr.bf16.mxu0 %v7095
      %7168 = vmatpush1.bf16.msra.mxu0 %v7094
      %7169 = vmatprep.subr.bf16.mxu0 %v7093
      %7170 = vmatpush1.bf16.msra.mxu0 %v7092
      %7171 = vmatprep.subr.bf16.mxu0 %v7091
      %7172 = vmatpush1.bf16.msra.mxu0 %v7090
      %7173 = vmatprep.subr.bf16.mxu0 %v7089
      %7174 = vmatpush1.bf16.msra.mxu0 %v7088
      %7175 = vmatprep.subr.bf16.mxu0 %v7087
      %7176 = vmatpush1.bf16.msra.mxu0 %v7086
      %7177 = vmatprep.subr.bf16.mxu0 %v7085
      %7178 = vmatpush1.bf16.msra.mxu0 %v7084
      %7179 = vmatprep.subr.bf16.mxu0 %v7083
      %7180 = vmatpush1.bf16.msra.mxu0 %v7082
      %7181 = vmatprep.subr.bf16.mxu0 %v7081
      %7182 = vmatpush1.bf16.msra.mxu0 %v7080
      %7183 = vmatprep.subr.bf16.mxu0 %v7111
      %7184 = vmatpush2.bf16.msra.mxu0 %v7110
      %7185 = vmatprep.subr.bf16.mxu0 %v7109
      %7186 = vmatpush2.bf16.msra.mxu0 %v7108
      %7187 = vmatprep.subr.bf16.mxu0 %v7107
      %7188 = vmatpush2.bf16.msra.mxu0 %v7106
      %7189 = vmatprep.subr.bf16.mxu0 %v7105
      %7190 = vmatpush2.bf16.msra.mxu0 %v7104
      %7191 = vmatprep.subr.bf16.mxu0 %v7103
      %7192 = vmatpush2.bf16.msra.mxu0 %v7102
      %7193 = vmatprep.subr.bf16.mxu0 %v7101
      %7194 = vmatpush2.bf16.msra.mxu0 %v7100
      %7195 = vmatprep.subr.bf16.mxu0 %v7099
      %7196 = vmatpush2.bf16.msra.mxu0 %v7098
      %7197 = vmatprep.subr.bf16.mxu0 %v7097
      %7198 = vmatpush2.bf16.msra.mxu0 %v7096
      %7199 = vmatprep.mubr.bf16.mxu0 %v6916
      %7200 = vmatmul.mubr.bf16.gmra.mxu0 %v6894
      %v7201 = vpop.f32.mrf.mxu0
      %v7202 = vadd.f32 %v6974, %v7201
      %v7203 = vpop.f32.mrf.mxu0
      %v7204 = vadd.f32 %v6978, %v7203
      %v7205 = vpop.f32.mrf.mxu0
      %v7206 = vadd.f32 %v6974, %v7205
      %v7207 = vpop.f32.mrf.mxu0
      %v7208 = vadd.f32 %v6978, %v7207
      %7209 = vmatprep.mubr.bf16.mxu0 %v6919
      %7210 = vmatmul.mubr.bf16.gmra.mxu0 %v6897
      %v7211 = vpop.f32.mrf.mxu0
      %v7212 = vadd.f32 %v6974, %v7211
      %v7213 = vpop.f32.mrf.mxu0
      %v7214 = vadd.f32 %v6978, %v7213
      %v7215 = vpop.f32.mrf.mxu0
      %v7216 = vadd.f32 %v6974, %v7215
      %v7217 = vpop.f32.mrf.mxu0
      %v7218 = vadd.f32 %v6978, %v7217
      %7219 = vmatprep.mubr.bf16.mxu0 %v6922
      %7220 = vmatmul.mubr.bf16.gmra.mxu0 %v6900
      %v7221 = vpop.f32.mrf.mxu0
      %v7222 = vadd.f32 %v6974, %v7221
      %v7223 = vpop.f32.mrf.mxu0
      %v7224 = vadd.f32 %v6978, %v7223
      %v7225 = vpop.f32.mrf.mxu0
      %v7226 = vadd.f32 %v6974, %v7225
      %v7227 = vpop.f32.mrf.mxu0
      %v7228 = vadd.f32 %v6978, %v7227
      %7229 = vmatprep.mubr.bf16.mxu0 %v6925
      %7230 = vmatmul.mubr.bf16.gmra.mxu0 %v6903
      %v7231 = vpop.f32.mrf.mxu0
      %v7232 = vadd.f32 %v6974, %v7231
      %v7233 = vpop.f32.mrf.mxu0
      %v7234 = vadd.f32 %v6978, %v7233
      %v7235 = vpop.f32.mrf.mxu0
      %v7236 = vadd.f32 %v6974, %v7235
      %v7237 = vpop.f32.mrf.mxu0
      %v7238 = vadd.f32 %v6978, %v7237
      %7239 = vmatprep.mubr.bf16.mxu0 %v6928
      %7240 = vmatmul.mubr.bf16.gmra.mxu0 %v6906
      %v7241 = vpop.f32.mrf.mxu0
      %v7242 = vadd.f32 %v6974, %v7241
      %v7243 = vpop.f32.mrf.mxu0
      %v7244 = vadd.f32 %v6978, %v7243
      %v7245 = vpop.f32.mrf.mxu0
      %v7246 = vadd.f32 %v6974, %v7245
      %v7247 = vpop.f32.mrf.mxu0
      %v7248 = vadd.f32 %v6978, %v7247
      %7249 = vmatprep.mubr.bf16.mxu0 %v6931
      %7250 = vmatmul.mubr.bf16.gmra.mxu0 %v6909
      %v7251 = vpop.f32.mrf.mxu0
      %v7252 = vadd.f32 %v6974, %v7251
      %v7253 = vpop.f32.mrf.mxu0
      %v7254 = vadd.f32 %v6978, %v7253
      %v7255 = vpop.f32.mrf.mxu0
      %v7256 = vadd.f32 %v6974, %v7255
      %v7257 = vpop.f32.mrf.mxu0
      %v7258 = vadd.f32 %v6978, %v7257
      %7259 = vmatprep.mubr.bf16.mxu0 %v6934
      %7260 = vmatmul.mubr.bf16.gmra.mxu0 %v6912
      %v7261 = vpop.f32.mrf.mxu0
      %v7262 = vadd.f32 %v6974, %v7261
      %v7263 = vpop.f32.mrf.mxu0
      %v7264 = vadd.f32 %v6978, %v7263
      %v7265 = vpop.f32.mrf.mxu0
      %v7266 = vpop.f32.mrf.mxu0
      %7267 = vdwg.mxu0
      %7268 = vmatprep.subr.bf16.mxu0 0
      %7269 = vmatpush1.bf16.msra.mxu0 0
      %7270 = vmatprep.subr.bf16.mxu0 0
      %7271 = vmatpush1.bf16.msra.mxu0 0
      %7272 = vmatprep.subr.bf16.mxu0 0
      %7273 = vmatpush1.bf16.msra.mxu0 0
      %7274 = vmatprep.subr.bf16.mxu0 0
      %7275 = vmatpush1.bf16.msra.mxu0 0
      %7276 = vmatprep.subr.bf16.mxu0 0
      %7277 = vmatpush1.bf16.msra.mxu0 0
      %7278 = vmatprep.subr.bf16.mxu0 0
      %7279 = vmatpush1.bf16.msra.mxu0 0
      %7280 = vmatprep.subr.bf16.mxu0 0
      %7281 = vmatpush1.bf16.msra.mxu0 0
      %7282 = vmatprep.subr.bf16.mxu0 %v7165
      %7283 = vmatpush1.bf16.msra.mxu0 %v7162
      %7284 = vmatprep.subr.bf16.mxu0 0
      %7285 = vmatpush2.bf16.msra.mxu0 0
      %7286 = vmatprep.subr.bf16.mxu0 0
      %7287 = vmatpush2.bf16.msra.mxu0 0
      %7288 = vmatprep.subr.bf16.mxu0 0
      %7289 = vmatpush2.bf16.msra.mxu0 0
      %7290 = vmatprep.subr.bf16.mxu0 0
      %7291 = vmatpush2.bf16.msra.mxu0 0
      %7292 = vmatprep.subr.bf16.mxu0 0
      %7293 = vmatpush2.bf16.msra.mxu0 0
      %7294 = vmatprep.subr.bf16.mxu0 0
      %7295 = vmatpush2.bf16.msra.mxu0 0
      %7296 = vmatprep.subr.bf16.mxu0 0
      %7297 = vmatpush2.bf16.msra.mxu0 0
      %7298 = vmatprep.subr.bf16.mxu0 0
      %7299 = vmatpush2.bf16.msra.mxu0 0
      %7300 = vmatprep.mubr.bf16.mxu0 0
      %7301 = vmatmul.mubr.bf16.gmra.mxu0 %v7147
      %v7302 = vpop.f32.mrf.mxu0
      %v7303 = vadd.f32 %v7202, %v7302
      %v7304 = vpop.f32.mrf.mxu0
      %v7305 = vadd.f32 %v7204, %v7304
      %v7306 = vpop.f32.mrf.mxu0
      %v7307 = vadd.f32 %v7206, %v7306
      %v7308 = vpop.f32.mrf.mxu0
      %v7309 = vadd.f32 %v7208, %v7308
      %7310 = vmatprep.mubr.bf16.mxu0 0
      %7311 = vmatmul.mubr.bf16.gmra.mxu0 %v7149
      %v7312 = vpop.f32.mrf.mxu0
      %v7313 = vadd.f32 %v7212, %v7312
      %v7314 = vpop.f32.mrf.mxu0
      %v7315 = vadd.f32 %v7214, %v7314
      %v7316 = vpop.f32.mrf.mxu0
      %v7317 = vadd.f32 %v7216, %v7316
      %v7318 = vpop.f32.mrf.mxu0
      %v7319 = vadd.f32 %v7218, %v7318
      %7320 = vmatprep.mubr.bf16.mxu0 0
      %7321 = vmatmul.mubr.bf16.gmra.mxu0 %v7151
      %v7322 = vpop.f32.mrf.mxu0
      %v7323 = vadd.f32 %v7222, %v7322
      %v7324 = vpop.f32.mrf.mxu0
      %v7325 = vadd.f32 %v7224, %v7324
      %v7326 = vpop.f32.mrf.mxu0
      %v7327 = vadd.f32 %v7226, %v7326
      %v7328 = vpop.f32.mrf.mxu0
      %v7329 = vadd.f32 %v7228, %v7328
      %7330 = vmatprep.mubr.bf16.mxu0 0
      %7331 = vmatmul.mubr.bf16.gmra.mxu0 %v7153
      %v7332 = vpop.f32.mrf.mxu0
      %v7333 = vadd.f32 %v7232, %v7332
      %v7334 = vpop.f32.mrf.mxu0
      %v7335 = vadd.f32 %v7234, %v7334
      %v7336 = vpop.f32.mrf.mxu0
      %v7337 = vadd.f32 %v7236, %v7336
      %v7338 = vpop.f32.mrf.mxu0
      %v7339 = vadd.f32 %v7238, %v7338
      %7340 = vmatprep.mubr.bf16.mxu0 0
      %7341 = vmatmul.mubr.bf16.gmra.mxu0 %v7155
      %v7342 = vpop.f32.mrf.mxu0
      %v7343 = vadd.f32 %v7242, %v7342
      %v7344 = vpop.f32.mrf.mxu0
      %v7345 = vadd.f32 %v7244, %v7344
      %v7346 = vpop.f32.mrf.mxu0
      %v7347 = vadd.f32 %v7246, %v7346
      %v7348 = vpop.f32.mrf.mxu0
      %v7349 = vadd.f32 %v7248, %v7348
      %7350 = vmatprep.mubr.bf16.mxu0 0
      %7351 = vmatmul.mubr.bf16.gmra.mxu0 %v7157
      %v7352 = vpop.f32.mrf.mxu0
      %v7353 = vadd.f32 %v7252, %v7352
      %v7354 = vpop.f32.mrf.mxu0
      %v7355 = vadd.f32 %v7254, %v7354
      %v7356 = vpop.f32.mrf.mxu0
      %v7357 = vadd.f32 %v7256, %v7356
      %v7358 = vpop.f32.mrf.mxu0
      %v7359 = vadd.f32 %v7258, %v7358
      %7360 = vmatprep.mubr.bf16.mxu0 0
      %7361 = vmatmul.mubr.bf16.gmra.mxu0 %v7159
      %v7362 = vpop.f32.mrf.mxu0
      %v7363 = vadd.f32 %v7262, %v7362
      %v7364 = vpop.f32.mrf.mxu0
      %v7365 = vadd.f32 %v7264, %v7364
      %v7366 = vpop.f32.mrf.mxu0
      %v7367 = vpop.f32.mrf.mxu0
      %7368 = vdwg.mxu0
      %v7369 = vmax.f32 %v7303, 0.0
      %v7370 = vmax.f32 %v7305, 0.0
      %v7371 = vmax.f32 %v7307, 0.0
      %v7372 = vmax.f32 %v7309, 0.0
      %v7373 = vmax.f32 %v7313, 0.0
      %v7374 = vmax.f32 %v7315, 0.0
      %v7375 = vmax.f32 %v7317, 0.0
      %v7376 = vmax.f32 %v7319, 0.0
      %v7377 = vmax.f32 %v7323, 0.0
      %v7378 = vmax.f32 %v7325, 0.0
      %v7379 = vmax.f32 %v7327, 0.0
      %v7380 = vmax.f32 %v7329, 0.0
      %v7381 = vmax.f32 %v7333, 0.0
      %v7382 = vmax.f32 %v7335, 0.0
      %v7383 = vmax.f32 %v7337, 0.0
      %v7384 = vmax.f32 %v7339, 0.0
      %v7385 = vmax.f32 %v7343, 0.0
      %v7386 = vmax.f32 %v7345, 0.0
      %v7387 = vmax.f32 %v7347, 0.0
      %v7388 = vmax.f32 %v7349, 0.0
      %v7389 = vmax.f32 %v7353, 0.0
      %v7390 = vmax.f32 %v7355, 0.0
      %v7391 = vmax.f32 %v7357, 0.0
      %v7392 = vmax.f32 %v7359, 0.0
      %v7393 = vmax.f32 %v7363, 0.0
      %v7394 = vmax.f32 %v7365, 0.0
      %v7395 = vpack.c.bf16 %v7371, %v7369
      %v7396 = vpack.c.bf16 %v7372, %v7370
      %v7397 = vpack.c.bf16 %v7375, %v7373
      %v7398 = vpack.c.bf16 %v7376, %v7374
      %v7399 = vpack.c.bf16 %v7379, %v7377
      %v7400 = vpack.c.bf16 %v7380, %v7378
      %v7401 = vpack.c.bf16 %v7383, %v7381
      %v7402 = vpack.c.bf16 %v7384, %v7382
      %v7403 = vpack.c.bf16 %v7387, %v7385
      %v7404 = vpack.c.bf16 %v7388, %v7386
      %v7405 = vpack.c.bf16 %v7391, %v7389
      %v7406 = vpack.c.bf16 %v7392, %v7390
      %v7407 = vpack.c.bf16 %v7393, %v7393
      %v7408 = vpack.c.bf16 %v7394, %v7394
      %v7410 = vshrl.u32 %v7395, 16
      %v7412 = vshll.u32 %v7395, 16
      %v7414 = vrot.slane %v7412, 1
      %v7415 = vor.u32 %v7410, %v7414
      %v7417 = vshll.u32 %v7397, 16
      %v7419 = vrot.slane %v7417, 1
      %v7420 = vsel %vm1402, %v7415, %v7419
      %v7422 = vshrl.u32 %v7396, 16
      %v7424 = vshll.u32 %v7396, 16
      %v7426 = vrot.slane %v7424, 1
      %v7427 = vor.u32 %v7422, %v7426
      %v7429 = vshll.u32 %v7398, 16
      %v7431 = vrot.slane %v7429, 1
      %v7432 = vsel %vm1402, %v7427, %v7431
      %v7433 = vshrl.u32 %v7397, 16
      %v7435 = vor.u32 %v7433, %v7419
      %v7437 = vshll.u32 %v7399, 16
      %v7439 = vrot.slane %v7437, 1
      %v7440 = vsel %vm1402, %v7435, %v7439
      %v7441 = vshrl.u32 %v7398, 16
      %v7443 = vor.u32 %v7441, %v7431
      %v7445 = vshll.u32 %v7400, 16
      %v7447 = vrot.slane %v7445, 1
      %v7448 = vsel %vm1402, %v7443, %v7447
      %v7449 = vshrl.u32 %v7399, 16
      %v7451 = vor.u32 %v7449, %v7439
      %v7453 = vshll.u32 %v7401, 16
      %v7455 = vrot.slane %v7453, 1
      %v7456 = vsel %vm1402, %v7451, %v7455
      %v7457 = vshrl.u32 %v7400, 16
      %v7459 = vor.u32 %v7457, %v7447
      %v7461 = vshll.u32 %v7402, 16
      %v7463 = vrot.slane %v7461, 1
      %v7464 = vsel %vm1402, %v7459, %v7463
      %v7465 = vshrl.u32 %v7401, 16
      %v7467 = vor.u32 %v7465, %v7455
      %v7469 = vshll.u32 %v7403, 16
      %v7471 = vrot.slane %v7469, 1
      %v7472 = vsel %vm1402, %v7467, %v7471
      %v7473 = vshrl.u32 %v7402, 16
      %v7475 = vor.u32 %v7473, %v7463
      %v7477 = vshll.u32 %v7404, 16
      %v7479 = vrot.slane %v7477, 1
      %v7480 = vsel %vm1402, %v7475, %v7479
      %v7481 = vshrl.u32 %v7403, 16
      %v7483 = vor.u32 %v7481, %v7471
      %v7485 = vshll.u32 %v7405, 16
      %v7487 = vrot.slane %v7485, 1
      %v7488 = vsel %vm1402, %v7483, %v7487
      %v7489 = vshrl.u32 %v7404, 16
      %v7491 = vor.u32 %v7489, %v7479
      %v7493 = vshll.u32 %v7406, 16
      %v7495 = vrot.slane %v7493, 1
      %v7496 = vsel %vm1402, %v7491, %v7495
      %v7497 = vshrl.u32 %v7405, 16
      %v7499 = vor.u32 %v7497, %v7487
      %v7500 = vshrl.u32 %v7406, 16
      %v7502 = vor.u32 %v7500, %v7495
      %v7529 = vrot.slane %v7395, 1
      %v7530 = vrot.slane %v7397, 1
      %v7531 = vsel %vm1578, %v7529, %v7530
      %v7532 = vrot.slane %v7396, 1
      %v7533 = vrot.slane %v7398, 1
      %v7534 = vsel %vm1578, %v7532, %v7533
      %v7535 = vrot.slane %v7399, 1
      %v7536 = vsel %vm1578, %v7530, %v7535
      %v7537 = vrot.slane %v7400, 1
      %v7538 = vsel %vm1578, %v7533, %v7537
      %v7539 = vrot.slane %v7401, 1
      %v7540 = vsel %vm1578, %v7535, %v7539
      %v7541 = vrot.slane %v7402, 1
      %v7542 = vsel %vm1578, %v7537, %v7541
      %v7543 = vrot.slane %v7403, 1
      %v7544 = vsel %vm1578, %v7539, %v7543
      %v7545 = vrot.slane %v7404, 1
      %v7546 = vsel %vm1578, %v7541, %v7545
      %v7547 = vrot.slane %v7405, 1
      %v7548 = vsel %vm1578, %v7543, %v7547
      %v7549 = vrot.slane %v7406, 1
      %v7550 = vsel %vm1578, %v7545, %v7549
      %v7551 = vrot.slane %v7407, 1
      %v7552 = vsel %vm1578, %v7547, %v7551
      %v7553 = vrot.slane %v7408, 1
      %v7554 = vsel %vm1578, %v7549, %v7553
      %v7567 = vld [vmem:[%s17] sm:$0xf]
      %v7568 = vld [vmem:[%s17 + $0x4] sm:$0xf]
      %v7569 = vld [vmem:[%s17 + $0x8] sm:$0xf]
      %v7570 = vld [vmem:[%s17 + $0xc] sm:$0xf]
      %v7571 = vld [vmem:[%s17 + $0x10] sm:$0xf]
      %v7572 = vld [vmem:[%s17 + $0x14] sm:$0xf]
      %v7573 = vld [vmem:[%s17 + $0x18] sm:$0xf]
      %v7574 = vld [vmem:[%s17 + $0x1c] sm:$0xf]
      %v7575 = vld [vmem:[%s17 + $0x20] sm:$0xf]
      %v7576 = vld [vmem:[%s17 + $0x24] sm:$0xf]
      %v7577 = vld [vmem:[%s17 + $0x28] sm:$0xf]
      %v7578 = vld [vmem:[%s17 + $0x2c] sm:$0xf]
      %v7579 = vld [vmem:[%s17 + $0x30] sm:$0xf]
      %v7580 = vld [vmem:[%s17 + $0x34] sm:$0xf]
      %v7581 = vld [vmem:[%s17 + $0x38] sm:$0xf]
      %v7582 = vld [vmem:[%s17 + $0x3c] sm:$0xf]
      %v7583 = vld [vmem:[%s17 + $0x40] sm:$0xf]
      %v7584 = vld [vmem:[%s17 + $0x44] sm:$0xf]
      %v7585 = vld [vmem:[%s17 + $0x48] sm:$0xf]
      %v7586 = vld [vmem:[%s17 + $0x4c] sm:$0xf]
      %v7587 = vld [vmem:[%s17 + $0x50] sm:$0xf]
      %v7588 = vld [vmem:[%s17 + $0x54] sm:$0xf]
      %v7589 = vld [vmem:[%s17 + $0x58] sm:$0xf]
      %v7590 = vld [vmem:[%s17 + $0x5c] sm:$0xf]
      %v7591 = vld [vmem:[%s17 + $0x60] sm:$0xf]
      %v7592 = vld [vmem:[%s17 + $0x64] sm:$0xf]
      %v7593 = vld [vmem:[%s17 + $0x68] sm:$0xf]
      %v7594 = vld [vmem:[%s17 + $0x6c] sm:$0xf]
      %v7595 = vld [vmem:[%s17 + $0x70] sm:$0xf]
      %v7596 = vld [vmem:[%s17 + $0x74] sm:$0xf]
      %v7597 = vld [vmem:[%s17 + $0x78] sm:$0xf]
      %v7598 = vld [vmem:[%s17 + $0x7c] sm:$0xf]
      %v7599 = vld [vmem:[%s17 + $0x80] sm:$0xf]
      %v7600 = vld [vmem:[%s17 + $0x84] sm:$0xf]
      %v7601 = vld [vmem:[%s17 + $0x88] sm:$0xf]
      %v7602 = vld [vmem:[%s17 + $0x8c] sm:$0xf]
      %v7603 = vld [vmem:[%s17 + $0x90] sm:$0xf]
      %v7604 = vld [vmem:[%s17 + $0x94] sm:$0xf]
      %v7605 = vld [vmem:[%s17 + $0x98] sm:$0xf]
      %v7606 = vld [vmem:[%s17 + $0x9c] sm:$0xf]
      %v7607 = vld [vmem:[%s17 + $0xa0] sm:$0xf]
      %v7608 = vld [vmem:[%s17 + $0xa4] sm:$0xf]
      %v7609 = vld [vmem:[%s17 + $0xa8] sm:$0xf]
      %v7610 = vld [vmem:[%s17 + $0xac] sm:$0xf]
      %v7611 = vld [vmem:[%s17 + $0xb0] sm:$0xf]
      %v7612 = vld [vmem:[%s17 + $0xb4] sm:$0xf]
      %v7613 = vld [vmem:[%s17 + $0xb8] sm:$0xf]
      %v7614 = vld [vmem:[%s17 + $0xbc] sm:$0xf]
      %v7615 = vld [vmem:[%s17 + $0xc0] sm:$0xf]
      %v7616 = vld [vmem:[%s17 + $0xc4] sm:$0xf]
      %v7617 = vld [vmem:[%s17 + $0xc8] sm:$0xf]
      %v7618 = vld [vmem:[%s17 + $0xcc] sm:$0xf]
      %v7619 = vld [vmem:[%s17 + $0xd0] sm:$0xf]
      %v7620 = vld [vmem:[%s17 + $0xd4] sm:$0xf]
      %v7621 = vld [vmem:[%s17 + $0xd8] sm:$0xf]
      %v7622 = vld [vmem:[%s17 + $0xdc] sm:$0xf]
      %v7623 = vld [vmem:[%s17 + $0xe0] sm:$0xf]
      %v7624 = vld [vmem:[%s17 + $0xe4] sm:$0xf]
      %v7625 = vld [vmem:[%s17 + $0xe8] sm:$0xf]
      %v7626 = vld [vmem:[%s17 + $0xec] sm:$0xf]
      %v7627 = vld [vmem:[%s17 + $0xf0] sm:$0xf]
      %v7628 = vld [vmem:[%s17 + $0xf4] sm:$0xf]
      %v7629 = vld [vmem:[%s17 + $0xf8] sm:$0xf]
      %v7630 = vld [vmem:[%s17 + $0xfc] sm:$0xf]
      %v7631 = vld [vmem:[%s17 + $0x100] sm:$0xf]
      %v7632 = vld [vmem:[%s17 + $0x104] sm:$0xf]
      %v7633 = vld [vmem:[%s17 + $0x108] sm:$0xf]
      %v7634 = vld [vmem:[%s17 + $0x10c] sm:$0xf]
      %v7635 = vld [vmem:[%s17 + $0x110] sm:$0xf]
      %v7636 = vld [vmem:[%s17 + $0x114] sm:$0xf]
      %v7637 = vld [vmem:[%s17 + $0x118] sm:$0xf]
      %v7638 = vld [vmem:[%s17 + $0x11c] sm:$0xf]
      %v7639 = vld [vmem:[%s17 + $0x120] sm:$0xf]
      %v7640 = vld [vmem:[%s17 + $0x124] sm:$0xf]
      %v7641 = vld [vmem:[%s17 + $0x128] sm:$0xf]
      %v7642 = vld [vmem:[%s17 + $0x12c] sm:$0xf]
      %v7643 = vld [vmem:[%s17 + $0x130] sm:$0xf]
      %v7644 = vld [vmem:[%s17 + $0x134] sm:$0xf]
      %v7645 = vld [vmem:[%s17 + $0x138] sm:$0xf]
      %v7646 = vld [vmem:[%s17 + $0x13c] sm:$0xf]
      %v7647 = vld [vmem:[%s17 + $0x140] sm:$0xf]
      %v7648 = vld [vmem:[%s17 + $0x144] sm:$0xf]
      %v7649 = vld [vmem:[%s17 + $0x148] sm:$0xf]
      %v7650 = vld [vmem:[%s17 + $0x14c] sm:$0xf]
      %v7651 = vld [vmem:[%s17 + $0x150] sm:$0xf]
      %v7652 = vld [vmem:[%s17 + $0x154] sm:$0xf]
      %v7653 = vld [vmem:[%s17 + $0x158] sm:$0xf]
      %v7654 = vld [vmem:[%s17 + $0x15c] sm:$0xf]
      %v7655 = vld [vmem:[%s17 + $0x160] sm:$0xf]
      %v7656 = vld [vmem:[%s17 + $0x164] sm:$0xf]
      %v7657 = vld [vmem:[%s17 + $0x168] sm:$0xf]
      %v7658 = vld [vmem:[%s17 + $0x16c] sm:$0xf]
      %v7659 = vld [vmem:[%s17 + $0x170] sm:$0xf]
      %v7660 = vld [vmem:[%s17 + $0x174] sm:$0xf]
      %v7661 = vld [vmem:[%s17 + $0x178] sm:$0xf]
      %v7662 = vld [vmem:[%s17 + $0x17c] sm:$0xf]
      %v7663 = vld [vmem:[%s18] sm:$0x1]
      %v7665 = vlaneseq
      %v7666 = vshrl.u32 %v7665, 7
      %v7667 = vsub.s32 0, %v7666
      %v7668 = vrot.slane %v7663, %v7667
      %v7766 = vunpack.c.l.b16 %v7567
      %v7767 = vunpack.c.l.b16 %v7568
      %v7768 = vunpack.c.l.b16 %v7569
      %v7769 = vunpack.c.l.b16 %v7570
      %v7770 = vunpack.c.l.b16 %v7571
      %v7771 = vunpack.c.l.b16 %v7572
      %v7772 = vunpack.c.l.b16 %v7573
      %v7773 = vunpack.c.l.b16 %v7574
      %v7774 = vunpack.c.l.b16 %v7575
      %v7775 = vunpack.c.l.b16 %v7576
      %v7776 = vunpack.c.l.b16 %v7577
      %v7777 = vunpack.c.l.b16 %v7578
      %v7778 = vunpack.c.l.b16 %v7579
      %v7779 = vunpack.c.l.b16 %v7580
      %v7780 = vunpack.c.l.b16 %v7581
      %v7781 = vunpack.c.l.b16 %v7582
      %v7782 = vunpack.c.l.b16 %v7583
      %v7783 = vunpack.c.l.b16 %v7584
      %v7784 = vunpack.c.l.b16 %v7585
      %v7785 = vunpack.c.l.b16 %v7586
      %v7786 = vunpack.c.l.b16 %v7587
      %v7787 = vunpack.c.l.b16 %v7588
      %v7788 = vunpack.c.l.b16 %v7589
      %v7789 = vunpack.c.l.b16 %v7590
      %v7790 = vunpack.c.l.b16 %v7591
      %v7791 = vunpack.c.l.b16 %v7592
      %v7792 = vunpack.c.l.b16 %v7593
      %v7793 = vunpack.c.l.b16 %v7594
      %v7794 = vunpack.c.l.b16 %v7595
      %v7795 = vunpack.c.l.b16 %v7596
      %v7796 = vunpack.c.l.b16 %v7597
      %v7797 = vunpack.c.l.b16 %v7598
      %v7798 = vunpack.c.l.b16 %v7599
      %v7799 = vunpack.c.l.b16 %v7600
      %v7800 = vunpack.c.l.b16 %v7601
      %v7801 = vunpack.c.l.b16 %v7602
      %v7802 = vunpack.c.l.b16 %v7603
      %v7803 = vunpack.c.l.b16 %v7604
      %v7804 = vunpack.c.l.b16 %v7605
      %v7805 = vunpack.c.l.b16 %v7606
      %v7806 = vunpack.c.l.b16 %v7607
      %v7807 = vunpack.c.l.b16 %v7608
      %v7808 = vunpack.c.l.b16 %v7609
      %v7809 = vunpack.c.l.b16 %v7610
      %v7810 = vunpack.c.l.b16 %v7611
      %v7811 = vunpack.c.l.b16 %v7612
      %v7812 = vunpack.c.l.b16 %v7613
      %v7813 = vunpack.c.l.b16 %v7614
      %v7814 = vunpack.c.l.b16 %v7615
      %v7815 = vunpack.c.l.b16 %v7616
      %v7816 = vunpack.c.l.b16 %v7617
      %v7817 = vunpack.c.l.b16 %v7618
      %v7818 = vunpack.c.l.b16 %v7619
      %v7819 = vunpack.c.l.b16 %v7620
      %v7820 = vunpack.c.l.b16 %v7621
      %v7821 = vunpack.c.l.b16 %v7622
      %v7822 = vunpack.c.l.b16 %v7623
      %v7823 = vunpack.c.l.b16 %v7624
      %v7824 = vunpack.c.l.b16 %v7625
      %v7825 = vunpack.c.l.b16 %v7626
      %v7826 = vunpack.c.l.b16 %v7627
      %v7827 = vunpack.c.l.b16 %v7628
      %v7828 = vunpack.c.l.b16 %v7629
      %v7829 = vunpack.c.l.b16 %v7630
      %v7830 = vunpack.c.l.b16 %v7631
      %v7831 = vunpack.c.l.b16 %v7632
      %v7832 = vunpack.c.l.b16 %v7633
      %v7833 = vunpack.c.l.b16 %v7634
      %v7834 = vunpack.c.l.b16 %v7635
      %v7835 = vunpack.c.l.b16 %v7636
      %v7836 = vunpack.c.l.b16 %v7637
      %v7837 = vunpack.c.l.b16 %v7638
      %v7838 = vunpack.c.l.b16 %v7639
      %v7839 = vunpack.c.l.b16 %v7640
      %v7840 = vunpack.c.l.b16 %v7641
      %v7841 = vunpack.c.l.b16 %v7642
      %v7842 = vunpack.c.l.b16 %v7643
      %v7843 = vunpack.c.l.b16 %v7644
      %v7844 = vunpack.c.l.b16 %v7645
      %v7845 = vunpack.c.l.b16 %v7646
      %v7846 = vunpack.c.l.b16 %v7647
      %v7847 = vunpack.c.l.b16 %v7648
      %v7848 = vunpack.c.l.b16 %v7649
      %v7849 = vunpack.c.l.b16 %v7650
      %v7850 = vunpack.c.l.b16 %v7651
      %v7851 = vunpack.c.l.b16 %v7652
      %v7852 = vunpack.c.l.b16 %v7653
      %v7853 = vunpack.c.l.b16 %v7654
      %v7854 = vunpack.c.l.b16 %v7655
      %v7855 = vunpack.c.l.b16 %v7656
      %v7856 = vunpack.c.l.b16 %v7657
      %v7857 = vunpack.c.l.b16 %v7658
      %v7858 = vunpack.c.l.b16 %v7659
      %v7859 = vunpack.c.l.b16 %v7660
      %v7860 = vunpack.c.l.b16 %v7661
      %v7861 = vunpack.c.l.b16 %v7662
      %v7862 = vpack.c.b16 %v7767, %v7766
      %v7863 = vpack.c.b16 %v7769, %v7768
      %v7864 = vpack.c.b16 %v7771, %v7770
      %v7865 = vpack.c.b16 %v7773, %v7772
      %v7866 = vpack.c.b16 %v7775, %v7774
      %v7867 = vpack.c.b16 %v7777, %v7776
      %v7868 = vpack.c.b16 %v7779, %v7778
      %v7869 = vpack.c.b16 %v7781, %v7780
      %v7870 = vpack.c.b16 %v7783, %v7782
      %v7871 = vpack.c.b16 %v7785, %v7784
      %v7872 = vpack.c.b16 %v7787, %v7786
      %v7873 = vpack.c.b16 %v7789, %v7788
      %v7874 = vpack.c.b16 %v7791, %v7790
      %v7875 = vpack.c.b16 %v7793, %v7792
      %v7876 = vpack.c.b16 %v7795, %v7794
      %v7877 = vpack.c.b16 %v7797, %v7796
      %v7878 = vpack.c.b16 %v7799, %v7798
      %v7879 = vpack.c.b16 %v7801, %v7800
      %v7880 = vpack.c.b16 %v7803, %v7802
      %v7881 = vpack.c.b16 %v7805, %v7804
      %v7882 = vpack.c.b16 %v7807, %v7806
      %v7883 = vpack.c.b16 %v7809, %v7808
      %v7884 = vpack.c.b16 %v7811, %v7810
      %v7885 = vpack.c.b16 %v7813, %v7812
      %v7886 = vpack.c.b16 %v7815, %v7814
      %v7887 = vpack.c.b16 %v7817, %v7816
      %v7888 = vpack.c.b16 %v7819, %v7818
      %v7889 = vpack.c.b16 %v7821, %v7820
      %v7890 = vpack.c.b16 %v7823, %v7822
      %v7891 = vpack.c.b16 %v7825, %v7824
      %v7892 = vpack.c.b16 %v7827, %v7826
      %v7893 = vpack.c.b16 %v7829, %v7828
      %v7894 = vpack.c.b16 %v7831, %v7830
      %v7895 = vpack.c.b16 %v7833, %v7832
      %v7896 = vpack.c.b16 %v7835, %v7834
      %v7897 = vpack.c.b16 %v7837, %v7836
      %v7898 = vpack.c.b16 %v7839, %v7838
      %v7899 = vpack.c.b16 %v7841, %v7840
      %v7900 = vpack.c.b16 %v7843, %v7842
      %v7901 = vpack.c.b16 %v7845, %v7844
      %v7902 = vpack.c.b16 %v7847, %v7846
      %v7903 = vpack.c.b16 %v7849, %v7848
      %v7904 = vpack.c.b16 %v7851, %v7850
      %v7905 = vpack.c.b16 %v7853, %v7852
      %v7906 = vpack.c.b16 %v7855, %v7854
      %v7907 = vpack.c.b16 %v7857, %v7856
      %v7908 = vpack.c.b16 %v7859, %v7858
      %v7909 = vpack.c.b16 %v7861, %v7860
      %7958 = vmatprep.subr.bf16.mxu0 0
      %7959 = vmatpush1.bf16.msra.mxu0 %v7869
      %7960 = vmatprep.subr.bf16.mxu0 0
      %7961 = vmatpush1.bf16.msra.mxu0 %v7868
      %7962 = vmatprep.subr.bf16.mxu0 0
      %7963 = vmatpush1.bf16.msra.mxu0 %v7867
      %7964 = vmatprep.subr.bf16.mxu0 0
      %7965 = vmatpush1.bf16.msra.mxu0 %v7866
      %7966 = vmatprep.subr.bf16.mxu0 0
      %7967 = vmatpush1.bf16.msra.mxu0 %v7865
      %7968 = vmatprep.subr.bf16.mxu0 0
      %7969 = vmatpush1.bf16.msra.mxu0 %v7864
      %7970 = vmatprep.subr.bf16.mxu0 0
      %7971 = vmatpush1.bf16.msra.mxu0 %v7863
      %7972 = vmatprep.subr.bf16.mxu0 0
      %7973 = vmatpush1.bf16.msra.mxu0 %v7862
      %7974 = vmatprep.subr.bf16.mxu0 0
      %7975 = vmatpush2.bf16.msra.mxu0 %v7877
      %7976 = vmatprep.subr.bf16.mxu0 0
      %7977 = vmatpush2.bf16.msra.mxu0 %v7876
      %7978 = vmatprep.subr.bf16.mxu0 0
      %7979 = vmatpush2.bf16.msra.mxu0 %v7875
      %7980 = vmatprep.subr.bf16.mxu0 0
      %7981 = vmatpush2.bf16.msra.mxu0 %v7874
      %7982 = vmatprep.subr.bf16.mxu0 0
      %7983 = vmatpush2.bf16.msra.mxu0 %v7873
      %7984 = vmatprep.subr.bf16.mxu0 0
      %7985 = vmatpush2.bf16.msra.mxu0 %v7872
      %7986 = vmatprep.subr.bf16.mxu0 0
      %7987 = vmatpush2.bf16.msra.mxu0 %v7871
      %7988 = vmatprep.subr.bf16.mxu0 0
      %7989 = vmatpush2.bf16.msra.mxu0 %v7870
      %7990 = vmatprep.mubr.bf16.mxu0 %v7396
      %7991 = vmatmul.mubr.bf16.gmra.mxu0 %v7395
      %v7992 = vpop.f32.mrf.mxu0
      %v7993 = vadd.f32 %v7668, %v7992
      %v7994 = vpop.f32.mrf.mxu0
      %v7995 = vpop.f32.mrf.mxu0
      %v7996 = vadd.f32 %v7668, %v7995
      %v7997 = vpop.f32.mrf.mxu0
      %7998 = vmatprep.mubr.bf16.mxu0 %v7398
      %7999 = vmatmul.mubr.bf16.gmra.mxu0 %v7397
      %v8000 = vpop.f32.mrf.mxu0
      %v8001 = vadd.f32 %v7668, %v8000
      %v8002 = vpop.f32.mrf.mxu0
      %v8003 = vpop.f32.mrf.mxu0
      %v8004 = vadd.f32 %v7668, %v8003
      %v8005 = vpop.f32.mrf.mxu0
      %8006 = vmatprep.mubr.bf16.mxu0 %v7400
      %8007 = vmatmul.mubr.bf16.gmra.mxu0 %v7399
      %v8008 = vpop.f32.mrf.mxu0
      %v8009 = vadd.f32 %v7668, %v8008
      %v8010 = vpop.f32.mrf.mxu0
      %v8011 = vpop.f32.mrf.mxu0
      %v8012 = vadd.f32 %v7668, %v8011
      %v8013 = vpop.f32.mrf.mxu0
      %8014 = vmatprep.mubr.bf16.mxu0 %v7402
      %8015 = vmatmul.mubr.bf16.gmra.mxu0 %v7401
      %v8016 = vpop.f32.mrf.mxu0
      %v8017 = vadd.f32 %v7668, %v8016
      %v8018 = vpop.f32.mrf.mxu0
      %v8019 = vpop.f32.mrf.mxu0
      %v8020 = vadd.f32 %v7668, %v8019
      %v8021 = vpop.f32.mrf.mxu0
      %8022 = vmatprep.mubr.bf16.mxu0 %v7404
      %8023 = vmatmul.mubr.bf16.gmra.mxu0 %v7403
      %v8024 = vpop.f32.mrf.mxu0
      %v8025 = vadd.f32 %v7668, %v8024
      %v8026 = vpop.f32.mrf.mxu0
      %v8027 = vpop.f32.mrf.mxu0
      %v8028 = vadd.f32 %v7668, %v8027
      %v8029 = vpop.f32.mrf.mxu0
      %8030 = vmatprep.mubr.bf16.mxu0 %v7406
      %8031 = vmatmul.mubr.bf16.gmra.mxu0 %v7405
      %v8032 = vpop.f32.mrf.mxu0
      %v8033 = vadd.f32 %v7668, %v8032
      %v8034 = vpop.f32.mrf.mxu0
      %v8035 = vpop.f32.mrf.mxu0
      %v8036 = vadd.f32 %v7668, %v8035
      %v8037 = vpop.f32.mrf.mxu0
      %8038 = vdwg.mxu0
      %8039 = vmatprep.subr.bf16.mxu0 0
      %8040 = vmatpush1.bf16.msra.mxu0 %v7885
      %8041 = vmatprep.subr.bf16.mxu0 0
      %8042 = vmatpush1.bf16.msra.mxu0 %v7884
      %8043 = vmatprep.subr.bf16.mxu0 0
      %8044 = vmatpush1.bf16.msra.mxu0 %v7883
      %8045 = vmatprep.subr.bf16.mxu0 0
      %8046 = vmatpush1.bf16.msra.mxu0 %v7882
      %8047 = vmatprep.subr.bf16.mxu0 0
      %8048 = vmatpush1.bf16.msra.mxu0 %v7881
      %8049 = vmatprep.subr.bf16.mxu0 0
      %8050 = vmatpush1.bf16.msra.mxu0 %v7880
      %8051 = vmatprep.subr.bf16.mxu0 0
      %8052 = vmatpush1.bf16.msra.mxu0 %v7879
      %8053 = vmatprep.subr.bf16.mxu0 0
      %8054 = vmatpush1.bf16.msra.mxu0 %v7878
      %8055 = vmatprep.subr.bf16.mxu0 0
      %8056 = vmatpush2.bf16.msra.mxu0 %v7893
      %8057 = vmatprep.subr.bf16.mxu0 0
      %8058 = vmatpush2.bf16.msra.mxu0 %v7892
      %8059 = vmatprep.subr.bf16.mxu0 0
      %8060 = vmatpush2.bf16.msra.mxu0 %v7891
      %8061 = vmatprep.subr.bf16.mxu0 0
      %8062 = vmatpush2.bf16.msra.mxu0 %v7890
      %8063 = vmatprep.subr.bf16.mxu0 0
      %8064 = vmatpush2.bf16.msra.mxu0 %v7889
      %8065 = vmatprep.subr.bf16.mxu0 0
      %8066 = vmatpush2.bf16.msra.mxu0 %v7888
      %8067 = vmatprep.subr.bf16.mxu0 0
      %8068 = vmatpush2.bf16.msra.mxu0 %v7887
      %8069 = vmatprep.subr.bf16.mxu0 0
      %8070 = vmatpush2.bf16.msra.mxu0 %v7886
      %8071 = vmatprep.mubr.bf16.mxu0 %v7432
      %8072 = vmatmul.mubr.bf16.gmra.mxu0 %v7420
      %v8073 = vpop.f32.mrf.mxu0
      %v8074 = vadd.f32 %v7993, %v8073
      %v8075 = vpop.f32.mrf.mxu0
      %v8076 = vpop.f32.mrf.mxu0
      %v8077 = vadd.f32 %v7996, %v8076
      %v8078 = vpop.f32.mrf.mxu0
      %8079 = vmatprep.mubr.bf16.mxu0 %v7448
      %8080 = vmatmul.mubr.bf16.gmra.mxu0 %v7440
      %v8081 = vpop.f32.mrf.mxu0
      %v8082 = vadd.f32 %v8001, %v8081
      %v8083 = vpop.f32.mrf.mxu0
      %v8084 = vpop.f32.mrf.mxu0
      %v8085 = vadd.f32 %v8004, %v8084
      %v8086 = vpop.f32.mrf.mxu0
      %8087 = vmatprep.mubr.bf16.mxu0 %v7464
      %8088 = vmatmul.mubr.bf16.gmra.mxu0 %v7456
      %v8089 = vpop.f32.mrf.mxu0
      %v8090 = vadd.f32 %v8009, %v8089
      %v8091 = vpop.f32.mrf.mxu0
      %v8092 = vpop.f32.mrf.mxu0
      %v8093 = vadd.f32 %v8012, %v8092
      %v8094 = vpop.f32.mrf.mxu0
      %8095 = vmatprep.mubr.bf16.mxu0 %v7480
      %8096 = vmatmul.mubr.bf16.gmra.mxu0 %v7472
      %v8097 = vpop.f32.mrf.mxu0
      %v8098 = vadd.f32 %v8017, %v8097
      %v8099 = vpop.f32.mrf.mxu0
      %v8100 = vpop.f32.mrf.mxu0
      %v8101 = vadd.f32 %v8020, %v8100
      %v8102 = vpop.f32.mrf.mxu0
      %8103 = vmatprep.mubr.bf16.mxu0 %v7496
      %8104 = vmatmul.mubr.bf16.gmra.mxu0 %v7488
      %v8105 = vpop.f32.mrf.mxu0
      %v8106 = vadd.f32 %v8025, %v8105
      %v8107 = vpop.f32.mrf.mxu0
      %v8108 = vpop.f32.mrf.mxu0
      %v8109 = vadd.f32 %v8028, %v8108
      %v8110 = vpop.f32.mrf.mxu0
      %8111 = vmatprep.mubr.bf16.mxu0 %v7502
      %8112 = vmatmul.mubr.bf16.gmra.mxu0 %v7499
      %v8113 = vpop.f32.mrf.mxu0
      %v8114 = vadd.f32 %v8033, %v8113
      %v8115 = vpop.f32.mrf.mxu0
      %v8116 = vpop.f32.mrf.mxu0
      %v8117 = vadd.f32 %v8036, %v8116
      %v8118 = vpop.f32.mrf.mxu0
      %8119 = vdwg.mxu0
      %8120 = vmatprep.subr.bf16.mxu0 0
      %8121 = vmatpush1.bf16.msra.mxu0 %v7901
      %8122 = vmatprep.subr.bf16.mxu0 0
      %8123 = vmatpush1.bf16.msra.mxu0 %v7900
      %8124 = vmatprep.subr.bf16.mxu0 0
      %8125 = vmatpush1.bf16.msra.mxu0 %v7899
      %8126 = vmatprep.subr.bf16.mxu0 0
      %8127 = vmatpush1.bf16.msra.mxu0 %v7898
      %8128 = vmatprep.subr.bf16.mxu0 0
      %8129 = vmatpush1.bf16.msra.mxu0 %v7897
      %8130 = vmatprep.subr.bf16.mxu0 0
      %8131 = vmatpush1.bf16.msra.mxu0 %v7896
      %8132 = vmatprep.subr.bf16.mxu0 0
      %8133 = vmatpush1.bf16.msra.mxu0 %v7895
      %8134 = vmatprep.subr.bf16.mxu0 0
      %8135 = vmatpush1.bf16.msra.mxu0 %v7894
      %8136 = vmatprep.subr.bf16.mxu0 0
      %8137 = vmatpush2.bf16.msra.mxu0 %v7909
      %8138 = vmatprep.subr.bf16.mxu0 0
      %8139 = vmatpush2.bf16.msra.mxu0 %v7908
      %8140 = vmatprep.subr.bf16.mxu0 0
      %8141 = vmatpush2.bf16.msra.mxu0 %v7907
      %8142 = vmatprep.subr.bf16.mxu0 0
      %8143 = vmatpush2.bf16.msra.mxu0 %v7906
      %8144 = vmatprep.subr.bf16.mxu0 0
      %8145 = vmatpush2.bf16.msra.mxu0 %v7905
      %8146 = vmatprep.subr.bf16.mxu0 0
      %8147 = vmatpush2.bf16.msra.mxu0 %v7904
      %8148 = vmatprep.subr.bf16.mxu0 0
      %8149 = vmatpush2.bf16.msra.mxu0 %v7903
      %8150 = vmatprep.subr.bf16.mxu0 0
      %8151 = vmatpush2.bf16.msra.mxu0 %v7902
      %8152 = vmatprep.mubr.bf16.mxu0 %v7534
      %8153 = vmatmul.mubr.bf16.gmra.mxu0 %v7531
      %v8154 = vpop.f32.mrf.mxu0
      %v8155 = vadd.f32 %v8074, %v8154
      %v8156 = vpop.f32.mrf.mxu0
      %v8157 = vpop.f32.mrf.mxu0
      %v8158 = vadd.f32 %v8077, %v8157
      %v8159 = vpop.f32.mrf.mxu0
      %8160 = vmatprep.mubr.bf16.mxu0 %v7538
      %8161 = vmatmul.mubr.bf16.gmra.mxu0 %v7536
      %v8162 = vpop.f32.mrf.mxu0
      %v8163 = vadd.f32 %v8082, %v8162
      %v8164 = vpop.f32.mrf.mxu0
      %v8165 = vpop.f32.mrf.mxu0
      %v8166 = vadd.f32 %v8085, %v8165
      %v8167 = vpop.f32.mrf.mxu0
      %8168 = vmatprep.mubr.bf16.mxu0 %v7542
      %8169 = vmatmul.mubr.bf16.gmra.mxu0 %v7540
      %v8170 = vpop.f32.mrf.mxu0
      %v8171 = vadd.f32 %v8090, %v8170
      %v8172 = vpop.f32.mrf.mxu0
      %v8173 = vpop.f32.mrf.mxu0
      %v8174 = vadd.f32 %v8093, %v8173
      %v8175 = vpop.f32.mrf.mxu0
      %8176 = vmatprep.mubr.bf16.mxu0 %v7546
      %8177 = vmatmul.mubr.bf16.gmra.mxu0 %v7544
      %v8178 = vpop.f32.mrf.mxu0
      %v8179 = vadd.f32 %v8098, %v8178
      %v8180 = vpop.f32.mrf.mxu0
      %v8181 = vpop.f32.mrf.mxu0
      %v8182 = vadd.f32 %v8101, %v8181
      %v8183 = vpop.f32.mrf.mxu0
      %8184 = vmatprep.mubr.bf16.mxu0 %v7550
      %8185 = vmatmul.mubr.bf16.gmra.mxu0 %v7548
      %v8186 = vpop.f32.mrf.mxu0
      %v8187 = vadd.f32 %v8106, %v8186
      %v8188 = vpop.f32.mrf.mxu0
      %v8189 = vpop.f32.mrf.mxu0
      %v8190 = vadd.f32 %v8109, %v8189
      %v8191 = vpop.f32.mrf.mxu0
      %8192 = vmatprep.mubr.bf16.mxu0 %v7554
      %8193 = vmatmul.mubr.bf16.gmra.mxu0 %v7552
      %v8194 = vpop.f32.mrf.mxu0
      %v8195 = vadd.f32 %v8114, %v8194
      %v8196 = vpop.f32.mrf.mxu0
      %v8197 = vpop.f32.mrf.mxu0
      %v8198 = vadd.f32 %v8117, %v8197
      %v8199 = vpop.f32.mrf.mxu0
      %8200 = vdwg.mxu0
      %v8201 = vmax.f32 %v8155, 0.0
      %v8202 = vmax.f32 %v8158, 0.0
      %v8203 = vmax.f32 %v8163, 0.0
      %v8204 = vmax.f32 %v8166, 0.0
      %v8205 = vmax.f32 %v8171, 0.0
      %v8206 = vmax.f32 %v8174, 0.0
      %v8207 = vmax.f32 %v8179, 0.0
      %v8208 = vmax.f32 %v8182, 0.0
      %v8209 = vmax.f32 %v8187, 0.0
      %v8210 = vmax.f32 %v8190, 0.0
      %v8211 = vmax.f32 %v8195, 0.0
      %v8212 = vmax.f32 %v8198, 0.0
      %v8213 = vpack.c.bf16 %v8202, %v8201
      %v8214 = vpack.c.bf16 %v8204, %v8203
      %v8215 = vpack.c.bf16 %v8206, %v8205
      %v8216 = vpack.c.bf16 %v8208, %v8207
      %v8217 = vpack.c.bf16 %v8210, %v8209
      %v8218 = vpack.c.bf16 %v8212, %v8211
      %v8220 = vshrl.u32 %v8213, 16
      %v8222 = vshll.u32 %v8213, 16
      %v8224 = vrot.slane %v8222, 1
      %v8225 = vor.u32 %v8220, %v8224
      %v8227 = vshll.u32 %v8214, 16
      %v8229 = vrot.slane %v8227, 1
      %v8230 = vsel %vm1402, %v8225, %v8229
      %v8231 = vshrl.u32 %v8214, 16
      %v8233 = vor.u32 %v8231, %v8229
      %v8235 = vshll.u32 %v8215, 16
      %v8237 = vrot.slane %v8235, 1
      %v8238 = vsel %vm1402, %v8233, %v8237
      %v8239 = vshrl.u32 %v8215, 16
      %v8241 = vor.u32 %v8239, %v8237
      %v8243 = vshll.u32 %v8216, 16
      %v8245 = vrot.slane %v8243, 1
      %v8246 = vsel %vm1402, %v8241, %v8245
      %v8247 = vshrl.u32 %v8216, 16
      %v8249 = vor.u32 %v8247, %v8245
      %v8251 = vshll.u32 %v8217, 16
      %v8253 = vrot.slane %v8251, 1
      %v8254 = vsel %vm1402, %v8249, %v8253
      %v8255 = vshrl.u32 %v8217, 16
      %v8257 = vor.u32 %v8255, %v8253
      %v8259 = vshll.u32 %v8218, 16
      %v8261 = vrot.slane %v8259, 1
      %v8262 = vsel %vm1402, %v8257, %v8261
      %v8263 = vshrl.u32 %v8218, 16
      %v8265 = vor.u32 %v8263, %v8261
      %v8278 = vrot.slane %v8213, 1
      %v8279 = vrot.slane %v8214, 1
      %v8280 = vsel %vm1578, %v8278, %v8279
      %v8281 = vrot.slane %v8215, 1
      %v8282 = vsel %vm1578, %v8279, %v8281
      %v8283 = vrot.slane %v8216, 1
      %v8284 = vsel %vm1578, %v8281, %v8283
      %v8285 = vrot.slane %v8217, 1
      %v8286 = vsel %vm1578, %v8283, %v8285
      %v8287 = vrot.slane %v8218, 1
      %v8288 = vsel %vm1578, %v8285, %v8287
      %v8295 = vld [vmem:[%s19] sm:$0xf]
      %v8296 = vld [vmem:[%s19 + $0x4] sm:$0xf]
      %v8297 = vld [vmem:[%s19 + $0x8] sm:$0xf]
      %v8298 = vld [vmem:[%s19 + $0xc] sm:$0xf]
      %v8299 = vld [vmem:[%s19 + $0x10] sm:$0xf]
      %v8300 = vld [vmem:[%s19 + $0x14] sm:$0xf]
      %v8301 = vld [vmem:[%s19 + $0x18] sm:$0xf]
      %v8302 = vld [vmem:[%s19 + $0x1c] sm:$0xf]
      %v8303 = vld [vmem:[%s19 + $0x20] sm:$0xf]
      %v8304 = vld [vmem:[%s19 + $0x24] sm:$0xf]
      %v8305 = vld [vmem:[%s19 + $0x28] sm:$0xf]
      %v8306 = vld [vmem:[%s19 + $0x2c] sm:$0xf]
      %v8307 = vld [vmem:[%s19 + $0x30] sm:$0xf]
      %v8308 = vld [vmem:[%s19 + $0x34] sm:$0xf]
      %v8309 = vld [vmem:[%s19 + $0x38] sm:$0xf]
      %v8310 = vld [vmem:[%s19 + $0x3c] sm:$0xf]
      %v8311 = vld [vmem:[%s19 + $0x40] sm:$0xf]
      %v8312 = vld [vmem:[%s19 + $0x44] sm:$0xf]
      %v8313 = vld [vmem:[%s19 + $0x48] sm:$0xf]
      %v8314 = vld [vmem:[%s19 + $0x4c] sm:$0xf]
      %v8315 = vld [vmem:[%s19 + $0x50] sm:$0xf]
      %v8316 = vld [vmem:[%s19 + $0x54] sm:$0xf]
      %v8317 = vld [vmem:[%s19 + $0x58] sm:$0xf]
      %v8318 = vld [vmem:[%s19 + $0x5c] sm:$0xf]
      %v8319 = vld [vmem:[%s19 + $0x60] sm:$0xf]
      %v8320 = vld [vmem:[%s19 + $0x64] sm:$0xf]
      %v8321 = vld [vmem:[%s19 + $0x68] sm:$0xf]
      %v8322 = vld [vmem:[%s19 + $0x6c] sm:$0xf]
      %v8323 = vld [vmem:[%s19 + $0x70] sm:$0xf]
      %v8324 = vld [vmem:[%s19 + $0x74] sm:$0xf]
      %v8325 = vld [vmem:[%s19 + $0x78] sm:$0xf]
      %v8326 = vld [vmem:[%s19 + $0x7c] sm:$0xf]
      %v8327 = vld [vmem:[%s19 + $0x80] sm:$0xf]
      %v8328 = vld [vmem:[%s19 + $0x84] sm:$0xf]
      %v8329 = vld [vmem:[%s19 + $0x88] sm:$0xf]
      %v8330 = vld [vmem:[%s19 + $0x8c] sm:$0xf]
      %v8331 = vld [vmem:[%s19 + $0x90] sm:$0xf]
      %v8332 = vld [vmem:[%s19 + $0x94] sm:$0xf]
      %v8333 = vld [vmem:[%s19 + $0x98] sm:$0xf]
      %v8334 = vld [vmem:[%s19 + $0x9c] sm:$0xf]
      %v8335 = vld [vmem:[%s19 + $0xa0] sm:$0xf]
      %v8336 = vld [vmem:[%s19 + $0xa4] sm:$0xf]
      %v8337 = vld [vmem:[%s19 + $0xa8] sm:$0xf]
      %v8338 = vld [vmem:[%s19 + $0xac] sm:$0xf]
      %v8339 = vld [vmem:[%s19 + $0xb0] sm:$0xf]
      %v8340 = vld [vmem:[%s19 + $0xb4] sm:$0xf]
      %v8341 = vld [vmem:[%s19 + $0xb8] sm:$0xf]
      %v8342 = vld [vmem:[%s19 + $0xbc] sm:$0xf]
      %v8343 = vld [vmem:[%s20] sm:$0x1]
      %v8345 = vlaneseq
      %v8346 = vshrl.u32 %v8345, 7
      %v8347 = vsub.s32 0, %v8346
      %v8348 = vrot.slane %v8343, %v8347
      %v8398 = vunpack.c.l.b16 %v8295
      %v8399 = vunpack.c.l.b16 %v8296
      %v8400 = vunpack.c.l.b16 %v8297
      %v8401 = vunpack.c.l.b16 %v8298
      %v8402 = vunpack.c.l.b16 %v8299
      %v8403 = vunpack.c.l.b16 %v8300
      %v8404 = vunpack.c.l.b16 %v8301
      %v8405 = vunpack.c.l.b16 %v8302
      %v8406 = vunpack.c.l.b16 %v8303
      %v8407 = vunpack.c.l.b16 %v8304
      %v8408 = vunpack.c.l.b16 %v8305
      %v8409 = vunpack.c.l.b16 %v8306
      %v8410 = vunpack.c.l.b16 %v8307
      %v8411 = vunpack.c.l.b16 %v8308
      %v8412 = vunpack.c.l.b16 %v8309
      %v8413 = vunpack.c.l.b16 %v8310
      %v8414 = vunpack.c.l.b16 %v8311
      %v8415 = vunpack.c.l.b16 %v8312
      %v8416 = vunpack.c.l.b16 %v8313
      %v8417 = vunpack.c.l.b16 %v8314
      %v8418 = vunpack.c.l.b16 %v8315
      %v8419 = vunpack.c.l.b16 %v8316
      %v8420 = vunpack.c.l.b16 %v8317
      %v8421 = vunpack.c.l.b16 %v8318
      %v8422 = vunpack.c.l.b16 %v8319
      %v8423 = vunpack.c.l.b16 %v8320
      %v8424 = vunpack.c.l.b16 %v8321
      %v8425 = vunpack.c.l.b16 %v8322
      %v8426 = vunpack.c.l.b16 %v8323
      %v8427 = vunpack.c.l.b16 %v8324
      %v8428 = vunpack.c.l.b16 %v8325
      %v8429 = vunpack.c.l.b16 %v8326
      %v8430 = vunpack.c.l.b16 %v8327
      %v8431 = vunpack.c.l.b16 %v8328
      %v8432 = vunpack.c.l.b16 %v8329
      %v8433 = vunpack.c.l.b16 %v8330
      %v8434 = vunpack.c.l.b16 %v8331
      %v8435 = vunpack.c.l.b16 %v8332
      %v8436 = vunpack.c.l.b16 %v8333
      %v8437 = vunpack.c.l.b16 %v8334
      %v8438 = vunpack.c.l.b16 %v8335
      %v8439 = vunpack.c.l.b16 %v8336
      %v8440 = vunpack.c.l.b16 %v8337
      %v8441 = vunpack.c.l.b16 %v8338
      %v8442 = vunpack.c.l.b16 %v8339
      %v8443 = vunpack.c.l.b16 %v8340
      %v8444 = vunpack.c.l.b16 %v8341
      %v8445 = vunpack.c.l.b16 %v8342
      %v8446 = vpack.c.b16 %v8399, %v8398
      %v8447 = vpack.c.b16 %v8401, %v8400
      %v8448 = vpack.c.b16 %v8403, %v8402
      %v8449 = vpack.c.b16 %v8405, %v8404
      %v8450 = vpack.c.b16 %v8407, %v8406
      %v8451 = vpack.c.b16 %v8409, %v8408
      %v8452 = vpack.c.b16 %v8411, %v8410
      %v8453 = vpack.c.b16 %v8413, %v8412
      %v8454 = vpack.c.b16 %v8415, %v8414
      %v8455 = vpack.c.b16 %v8417, %v8416
      %v8456 = vpack.c.b16 %v8419, %v8418
      %v8457 = vpack.c.b16 %v8421, %v8420
      %v8458 = vpack.c.b16 %v8423, %v8422
      %v8459 = vpack.c.b16 %v8425, %v8424
      %v8460 = vpack.c.b16 %v8427, %v8426
      %v8461 = vpack.c.b16 %v8429, %v8428
      %v8462 = vpack.c.b16 %v8431, %v8430
      %v8463 = vpack.c.b16 %v8433, %v8432
      %v8464 = vpack.c.b16 %v8435, %v8434
      %v8465 = vpack.c.b16 %v8437, %v8436
      %v8466 = vpack.c.b16 %v8439, %v8438
      %v8467 = vpack.c.b16 %v8441, %v8440
      %v8468 = vpack.c.b16 %v8443, %v8442
      %v8469 = vpack.c.b16 %v8445, %v8444
      %8494 = vmatprep.subr.bf16.mxu0 0
      %8495 = vmatpush1.bf16.msra.mxu0 %v8453
      %8496 = vmatprep.subr.bf16.mxu0 0
      %8497 = vmatpush1.bf16.msra.mxu0 %v8452
      %8498 = vmatprep.subr.bf16.mxu0 0
      %8499 = vmatpush1.bf16.msra.mxu0 %v8451
      %8500 = vmatprep.subr.bf16.mxu0 0
      %8501 = vmatpush1.bf16.msra.mxu0 %v8450
      %8502 = vmatprep.subr.bf16.mxu0 0
      %8503 = vmatpush1.bf16.msra.mxu0 %v8449
      %8504 = vmatprep.subr.bf16.mxu0 0
      %8505 = vmatpush1.bf16.msra.mxu0 %v8448
      %8506 = vmatprep.subr.bf16.mxu0 0
      %8507 = vmatpush1.bf16.msra.mxu0 %v8447
      %8508 = vmatprep.subr.bf16.mxu0 0
      %8509 = vmatpush1.bf16.msra.mxu0 %v8446
      %8510 = vmatprep.subr.bf16.mxu0 0
      %8511 = vmatpush2.bf16.msra.mxu0 %v8461
      %8512 = vmatprep.subr.bf16.mxu0 0
      %8513 = vmatpush2.bf16.msra.mxu0 %v8460
      %8514 = vmatprep.subr.bf16.mxu0 0
      %8515 = vmatpush2.bf16.msra.mxu0 %v8459
      %8516 = vmatprep.subr.bf16.mxu0 0
      %8517 = vmatpush2.bf16.msra.mxu0 %v8458
      %8518 = vmatprep.subr.bf16.mxu0 0
      %8519 = vmatpush2.bf16.msra.mxu0 %v8457
      %8520 = vmatprep.subr.bf16.mxu0 0
      %8521 = vmatpush2.bf16.msra.mxu0 %v8456
      %8522 = vmatprep.subr.bf16.mxu0 0
      %8523 = vmatpush2.bf16.msra.mxu0 %v8455
      %8524 = vmatprep.subr.bf16.mxu0 0
      %8525 = vmatpush2.bf16.msra.mxu0 %v8454
      %8526 = vmatprep.mubr.bf16.mxu0 %v8230
      %8527 = vmatmul.mubr.bf16.gmra.mxu0 %v8213
      %v8528 = vpop.f32.mrf.mxu0
      %v8529 = vadd.f32 %v8348, %v8528
      %v8530 = vpop.f32.mrf.mxu0
      %v8531 = vpop.f32.mrf.mxu0
      %v8532 = vadd.f32 %v8348, %v8531
      %v8533 = vpop.f32.mrf.mxu0
      %8534 = vmatprep.mubr.bf16.mxu0 %v8238
      %8535 = vmatmul.mubr.bf16.gmra.mxu0 %v8214
      %v8536 = vpop.f32.mrf.mxu0
      %v8537 = vadd.f32 %v8348, %v8536
      %v8538 = vpop.f32.mrf.mxu0
      %v8539 = vpop.f32.mrf.mxu0
      %v8540 = vadd.f32 %v8348, %v8539
      %v8541 = vpop.f32.mrf.mxu0
      %8542 = vmatprep.mubr.bf16.mxu0 %v8246
      %8543 = vmatmul.mubr.bf16.gmra.mxu0 %v8215
      %v8544 = vpop.f32.mrf.mxu0
      %v8545 = vadd.f32 %v8348, %v8544
      %v8546 = vpop.f32.mrf.mxu0
      %v8547 = vpop.f32.mrf.mxu0
      %v8548 = vadd.f32 %v8348, %v8547
      %v8549 = vpop.f32.mrf.mxu0
      %8550 = vmatprep.mubr.bf16.mxu0 %v8254
      %8551 = vmatmul.mubr.bf16.gmra.mxu0 %v8216
      %v8552 = vpop.f32.mrf.mxu0
      %v8553 = vadd.f32 %v8348, %v8552
      %v8554 = vpop.f32.mrf.mxu0
      %v8555 = vpop.f32.mrf.mxu0
      %v8556 = vadd.f32 %v8348, %v8555
      %v8557 = vpop.f32.mrf.mxu0
      %8558 = vmatprep.mubr.bf16.mxu0 %v8262
      %8559 = vmatmul.mubr.bf16.gmra.mxu0 %v8217
      %v8560 = vpop.f32.mrf.mxu0
      %v8561 = vadd.f32 %v8348, %v8560
      %v8562 = vpop.f32.mrf.mxu0
      %v8563 = vpop.f32.mrf.mxu0
      %v8564 = vadd.f32 %v8348, %v8563
      %v8565 = vpop.f32.mrf.mxu0
      %8566 = vmatprep.mubr.bf16.mxu0 %v8265
      %8567 = vmatmul.mubr.bf16.gmra.mxu0 %v8218
      %v8568 = vpop.f32.mrf.mxu0
      %v8569 = vadd.f32 %v8348, %v8568
      %v8570 = vpop.f32.mrf.mxu0
      %v8571 = vpop.f32.mrf.mxu0
      %v8572 = vadd.f32 %v8348, %v8571
      %v8573 = vpop.f32.mrf.mxu0
      %8574 = vdwg.mxu0
      %8575 = vmatprep.subr.bf16.mxu0 0
      %8576 = vmatpush1.bf16.msra.mxu0 %v8469
      %8577 = vmatprep.subr.bf16.mxu0 0
      %8578 = vmatpush1.bf16.msra.mxu0 %v8468
      %8579 = vmatprep.subr.bf16.mxu0 0
      %8580 = vmatpush1.bf16.msra.mxu0 %v8467
      %8581 = vmatprep.subr.bf16.mxu0 0
      %8582 = vmatpush1.bf16.msra.mxu0 %v8466
      %8583 = vmatprep.subr.bf16.mxu0 0
      %8584 = vmatpush1.bf16.msra.mxu0 %v8465
      %8585 = vmatprep.subr.bf16.mxu0 0
      %8586 = vmatpush1.bf16.msra.mxu0 %v8464
      %8587 = vmatprep.subr.bf16.mxu0 0
      %8588 = vmatpush1.bf16.msra.mxu0 %v8463
      %8589 = vmatprep.subr.bf16.mxu0 0
      %8590 = vmatpush1.bf16.msra.mxu0 %v8462
      %8591 = vmatprep.subr.bf16.mxu0 0
      %8592 = vmatpush2.bf16.msra.mxu0 0
      %8593 = vmatprep.subr.bf16.mxu0 0
      %8594 = vmatpush2.bf16.msra.mxu0 0
      %8595 = vmatprep.subr.bf16.mxu0 0
      %8596 = vmatpush2.bf16.msra.mxu0 0
      %8597 = vmatprep.subr.bf16.mxu0 0
      %8598 = vmatpush2.bf16.msra.mxu0 0
      %8599 = vmatprep.subr.bf16.mxu0 0
      %8600 = vmatpush2.bf16.msra.mxu0 0
      %8601 = vmatprep.subr.bf16.mxu0 0
      %8602 = vmatpush2.bf16.msra.mxu0 0
      %8603 = vmatprep.subr.bf16.mxu0 0
      %8604 = vmatpush2.bf16.msra.mxu0 0
      %8605 = vmatprep.subr.bf16.mxu0 0
      %8606 = vmatpush2.bf16.msra.mxu0 0
      %8607 = vmatprep.mubr.bf16.mxu0 0
      %8608 = vmatmul.mubr.bf16.gmra.mxu0 %v8280
      %v8609 = vpop.f32.mrf.mxu0
      %v8610 = vadd.f32 %v8529, %v8609
      %v8611 = vpop.f32.mrf.mxu0
      %v8612 = vpop.f32.mrf.mxu0
      %v8613 = vadd.f32 %v8532, %v8612
      %v8614 = vpop.f32.mrf.mxu0
      %8615 = vmatprep.mubr.bf16.mxu0 0
      %8616 = vmatmul.mubr.bf16.gmra.mxu0 %v8282
      %v8617 = vpop.f32.mrf.mxu0
      %v8618 = vadd.f32 %v8537, %v8617
      %v8619 = vpop.f32.mrf.mxu0
      %v8620 = vpop.f32.mrf.mxu0
      %v8621 = vadd.f32 %v8540, %v8620
      %v8622 = vpop.f32.mrf.mxu0
      %8623 = vmatprep.mubr.bf16.mxu0 0
      %8624 = vmatmul.mubr.bf16.gmra.mxu0 %v8284
      %v8625 = vpop.f32.mrf.mxu0
      %v8626 = vadd.f32 %v8545, %v8625
      %v8627 = vpop.f32.mrf.mxu0
      %v8628 = vpop.f32.mrf.mxu0
      %v8629 = vadd.f32 %v8548, %v8628
      %v8630 = vpop.f32.mrf.mxu0
      %8631 = vmatprep.mubr.bf16.mxu0 0
      %8632 = vmatmul.mubr.bf16.gmra.mxu0 %v8286
      %v8633 = vpop.f32.mrf.mxu0
      %v8634 = vadd.f32 %v8553, %v8633
      %v8635 = vpop.f32.mrf.mxu0
      %v8636 = vpop.f32.mrf.mxu0
      %v8637 = vadd.f32 %v8556, %v8636
      %v8638 = vpop.f32.mrf.mxu0
      %8639 = vmatprep.mubr.bf16.mxu0 0
      %8640 = vmatmul.mubr.bf16.gmra.mxu0 %v8288
      %v8641 = vpop.f32.mrf.mxu0
      %v8642 = vadd.f32 %v8561, %v8641
      %v8643 = vpop.f32.mrf.mxu0
      %v8644 = vpop.f32.mrf.mxu0
      %v8645 = vadd.f32 %v8564, %v8644
      %v8646 = vpop.f32.mrf.mxu0
      %8647 = vmatprep.mubr.bf16.mxu0 0
      %8648 = vmatmul.mubr.bf16.gmra.mxu0 %v8287
      %v8649 = vpop.f32.mrf.mxu0
      %v8650 = vadd.f32 %v8569, %v8649
      %v8651 = vpop.f32.mrf.mxu0
      %v8652 = vpop.f32.mrf.mxu0
      %v8653 = vadd.f32 %v8572, %v8652
      %v8654 = vpop.f32.mrf.mxu0
      %8655 = vdwg.mxu0
      %v8656 = vmax.f32 %v8610, 0.0
      %v8657 = vmax.f32 %v8613, 0.0
      %v8658 = vmax.f32 %v8618, 0.0
      %v8659 = vmax.f32 %v8621, 0.0
      %v8660 = vmax.f32 %v8626, 0.0
      %v8661 = vmax.f32 %v8629, 0.0
      %v8662 = vmax.f32 %v8634, 0.0
      %v8663 = vmax.f32 %v8637, 0.0
      %v8664 = vmax.f32 %v8642, 0.0
      %v8665 = vmax.f32 %v8645, 0.0
      %v8666 = vmax.f32 %v8650, 0.0
      %v8667 = vmax.f32 %v8653, 0.0
      %v8668 = vpack.c.bf16 %v8657, %v8656
      %v8669 = vpack.c.bf16 %v8659, %v8658
      %v8670 = vpack.c.bf16 %v8661, %v8660
      %v8671 = vpack.c.bf16 %v8663, %v8662
      %v8672 = vpack.c.bf16 %v8665, %v8664
      %v8673 = vpack.c.bf16 %v8667, %v8666
      %v8675 = vshrl.u32 %v8668, 16
      %v8677 = vshll.u32 %v8668, 16
      %v8679 = vrot.slane %v8677, 1
      %v8680 = vor.u32 %v8675, %v8679
      %v8682 = vshll.u32 %v8669, 16
      %v8684 = vrot.slane %v8682, 1
      %v8685 = vsel %vm1402, %v8680, %v8684
      %v8686 = vshrl.u32 %v8669, 16
      %v8688 = vor.u32 %v8686, %v8684
      %v8690 = vshll.u32 %v8670, 16
      %v8692 = vrot.slane %v8690, 1
      %v8693 = vsel %vm1402, %v8688, %v8692
      %v8694 = vshrl.u32 %v8670, 16
      %v8696 = vor.u32 %v8694, %v8692
      %v8698 = vshll.u32 %v8671, 16
      %v8700 = vrot.slane %v8698, 1
      %v8701 = vsel %vm1402, %v8696, %v8700
      %v8702 = vshrl.u32 %v8671, 16
      %v8704 = vor.u32 %v8702, %v8700
      %v8706 = vshll.u32 %v8672, 16
      %v8708 = vrot.slane %v8706, 1
      %v8709 = vsel %vm1402, %v8704, %v8708
      %v8710 = vshrl.u32 %v8672, 16
      %v8712 = vor.u32 %v8710, %v8708
      %v8714 = vshll.u32 %v8673, 16
      %v8716 = vrot.slane %v8714, 1
      %v8717 = vsel %vm1402, %v8712, %v8716
      %v8718 = vshrl.u32 %v8673, 16
      %v8720 = vor.u32 %v8718, %v8716
      %8721 = vrot.lane.b32.xlu0 %v8685, 64
      %v8722 = vpop.permute.xlu0 %8721
      %8723 = vrot.lane.b32.xlu0 %v8693, 64
      %v8724 = vpop.permute.xlu0 %8723
      %8725 = vrot.lane.b32.xlu0 %v8701, 64
      %v8726 = vpop.permute.xlu0 %8725
      %8727 = vrot.lane.b32.xlu0 %v8709, 64
      %v8728 = vpop.permute.xlu0 %8727
      %8729 = vrot.lane.b32.xlu0 %v8717, 64
      %v8730 = vpop.permute.xlu0 %8729
      %8731 = vrot.lane.b32.xlu0 %v8720, 64
      %v8732 = vpop.permute.xlu0 %8731
      %v8739 = vrot.slane %v8668, 1
      %v8740 = vrot.slane %v8669, 1
      %v8741 = vsel %vm1578, %v8739, %v8740
      %v8742 = vrot.slane %v8670, 1
      %v8743 = vsel %vm1578, %v8740, %v8742
      %v8744 = vrot.slane %v8671, 1
      %v8745 = vsel %vm1578, %v8742, %v8744
      %v8746 = vrot.slane %v8672, 1
      %v8747 = vsel %vm1578, %v8744, %v8746
      %v8748 = vrot.slane %v8673, 1
      %v8749 = vsel %vm1578, %v8746, %v8748
      %v8751 = vsel %vm3207, %v8668, %v8722
      %v8754 = vsel %vm3207, %v8669, %v8724
      %v8757 = vsel %vm3207, %v8670, %v8726
      %v8760 = vsel %vm3207, %v8671, %v8728
      %v8763 = vsel %vm3207, %v8672, %v8730
      %v8766 = vsel %vm3207, %v8673, %v8732
      %v8768 = vld [vmem:[%s21] sm:$0xf]
      %v8769 = vld [vmem:[%s21 + $0x4] sm:$0xf]
      %v8770 = vld [vmem:[%s21 + $0x8] sm:$0xf]
      %v8771 = vld [vmem:[%s21 + $0xc] sm:$0xf]
      %v8772 = vld [vmem:[%s21 + $0x10] sm:$0xf]
      %v8773 = vld [vmem:[%s21 + $0x14] sm:$0xf]
      %v8774 = vld [vmem:[%s21 + $0x18] sm:$0xf]
      %v8775 = vld [vmem:[%s21 + $0x1c] sm:$0xf]
      %v8776 = vld [vmem:[%s21 + $0x20] sm:$0xf]
      %v8777 = vld [vmem:[%s21 + $0x24] sm:$0xf]
      %v8778 = vld [vmem:[%s21 + $0x28] sm:$0xf]
      %v8779 = vld [vmem:[%s21 + $0x2c] sm:$0xf]
      %v8780 = vld [vmem:[%s21 + $0x30] sm:$0xf]
      %v8781 = vld [vmem:[%s21 + $0x34] sm:$0xf]
      %v8782 = vld [vmem:[%s21 + $0x38] sm:$0xf]
      %v8783 = vld [vmem:[%s21 + $0x3c] sm:$0xf]
      %v8784 = vld [vmem:[%s21 + $0x40] sm:$0xf]
      %v8785 = vld [vmem:[%s21 + $0x44] sm:$0xf]
      %v8786 = vld [vmem:[%s21 + $0x48] sm:$0xf]
      %v8787 = vld [vmem:[%s21 + $0x4c] sm:$0xf]
      %v8788 = vld [vmem:[%s21 + $0x50] sm:$0xf]
      %v8789 = vld [vmem:[%s21 + $0x54] sm:$0xf]
      %v8790 = vld [vmem:[%s21 + $0x58] sm:$0xf]
      %v8791 = vld [vmem:[%s21 + $0x5c] sm:$0xf]
      %v8792 = vld [vmem:[%s22] sm:$0x1]
      %v8794 = vlaneseq
      %v8795 = vshrl.u32 %v8794, 7
      %v8796 = vsub.s32 0, %v8795
      %v8797 = vrot.slane %v8792, %v8796
      %v8823 = vunpack.c.l.b16 %v8768
      %v8824 = vunpack.c.l.b16 %v8769
      %v8825 = vunpack.c.l.b16 %v8770
      %v8826 = vunpack.c.l.b16 %v8771
      %v8827 = vunpack.c.l.b16 %v8772
      %v8828 = vunpack.c.l.b16 %v8773
      %v8829 = vunpack.c.l.b16 %v8774
      %v8830 = vunpack.c.l.b16 %v8775
      %v8831 = vunpack.c.l.b16 %v8776
      %v8832 = vunpack.c.l.b16 %v8777
      %v8833 = vunpack.c.l.b16 %v8778
      %v8834 = vunpack.c.l.b16 %v8779
      %v8835 = vunpack.c.l.b16 %v8780
      %v8836 = vunpack.c.l.b16 %v8781
      %v8837 = vunpack.c.l.b16 %v8782
      %v8838 = vunpack.c.l.b16 %v8783
      %v8839 = vunpack.c.l.b16 %v8784
      %v8840 = vunpack.c.l.b16 %v8785
      %v8841 = vunpack.c.l.b16 %v8786
      %v8842 = vunpack.c.l.b16 %v8787
      %v8843 = vunpack.c.l.b16 %v8788
      %v8844 = vunpack.c.l.b16 %v8789
      %v8845 = vunpack.c.l.b16 %v8790
      %v8846 = vunpack.c.l.b16 %v8791
      %v8847 = vpack.c.b16 %v8824, %v8823
      %v8848 = vpack.c.b16 %v8826, %v8825
      %v8849 = vpack.c.b16 %v8828, %v8827
      %v8850 = vpack.c.b16 %v8830, %v8829
      %v8851 = vpack.c.b16 %v8832, %v8831
      %v8852 = vpack.c.b16 %v8834, %v8833
      %v8853 = vpack.c.b16 %v8836, %v8835
      %v8854 = vpack.c.b16 %v8838, %v8837
      %v8855 = vpack.c.b16 %v8840, %v8839
      %v8856 = vpack.c.b16 %v8842, %v8841
      %v8857 = vpack.c.b16 %v8844, %v8843
      %v8858 = vpack.c.b16 %v8846, %v8845
      %v8872 = vsel %vm3207, %v8741, 0
      %v8875 = vsel %vm3207, %v8743, 0
      %v8878 = vsel %vm3207, %v8745, 0
      %v8881 = vsel %vm3207, %v8747, 0
      %v8884 = vsel %vm3207, %v8749, 0
      %v8887 = vsel %vm3207, %v8748, 0
      %8889 = vmatprep.subr.bf16.mxu0 0
      %8890 = vmatpush1.bf16.msra.mxu0 %v8854
      %8891 = vmatprep.subr.bf16.mxu0 0
      %8892 = vmatpush1.bf16.msra.mxu0 %v8853
      %8893 = vmatprep.subr.bf16.mxu0 0
      %8894 = vmatpush1.bf16.msra.mxu0 %v8852
      %8895 = vmatprep.subr.bf16.mxu0 0
      %8896 = vmatpush1.bf16.msra.mxu0 %v8851
      %8897 = vmatprep.subr.bf16.mxu0 0
      %8898 = vmatpush1.bf16.msra.mxu0 %v8850
      %8899 = vmatprep.subr.bf16.mxu0 0
      %8900 = vmatpush1.bf16.msra.mxu0 %v8849
      %8901 = vmatprep.subr.bf16.mxu0 0
      %8902 = vmatpush1.bf16.msra.mxu0 %v8848
      %8903 = vmatprep.subr.bf16.mxu0 0
      %8904 = vmatpush1.bf16.msra.mxu0 %v8847
      %8905 = vmatprep.subr.bf16.mxu0 0
      %8906 = vmatpush2.bf16.msra.mxu0 0
      %8907 = vmatprep.subr.bf16.mxu0 0
      %8908 = vmatpush2.bf16.msra.mxu0 0
      %8909 = vmatprep.subr.bf16.mxu0 0
      %8910 = vmatpush2.bf16.msra.mxu0 0
      %8911 = vmatprep.subr.bf16.mxu0 0
      %8912 = vmatpush2.bf16.msra.mxu0 0
      %8913 = vmatprep.subr.bf16.mxu0 0
      %8914 = vmatpush2.bf16.msra.mxu0 %v8858
      %8915 = vmatprep.subr.bf16.mxu0 0
      %8916 = vmatpush2.bf16.msra.mxu0 %v8857
      %8917 = vmatprep.subr.bf16.mxu0 0
      %8918 = vmatpush2.bf16.msra.mxu0 %v8856
      %8919 = vmatprep.subr.bf16.mxu0 0
      %8920 = vmatpush2.bf16.msra.mxu0 %v8855
      %8921 = vmatprep.mubr.bf16.mxu0 %v8872
      %8922 = vmatmul.mubr.bf16.gmra.mxu0 %v8751
      %v8923 = vpop.f32.mrf.mxu0
      %v8924 = vadd.f32 %v8797, %v8923
      %v8925 = vpop.f32.mrf.mxu0
      %v8926 = vpop.f32.mrf.mxu0
      %v8927 = vadd.f32 %v8797, %v8926
      %v8928 = vpop.f32.mrf.mxu0
      %8929 = vmatprep.mubr.bf16.mxu0 %v8875
      %8930 = vmatmul.mubr.bf16.gmra.mxu0 %v8754
      %v8931 = vpop.f32.mrf.mxu0
      %v8932 = vadd.f32 %v8797, %v8931
      %v8933 = vpop.f32.mrf.mxu0
      %v8934 = vpop.f32.mrf.mxu0
      %v8935 = vadd.f32 %v8797, %v8934
      %v8936 = vpop.f32.mrf.mxu0
      %8937 = vmatprep.mubr.bf16.mxu0 %v8878
      %8938 = vmatmul.mubr.bf16.gmra.mxu0 %v8757
      %v8939 = vpop.f32.mrf.mxu0
      %v8940 = vadd.f32 %v8797, %v8939
      %v8941 = vpop.f32.mrf.mxu0
      %v8942 = vpop.f32.mrf.mxu0
      %v8943 = vadd.f32 %v8797, %v8942
      %v8944 = vpop.f32.mrf.mxu0
      %8945 = vmatprep.mubr.bf16.mxu0 %v8881
      %8946 = vmatmul.mubr.bf16.gmra.mxu0 %v8760
      %v8947 = vpop.f32.mrf.mxu0
      %v8948 = vadd.f32 %v8797, %v8947
      %v8949 = vpop.f32.mrf.mxu0
      %v8950 = vpop.f32.mrf.mxu0
      %v8951 = vadd.f32 %v8797, %v8950
      %v8952 = vpop.f32.mrf.mxu0
      %8953 = vmatprep.mubr.bf16.mxu0 %v8884
      %8954 = vmatmul.mubr.bf16.gmra.mxu0 %v8763
      %v8955 = vpop.f32.mrf.mxu0
      %v8956 = vadd.f32 %v8797, %v8955
      %v8957 = vpop.f32.mrf.mxu0
      %v8958 = vpop.f32.mrf.mxu0
      %v8959 = vadd.f32 %v8797, %v8958
      %v8960 = vpop.f32.mrf.mxu0
      %8961 = vmatprep.mubr.bf16.mxu0 %v8887
      %8962 = vmatmul.mubr.bf16.gmra.mxu0 %v8766
      %v8963 = vpop.f32.mrf.mxu0
      %v8964 = vadd.f32 %v8797, %v8963
      %v8965 = vpop.f32.mrf.mxu0
      %v8966 = vpop.f32.mrf.mxu0
      %v8967 = vadd.f32 %v8797, %v8966
      %v8968 = vpop.f32.mrf.mxu0
      %8969 = vdwg.mxu0
      %v8970 = vmax.f32 %v8924, 0.0
      %v8971 = vmax.f32 %v8927, 0.0
      %v8972 = vmax.f32 %v8932, 0.0
      %v8973 = vmax.f32 %v8935, 0.0
      %v8974 = vmax.f32 %v8940, 0.0
      %v8975 = vmax.f32 %v8943, 0.0
      %v8976 = vmax.f32 %v8948, 0.0
      %v8977 = vmax.f32 %v8951, 0.0
      %v8978 = vmax.f32 %v8956, 0.0
      %v8979 = vmax.f32 %v8959, 0.0
      %v8980 = vmax.f32 %v8964, 0.0
      %v8981 = vmax.f32 %v8967, 0.0
      %v8982 = vpack.c.bf16 %v8971, %v8970
      %v8983 = vpack.c.bf16 %v8973, %v8972
      %v8984 = vpack.c.bf16 %v8975, %v8974
      %v8985 = vpack.c.bf16 %v8977, %v8976
      %v8986 = vpack.c.bf16 %v8979, %v8978
      %v8987 = vpack.c.bf16 %v8981, %v8980
      %vm8988 = vcmask 744448
      %v8990 = vsel %vm8988, %v2595, 0
      %v8993 = vsel %vm8988, %v2597, 0
      %v8996 = vsel %vm8988, %v2599, 0
      %vm8998 = vcmask 1045504
      %v8999 = vsel %vm6588, 4294967295, 65535
      %v9000 = vsel %vm8998, %v8999, 0
      %v9002 = vand.u32 %v8987, %v9000
      %9004 = vmatprep.subr.bf16.mxu0 0
      %9005 = vmatpush1.bf16.msra.mxu0 0
      %9006 = vmatprep.subr.bf16.mxu0 0
      %9007 = vmatpush1.bf16.msra.mxu0 0
      %9008 = vmatprep.subr.bf16.mxu0 0
      %9009 = vmatpush1.bf16.msra.mxu0 %v9002
      %9010 = vmatprep.subr.bf16.mxu0 0
      %9011 = vmatpush1.bf16.msra.mxu0 %v8986
      %9012 = vmatprep.subr.bf16.mxu0 0
      %9013 = vmatpush1.bf16.msra.mxu0 %v8985
      %9014 = vmatprep.subr.bf16.mxu0 0
      %9015 = vmatpush1.bf16.msra.mxu0 %v8984
      %9016 = vmatprep.subr.bf16.mxu0 0
      %9017 = vmatpush1.bf16.msra.mxu0 %v8983
      %9018 = vmatprep.subr.bf16.mxu0 0
      %9019 = vmatpush1.bf16.msra.mxu0 %v8982
      %9020 = vmatprep.subr.bf16.mxu0 0
      %9021 = vmatpush2.bf16.msra.mxu0 0
      %9022 = vmatprep.subr.bf16.mxu0 0
      %9023 = vmatpush2.bf16.msra.mxu0 0
      %9024 = vmatprep.subr.bf16.mxu0 0
      %9025 = vmatpush2.bf16.msra.mxu0 0
      %9026 = vmatprep.subr.bf16.mxu0 0
      %9027 = vmatpush2.bf16.msra.mxu0 0
      %9028 = vmatprep.subr.bf16.mxu0 0
      %9029 = vmatpush2.bf16.msra.mxu0 0
      %9030 = vmatprep.subr.bf16.mxu0 0
      %9031 = vmatpush2.bf16.msra.mxu0 0
      %9032 = vmatprep.subr.bf16.mxu0 0
      %9033 = vmatpush2.bf16.msra.mxu0 0
      %9034 = vmatprep.subr.bf16.mxu0 0
      %9035 = vmatpush2.bf16.msra.mxu0 0
      %9036 = vmatprep.mubr.bf16.mxu0 0
      %9037 = vmatmul.mubr.bf16.gmra.mxu0 %v8990
      %v9038 = vpop.f32.mrf.mxu0
      %v9039 = vadd.f32 0.0, %v9038
      %v9040 = vpop.f32.mrf.mxu0
      %v9041 = vpop.f32.mrf.mxu0
      %v9042 = vadd.f32 0.0, %v9041
      %v9043 = vpop.f32.mrf.mxu0
      %9044 = vmatprep.mubr.bf16.mxu0 0
      %9045 = vmatmul.mubr.bf16.gmra.mxu0 %v8993
      %v9046 = vpop.f32.mrf.mxu0
      %v9047 = vadd.f32 0.0, %v9046
      %v9048 = vpop.f32.mrf.mxu0
      %v9049 = vpop.f32.mrf.mxu0
      %v9050 = vadd.f32 0.0, %v9049
      %v9051 = vpop.f32.mrf.mxu0
      %9052 = vmatprep.mubr.bf16.mxu0 0
      %9053 = vmatmul.mubr.bf16.gmra.mxu0 %v8996
      %v9054 = vpop.f32.mrf.mxu0
      %v9055 = vadd.f32 0.0, %v9054
      %v9056 = vpop.f32.mrf.mxu0
      %v9057 = vpop.f32.mrf.mxu0
      %v9058 = vadd.f32 0.0, %v9057
      %v9059 = vpop.f32.mrf.mxu0
      %9060 = vdwg.mxu0
      %v9062 = vsel %vm8988, %v2723, 0
      %v9065 = vsel %vm8988, %v2725, 0
      %v9068 = vsel %vm8988, %v2727, 0
      %9070 = vmatprep.subr.bf16.mxu0 0
      %9071 = vmatpush1.bf16.msra.mxu0 0
      %9072 = vmatprep.subr.bf16.mxu0 0
      %9073 = vmatpush1.bf16.msra.mxu0 0
      %9074 = vmatprep.subr.bf16.mxu0 0
      %9075 = vmatpush1.bf16.msra.mxu0 %v9002
      %9076 = vmatprep.subr.bf16.mxu0 0
      %9077 = vmatpush1.bf16.msra.mxu0 %v8986
      %9078 = vmatprep.subr.bf16.mxu0 0
      %9079 = vmatpush1.bf16.msra.mxu0 %v8985
      %9080 = vmatprep.subr.bf16.mxu0 0
      %9081 = vmatpush1.bf16.msra.mxu0 %v8984
      %9082 = vmatprep.subr.bf16.mxu0 0
      %9083 = vmatpush1.bf16.msra.mxu0 %v8983
      %9084 = vmatprep.subr.bf16.mxu0 0
      %9085 = vmatpush1.bf16.msra.mxu0 %v8982
      %9086 = vmatprep.subr.bf16.mxu0 0
      %9087 = vmatpush2.bf16.msra.mxu0 0
      %9088 = vmatprep.subr.bf16.mxu0 0
      %9089 = vmatpush2.bf16.msra.mxu0 0
      %9090 = vmatprep.subr.bf16.mxu0 0
      %9091 = vmatpush2.bf16.msra.mxu0 0
      %9092 = vmatprep.subr.bf16.mxu0 0
      %9093 = vmatpush2.bf16.msra.mxu0 0
      %9094 = vmatprep.subr.bf16.mxu0 0
      %9095 = vmatpush2.bf16.msra.mxu0 0
      %9096 = vmatprep.subr.bf16.mxu0 0
      %9097 = vmatpush2.bf16.msra.mxu0 0
      %9098 = vmatprep.subr.bf16.mxu0 0
      %9099 = vmatpush2.bf16.msra.mxu0 0
      %9100 = vmatprep.subr.bf16.mxu0 0
      %9101 = vmatpush2.bf16.msra.mxu0 0
      %9102 = vmatprep.mubr.bf16.mxu0 0
      %9103 = vmatmul.mubr.bf16.gmra.mxu0 %v9062
      %v9104 = vpop.f32.mrf.mxu0
      %v9105 = vadd.f32 0.0, %v9104
      %v9106 = vpop.f32.mrf.mxu0
      %v9107 = vpop.f32.mrf.mxu0
      %v9108 = vadd.f32 0.0, %v9107
      %v9109 = vpop.f32.mrf.mxu0
      %9110 = vmatprep.mubr.bf16.mxu0 0
      %9111 = vmatmul.mubr.bf16.gmra.mxu0 %v9065
      %v9112 = vpop.f32.mrf.mxu0
      %v9113 = vadd.f32 0.0, %v9112
      %v9114 = vpop.f32.mrf.mxu0
      %v9115 = vpop.f32.mrf.mxu0
      %v9116 = vadd.f32 0.0, %v9115
      %v9117 = vpop.f32.mrf.mxu0
      %9118 = vmatprep.mubr.bf16.mxu0 0
      %9119 = vmatmul.mubr.bf16.gmra.mxu0 %v9068
      %v9120 = vpop.f32.mrf.mxu0
      %v9121 = vadd.f32 0.0, %v9120
      %v9122 = vpop.f32.mrf.mxu0
      %v9123 = vpop.f32.mrf.mxu0
      %v9124 = vadd.f32 0.0, %v9123
      %v9125 = vpop.f32.mrf.mxu0
      %9126 = vdwg.mxu0
      %v9127 = vmax.f32 %v9039, %v9105
      %v9128 = vmax.f32 %v9042, %v9108
      %v9129 = vmax.f32 %v9047, %v9113
      %v9130 = vmax.f32 %v9050, %v9116
      %v9131 = vmax.f32 %v9055, %v9121
      %v9132 = vmax.f32 %v9058, %v9124
      %v9133 = vpack.c.bf16 %v9128, %v9127
      %v9134 = vpack.c.bf16 %v9130, %v9129
      %v9135 = vpack.c.bf16 %v9132, %v9131
      %v9139 = vunpack.c.l.b16 %v9133
      %v9140 = vunpack.c.h.b16 %v9133
      %v9141 = vunpack.c.l.b16 %v9134
      %v9142 = vunpack.c.h.b16 %v9134
      %v9143 = vunpack.c.l.b16 %v9135
      %v9144 = vunpack.c.h.b16 %v9135
      %v9145 = vpack.c.b16 %v9139, %v9139
      %v9146 = vpack.c.b16 %v9140, %v9140
      %v9147 = vpack.c.b16 %v9141, %v9141
      %v9148 = vpack.c.b16 %v9142, %v9142
      %v9149 = vpack.c.b16 %v9143, %v9143
      %v9150 = vpack.c.b16 %v9144, %v9144
      %vm9157 = vcmask 257024
      %9158 = vst.msk [vmem:[%s710] sm:$0xf] %vm9157, %v9145
      %9159 = vst.msk [vmem:[%s710 + $0x4] sm:$0xf] %vm9157, %v9146
      %9160 = vst.msk [vmem:[%s710 + $0x8] sm:$0xf] %vm9157, %v9147
      %9161 = vst.msk [vmem:[%s710 + $0xc] sm:$0xf] %vm9157, %v9148
      %9162 = vst.msk [vmem:[%s710 + $0x10] sm:$0xf] %vm9157, %v9149
      %vm9163 = vcmask 256000
      %vm9164 = vsmask.f32 2304
      %vm9165 = vmand %vm9163, %vm9164
      %v9166 = vld [vmem:[%s710 + $0x14] sm:$0x7]
      %v9167 = vsel %vm9165, %v9150, %v9166
      %9168 = vst [vmem:[%s710 + $0x14] sm:$0x7] %v9167
      %p9169 = scmp.lt.s32.totalorder %s34, 1
      %s9170 = scalar_select %p9169, %s34, 1
      %s9171 = smul.addr %s9170, 6
      %s9172 = smul.addr %s9171, 4
      %s9173 = scalar_lea.vmem %s23, %s9172
      // Predicated region
      $region113: #{forward.2} parent=111 // pred_check
        %p9174 = pneg %p540
      $region114: #{forward.2} parent=111 // pred_check_branch
        %9176 = sbr.rel (%p9174) target = $region116
      $region115: #{forward.2} parent=111 // pred_region
        _
      $region116: #{forward.2} parent=111 // pred_fallthru
        _
    $region112: #{forward.2} parent=5 // pred_fallthru
      _
    %p9177 = scmp.le.s32.totalorder 2, %s29
    // Predicated region
    $region117: #{forward.2} parent=5 // pred_check
      %p9178 = pneg %p9177
    $region118: #{forward.2} parent=5 // pred_check_branch
      %9180 = sbr.rel (%p9178) target = $region120
    $region119: #{forward.2} parent=5 // pred_region
      %s9181 = ssub.s32 %s29, 2
      // Predicated region
      $region121: #{forward.2} parent=119 // pred_check
        %p9182 = pneg %p546
      $region122: #{forward.2} parent=119 // pred_check_branch
        %9184 = sbr.rel (%p9182) target = $region124
      $region123: #{forward.2} parent=119 // pred_region
        %p9185 = scmp.lt.s32.totalorder %s35, 1
        %s9186 = scalar_select %p9185, %s35, 1
        %s9187 = smul.addr %s9186, 6
        %s9188 = smul.addr %s9187, 4
        %s9189 = scalar_lea.vmem %s23, %s9188
      $region124: #{forward.2} parent=119 // pred_fallthru
        _
    $region120: #{forward.2} parent=5 // pred_fallthru
      _
  $region6: #{forward.2} parent=0 // loop_footer
    %s33 = sadd.s32 1, %s29
  $region7: #{forward.2} parent=0 // loop_footer_branch
    %28 = sbr.rel target = $region3
  $region8: #{forward.2} parent=0 // loop_exit
    _

</llo_original>
